<compile_context>
chip_gen: v6e
topology: v6e:2x2x1
jax: 0.10.0
libtpu: 0.0.40
codegen_flags: <defaults>
</compile_context>

<pallas_src>
import numpy as np
import jax
import jax.numpy as jnp
from jax import lax
from jax.experimental import pallas as pl
from jax.experimental.pallas import tpu as pltpu


# ------------------------------------------------------------------ Pallas kernel
def make_kernel(H2, W2, Cenc, Cdec, Cout):
    HW2 = H2 * W2

    def kernel(x1_ref, x2_ref,
               s1_ref, b1_ref, s2_ref, b2_ref, s3_ref, b3_ref,
               wenc_ref, benc_ref, wdec_ref, bdec_ref,
               wattn_ref, battn_ref,
               out_ref,
               penc_ref, col1_ref, pdec_ref, col2_ref):
        bf16 = jnp.bfloat16

        # ---- zero ONLY the 1-pixel halo (interior is fully overwritten below).
        penc_ref[:, 0:1, :, :] = jnp.zeros((4, 1, W2 + 2, Cenc), bf16)
        penc_ref[:, H2 + 1:H2 + 2, :, :] = jnp.zeros((4, 1, W2 + 2, Cenc), bf16)
        penc_ref[:, :, 0:1, :] = jnp.zeros((4, H2 + 2, 1, Cenc), bf16)
        penc_ref[:, :, W2 + 1:W2 + 2, :] = jnp.zeros((4, H2 + 2, 1, Cenc), bf16)
        pdec_ref[0:1, :, :] = jnp.zeros((1, W2 + 2, Cdec), bf16)
        pdec_ref[H2 + 1:H2 + 2, :, :] = jnp.zeros((1, W2 + 2, Cdec), bf16)
        pdec_ref[:, 0:1, :] = jnp.zeros((H2 + 2, 1, Cdec), bf16)
        pdec_ref[:, W2 + 1:W2 + 2, :] = jnp.zeros((H2 + 2, 1, Cdec), bf16)

        # ================= encoder branch: BN+ReLU, conv3x3 + 2x2 maxpool =======
        # x1 arrives space-to-depth: row (a*2+b)*H2 + y  <->  pixel (2y+a, 2x+b)
        x1 = x1_ref[0]                                            # (4*H2, W2, Cenc) f32
        a1 = jnp.maximum(x1 * s1_ref[...] + b1_ref[...], 0.0)     # BN + ReLU (f32 VPU)
        a1b = a1.astype(bf16)
        for pp in range(4):                                       # fill padded planes
            penc_ref[pp, 1:H2 + 1, 1:W2 + 1, :] = a1b[pp * H2:(pp + 1) * H2]

        # im2col with the 4 pooling phases stacked along the leading dim.
        # Taps are channel-contiguous on the last (lane) dim -> no reshape per tap.
        for p in range(2):
            for q in range(2):
                for ky in range(3):
                    for kx in range(3):
                        u, v = p + ky - 1, q + kx - 1
                        au, du = u % 2, u // 2      # row parity plane / shift (ints)
                        av, dv = v % 2, v // 2      # col parity plane / shift
                        win = penc_ref[au * 2 + av,
                                       du + 1:du + 1 + H2,
                                       dv + 1:dv + 1 + W2, :]     # (H2, W2, Cenc) bf16
                        c0 = (3 * ky + kx) * Cenc
                        col1_ref[2 * p + q, :, :, c0:c0 + Cenc] = win

        # one MXU matmul for all 4 pooling phases (bf16 operands, f32 accumulate)
        c1 = col1_ref[...].reshape(4 * HW2, 9 * Cenc)             # last dim kept: cheap
        e4 = jnp.dot(c1, wenc_ref[...], preferred_element_type=jnp.float32)
        e4 = e4.reshape(4, HW2, Cout)
        # bias after the max is valid only because it is constant over the 2x2
        # pooled window (per-channel conv bias) -- keep this invariant.
        pooled = jnp.maximum(jnp.maximum(e4[0], e4[1]),
                             jnp.maximum(e4[2], e4[3])) + benc_ref[...]   # (HW2, Cout)

        # ================= decoder branch: BN+ReLU, conv3x3 =====================
        x2 = x2_ref[0]                                            # (H2, W2, Cdec) f32
        a2 = jnp.maximum(x2 * s2_ref[...] + b2_ref[...], 0.0)
        pdec_ref[1:H2 + 1, 1:W2 + 1, :] = a2.astype(bf16)
        for ky in range(3):
            for kx in range(3):
                win = pdec_ref[ky:ky + H2, kx:kx + W2, :]         # (H2, W2, Cdec) bf16
                c0 = (3 * ky + kx) * Cdec
                col2_ref[:, :, c0:c0 + Cdec] = win
        c2v = col2_ref[...].reshape(HW2, 9 * Cdec)
        d = jnp.dot(c2v, wdec_ref[...],
                    preferred_element_type=jnp.float32) + bdec_ref[...]   # (HW2, Cout)

        # ================= attention head + gate ================================
        h = jnp.maximum((pooled + d) * s3_ref[...] + b3_ref[...], 0.0)    # (HW2, Cout)
        attn = jnp.sum(h * wattn_ref[...], axis=1, keepdims=True) + battn_ref[...]
        # gate in spatial layout: only the lane-width-1 attn map is reshaped.
        out_ref[0] = (attn.reshape(H2, W2, 1) * x2).astype(out_ref.dtype)

    return kernel


# ------------------------------------------------------------------ VMEM sizing
def _padded_bytes(shape, dtype):
    """Lane/sublane-padded VMEM footprint of one buffer (>=2D shapes)."""
    item = jnp.dtype(dtype).itemsize
    sub = 8 * (4 // item)                 # 8 rows per sublane tile (f32), 16 (bf16)
    lead = 1
    for dd in shape[:-2]:
        lead *= dd
    s = -(-shape[-2] // sub) * sub
    l = -(-shape[-1] // 128) * 128
    return lead * s * l * item


# ------------------------------------------------------------------ wrapper (glue)
def attention_block_pallas(x1_nchw, x2_nchw, p):
    N, Cenc, H1, W1 = x1_nchw.shape
    _, Cdec, H2, W2 = x2_nchw.shape
    Cout = p["w_enc"].shape[0]
    assert H1 == 2 * H2 and W1 == 2 * W2 and H1 % 2 == 0 and W1 % 2 == 0
    HW2 = H2 * W2

    # NCHW -> space-to-depth parity planes (N, 4*H2, W2, Cenc) in one pass:
    #   row (a*2+b)*H2 + y holds original pixel row 2y+a; column x holds col 2x+b.
    # TODO(synk): if up/downstream layers can consume NHWC, drop these layout
    #             passes entirely (each is a full HBM round trip).
    x1_s2d = (x1_nchw.reshape(N, Cenc, H2, 2, W2, 2)
              .transpose(0, 3, 5, 2, 4, 1)
              .reshape(N, 4 * H2, W2, Cenc))
    x2_nhwc = jnp.transpose(x2_nchw, (0, 2, 3, 1))               # (N, H2, W2, Cdec)

    # conv weights (Cout, Cin, 3, 3) -> (9*Cin, Cout), rows ordered (ky, kx, cin);
    # bf16 MXU operands (accumulation stays f32 in-kernel).
    wenc = jnp.transpose(p["w_enc"], (2, 3, 1, 0)).reshape(9 * Cenc, Cout).astype(jnp.bfloat16)
    wdec = jnp.transpose(p["w_dec"], (2, 3, 1, 0)).reshape(9 * Cdec, Cout).astype(jnp.bfloat16)
    wattn = p["w_attn"].reshape(1, Cout)

    args = (x1_s2d, x2_nhwc,
            p["scale1"].reshape(1, Cenc), p["shift1"].reshape(1, Cenc),
            p["scale2"].reshape(1, Cdec), p["shift2"].reshape(1, Cdec),
            p["scale3"].reshape(1, Cout), p["shift3"].reshape(1, Cout),
            wenc, p["b_enc"].reshape(1, Cout),
            wdec, p["b_dec"].reshape(1, Cout),
            wattn, p["b_attn"].reshape(1, 1))

    batch4 = lambda n: (n, 0, 0, 0)
    c2 = lambda n: (0, 0)
    in_block_shapes = [
        ((1, 4 * H2, W2, Cenc), jnp.float32),
        ((1, H2, W2, Cdec), jnp.float32),
        ((1, Cenc), jnp.float32), ((1, Cenc), jnp.float32),
        ((1, Cdec), jnp.float32), ((1, Cdec), jnp.float32),
        ((1, Cout), jnp.float32), ((1, Cout), jnp.float32),
        ((9 * Cenc, Cout), jnp.bfloat16), ((1, Cout), jnp.float32),
        ((9 * Cdec, Cout), jnp.bfloat16), ((1, Cout), jnp.float32),
        ((1, Cout), jnp.float32), ((1, 1), jnp.float32),
    ]
    in_specs = [
        pl.BlockSpec(in_block_shapes[0][0], batch4),
        pl.BlockSpec(in_block_shapes[1][0], batch4),
    ] + [pl.BlockSpec(s, c2) for s, _ in in_block_shapes[2:]]
    out_specs = pl.BlockSpec((1, H2, W2, Cdec), batch4)

    scratch_defs = [
        ((4, H2 + 2, W2 + 2, Cenc), jnp.bfloat16),   # padded enc parity planes
        ((4, H2, W2, 9 * Cenc), jnp.bfloat16),       # enc im2col (phases stacked)
        ((H2 + 2, W2 + 2, Cdec), jnp.bfloat16),      # padded dec activations
        ((H2, W2, 9 * Cdec), jnp.bfloat16),          # dec im2col
    ]
    scratch_shapes = [pltpu.VMEM(s, d) for s, d in scratch_defs]

    # derive the VMEM budget from actual lane-padded sizes: scratch buffers +
    # double-buffered input/output blocks + headroom.  (v7x physical = 64 MiB.)
    est = (sum(_padded_bytes(s, d) for s, d in scratch_defs)
           + 2 * sum(_padded_bytes(s, d) for s, d in in_block_shapes)
           + 2 * _padded_bytes((1, H2, W2, Cdec), jnp.float32))
    vmem_limit = int(min(64 * 1024 * 1024, max(8 * 1024 * 1024, 1.5 * est)))

    fn = pl.pallas_call(
        make_kernel(H2, W2, Cenc, Cdec, Cout),
        grid=(N,),
        in_specs=in_specs,
        out_specs=out_specs,
        out_shape=jax.ShapeDtypeStruct((N, H2, W2, Cdec), jnp.float32),
        scratch_shapes=scratch_shapes,
        compiler_params=pltpu.CompilerParams(
            dimension_semantics=("parallel",),
            vmem_limit_bytes=vmem_limit,
        ),
    )
    outf = fn(*args)                                             # (N, H2, W2, Cdec)
    return jnp.transpose(outf, (0, 3, 1, 2))                     # -> NCHW


# ------------------------------------------------------------------ pure-JAX reference
def attention_block_ref(x1, x2, p):
    def bn(x, s, b):
        return x * s[None, :, None, None] + b[None, :, None, None]

    a1 = jax.nn.relu(bn(x1, p["scale1"], p["shift1"]))
    e = lax.conv_general_dilated(a1, p["w_enc"], (1, 1), ((1, 1), (1, 1)),
                                 dimension_numbers=("NCHW", "OIHW", "NCHW"))
    e = e + p["b_enc"][None, :, None, None]
    e = lax.reduce_window(e, -jnp.inf, lax.max, (1, 1, 2, 2), (1, 1, 2, 2), "VALID")

    a2 = jax.nn.relu(bn(x2, p["scale2"], p["shift2"]))
    d = lax.conv_general_dilated(a2, p["w_dec"], (1, 1), ((1, 1), (1, 1)),
                                 dimension_numbers=("NCHW", "OIHW", "NCHW"))
    d = d + p["b_dec"][None, :, None, None]

    h = jax.nn.relu(bn(e + d, p["scale3"], p["shift3"]))
    Cout = p["w_enc"].shape[0]
    attn = jnp.einsum("nchw,oc->nohw", h, p["w_attn"].reshape(1, Cout))
    attn = attn + p["b_attn"][None, :, None, None]
    return attn * x2


# ------------------------------------------------------------------ main
if __name__ == "__main__":
    N, Cenc, Cdec, Cout = 2, 4, 6, 8
    H1 = W1 = 16
    H2 = W2 = H1 // 2

    key = jax.random.PRNGKey(0)
    ks = jax.random.split(key, 20)

    x1 = jax.random.normal(ks[0], (N, Cenc, H1, W1), jnp.float32)
    x2 = jax.random.normal(ks[1], (N, Cdec, H2, W2), jnp.float32)

    def bn_params(kg, kb, km, kv, C):
        gamma = jax.random.uniform(kg, (C,), jnp.float32, 0.5, 1.5)
        beta = 0.1 * jax.random.normal(kb, (C,), jnp.float32)
        mean = 0.1 * jax.random.normal(km, (C,), jnp.float32)
        var = jax.random.uniform(kv, (C,), jnp.float32, 0.5, 1.5)
        scale = gamma / jnp.sqrt(var + 1e-5)
        shift = beta - mean * scale
        return scale, shift

    scale1, shift1 = bn_params(ks[2], ks[3], ks[4], ks[5], Cenc)
    scale2, shift2 = bn_params(ks[6], ks[7], ks[8], ks[9], Cdec)
    scale3, shift3 = bn_params(ks[10], ks[11], ks[12], ks[13], Cout)

    params = dict(
        scale1=scale1, shift1=shift1,
        scale2=scale2, shift2=shift2,
        scale3=scale3, shift3=shift3,
        w_enc=0.1 * jax.random.normal(ks[14], (Cout, Cenc, 3, 3), jnp.float32),
        b_enc=0.1 * jax.random.normal(ks[15], (Cout,), jnp.float32),
        w_dec=0.1 * jax.random.normal(ks[16], (Cout, Cdec, 3, 3), jnp.float32),
        b_dec=0.1 * jax.random.normal(ks[17], (Cout,), jnp.float32),
        w_attn=0.1 * jax.random.normal(ks[18], (1, Cout, 1, 1), jnp.float32),
        b_attn=0.1 * jax.random.normal(ks[19], (1,), jnp.float32),
    )

    out = attention_block_pallas(x1, x2, params)
    out = jax.block_until_ready(out)

    ref = jax.block_until_ready(attention_block_ref(x1, x2, params))
    np.testing.assert_allclose(np.asarray(out), np.asarray(ref), rtol=2e-2, atol=2e-2)
    assert out.shape == (N, Cdec, H2, W2)

    print("KERNEL_OK")
</pallas_src>

<mosaic_0001>
module attributes {stable_mosaic.version = 11 : i64} {
  func.func @kernel(%arg0: i32, %arg1: memref<1x32x8x4xf32, #tpu.memory_space<vmem>>, %arg2: memref<1x8x8x6xf32, #tpu.memory_space<vmem>>, %arg3: memref<1x4xf32, #tpu.memory_space<vmem>>, %arg4: memref<1x4xf32, #tpu.memory_space<vmem>>, %arg5: memref<1x6xf32, #tpu.memory_space<vmem>>, %arg6: memref<1x6xf32, #tpu.memory_space<vmem>>, %arg7: memref<1x8xf32, #tpu.memory_space<vmem>>, %arg8: memref<1x8xf32, #tpu.memory_space<vmem>>, %arg9: memref<36x8xbf16, #tpu.memory_space<vmem>>, %arg10: memref<1x8xf32, #tpu.memory_space<vmem>>, %arg11: memref<54x8xbf16, #tpu.memory_space<vmem>>, %arg12: memref<1x8xf32, #tpu.memory_space<vmem>>, %arg13: memref<1x8xf32, #tpu.memory_space<vmem>>, %arg14: memref<1x1xf32, #tpu.memory_space<vmem>>, %arg15: memref<1x8x8x6xf32, #tpu.memory_space<vmem>>, %arg16: memref<4x10x10x4xbf16, #tpu.memory_space<vmem>>, %arg17: memref<4x8x8x36xbf16, #tpu.memory_space<vmem>>, %arg18: memref<10x10x6xbf16, #tpu.memory_space<vmem>>, %arg19: memref<8x8x54xbf16, #tpu.memory_space<vmem>>) attributes {dimension_semantics = [#tpu.dimension_semantics<parallel>], iteration_bounds = array<i64: 2>, scalar_prefetch = 0 : i64, scratch_operands = 4 : i64, tpu.core_type = #tpu.core_type<tc>, window_params = [{transform_indices = @transform_0, window_bounds = array<i64: 1, 32, 8, 4>}, {transform_indices = @transform_1, window_bounds = array<i64: 1, 8, 8, 6>}, {pipeline_mode = #tpu.pipeline_mode<synchronous>, transform_indices = @transform_2, window_bounds = array<i64: 1, 4>}, {pipeline_mode = #tpu.pipeline_mode<synchronous>, transform_indices = @transform_3, window_bounds = array<i64: 1, 4>}, {pipeline_mode = #tpu.pipeline_mode<synchronous>, transform_indices = @transform_4, window_bounds = array<i64: 1, 6>}, {pipeline_mode = #tpu.pipeline_mode<synchronous>, transform_indices = @transform_5, window_bounds = array<i64: 1, 6>}, {pipeline_mode = #tpu.pipeline_mode<synchronous>, transform_indices = @transform_6, window_bounds = array<i64: 1, 8>}, {pipeline_mode = #tpu.pipeline_mode<synchronous>, transform_indices = @transform_7, window_bounds = array<i64: 1, 8>}, {pipeline_mode = #tpu.pipeline_mode<synchronous>, transform_indices = @transform_8, window_bounds = array<i64: 36, 8>}, {pipeline_mode = #tpu.pipeline_mode<synchronous>, transform_indices = @transform_9, window_bounds = array<i64: 1, 8>}, {pipeline_mode = #tpu.pipeline_mode<synchronous>, transform_indices = @transform_10, window_bounds = array<i64: 54, 8>}, {pipeline_mode = #tpu.pipeline_mode<synchronous>, transform_indices = @transform_11, window_bounds = array<i64: 1, 8>}, {pipeline_mode = #tpu.pipeline_mode<synchronous>, transform_indices = @transform_12, window_bounds = array<i64: 1, 8>}, {pipeline_mode = #tpu.pipeline_mode<synchronous>, transform_indices = @transform_13, window_bounds = array<i64: 1, 1>}, {transform_indices = @transform_14, window_bounds = array<i64: 1, 8, 8, 6>}]} {
    %cst = arith.constant 0.000000e+00 : bf16
    %0 = vector.broadcast %cst : bf16 to vector<4x1x10x4xbf16>
    %c0 = arith.constant 0 : index
    %c0_0 = arith.constant 0 : index
    %c0_1 = arith.constant 0 : index
    %c0_2 = arith.constant 0 : index
    %1 = vector.load %arg16[%c0, %c0_0, %c0_1, %c0_2] : memref<4x10x10x4xbf16, #tpu.memory_space<vmem>>, vector<4x1x10x4xbf16>
    tpu.vector_store %arg16[%c0, %c0_0, %c0_1, %c0_2], %0 {strides = array<i32>} : memref<4x10x10x4xbf16, #tpu.memory_space<vmem>>, vector<4x1x10x4xbf16>,
    %cst_3 = arith.constant 0.000000e+00 : bf16
    %2 = vector.broadcast %cst_3 : bf16 to vector<4x1x10x4xbf16>
    %c0_4 = arith.constant 0 : index
    %c9 = arith.constant 9 : index
    %c0_5 = arith.constant 0 : index
    %c0_6 = arith.constant 0 : index
    %3 = vector.load %arg16[%c0_4, %c9, %c0_5, %c0_6] : memref<4x10x10x4xbf16, #tpu.memory_space<vmem>>, vector<4x1x10x4xbf16>
    tpu.vector_store %arg16[%c0_4, %c9, %c0_5, %c0_6], %2 {strides = array<i32>} : memref<4x10x10x4xbf16, #tpu.memory_space<vmem>>, vector<4x1x10x4xbf16>,
    %cst_7 = arith.constant 0.000000e+00 : bf16
    %4 = vector.broadcast %cst_7 : bf16 to vector<4x10x1x4xbf16>
    %c0_8 = arith.constant 0 : index
    %c0_9 = arith.constant 0 : index
    %c0_10 = arith.constant 0 : index
    %c0_11 = arith.constant 0 : index
    %5 = vector.load %arg16[%c0_8, %c0_9, %c0_10, %c0_11] : memref<4x10x10x4xbf16, #tpu.memory_space<vmem>>, vector<4x10x1x4xbf16>
    tpu.vector_store %arg16[%c0_8, %c0_9, %c0_10, %c0_11], %4 {strides = array<i32>} : memref<4x10x10x4xbf16, #tpu.memory_space<vmem>>, vector<4x10x1x4xbf16>,
    %cst_12 = arith.constant 0.000000e+00 : bf16
    %6 = vector.broadcast %cst_12 : bf16 to vector<4x10x1x4xbf16>
    %c0_13 = arith.constant 0 : index
    %c0_14 = arith.constant 0 : index
    %c9_15 = arith.constant 9 : index
    %c0_16 = arith.constant 0 : index
    %7 = vector.load %arg16[%c0_13, %c0_14, %c9_15, %c0_16] : memref<4x10x10x4xbf16, #tpu.memory_space<vmem>>, vector<4x10x1x4xbf16>
    tpu.vector_store %arg16[%c0_13, %c0_14, %c9_15, %c0_16], %6 {strides = array<i32>} : memref<4x10x10x4xbf16, #tpu.memory_space<vmem>>, vector<4x10x1x4xbf16>,
    %cst_17 = arith.constant 0.000000e+00 : bf16
    %8 = vector.broadcast %cst_17 : bf16 to vector<1x10x6xbf16>
    %c0_18 = arith.constant 0 : index
    %c0_19 = arith.constant 0 : index
    %c0_20 = arith.constant 0 : index
    %9 = vector.load %arg18[%c0_18, %c0_19, %c0_20] : memref<10x10x6xbf16, #tpu.memory_space<vmem>>, vector<1x10x6xbf16>
    tpu.vector_store %arg18[%c0_18, %c0_19, %c0_20], %8 {strides = array<i32>} : memref<10x10x6xbf16, #tpu.memory_space<vmem>>, vector<1x10x6xbf16>,
    %cst_21 = arith.constant 0.000000e+00 : bf16
    %10 = vector.broadcast %cst_21 : bf16 to vector<1x10x6xbf16>
    %c9_22 = arith.constant 9 : index
    %c0_23 = arith.constant 0 : index
    %c0_24 = arith.constant 0 : index
    %11 = vector.load %arg18[%c9_22, %c0_23, %c0_24] : memref<10x10x6xbf16, #tpu.memory_space<vmem>>, vector<1x10x6xbf16>
    tpu.vector_store %arg18[%c9_22, %c0_23, %c0_24], %10 {strides = array<i32>} : memref<10x10x6xbf16, #tpu.memory_space<vmem>>, vector<1x10x6xbf16>,
    %cst_25 = arith.constant 0.000000e+00 : bf16
    %12 = vector.broadcast %cst_25 : bf16 to vector<10x1x6xbf16>
    %c0_26 = arith.constant 0 : index
    %c0_27 = arith.constant 0 : index
    %c0_28 = arith.constant 0 : index
    %13 = vector.load %arg18[%c0_26, %c0_27, %c0_28] : memref<10x10x6xbf16, #tpu.memory_space<vmem>>, vector<10x1x6xbf16>
    tpu.vector_store %arg18[%c0_26, %c0_27, %c0_28], %12 {strides = array<i32>} : memref<10x10x6xbf16, #tpu.memory_space<vmem>>, vector<10x1x6xbf16>,
    %cst_29 = arith.constant 0.000000e+00 : bf16
    %14 = vector.broadcast %cst_29 : bf16 to vector<10x1x6xbf16>
    %c0_30 = arith.constant 0 : index
    %c9_31 = arith.constant 9 : index
    %c0_32 = arith.constant 0 : index
    %15 = vector.load %arg18[%c0_30, %c9_31, %c0_32] : memref<10x10x6xbf16, #tpu.memory_space<vmem>>, vector<10x1x6xbf16>
    tpu.vector_store %arg18[%c0_30, %c9_31, %c0_32], %14 {strides = array<i32>} : memref<10x10x6xbf16, #tpu.memory_space<vmem>>, vector<10x1x6xbf16>,
    %c0_33 = arith.constant 0 : index
    %c0_34 = arith.constant 0 : index
    %c0_35 = arith.constant 0 : index
    %c0_36 = arith.constant 0 : index
    %16 = vector.load %arg1[%c0_33, %c0_34, %c0_35, %c0_36] : memref<1x32x8x4xf32, #tpu.memory_space<vmem>>, vector<1x32x8x4xf32>
    %17 = vector.shape_cast %16 : vector<1x32x8x4xf32> to vector<32x8x4xf32>
    %c0_37 = arith.constant 0 : index
    %c0_38 = arith.constant 0 : index
    %18 = vector.load %arg3[%c0_37, %c0_38] : memref<1x4xf32, #tpu.memory_space<vmem>>, vector<1x4xf32>
    %19 = vector.shape_cast %18 : vector<1x4xf32> to vector<1x1x4xf32>
    %20 = vector.broadcast %19 : vector<1x1x4xf32> to vector<32x8x4xf32>
    %21 = arith.mulf %17, %20 : vector<32x8x4xf32>
    %c0_39 = arith.constant 0 : index
    %c0_40 = arith.constant 0 : index
    %22 = vector.load %arg4[%c0_39, %c0_40] : memref<1x4xf32, #tpu.memory_space<vmem>>, vector<1x4xf32>
    %23 = vector.shape_cast %22 : vector<1x4xf32> to vector<1x1x4xf32>
    %24 = vector.broadcast %23 : vector<1x1x4xf32> to vector<32x8x4xf32>
    %25 = arith.addf %21, %24 : vector<32x8x4xf32>
    %cst_41 = arith.constant 0.000000e+00 : f32
    %26 = vector.broadcast %cst_41 : f32 to vector<32x8x4xf32>
    %27 = arith.maximumf %25, %26 : vector<32x8x4xf32>
    %28 = arith.truncf %27 : vector<32x8x4xf32> to vector<32x8x4xbf16>
    %29 = vector.extract_strided_slice %28 {offsets = [0, 0, 0], sizes = [8, 8, 4], strides = [1, 1, 1]} : vector<32x8x4xbf16> to vector<8x8x4xbf16>
    %c0_42 = arith.constant 0 : index
    %c1 = arith.constant 1 : index
    %c1_43 = arith.constant 1 : index
    %c0_44 = arith.constant 0 : index
    %30 = vector.load %arg16[%c0_42, %c1, %c1_43, %c0_44] : memref<4x10x10x4xbf16, #tpu.memory_space<vmem>>, vector<1x8x8x4xbf16>
    %31 = vector.shape_cast %30 : vector<1x8x8x4xbf16> to vector<8x8x4xbf16>
    %32 = vector.shape_cast %29 : vector<8x8x4xbf16> to vector<1x8x8x4xbf16>
    tpu.vector_store %arg16[%c0_42, %c1, %c1_43, %c0_44], %32 {strides = array<i32>} : memref<4x10x10x4xbf16, #tpu.memory_space<vmem>>, vector<1x8x8x4xbf16>,
    %33 = vector.extract_strided_slice %28 {offsets = [8, 0, 0], sizes = [8, 8, 4], strides = [1, 1, 1]} : vector<32x8x4xbf16> to vector<8x8x4xbf16>
    %c1_45 = arith.constant 1 : index
    %c1_46 = arith.constant 1 : index
    %c1_47 = arith.constant 1 : index
    %c0_48 = arith.constant 0 : index
    %34 = vector.load %arg16[%c1_45, %c1_46, %c1_47, %c0_48] : memref<4x10x10x4xbf16, #tpu.memory_space<vmem>>, vector<1x8x8x4xbf16>
    %35 = vector.shape_cast %34 : vector<1x8x8x4xbf16> to vector<8x8x4xbf16>
    %36 = vector.shape_cast %33 : vector<8x8x4xbf16> to vector<1x8x8x4xbf16>
    tpu.vector_store %arg16[%c1_45, %c1_46, %c1_47, %c0_48], %36 {strides = array<i32>} : memref<4x10x10x4xbf16, #tpu.memory_space<vmem>>, vector<1x8x8x4xbf16>,
    %37 = vector.extract_strided_slice %28 {offsets = [16, 0, 0], sizes = [8, 8, 4], strides = [1, 1, 1]} : vector<32x8x4xbf16> to vector<8x8x4xbf16>
    %c2 = arith.constant 2 : index
    %c1_49 = arith.constant 1 : index
    %c1_50 = arith.constant 1 : index
    %c0_51 = arith.constant 0 : index
    %38 = vector.load %arg16[%c2, %c1_49, %c1_50, %c0_51] : memref<4x10x10x4xbf16, #tpu.memory_space<vmem>>, vector<1x8x8x4xbf16>
    %39 = vector.shape_cast %38 : vector<1x8x8x4xbf16> to vector<8x8x4xbf16>
    %40 = vector.shape_cast %37 : vector<8x8x4xbf16> to vector<1x8x8x4xbf16>
    tpu.vector_store %arg16[%c2, %c1_49, %c1_50, %c0_51], %40 {strides = array<i32>} : memref<4x10x10x4xbf16, #tpu.memory_space<vmem>>, vector<1x8x8x4xbf16>,
    %41 = vector.extract_strided_slice %28 {offsets = [24, 0, 0], sizes = [8, 8, 4], strides = [1, 1, 1]} : vector<32x8x4xbf16> to vector<8x8x4xbf16>
    %c3 = arith.constant 3 : index
    %c1_52 = arith.constant 1 : index
    %c1_53 = arith.constant 1 : index
    %c0_54 = arith.constant 0 : index
    %42 = vector.load %arg16[%c3, %c1_52, %c1_53, %c0_54] : memref<4x10x10x4xbf16, #tpu.memory_space<vmem>>, vector<1x8x8x4xbf16>
    %43 = vector.shape_cast %42 : vector<1x8x8x4xbf16> to vector<8x8x4xbf16>
    %44 = vector.shape_cast %41 : vector<8x8x4xbf16> to vector<1x8x8x4xbf16>
    tpu.vector_store %arg16[%c3, %c1_52, %c1_53, %c0_54], %44 {strides = array<i32>} : memref<4x10x10x4xbf16, #tpu.memory_space<vmem>>, vector<1x8x8x4xbf16>,
    %c3_55 = arith.constant 3 : index
    %c0_56 = arith.constant 0 : index
    %c0_57 = arith.constant 0 : index
    %c0_58 = arith.constant 0 : index
    %45 = vector.load %arg16[%c3_55, %c0_56, %c0_57, %c0_58] : memref<4x10x10x4xbf16, #tpu.memory_space<vmem>>, vector<1x8x8x4xbf16>
    %46 = vector.shape_cast %45 : vector<1x8x8x4xbf16> to vector<8x8x4xbf16>
    %c0_59 = arith.constant 0 : index
    %c0_60 = arith.constant 0 : index
    %c0_61 = arith.constant 0 : index
    %c0_62 = arith.constant 0 : index
    %47 = vector.load %arg17[%c0_59, %c0_60, %c0_61, %c0_62] : memref<4x8x8x36xbf16, #tpu.memory_space<vmem>>, vector<1x8x8x4xbf16>
    %48 = vector.shape_cast %47 : vector<1x8x8x4xbf16> to vector<8x8x4xbf16>
    %49 = vector.shape_cast %46 : vector<8x8x4xbf16> to vector<1x8x8x4xbf16>
    tpu.vector_store %arg17[%c0_59, %c0_60, %c0_61, %c0_62], %49 {strides = array<i32>} : memref<4x8x8x36xbf16, #tpu.memory_space<vmem>>, vector<1x8x8x4xbf16>,
    %c2_63 = arith.constant 2 : index
    %c0_64 = arith.constant 0 : index
    %c1_65 = arith.constant 1 : index
    %c0_66 = arith.constant 0 : index
    %50 = vector.load %arg16[%c2_63, %c0_64, %c1_65, %c0_66] : memref<4x10x10x4xbf16, #tpu.memory_space<vmem>>, vector<1x8x8x4xbf16>
    %51 = vector.shape_cast %50 : vector<1x8x8x4xbf16> to vector<8x8x4xbf16>
    %c0_67 = arith.constant 0 : index
    %c0_68 = arith.constant 0 : index
    %c0_69 = arith.constant 0 : index
    %c4 = arith.constant 4 : index
    %52 = vector.load %arg17[%c0_67, %c0_68, %c0_69, %c4] : memref<4x8x8x36xbf16, #tpu.memory_space<vmem>>, vector<1x8x8x4xbf16>
    %53 = vector.shape_cast %52 : vector<1x8x8x4xbf16> to vector<8x8x4xbf16>
    %54 = vector.shape_cast %51 : vector<8x8x4xbf16> to vector<1x8x8x4xbf16>
    tpu.vector_store %arg17[%c0_67, %c0_68, %c0_69, %c4], %54 {strides = array<i32>} : memref<4x8x8x36xbf16, #tpu.memory_space<vmem>>, vector<1x8x8x4xbf16>,
    %c3_70 = arith.constant 3 : index
    %c0_71 = arith.constant 0 : index
    %c1_72 = arith.constant 1 : index
    %c0_73 = arith.constant 0 : index
    %55 = vector.load %arg16[%c3_70, %c0_71, %c1_72, %c0_73] : memref<4x10x10x4xbf16, #tpu.memory_space<vmem>>, vector<1x8x8x4xbf16>
    %56 = vector.shape_cast %55 : vector<1x8x8x4xbf16> to vector<8x8x4xbf16>
    %c0_74 = arith.constant 0 : index
    %c0_75 = arith.constant 0 : index
    %c0_76 = arith.constant 0 : index
    %c8 = arith.constant 8 : index
    %57 = vector.load %arg17[%c0_74, %c0_75, %c0_76, %c8] : memref<4x8x8x36xbf16, #tpu.memory_space<vmem>>, vector<1x8x8x4xbf16>
    %58 = vector.shape_cast %57 : vector<1x8x8x4xbf16> to vector<8x8x4xbf16>
    %59 = vector.shape_cast %56 : vector<8x8x4xbf16> to vector<1x8x8x4xbf16>
    tpu.vector_store %arg17[%c0_74, %c0_75, %c0_76, %c8], %59 {strides = array<i32>} : memref<4x8x8x36xbf16, #tpu.memory_space<vmem>>, vector<1x8x8x4xbf16>,
    %c1_77 = arith.constant 1 : index
    %c1_78 = arith.constant 1 : index
    %c0_79 = arith.constant 0 : index
    %c0_80 = arith.constant 0 : index
    %60 = vector.load %arg16[%c1_77, %c1_78, %c0_79, %c0_80] : memref<4x10x10x4xbf16, #tpu.memory_space<vmem>>, vector<1x8x8x4xbf16>
    %61 = vector.shape_cast %60 : vector<1x8x8x4xbf16> to vector<8x8x4xbf16>
    %c0_81 = arith.constant 0 : index
    %c0_82 = arith.constant 0 : index
    %c0_83 = arith.constant 0 : index
    %c12 = arith.constant 12 : index
    %62 = vector.load %arg17[%c0_81, %c0_82, %c0_83, %c12] : memref<4x8x8x36xbf16, #tpu.memory_space<vmem>>, vector<1x8x8x4xbf16>
    %63 = vector.shape_cast %62 : vector<1x8x8x4xbf16> to vector<8x8x4xbf16>
    %64 = vector.shape_cast %61 : vector<8x8x4xbf16> to vector<1x8x8x4xbf16>
    tpu.vector_store %arg17[%c0_81, %c0_82, %c0_83, %c12], %64 {strides = array<i32>} : memref<4x8x8x36xbf16, #tpu.memory_space<vmem>>, vector<1x8x8x4xbf16>,
    %c0_84 = arith.constant 0 : index
    %c1_85 = arith.constant 1 : index
    %c1_86 = arith.constant 1 : index
    %c0_87 = arith.constant 0 : index
    %65 = vector.load %arg16[%c0_84, %c1_85, %c1_86, %c0_87] : memref<4x10x10x4xbf16, #tpu.memory_space<vmem>>, vector<1x8x8x4xbf16>
    %66 = vector.shape_cast %65 : vector<1x8x8x4xbf16> to vector<8x8x4xbf16>
    %c0_88 = arith.constant 0 : index
    %c0_89 = arith.constant 0 : index
    %c0_90 = arith.constant 0 : index
    %c16 = arith.constant 16 : index
    %67 = vector.load %arg17[%c0_88, %c0_89, %c0_90, %c16] : memref<4x8x8x36xbf16, #tpu.memory_space<vmem>>, vector<1x8x8x4xbf16>
    %68 = vector.shape_cast %67 : vector<1x8x8x4xbf16> to vector<8x8x4xbf16>
    %69 = vector.shape_cast %66 : vector<8x8x4xbf16> to vector<1x8x8x4xbf16>
    tpu.vector_store %arg17[%c0_88, %c0_89, %c0_90, %c16], %69 {strides = array<i32>} : memref<4x8x8x36xbf16, #tpu.memory_space<vmem>>, vector<1x8x8x4xbf16>,
    %c1_91 = arith.constant 1 : index
    %c1_92 = arith.constant 1 : index
    %c1_93 = arith.constant 1 : index
    %c0_94 = arith.constant 0 : index
    %70 = vector.load %arg16[%c1_91, %c1_92, %c1_93, %c0_94] : memref<4x10x10x4xbf16, #tpu.memory_space<vmem>>, vector<1x8x8x4xbf16>
    %71 = vector.shape_cast %70 : vector<1x8x8x4xbf16> to vector<8x8x4xbf16>
    %c0_95 = arith.constant 0 : index
    %c0_96 = arith.constant 0 : index
    %c0_97 = arith.constant 0 : index
    %c20 = arith.constant 20 : index
    %72 = vector.load %arg17[%c0_95, %c0_96, %c0_97, %c20] : memref<4x8x8x36xbf16, #tpu.memory_space<vmem>>, vector<1x8x8x4xbf16>
    %73 = vector.shape_cast %72 : vector<1x8x8x4xbf16> to vector<8x8x4xbf16>
    %74 = vector.shape_cast %71 : vector<8x8x4xbf16> to vector<1x8x8x4xbf16>
    tpu.vector_store %arg17[%c0_95, %c0_96, %c0_97, %c20], %74 {strides = array<i32>} : memref<4x8x8x36xbf16, #tpu.memory_space<vmem>>, vector<1x8x8x4xbf16>,
    %c3_98 = arith.constant 3 : index
    %c1_99 = arith.constant 1 : index
    %c0_100 = arith.constant 0 : index
    %c0_101 = arith.constant 0 : index
    %75 = vector.load %arg16[%c3_98, %c1_99, %c0_100, %c0_101] : memref<4x10x10x4xbf16, #tpu.memory_space<vmem>>, vector<1x8x8x4xbf16>
    %76 = vector.shape_cast %75 : vector<1x8x8x4xbf16> to vector<8x8x4xbf16>
    %c0_102 = arith.constant 0 : index
    %c0_103 = arith.constant 0 : index
    %c0_104 = arith.constant 0 : index
    %c24 = arith.constant 24 : index
    %77 = vector.load %arg17[%c0_102, %c0_103, %c0_104, %c24] : memref<4x8x8x36xbf16, #tpu.memory_space<vmem>>, vector<1x8x8x4xbf16>
    %78 = vector.shape_cast %77 : vector<1x8x8x4xbf16> to vector<8x8x4xbf16>
    %79 = vector.shape_cast %76 : vector<8x8x4xbf16> to vector<1x8x8x4xbf16>
    tpu.vector_store %arg17[%c0_102, %c0_103, %c0_104, %c24], %79 {strides = array<i32>} : memref<4x8x8x36xbf16, #tpu.memory_space<vmem>>, vector<1x8x8x4xbf16>,
    %c2_105 = arith.constant 2 : index
    %c1_106 = arith.constant 1 : index
    %c1_107 = arith.constant 1 : index
    %c0_108 = arith.constant 0 : index
    %80 = vector.load %arg16[%c2_105, %c1_106, %c1_107, %c0_108] : memref<4x10x10x4xbf16, #tpu.memory_space<vmem>>, vector<1x8x8x4xbf16>
    %81 = vector.shape_cast %80 : vector<1x8x8x4xbf16> to vector<8x8x4xbf16>
    %c0_109 = arith.constant 0 : index
    %c0_110 = arith.constant 0 : index
    %c0_111 = arith.constant 0 : index
    %c28 = arith.constant 28 : index
    %82 = vector.load %arg17[%c0_109, %c0_110, %c0_111, %c28] : memref<4x8x8x36xbf16, #tpu.memory_space<vmem>>, vector<1x8x8x4xbf16>
    %83 = vector.shape_cast %82 : vector<1x8x8x4xbf16> to vector<8x8x4xbf16>
    %84 = vector.shape_cast %81 : vector<8x8x4xbf16> to vector<1x8x8x4xbf16>
    tpu.vector_store %arg17[%c0_109, %c0_110, %c0_111, %c28], %84 {strides = array<i32>} : memref<4x8x8x36xbf16, #tpu.memory_space<vmem>>, vector<1x8x8x4xbf16>,
    %c3_112 = arith.constant 3 : index
    %c1_113 = arith.constant 1 : index
    %c1_114 = arith.constant 1 : index
    %c0_115 = arith.constant 0 : index
    %85 = vector.load %arg16[%c3_112, %c1_113, %c1_114, %c0_115] : memref<4x10x10x4xbf16, #tpu.memory_space<vmem>>, vector<1x8x8x4xbf16>
    %86 = vector.shape_cast %85 : vector<1x8x8x4xbf16> to vector<8x8x4xbf16>
    %c0_116 = arith.constant 0 : index
    %c0_117 = arith.constant 0 : index
    %c0_118 = arith.constant 0 : index
    %c32 = arith.constant 32 : index
    %87 = vector.load %arg17[%c0_116, %c0_117, %c0_118, %c32] : memref<4x8x8x36xbf16, #tpu.memory_space<vmem>>, vector<1x8x8x4xbf16>
    %88 = vector.shape_cast %87 : vector<1x8x8x4xbf16> to vector<8x8x4xbf16>
    %89 = vector.shape_cast %86 : vector<8x8x4xbf16> to vector<1x8x8x4xbf16>
    tpu.vector_store %arg17[%c0_116, %c0_117, %c0_118, %c32], %89 {strides = array<i32>} : memref<4x8x8x36xbf16, #tpu.memory_space<vmem>>, vector<1x8x8x4xbf16>,
    %c2_119 = arith.constant 2 : index
    %c0_120 = arith.constant 0 : index
    %c1_121 = arith.constant 1 : index
    %c0_122 = arith.constant 0 : index
    %90 = vector.load %arg16[%c2_119, %c0_120, %c1_121, %c0_122] : memref<4x10x10x4xbf16, #tpu.memory_space<vmem>>, vector<1x8x8x4xbf16>
    %91 = vector.shape_cast %90 : vector<1x8x8x4xbf16> to vector<8x8x4xbf16>
    %c1_123 = arith.constant 1 : index
    %c0_124 = arith.constant 0 : index
    %c0_125 = arith.constant 0 : index
    %c0_126 = arith.constant 0 : index
    %92 = vector.load %arg17[%c1_123, %c0_124, %c0_125, %c0_126] : memref<4x8x8x36xbf16, #tpu.memory_space<vmem>>, vector<1x8x8x4xbf16>
    %93 = vector.shape_cast %92 : vector<1x8x8x4xbf16> to vector<8x8x4xbf16>
    %94 = vector.shape_cast %91 : vector<8x8x4xbf16> to vector<1x8x8x4xbf16>
    tpu.vector_store %arg17[%c1_123, %c0_124, %c0_125, %c0_126], %94 {strides = array<i32>} : memref<4x8x8x36xbf16, #tpu.memory_space<vmem>>, vector<1x8x8x4xbf16>,
    %c3_127 = arith.constant 3 : index
    %c0_128 = arith.constant 0 : index
    %c1_129 = arith.constant 1 : index
    %c0_130 = arith.constant 0 : index
    %95 = vector.load %arg16[%c3_127, %c0_128, %c1_129, %c0_130] : memref<4x10x10x4xbf16, #tpu.memory_space<vmem>>, vector<1x8x8x4xbf16>
    %96 = vector.shape_cast %95 : vector<1x8x8x4xbf16> to vector<8x8x4xbf16>
    %c1_131 = arith.constant 1 : index
    %c0_132 = arith.constant 0 : index
    %c0_133 = arith.constant 0 : index
    %c4_134 = arith.constant 4 : index
    %97 = vector.load %arg17[%c1_131, %c0_132, %c0_133, %c4_134] : memref<4x8x8x36xbf16, #tpu.memory_space<vmem>>, vector<1x8x8x4xbf16>
    %98 = vector.shape_cast %97 : vector<1x8x8x4xbf16> to vector<8x8x4xbf16>
    %99 = vector.shape_cast %96 : vector<8x8x4xbf16> to vector<1x8x8x4xbf16>
    tpu.vector_store %arg17[%c1_131, %c0_132, %c0_133, %c4_134], %99 {strides = array<i32>} : memref<4x8x8x36xbf16, #tpu.memory_space<vmem>>, vector<1x8x8x4xbf16>,
    %c2_135 = arith.constant 2 : index
    %c0_136 = arith.constant 0 : index
    %c2_137 = arith.constant 2 : index
    %c0_138 = arith.constant 0 : index
    %100 = vector.load %arg16[%c2_135, %c0_136, %c2_137, %c0_138] : memref<4x10x10x4xbf16, #tpu.memory_space<vmem>>, vector<1x8x8x4xbf16>
    %101 = vector.shape_cast %100 : vector<1x8x8x4xbf16> to vector<8x8x4xbf16>
    %c1_139 = arith.constant 1 : index
    %c0_140 = arith.constant 0 : index
    %c0_141 = arith.constant 0 : index
    %c8_142 = arith.constant 8 : index
    %102 = vector.load %arg17[%c1_139, %c0_140, %c0_141, %c8_142] : memref<4x8x8x36xbf16, #tpu.memory_space<vmem>>, vector<1x8x8x4xbf16>
    %103 = vector.shape_cast %102 : vector<1x8x8x4xbf16> to vector<8x8x4xbf16>
    %104 = vector.shape_cast %101 : vector<8x8x4xbf16> to vector<1x8x8x4xbf16>
    tpu.vector_store %arg17[%c1_139, %c0_140, %c0_141, %c8_142], %104 {strides = array<i32>} : memref<4x8x8x36xbf16, #tpu.memory_space<vmem>>, vector<1x8x8x4xbf16>,
    %c0_143 = arith.constant 0 : index
    %c1_144 = arith.constant 1 : index
    %c1_145 = arith.constant 1 : index
    %c0_146 = arith.constant 0 : index
    %105 = vector.load %arg16[%c0_143, %c1_144, %c1_145, %c0_146] : memref<4x10x10x4xbf16, #tpu.memory_space<vmem>>, vector<1x8x8x4xbf16>
    %106 = vector.shape_cast %105 : vector<1x8x8x4xbf16> to vector<8x8x4xbf16>
    %c1_147 = arith.constant 1 : index
    %c0_148 = arith.constant 0 : index
    %c0_149 = arith.constant 0 : index
    %c12_150 = arith.constant 12 : index
    %107 = vector.load %arg17[%c1_147, %c0_148, %c0_149, %c12_150] : memref<4x8x8x36xbf16, #tpu.memory_space<vmem>>, vector<1x8x8x4xbf16>
    %108 = vector.shape_cast %107 : vector<1x8x8x4xbf16> to vector<8x8x4xbf16>
    %109 = vector.shape_cast %106 : vector<8x8x4xbf16> to vector<1x8x8x4xbf16>
    tpu.vector_store %arg17[%c1_147, %c0_148, %c0_149, %c12_150], %109 {strides = array<i32>} : memref<4x8x8x36xbf16, #tpu.memory_space<vmem>>, vector<1x8x8x4xbf16>,
    %c1_151 = arith.constant 1 : index
    %c1_152 = arith.constant 1 : index
    %c1_153 = arith.constant 1 : index
    %c0_154 = arith.constant 0 : index
    %110 = vector.load %arg16[%c1_151, %c1_152, %c1_153, %c0_154] : memref<4x10x10x4xbf16, #tpu.memory_space<vmem>>, vector<1x8x8x4xbf16>
    %111 = vector.shape_cast %110 : vector<1x8x8x4xbf16> to vector<8x8x4xbf16>
    %c1_155 = arith.constant 1 : index
    %c0_156 = arith.constant 0 : index
    %c0_157 = arith.constant 0 : index
    %c16_158 = arith.constant 16 : index
    %112 = vector.load %arg17[%c1_155, %c0_156, %c0_157, %c16_158] : memref<4x8x8x36xbf16, #tpu.memory_space<vmem>>, vector<1x8x8x4xbf16>
    %113 = vector.shape_cast %112 : vector<1x8x8x4xbf16> to vector<8x8x4xbf16>
    %114 = vector.shape_cast %111 : vector<8x8x4xbf16> to vector<1x8x8x4xbf16>
    tpu.vector_store %arg17[%c1_155, %c0_156, %c0_157, %c16_158], %114 {strides = array<i32>} : memref<4x8x8x36xbf16, #tpu.memory_space<vmem>>, vector<1x8x8x4xbf16>,
    %c0_159 = arith.constant 0 : index
    %c1_160 = arith.constant 1 : index
    %c2_161 = arith.constant 2 : index
    %c0_162 = arith.constant 0 : index
    %115 = vector.load %arg16[%c0_159, %c1_160, %c2_161, %c0_162] : memref<4x10x10x4xbf16, #tpu.memory_space<vmem>>, vector<1x8x8x4xbf16>
    %116 = vector.shape_cast %115 : vector<1x8x8x4xbf16> to vector<8x8x4xbf16>
    %c1_163 = arith.constant 1 : index
    %c0_164 = arith.constant 0 : index
    %c0_165 = arith.constant 0 : index
    %c20_166 = arith.constant 20 : index
    %117 = vector.load %arg17[%c1_163, %c0_164, %c0_165, %c20_166] : memref<4x8x8x36xbf16, #tpu.memory_space<vmem>>, vector<1x8x8x4xbf16>
    %118 = vector.shape_cast %117 : vector<1x8x8x4xbf16> to vector<8x8x4xbf16>
    %119 = vector.shape_cast %116 : vector<8x8x4xbf16> to vector<1x8x8x4xbf16>
    tpu.vector_store %arg17[%c1_163, %c0_164, %c0_165, %c20_166], %119 {strides = array<i32>} : memref<4x8x8x36xbf16, #tpu.memory_space<vmem>>, vector<1x8x8x4xbf16>,
    %c2_167 = arith.constant 2 : index
    %c1_168 = arith.constant 1 : index
    %c1_169 = arith.constant 1 : index
    %c0_170 = arith.constant 0 : index
    %120 = vector.load %arg16[%c2_167, %c1_168, %c1_169, %c0_170] : memref<4x10x10x4xbf16, #tpu.memory_space<vmem>>, vector<1x8x8x4xbf16>
    %121 = vector.shape_cast %120 : vector<1x8x8x4xbf16> to vector<8x8x4xbf16>
    %c1_171 = arith.constant 1 : index
    %c0_172 = arith.constant 0 : index
    %c0_173 = arith.constant 0 : index
    %c24_174 = arith.constant 24 : index
    %122 = vector.load %arg17[%c1_171, %c0_172, %c0_173, %c24_174] : memref<4x8x8x36xbf16, #tpu.memory_space<vmem>>, vector<1x8x8x4xbf16>
    %123 = vector.shape_cast %122 : vector<1x8x8x4xbf16> to vector<8x8x4xbf16>
    %124 = vector.shape_cast %121 : vector<8x8x4xbf16> to vector<1x8x8x4xbf16>
    tpu.vector_store %arg17[%c1_171, %c0_172, %c0_173, %c24_174], %124 {strides = array<i32>} : memref<4x8x8x36xbf16, #tpu.memory_space<vmem>>, vector<1x8x8x4xbf16>,
    %c3_175 = arith.constant 3 : index
    %c1_176 = arith.constant 1 : index
    %c1_177 = arith.constant 1 : index
    %c0_178 = arith.constant 0 : index
    %125 = vector.load %arg16[%c3_175, %c1_176, %c1_177, %c0_178] : memref<4x10x10x4xbf16, #tpu.memory_space<vmem>>, vector<1x8x8x4xbf16>
    %126 = vector.shape_cast %125 : vector<1x8x8x4xbf16> to vector<8x8x4xbf16>
    %c1_179 = arith.constant 1 : index
    %c0_180 = arith.constant 0 : index
    %c0_181 = arith.constant 0 : index
    %c28_182 = arith.constant 28 : index
    %127 = vector.load %arg17[%c1_179, %c0_180, %c0_181, %c28_182] : memref<4x8x8x36xbf16, #tpu.memory_space<vmem>>, vector<1x8x8x4xbf16>
    %128 = vector.shape_cast %127 : vector<1x8x8x4xbf16> to vector<8x8x4xbf16>
    %129 = vector.shape_cast %126 : vector<8x8x4xbf16> to vector<1x8x8x4xbf16>
    tpu.vector_store %arg17[%c1_179, %c0_180, %c0_181, %c28_182], %129 {strides = array<i32>} : memref<4x8x8x36xbf16, #tpu.memory_space<vmem>>, vector<1x8x8x4xbf16>,
    %c2_183 = arith.constant 2 : index
    %c1_184 = arith.constant 1 : index
    %c2_185 = arith.constant 2 : index
    %c0_186 = arith.constant 0 : index
    %130 = vector.load %arg16[%c2_183, %c1_184, %c2_185, %c0_186] : memref<4x10x10x4xbf16, #tpu.memory_space<vmem>>, vector<1x8x8x4xbf16>
    %131 = vector.shape_cast %130 : vector<1x8x8x4xbf16> to vector<8x8x4xbf16>
    %c1_187 = arith.constant 1 : index
    %c0_188 = arith.constant 0 : index
    %c0_189 = arith.constant 0 : index
    %c32_190 = arith.constant 32 : index
    %132 = vector.load %arg17[%c1_187, %c0_188, %c0_189, %c32_190] : memref<4x8x8x36xbf16, #tpu.memory_space<vmem>>, vector<1x8x8x4xbf16>
    %133 = vector.shape_cast %132 : vector<1x8x8x4xbf16> to vector<8x8x4xbf16>
    %134 = vector.shape_cast %131 : vector<8x8x4xbf16> to vector<1x8x8x4xbf16>
    tpu.vector_store %arg17[%c1_187, %c0_188, %c0_189, %c32_190], %134 {strides = array<i32>} : memref<4x8x8x36xbf16, #tpu.memory_space<vmem>>, vector<1x8x8x4xbf16>,
    %c1_191 = arith.constant 1 : index
    %c1_192 = arith.constant 1 : index
    %c0_193 = arith.constant 0 : index
    %c0_194 = arith.constant 0 : index
    %135 = vector.load %arg16[%c1_191, %c1_192, %c0_193, %c0_194] : memref<4x10x10x4xbf16, #tpu.memory_space<vmem>>, vector<1x8x8x4xbf16>
    %136 = vector.shape_cast %135 : vector<1x8x8x4xbf16> to vector<8x8x4xbf16>
    %c2_195 = arith.constant 2 : index
    %c0_196 = arith.constant 0 : index
    %c0_197 = arith.constant 0 : index
    %c0_198 = arith.constant 0 : index
    %137 = vector.load %arg17[%c2_195, %c0_196, %c0_197, %c0_198] : memref<4x8x8x36xbf16, #tpu.memory_space<vmem>>, vector<1x8x8x4xbf16>
    %138 = vector.shape_cast %137 : vector<1x8x8x4xbf16> to vector<8x8x4xbf16>
    %139 = vector.shape_cast %136 : vector<8x8x4xbf16> to vector<1x8x8x4xbf16>
    tpu.vector_store %arg17[%c2_195, %c0_196, %c0_197, %c0_198], %139 {strides = array<i32>} : memref<4x8x8x36xbf16, #tpu.memory_space<vmem>>, vector<1x8x8x4xbf16>,
    %c0_199 = arith.constant 0 : index
    %c1_200 = arith.constant 1 : index
    %c1_201 = arith.constant 1 : index
    %c0_202 = arith.constant 0 : index
    %140 = vector.load %arg16[%c0_199, %c1_200, %c1_201, %c0_202] : memref<4x10x10x4xbf16, #tpu.memory_space<vmem>>, vector<1x8x8x4xbf16>
    %141 = vector.shape_cast %140 : vector<1x8x8x4xbf16> to vector<8x8x4xbf16>
    %c2_203 = arith.constant 2 : index
    %c0_204 = arith.constant 0 : index
    %c0_205 = arith.constant 0 : index
    %c4_206 = arith.constant 4 : index
    %142 = vector.load %arg17[%c2_203, %c0_204, %c0_205, %c4_206] : memref<4x8x8x36xbf16, #tpu.memory_space<vmem>>, vector<1x8x8x4xbf16>
    %143 = vector.shape_cast %142 : vector<1x8x8x4xbf16> to vector<8x8x4xbf16>
    %144 = vector.shape_cast %141 : vector<8x8x4xbf16> to vector<1x8x8x4xbf16>
    tpu.vector_store %arg17[%c2_203, %c0_204, %c0_205, %c4_206], %144 {strides = array<i32>} : memref<4x8x8x36xbf16, #tpu.memory_space<vmem>>, vector<1x8x8x4xbf16>,
    %c1_207 = arith.constant 1 : index
    %c1_208 = arith.constant 1 : index
    %c1_209 = arith.constant 1 : index
    %c0_210 = arith.constant 0 : index
    %145 = vector.load %arg16[%c1_207, %c1_208, %c1_209, %c0_210] : memref<4x10x10x4xbf16, #tpu.memory_space<vmem>>, vector<1x8x8x4xbf16>
    %146 = vector.shape_cast %145 : vector<1x8x8x4xbf16> to vector<8x8x4xbf16>
    %c2_211 = arith.constant 2 : index
    %c0_212 = arith.constant 0 : index
    %c0_213 = arith.constant 0 : index
    %c8_214 = arith.constant 8 : index
    %147 = vector.load %arg17[%c2_211, %c0_212, %c0_213, %c8_214] : memref<4x8x8x36xbf16, #tpu.memory_space<vmem>>, vector<1x8x8x4xbf16>
    %148 = vector.shape_cast %147 : vector<1x8x8x4xbf16> to vector<8x8x4xbf16>
    %149 = vector.shape_cast %146 : vector<8x8x4xbf16> to vector<1x8x8x4xbf16>
    tpu.vector_store %arg17[%c2_211, %c0_212, %c0_213, %c8_214], %149 {strides = array<i32>} : memref<4x8x8x36xbf16, #tpu.memory_space<vmem>>, vector<1x8x8x4xbf16>,
    %c3_215 = arith.constant 3 : index
    %c1_216 = arith.constant 1 : index
    %c0_217 = arith.constant 0 : index
    %c0_218 = arith.constant 0 : index
    %150 = vector.load %arg16[%c3_215, %c1_216, %c0_217, %c0_218] : memref<4x10x10x4xbf16, #tpu.memory_space<vmem>>, vector<1x8x8x4xbf16>
    %151 = vector.shape_cast %150 : vector<1x8x8x4xbf16> to vector<8x8x4xbf16>
    %c2_219 = arith.constant 2 : index
    %c0_220 = arith.constant 0 : index
    %c0_221 = arith.constant 0 : index
    %c12_222 = arith.constant 12 : index
    %152 = vector.load %arg17[%c2_219, %c0_220, %c0_221, %c12_222] : memref<4x8x8x36xbf16, #tpu.memory_space<vmem>>, vector<1x8x8x4xbf16>
    %153 = vector.shape_cast %152 : vector<1x8x8x4xbf16> to vector<8x8x4xbf16>
    %154 = vector.shape_cast %151 : vector<8x8x4xbf16> to vector<1x8x8x4xbf16>
    tpu.vector_store %arg17[%c2_219, %c0_220, %c0_221, %c12_222], %154 {strides = array<i32>} : memref<4x8x8x36xbf16, #tpu.memory_space<vmem>>, vector<1x8x8x4xbf16>,
    %c2_223 = arith.constant 2 : index
    %c1_224 = arith.constant 1 : index
    %c1_225 = arith.constant 1 : index
    %c0_226 = arith.constant 0 : index
    %155 = vector.load %arg16[%c2_223, %c1_224, %c1_225, %c0_226] : memref<4x10x10x4xbf16, #tpu.memory_space<vmem>>, vector<1x8x8x4xbf16>
    %156 = vector.shape_cast %155 : vector<1x8x8x4xbf16> to vector<8x8x4xbf16>
    %c2_227 = arith.constant 2 : index
    %c0_228 = arith.constant 0 : index
    %c0_229 = arith.constant 0 : index
    %c16_230 = arith.constant 16 : index
    %157 = vector.load %arg17[%c2_227, %c0_228, %c0_229, %c16_230] : memref<4x8x8x36xbf16, #tpu.memory_space<vmem>>, vector<1x8x8x4xbf16>
    %158 = vector.shape_cast %157 : vector<1x8x8x4xbf16> to vector<8x8x4xbf16>
    %159 = vector.shape_cast %156 : vector<8x8x4xbf16> to vector<1x8x8x4xbf16>
    tpu.vector_store %arg17[%c2_227, %c0_228, %c0_229, %c16_230], %159 {strides = array<i32>} : memref<4x8x8x36xbf16, #tpu.memory_space<vmem>>, vector<1x8x8x4xbf16>,
    %c3_231 = arith.constant 3 : index
    %c1_232 = arith.constant 1 : index
    %c1_233 = arith.constant 1 : index
    %c0_234 = arith.constant 0 : index
    %160 = vector.load %arg16[%c3_231, %c1_232, %c1_233, %c0_234] : memref<4x10x10x4xbf16, #tpu.memory_space<vmem>>, vector<1x8x8x4xbf16>
    %161 = vector.shape_cast %160 : vector<1x8x8x4xbf16> to vector<8x8x4xbf16>
    %c2_235 = arith.constant 2 : index
    %c0_236 = arith.constant 0 : index
    %c0_237 = arith.constant 0 : index
    %c20_238 = arith.constant 20 : index
    %162 = vector.load %arg17[%c2_235, %c0_236, %c0_237, %c20_238] : memref<4x8x8x36xbf16, #tpu.memory_space<vmem>>, vector<1x8x8x4xbf16>
    %163 = vector.shape_cast %162 : vector<1x8x8x4xbf16> to vector<8x8x4xbf16>
    %164 = vector.shape_cast %161 : vector<8x8x4xbf16> to vector<1x8x8x4xbf16>
    tpu.vector_store %arg17[%c2_235, %c0_236, %c0_237, %c20_238], %164 {strides = array<i32>} : memref<4x8x8x36xbf16, #tpu.memory_space<vmem>>, vector<1x8x8x4xbf16>,
    %c1_239 = arith.constant 1 : index
    %c2_240 = arith.constant 2 : index
    %c0_241 = arith.constant 0 : index
    %c0_242 = arith.constant 0 : index
    %165 = vector.load %arg16[%c1_239, %c2_240, %c0_241, %c0_242] : memref<4x10x10x4xbf16, #tpu.memory_space<vmem>>, vector<1x8x8x4xbf16>
    %166 = vector.shape_cast %165 : vector<1x8x8x4xbf16> to vector<8x8x4xbf16>
    %c2_243 = arith.constant 2 : index
    %c0_244 = arith.constant 0 : index
    %c0_245 = arith.constant 0 : index
    %c24_246 = arith.constant 24 : index
    %167 = vector.load %arg17[%c2_243, %c0_244, %c0_245, %c24_246] : memref<4x8x8x36xbf16, #tpu.memory_space<vmem>>, vector<1x8x8x4xbf16>
    %168 = vector.shape_cast %167 : vector<1x8x8x4xbf16> to vector<8x8x4xbf16>
    %169 = vector.shape_cast %166 : vector<8x8x4xbf16> to vector<1x8x8x4xbf16>
    tpu.vector_store %arg17[%c2_243, %c0_244, %c0_245, %c24_246], %169 {strides = array<i32>} : memref<4x8x8x36xbf16, #tpu.memory_space<vmem>>, vector<1x8x8x4xbf16>,
    %c0_247 = arith.constant 0 : index
    %c2_248 = arith.constant 2 : index
    %c1_249 = arith.constant 1 : index
    %c0_250 = arith.constant 0 : index
    %170 = vector.load %arg16[%c0_247, %c2_248, %c1_249, %c0_250] : memref<4x10x10x4xbf16, #tpu.memory_space<vmem>>, vector<1x8x8x4xbf16>
    %171 = vector.shape_cast %170 : vector<1x8x8x4xbf16> to vector<8x8x4xbf16>
    %c2_251 = arith.constant 2 : index
    %c0_252 = arith.constant 0 : index
    %c0_253 = arith.constant 0 : index
    %c28_254 = arith.constant 28 : index
    %172 = vector.load %arg17[%c2_251, %c0_252, %c0_253, %c28_254] : memref<4x8x8x36xbf16, #tpu.memory_space<vmem>>, vector<1x8x8x4xbf16>
    %173 = vector.shape_cast %172 : vector<1x8x8x4xbf16> to vector<8x8x4xbf16>
    %174 = vector.shape_cast %171 : vector<8x8x4xbf16> to vector<1x8x8x4xbf16>
    tpu.vector_store %arg17[%c2_251, %c0_252, %c0_253, %c28_254], %174 {strides = array<i32>} : memref<4x8x8x36xbf16, #tpu.memory_space<vmem>>, vector<1x8x8x4xbf16>,
    %c1_255 = arith.constant 1 : index
    %c2_256 = arith.constant 2 : index
    %c1_257 = arith.constant 1 : index
    %c0_258 = arith.constant 0 : index
    %175 = vector.load %arg16[%c1_255, %c2_256, %c1_257, %c0_258] : memref<4x10x10x4xbf16, #tpu.memory_space<vmem>>, vector<1x8x8x4xbf16>
    %176 = vector.shape_cast %175 : vector<1x8x8x4xbf16> to vector<8x8x4xbf16>
    %c2_259 = arith.constant 2 : index
    %c0_260 = arith.constant 0 : index
    %c0_261 = arith.constant 0 : index
    %c32_262 = arith.constant 32 : index
    %177 = vector.load %arg17[%c2_259, %c0_260, %c0_261, %c32_262] : memref<4x8x8x36xbf16, #tpu.memory_space<vmem>>, vector<1x8x8x4xbf16>
    %178 = vector.shape_cast %177 : vector<1x8x8x4xbf16> to vector<8x8x4xbf16>
    %179 = vector.shape_cast %176 : vector<8x8x4xbf16> to vector<1x8x8x4xbf16>
    tpu.vector_store %arg17[%c2_259, %c0_260, %c0_261, %c32_262], %179 {strides = array<i32>} : memref<4x8x8x36xbf16, #tpu.memory_space<vmem>>, vector<1x8x8x4xbf16>,
    %c0_263 = arith.constant 0 : index
    %c1_264 = arith.constant 1 : index
    %c1_265 = arith.constant 1 : index
    %c0_266 = arith.constant 0 : index
    %180 = vector.load %arg16[%c0_263, %c1_264, %c1_265, %c0_266] : memref<4x10x10x4xbf16, #tpu.memory_space<vmem>>, vector<1x8x8x4xbf16>
    %181 = vector.shape_cast %180 : vector<1x8x8x4xbf16> to vector<8x8x4xbf16>
    %c3_267 = arith.constant 3 : index
    %c0_268 = arith.constant 0 : index
    %c0_269 = arith.constant 0 : index
    %c0_270 = arith.constant 0 : index
    %182 = vector.load %arg17[%c3_267, %c0_268, %c0_269, %c0_270] : memref<4x8x8x36xbf16, #tpu.memory_space<vmem>>, vector<1x8x8x4xbf16>
    %183 = vector.shape_cast %182 : vector<1x8x8x4xbf16> to vector<8x8x4xbf16>
    %184 = vector.shape_cast %181 : vector<8x8x4xbf16> to vector<1x8x8x4xbf16>
    tpu.vector_store %arg17[%c3_267, %c0_268, %c0_269, %c0_270], %184 {strides = array<i32>} : memref<4x8x8x36xbf16, #tpu.memory_space<vmem>>, vector<1x8x8x4xbf16>,
    %c1_271 = arith.constant 1 : index
    %c1_272 = arith.constant 1 : index
    %c1_273 = arith.constant 1 : index
    %c0_274 = arith.constant 0 : index
    %185 = vector.load %arg16[%c1_271, %c1_272, %c1_273, %c0_274] : memref<4x10x10x4xbf16, #tpu.memory_space<vmem>>, vector<1x8x8x4xbf16>
    %186 = vector.shape_cast %185 : vector<1x8x8x4xbf16> to vector<8x8x4xbf16>
    %c3_275 = arith.constant 3 : index
    %c0_276 = arith.constant 0 : index
    %c0_277 = arith.constant 0 : index
    %c4_278 = arith.constant 4 : index
    %187 = vector.load %arg17[%c3_275, %c0_276, %c0_277, %c4_278] : memref<4x8x8x36xbf16, #tpu.memory_space<vmem>>, vector<1x8x8x4xbf16>
    %188 = vector.shape_cast %187 : vector<1x8x8x4xbf16> to vector<8x8x4xbf16>
    %189 = vector.shape_cast %186 : vector<8x8x4xbf16> to vector<1x8x8x4xbf16>
    tpu.vector_store %arg17[%c3_275, %c0_276, %c0_277, %c4_278], %189 {strides = array<i32>} : memref<4x8x8x36xbf16, #tpu.memory_space<vmem>>, vector<1x8x8x4xbf16>,
    %c0_279 = arith.constant 0 : index
    %c1_280 = arith.constant 1 : index
    %c2_281 = arith.constant 2 : index
    %c0_282 = arith.constant 0 : index
    %190 = vector.load %arg16[%c0_279, %c1_280, %c2_281, %c0_282] : memref<4x10x10x4xbf16, #tpu.memory_space<vmem>>, vector<1x8x8x4xbf16>
    %191 = vector.shape_cast %190 : vector<1x8x8x4xbf16> to vector<8x8x4xbf16>
    %c3_283 = arith.constant 3 : index
    %c0_284 = arith.constant 0 : index
    %c0_285 = arith.constant 0 : index
    %c8_286 = arith.constant 8 : index
    %192 = vector.load %arg17[%c3_283, %c0_284, %c0_285, %c8_286] : memref<4x8x8x36xbf16, #tpu.memory_space<vmem>>, vector<1x8x8x4xbf16>
    %193 = vector.shape_cast %192 : vector<1x8x8x4xbf16> to vector<8x8x4xbf16>
    %194 = vector.shape_cast %191 : vector<8x8x4xbf16> to vector<1x8x8x4xbf16>
    tpu.vector_store %arg17[%c3_283, %c0_284, %c0_285, %c8_286], %194 {strides = array<i32>} : memref<4x8x8x36xbf16, #tpu.memory_space<vmem>>, vector<1x8x8x4xbf16>,
    %c2_287 = arith.constant 2 : index
    %c1_288 = arith.constant 1 : index
    %c1_289 = arith.constant 1 : index
    %c0_290 = arith.constant 0 : index
    %195 = vector.load %arg16[%c2_287, %c1_288, %c1_289, %c0_290] : memref<4x10x10x4xbf16, #tpu.memory_space<vmem>>, vector<1x8x8x4xbf16>
    %196 = vector.shape_cast %195 : vector<1x8x8x4xbf16> to vector<8x8x4xbf16>
    %c3_291 = arith.constant 3 : index
    %c0_292 = arith.constant 0 : index
    %c0_293 = arith.constant 0 : index
    %c12_294 = arith.constant 12 : index
    %197 = vector.load %arg17[%c3_291, %c0_292, %c0_293, %c12_294] : memref<4x8x8x36xbf16, #tpu.memory_space<vmem>>, vector<1x8x8x4xbf16>
    %198 = vector.shape_cast %197 : vector<1x8x8x4xbf16> to vector<8x8x4xbf16>
    %199 = vector.shape_cast %196 : vector<8x8x4xbf16> to vector<1x8x8x4xbf16>
    tpu.vector_store %arg17[%c3_291, %c0_292, %c0_293, %c12_294], %199 {strides = array<i32>} : memref<4x8x8x36xbf16, #tpu.memory_space<vmem>>, vector<1x8x8x4xbf16>,
    %c3_295 = arith.constant 3 : index
    %c1_296 = arith.constant 1 : index
    %c1_297 = arith.constant 1 : index
    %c0_298 = arith.constant 0 : index
    %200 = vector.load %arg16[%c3_295, %c1_296, %c1_297, %c0_298] : memref<4x10x10x4xbf16, #tpu.memory_space<vmem>>, vector<1x8x8x4xbf16>
    %201 = vector.shape_cast %200 : vector<1x8x8x4xbf16> to vector<8x8x4xbf16>
    %c3_299 = arith.constant 3 : index
    %c0_300 = arith.constant 0 : index
    %c0_301 = arith.constant 0 : index
    %c16_302 = arith.constant 16 : index
    %202 = vector.load %arg17[%c3_299, %c0_300, %c0_301, %c16_302] : memref<4x8x8x36xbf16, #tpu.memory_space<vmem>>, vector<1x8x8x4xbf16>
    %203 = vector.shape_cast %202 : vector<1x8x8x4xbf16> to vector<8x8x4xbf16>
    %204 = vector.shape_cast %201 : vector<8x8x4xbf16> to vector<1x8x8x4xbf16>
    tpu.vector_store %arg17[%c3_299, %c0_300, %c0_301, %c16_302], %204 {strides = array<i32>} : memref<4x8x8x36xbf16, #tpu.memory_space<vmem>>, vector<1x8x8x4xbf16>,
    %c2_303 = arith.constant 2 : index
    %c1_304 = arith.constant 1 : index
    %c2_305 = arith.constant 2 : index
    %c0_306 = arith.constant 0 : index
    %205 = vector.load %arg16[%c2_303, %c1_304, %c2_305, %c0_306] : memref<4x10x10x4xbf16, #tpu.memory_space<vmem>>, vector<1x8x8x4xbf16>
    %206 = vector.shape_cast %205 : vector<1x8x8x4xbf16> to vector<8x8x4xbf16>
    %c3_307 = arith.constant 3 : index
    %c0_308 = arith.constant 0 : index
    %c0_309 = arith.constant 0 : index
    %c20_310 = arith.constant 20 : index
    %207 = vector.load %arg17[%c3_307, %c0_308, %c0_309, %c20_310] : memref<4x8x8x36xbf16, #tpu.memory_space<vmem>>, vector<1x8x8x4xbf16>
    %208 = vector.shape_cast %207 : vector<1x8x8x4xbf16> to vector<8x8x4xbf16>
    %209 = vector.shape_cast %206 : vector<8x8x4xbf16> to vector<1x8x8x4xbf16>
    tpu.vector_store %arg17[%c3_307, %c0_308, %c0_309, %c20_310], %209 {strides = array<i32>} : memref<4x8x8x36xbf16, #tpu.memory_space<vmem>>, vector<1x8x8x4xbf16>,
    %c0_311 = arith.constant 0 : index
    %c2_312 = arith.constant 2 : index
    %c1_313 = arith.constant 1 : index
    %c0_314 = arith.constant 0 : index
    %210 = vector.load %arg16[%c0_311, %c2_312, %c1_313, %c0_314] : memref<4x10x10x4xbf16, #tpu.memory_space<vmem>>, vector<1x8x8x4xbf16>
    %211 = vector.shape_cast %210 : vector<1x8x8x4xbf16> to vector<8x8x4xbf16>
    %c3_315 = arith.constant 3 : index
    %c0_316 = arith.constant 0 : index
    %c0_317 = arith.constant 0 : index
    %c24_318 = arith.constant 24 : index
    %212 = vector.load %arg17[%c3_315, %c0_316, %c0_317, %c24_318] : memref<4x8x8x36xbf16, #tpu.memory_space<vmem>>, vector<1x8x8x4xbf16>
    %213 = vector.shape_cast %212 : vector<1x8x8x4xbf16> to vector<8x8x4xbf16>
    %214 = vector.shape_cast %211 : vector<8x8x4xbf16> to vector<1x8x8x4xbf16>
    tpu.vector_store %arg17[%c3_315, %c0_316, %c0_317, %c24_318], %214 {strides = array<i32>} : memref<4x8x8x36xbf16, #tpu.memory_space<vmem>>, vector<1x8x8x4xbf16>,
    %c1_319 = arith.constant 1 : index
    %c2_320 = arith.constant 2 : index
    %c1_321 = arith.constant 1 : index
    %c0_322 = arith.constant 0 : index
    %215 = vector.load %arg16[%c1_319, %c2_320, %c1_321, %c0_322] : memref<4x10x10x4xbf16, #tpu.memory_space<vmem>>, vector<1x8x8x4xbf16>
    %216 = vector.shape_cast %215 : vector<1x8x8x4xbf16> to vector<8x8x4xbf16>
    %c3_323 = arith.constant 3 : index
    %c0_324 = arith.constant 0 : index
    %c0_325 = arith.constant 0 : index
    %c28_326 = arith.constant 28 : index
    %217 = vector.load %arg17[%c3_323, %c0_324, %c0_325, %c28_326] : memref<4x8x8x36xbf16, #tpu.memory_space<vmem>>, vector<1x8x8x4xbf16>
    %218 = vector.shape_cast %217 : vector<1x8x8x4xbf16> to vector<8x8x4xbf16>
    %219 = vector.shape_cast %216 : vector<8x8x4xbf16> to vector<1x8x8x4xbf16>
    tpu.vector_store %arg17[%c3_323, %c0_324, %c0_325, %c28_326], %219 {strides = array<i32>} : memref<4x8x8x36xbf16, #tpu.memory_space<vmem>>, vector<1x8x8x4xbf16>,
    %c0_327 = arith.constant 0 : index
    %c2_328 = arith.constant 2 : index
    %c2_329 = arith.constant 2 : index
    %c0_330 = arith.constant 0 : index
    %220 = vector.load %arg16[%c0_327, %c2_328, %c2_329, %c0_330] : memref<4x10x10x4xbf16, #tpu.memory_space<vmem>>, vector<1x8x8x4xbf16>
    %221 = vector.shape_cast %220 : vector<1x8x8x4xbf16> to vector<8x8x4xbf16>
    %c3_331 = arith.constant 3 : index
    %c0_332 = arith.constant 0 : index
    %c0_333 = arith.constant 0 : index
    %c32_334 = arith.constant 32 : index
    %222 = vector.load %arg17[%c3_331, %c0_332, %c0_333, %c32_334] : memref<4x8x8x36xbf16, #tpu.memory_space<vmem>>, vector<1x8x8x4xbf16>
    %223 = vector.shape_cast %222 : vector<1x8x8x4xbf16> to vector<8x8x4xbf16>
    %224 = vector.shape_cast %221 : vector<8x8x4xbf16> to vector<1x8x8x4xbf16>
    tpu.vector_store %arg17[%c3_331, %c0_332, %c0_333, %c32_334], %224 {strides = array<i32>} : memref<4x8x8x36xbf16, #tpu.memory_space<vmem>>, vector<1x8x8x4xbf16>,
    %c0_335 = arith.constant 0 : index
    %c0_336 = arith.constant 0 : index
    %c0_337 = arith.constant 0 : index
    %c0_338 = arith.constant 0 : index
    %225 = vector.load %arg17[%c0_335, %c0_336, %c0_337, %c0_338] : memref<4x8x8x36xbf16, #tpu.memory_space<vmem>>, vector<4x8x8x36xbf16>
    %226 = vector.shape_cast %225 : vector<4x8x8x36xbf16> to vector<256x36xbf16>
    %c0_339 = arith.constant 0 : index
    %c0_340 = arith.constant 0 : index
    %227 = vector.load %arg9[%c0_339, %c0_340] : memref<36x8xbf16, #tpu.memory_space<vmem>>, vector<36x8xbf16>
    %cst_341 = arith.constant dense<0.000000e+00> : vector<256x8xf32>
    %228 = tpu.matmul %226, %227, %cst_341 {dimension_numbers = #tpu.dot_dimension_numbers<[1], [0], [0], [1], [0, 0, 1, 1], [], []>} : vector<256x36xbf16>, vector<36x8xbf16>, vector<256x8xf32> -> vector<256x8xf32>
    %229 = vector.shape_cast %228 : vector<256x8xf32> to vector<4x64x8xf32>
    %230 = vector.extract_strided_slice %229 {offsets = [0, 0, 0], sizes = [1, 64, 8], strides = [1, 1, 1]} : vector<4x64x8xf32> to vector<1x64x8xf32>
    %231 = vector.shape_cast %230 : vector<1x64x8xf32> to vector<64x8xf32>
    %232 = vector.extract_strided_slice %229 {offsets = [1, 0, 0], sizes = [1, 64, 8], strides = [1, 1, 1]} : vector<4x64x8xf32> to vector<1x64x8xf32>
    %233 = vector.shape_cast %232 : vector<1x64x8xf32> to vector<64x8xf32>
    %234 = arith.maximumf %231, %233 : vector<64x8xf32>
    %235 = vector.extract_strided_slice %229 {offsets = [2, 0, 0], sizes = [1, 64, 8], strides = [1, 1, 1]} : vector<4x64x8xf32> to vector<1x64x8xf32>
    %236 = vector.shape_cast %235 : vector<1x64x8xf32> to vector<64x8xf32>
    %237 = vector.extract_strided_slice %229 {offsets = [3, 0, 0], sizes = [1, 64, 8], strides = [1, 1, 1]} : vector<4x64x8xf32> to vector<1x64x8xf32>
    %238 = vector.shape_cast %237 : vector<1x64x8xf32> to vector<64x8xf32>
    %239 = arith.maximumf %236, %238 : vector<64x8xf32>
    %240 = arith.maximumf %234, %239 : vector<64x8xf32>
    %c0_342 = arith.constant 0 : index
    %c0_343 = arith.constant 0 : index
    %241 = vector.load %arg10[%c0_342, %c0_343] : memref<1x8xf32, #tpu.memory_space<vmem>>, vector<1x8xf32>
    %242 = vector.broadcast %241 : vector<1x8xf32> to vector<64x8xf32>
    %243 = arith.addf %240, %242 : vector<64x8xf32>
    %c0_344 = arith.constant 0 : index
    %c0_345 = arith.constant 0 : index
    %c0_346 = arith.constant 0 : index
    %c0_347 = arith.constant 0 : index
    %244 = vector.load %arg2[%c0_344, %c0_345, %c0_346, %c0_347] : memref<1x8x8x6xf32, #tpu.memory_space<vmem>>, vector<1x8x8x6xf32>
    %245 = vector.shape_cast %244 : vector<1x8x8x6xf32> to vector<8x8x6xf32>
    %c0_348 = arith.constant 0 : index
    %c0_349 = arith.constant 0 : index
    %246 = vector.load %arg5[%c0_348, %c0_349] : memref<1x6xf32, #tpu.memory_space<vmem>>, vector<1x6xf32>
    %247 = vector.shape_cast %246 : vector<1x6xf32> to vector<1x1x6xf32>
    %248 = vector.broadcast %247 : vector<1x1x6xf32> to vector<8x8x6xf32>
    %249 = arith.mulf %245, %248 : vector<8x8x6xf32>
    %c0_350 = arith.constant 0 : index
    %c0_351 = arith.constant 0 : index
    %250 = vector.load %arg6[%c0_350, %c0_351] : memref<1x6xf32, #tpu.memory_space<vmem>>, vector<1x6xf32>
    %251 = vector.shape_cast %250 : vector<1x6xf32> to vector<1x1x6xf32>
    %252 = vector.broadcast %251 : vector<1x1x6xf32> to vector<8x8x6xf32>
    %253 = arith.addf %249, %252 : vector<8x8x6xf32>
    %cst_352 = arith.constant 0.000000e+00 : f32
    %254 = vector.broadcast %cst_352 : f32 to vector<8x8x6xf32>
    %255 = arith.maximumf %253, %254 : vector<8x8x6xf32>
    %256 = arith.truncf %255 : vector<8x8x6xf32> to vector<8x8x6xbf16>
    %c1_353 = arith.constant 1 : index
    %c1_354 = arith.constant 1 : index
    %c0_355 = arith.constant 0 : index
    %257 = vector.load %arg18[%c1_353, %c1_354, %c0_355] : memref<10x10x6xbf16, #tpu.memory_space<vmem>>, vector<8x8x6xbf16>
    tpu.vector_store %arg18[%c1_353, %c1_354, %c0_355], %256 {strides = array<i32>} : memref<10x10x6xbf16, #tpu.memory_space<vmem>>, vector<8x8x6xbf16>,
    %c0_356 = arith.constant 0 : index
    %c0_357 = arith.constant 0 : index
    %c0_358 = arith.constant 0 : index
    %258 = vector.load %arg18[%c0_356, %c0_357, %c0_358] : memref<10x10x6xbf16, #tpu.memory_space<vmem>>, vector<8x8x6xbf16>
    %c0_359 = arith.constant 0 : index
    %c0_360 = arith.constant 0 : index
    %c0_361 = arith.constant 0 : index
    %259 = vector.load %arg19[%c0_359, %c0_360, %c0_361] : memref<8x8x54xbf16, #tpu.memory_space<vmem>>, vector<8x8x6xbf16>
    tpu.vector_store %arg19[%c0_359, %c0_360, %c0_361], %258 {strides = array<i32>} : memref<8x8x54xbf16, #tpu.memory_space<vmem>>, vector<8x8x6xbf16>,
    %c0_362 = arith.constant 0 : index
    %c1_363 = arith.constant 1 : index
    %c0_364 = arith.constant 0 : index
    %260 = vector.load %arg18[%c0_362, %c1_363, %c0_364] : memref<10x10x6xbf16, #tpu.memory_space<vmem>>, vector<8x8x6xbf16>
    %c0_365 = arith.constant 0 : index
    %c0_366 = arith.constant 0 : index
    %c6 = arith.constant 6 : index
    %261 = vector.load %arg19[%c0_365, %c0_366, %c6] : memref<8x8x54xbf16, #tpu.memory_space<vmem>>, vector<8x8x6xbf16>
    tpu.vector_store %arg19[%c0_365, %c0_366, %c6], %260 {strides = array<i32>} : memref<8x8x54xbf16, #tpu.memory_space<vmem>>, vector<8x8x6xbf16>,
    %c0_367 = arith.constant 0 : index
    %c2_368 = arith.constant 2 : index
    %c0_369 = arith.constant 0 : index
    %262 = vector.load %arg18[%c0_367, %c2_368, %c0_369] : memref<10x10x6xbf16, #tpu.memory_space<vmem>>, vector<8x8x6xbf16>
    %c0_370 = arith.constant 0 : index
    %c0_371 = arith.constant 0 : index
    %c12_372 = arith.constant 12 : index
    %263 = vector.load %arg19[%c0_370, %c0_371, %c12_372] : memref<8x8x54xbf16, #tpu.memory_space<vmem>>, vector<8x8x6xbf16>
    tpu.vector_store %arg19[%c0_370, %c0_371, %c12_372], %262 {strides = array<i32>} : memref<8x8x54xbf16, #tpu.memory_space<vmem>>, vector<8x8x6xbf16>,
    %c1_373 = arith.constant 1 : index
    %c0_374 = arith.constant 0 : index
    %c0_375 = arith.constant 0 : index
    %264 = vector.load %arg18[%c1_373, %c0_374, %c0_375] : memref<10x10x6xbf16, #tpu.memory_space<vmem>>, vector<8x8x6xbf16>
    %c0_376 = arith.constant 0 : index
    %c0_377 = arith.constant 0 : index
    %c18 = arith.constant 18 : index
    %265 = vector.load %arg19[%c0_376, %c0_377, %c18] : memref<8x8x54xbf16, #tpu.memory_space<vmem>>, vector<8x8x6xbf16>
    tpu.vector_store %arg19[%c0_376, %c0_377, %c18], %264 {strides = array<i32>} : memref<8x8x54xbf16, #tpu.memory_space<vmem>>, vector<8x8x6xbf16>,
    %c1_378 = arith.constant 1 : index
    %c1_379 = arith.constant 1 : index
    %c0_380 = arith.constant 0 : index
    %266 = vector.load %arg18[%c1_378, %c1_379, %c0_380] : memref<10x10x6xbf16, #tpu.memory_space<vmem>>, vector<8x8x6xbf16>
    %c0_381 = arith.constant 0 : index
    %c0_382 = arith.constant 0 : index
    %c24_383 = arith.constant 24 : index
    %267 = vector.load %arg19[%c0_381, %c0_382, %c24_383] : memref<8x8x54xbf16, #tpu.memory_space<vmem>>, vector<8x8x6xbf16>
    tpu.vector_store %arg19[%c0_381, %c0_382, %c24_383], %266 {strides = array<i32>} : memref<8x8x54xbf16, #tpu.memory_space<vmem>>, vector<8x8x6xbf16>,
    %c1_384 = arith.constant 1 : index
    %c2_385 = arith.constant 2 : index
    %c0_386 = arith.constant 0 : index
    %268 = vector.load %arg18[%c1_384, %c2_385, %c0_386] : memref<10x10x6xbf16, #tpu.memory_space<vmem>>, vector<8x8x6xbf16>
    %c0_387 = arith.constant 0 : index
    %c0_388 = arith.constant 0 : index
    %c30 = arith.constant 30 : index
    %269 = vector.load %arg19[%c0_387, %c0_388, %c30] : memref<8x8x54xbf16, #tpu.memory_space<vmem>>, vector<8x8x6xbf16>
    tpu.vector_store %arg19[%c0_387, %c0_388, %c30], %268 {strides = array<i32>} : memref<8x8x54xbf16, #tpu.memory_space<vmem>>, vector<8x8x6xbf16>,
    %c2_389 = arith.constant 2 : index
    %c0_390 = arith.constant 0 : index
    %c0_391 = arith.constant 0 : index
    %270 = vector.load %arg18[%c2_389, %c0_390, %c0_391] : memref<10x10x6xbf16, #tpu.memory_space<vmem>>, vector<8x8x6xbf16>
    %c0_392 = arith.constant 0 : index
    %c0_393 = arith.constant 0 : index
    %c36 = arith.constant 36 : index
    %271 = vector.load %arg19[%c0_392, %c0_393, %c36] : memref<8x8x54xbf16, #tpu.memory_space<vmem>>, vector<8x8x6xbf16>
    tpu.vector_store %arg19[%c0_392, %c0_393, %c36], %270 {strides = array<i32>} : memref<8x8x54xbf16, #tpu.memory_space<vmem>>, vector<8x8x6xbf16>,
    %c2_394 = arith.constant 2 : index
    %c1_395 = arith.constant 1 : index
    %c0_396 = arith.constant 0 : index
    %272 = vector.load %arg18[%c2_394, %c1_395, %c0_396] : memref<10x10x6xbf16, #tpu.memory_space<vmem>>, vector<8x8x6xbf16>
    %c0_397 = arith.constant 0 : index
    %c0_398 = arith.constant 0 : index
    %c42 = arith.constant 42 : index
    %273 = vector.load %arg19[%c0_397, %c0_398, %c42] : memref<8x8x54xbf16, #tpu.memory_space<vmem>>, vector<8x8x6xbf16>
    tpu.vector_store %arg19[%c0_397, %c0_398, %c42], %272 {strides = array<i32>} : memref<8x8x54xbf16, #tpu.memory_space<vmem>>, vector<8x8x6xbf16>,
    %c2_399 = arith.constant 2 : index
    %c2_400 = arith.constant 2 : index
    %c0_401 = arith.constant 0 : index
    %274 = vector.load %arg18[%c2_399, %c2_400, %c0_401] : memref<10x10x6xbf16, #tpu.memory_space<vmem>>, vector<8x8x6xbf16>
    %c0_402 = arith.constant 0 : index
    %c0_403 = arith.constant 0 : index
    %c48 = arith.constant 48 : index
    %275 = vector.load %arg19[%c0_402, %c0_403, %c48] : memref<8x8x54xbf16, #tpu.memory_space<vmem>>, vector<8x8x6xbf16>
    tpu.vector_store %arg19[%c0_402, %c0_403, %c48], %274 {strides = array<i32>} : memref<8x8x54xbf16, #tpu.memory_space<vmem>>, vector<8x8x6xbf16>,
    %c0_404 = arith.constant 0 : index
    %c0_405 = arith.constant 0 : index
    %c0_406 = arith.constant 0 : index
    %276 = vector.load %arg19[%c0_404, %c0_405, %c0_406] : memref<8x8x54xbf16, #tpu.memory_space<vmem>>, vector<8x8x54xbf16>
    %277 = vector.shape_cast %276 : vector<8x8x54xbf16> to vector<64x54xbf16>
    %c0_407 = arith.constant 0 : index
    %c0_408 = arith.constant 0 : index
    %278 = vector.load %arg11[%c0_407, %c0_408] : memref<54x8xbf16, #tpu.memory_space<vmem>>, vector<54x8xbf16>
    %cst_409 = arith.constant dense<0.000000e+00> : vector<64x8xf32>
    %279 = tpu.matmul %277, %278, %cst_409 {dimension_numbers = #tpu.dot_dimension_numbers<[1], [0], [0], [1], [0, 0, 1, 1], [], []>} : vector<64x54xbf16>, vector<54x8xbf16>, vector<64x8xf32> -> vector<64x8xf32>
    %c0_410 = arith.constant 0 : index
    %c0_411 = arith.constant 0 : index
    %280 = vector.load %arg12[%c0_410, %c0_411] : memref<1x8xf32, #tpu.memory_space<vmem>>, vector<1x8xf32>
    %281 = vector.broadcast %280 : vector<1x8xf32> to vector<64x8xf32>
    %282 = arith.addf %279, %281 : vector<64x8xf32>
    %283 = arith.addf %243, %282 : vector<64x8xf32>
    %c0_412 = arith.constant 0 : index
    %c0_413 = arith.constant 0 : index
    %284 = vector.load %arg7[%c0_412, %c0_413] : memref<1x8xf32, #tpu.memory_space<vmem>>, vector<1x8xf32>
    %285 = vector.broadcast %284 : vector<1x8xf32> to vector<64x8xf32>
    %286 = arith.mulf %283, %285 : vector<64x8xf32>
    %c0_414 = arith.constant 0 : index
    %c0_415 = arith.constant 0 : index
    %287 = vector.load %arg8[%c0_414, %c0_415] : memref<1x8xf32, #tpu.memory_space<vmem>>, vector<1x8xf32>
    %288 = vector.broadcast %287 : vector<1x8xf32> to vector<64x8xf32>
    %289 = arith.addf %286, %288 : vector<64x8xf32>
    %cst_416 = arith.constant 0.000000e+00 : f32
    %290 = vector.broadcast %cst_416 : f32 to vector<64x8xf32>
    %291 = arith.maximumf %289, %290 : vector<64x8xf32>
    %c0_417 = arith.constant 0 : index
    %c0_418 = arith.constant 0 : index
    %292 = vector.load %arg13[%c0_417, %c0_418] : memref<1x8xf32, #tpu.memory_space<vmem>>, vector<1x8xf32>
    %293 = vector.broadcast %292 : vector<1x8xf32> to vector<64x8xf32>
    %294 = arith.mulf %291, %293 : vector<64x8xf32>
    %cst_419 = arith.constant dense<0.000000e+00> : vector<64xf32>
    %295 = vector.multi_reduction <add>, %294, %cst_419 [1] : vector<64x8xf32> to vector<64xf32>
    %296 = vector.shape_cast %295 : vector<64xf32> to vector<64x1xf32>
    %c0_420 = arith.constant 0 : index
    %c0_421 = arith.constant 0 : index
    %297 = vector.load %arg14[%c0_420, %c0_421] : memref<1x1xf32, #tpu.memory_space<vmem>>, vector<1x1xf32>
    %298 = vector.broadcast %297 : vector<1x1xf32> to vector<64x1xf32>
    %299 = arith.addf %296, %298 : vector<64x1xf32>
    %300 = vector.shape_cast %299 : vector<64x1xf32> to vector<8x8x1xf32>
    %301 = vector.broadcast %300 : vector<8x8x1xf32> to vector<8x8x6xf32>
    %302 = arith.mulf %301, %245 : vector<8x8x6xf32>
    %c0_422 = arith.constant 0 : index
    %c0_423 = arith.constant 0 : index
    %c0_424 = arith.constant 0 : index
    %c0_425 = arith.constant 0 : index
    %303 = vector.load %arg15[%c0_422, %c0_423, %c0_424, %c0_425] : memref<1x8x8x6xf32, #tpu.memory_space<vmem>>, vector<1x8x8x6xf32>
    %304 = vector.shape_cast %303 : vector<1x8x8x6xf32> to vector<8x8x6xf32>
    %305 = vector.shape_cast %302 : vector<8x8x6xf32> to vector<1x8x8x6xf32>
    tpu.vector_store %arg15[%c0_422, %c0_423, %c0_424, %c0_425], %305 {strides = array<i32>} : memref<1x8x8x6xf32, #tpu.memory_space<vmem>>, vector<1x8x8x6xf32>,
    return
  }
  func.func @transform_0(%arg0: i32) -> (i32, i32, i32, i32) {
    %c0_i32 = arith.constant 0 : i32
    %c0_i32_0 = arith.constant 0 : i32
    %c0_i32_1 = arith.constant 0 : i32
    %c0_i32_2 = arith.constant 0 : i32
    return %arg0, %c0_i32, %c0_i32_0, %c0_i32_1 : i32, i32, i32, i32
  }
  func.func @transform_1(%arg0: i32) -> (i32, i32, i32, i32) {
    %c0_i32 = arith.constant 0 : i32
    %c0_i32_0 = arith.constant 0 : i32
    %c0_i32_1 = arith.constant 0 : i32
    %c0_i32_2 = arith.constant 0 : i32
    return %arg0, %c0_i32, %c0_i32_0, %c0_i32_1 : i32, i32, i32, i32
  }
  func.func @transform_2(%arg0: i32) -> (i32, i32) {
    %c0_i32 = arith.constant 0 : i32
    %c0_i32_0 = arith.constant 0 : i32
    %c0_i32_1 = arith.constant 0 : i32
    return %c0_i32, %c0_i32_0 : i32, i32
  }
  func.func @transform_3(%arg0: i32) -> (i32, i32) {
    %c0_i32 = arith.constant 0 : i32
    %c0_i32_0 = arith.constant 0 : i32
    %c0_i32_1 = arith.constant 0 : i32
    return %c0_i32, %c0_i32_0 : i32, i32
  }
  func.func @transform_4(%arg0: i32) -> (i32, i32) {
    %c0_i32 = arith.constant 0 : i32
    %c0_i32_0 = arith.constant 0 : i32
    %c0_i32_1 = arith.constant 0 : i32
    return %c0_i32, %c0_i32_0 : i32, i32
  }
  func.func @transform_5(%arg0: i32) -> (i32, i32) {
    %c0_i32 = arith.constant 0 : i32
    %c0_i32_0 = arith.constant 0 : i32
    %c0_i32_1 = arith.constant 0 : i32
    return %c0_i32, %c0_i32_0 : i32, i32
  }
  func.func @transform_6(%arg0: i32) -> (i32, i32) {
    %c0_i32 = arith.constant 0 : i32
    %c0_i32_0 = arith.constant 0 : i32
    %c0_i32_1 = arith.constant 0 : i32
    return %c0_i32, %c0_i32_0 : i32, i32
  }
  func.func @transform_7(%arg0: i32) -> (i32, i32) {
    %c0_i32 = arith.constant 0 : i32
    %c0_i32_0 = arith.constant 0 : i32
    %c0_i32_1 = arith.constant 0 : i32
    return %c0_i32, %c0_i32_0 : i32, i32
  }
  func.func @transform_8(%arg0: i32) -> (i32, i32) {
    %c0_i32 = arith.constant 0 : i32
    %c0_i32_0 = arith.constant 0 : i32
    %c0_i32_1 = arith.constant 0 : i32
    return %c0_i32, %c0_i32_0 : i32, i32
  }
  func.func @transform_9(%arg0: i32) -> (i32, i32) {
    %c0_i32 = arith.constant 0 : i32
    %c0_i32_0 = arith.constant 0 : i32
    %c0_i32_1 = arith.constant 0 : i32
    return %c0_i32, %c0_i32_0 : i32, i32
  }
  func.func @transform_10(%arg0: i32) -> (i32, i32) {
    %c0_i32 = arith.constant 0 : i32
    %c0_i32_0 = arith.constant 0 : i32
    %c0_i32_1 = arith.constant 0 : i32
    return %c0_i32, %c0_i32_0 : i32, i32
  }
  func.func @transform_11(%arg0: i32) -> (i32, i32) {
    %c0_i32 = arith.constant 0 : i32
    %c0_i32_0 = arith.constant 0 : i32
    %c0_i32_1 = arith.constant 0 : i32
    return %c0_i32, %c0_i32_0 : i32, i32
  }
  func.func @transform_12(%arg0: i32) -> (i32, i32) {
    %c0_i32 = arith.constant 0 : i32
    %c0_i32_0 = arith.constant 0 : i32
    %c0_i32_1 = arith.constant 0 : i32
    return %c0_i32, %c0_i32_0 : i32, i32
  }
  func.func @transform_13(%arg0: i32) -> (i32, i32) {
    %c0_i32 = arith.constant 0 : i32
    %c0_i32_0 = arith.constant 0 : i32
    %c0_i32_1 = arith.constant 0 : i32
    return %c0_i32, %c0_i32_0 : i32, i32
  }
  func.func @transform_14(%arg0: i32) -> (i32, i32, i32, i32) {
    %c0_i32 = arith.constant 0 : i32
    %c0_i32_0 = arith.constant 0 : i32
    %c0_i32_1 = arith.constant 0 : i32
    %c0_i32_2 = arith.constant 0 : i32
    return %arg0, %c0_i32, %c0_i32_0, %c0_i32_1 : i32, i32, i32, i32
  }
}

</mosaic_0001>

<llo_original>
// kernel: tpu_custom_call.1
$region0: #{tpu_custom_call.1}
  #allocation0 [shape = 'u32[]', space=smem, size = 0x4, offset = 0x4, fixed_abs, tag = 'smem constant byte address 0x4 - core index']
  #allocation1 [shape = 'u32[144,128]{1,0:T(1,128)}', space=vmem, size = 0x12000, scoped, tag = 'internal scratch']
  #allocation2 [shape = 'bf16[4,10,10,4]{3,2,1,0:T(8,128)(2,1)}', space=vmem, size = 0x28000, scoped, tag = 'scratch operand']
  #allocation3 [shape = 'bf16[4,8,8,36]{3,2,1,0:T(8,128)(2,1)}', space=vmem, size = 0x10000, scoped, tag = 'scratch operand']
  #allocation4 [shape = 'bf16[10,10,6]{2,1,0:T(8,128)(2,1)}', space=vmem, size = 0xa000, scoped, tag = 'scratch operand']
  #allocation5 [shape = 'bf16[8,8,54]{2,1,0:T(8,128)(2,1)}', space=vmem, size = 0x4000, scoped, tag = 'scratch operand']
  #allocation6 [shape = 'f32[1,1]{1,0:T(1,128)S(1)}', space=vmem, size = 0x200, scoped, tag = 'scoped memory for tpu_custom_call.1']
  %s0 = inlined_call_operand.vmem [shape: f32[2,32,8,4], index: 0, kind: input, shape index: {}]
  %s1 = inlined_call_operand.vmem [shape: f32[2,8,8,6], index: 1, kind: input, shape index: {}]
  %s2 = inlined_call_operand.vmem [shape: f32[1,4], index: 2, kind: input, shape index: {}]
  %s3 = inlined_call_operand.vmem [shape: f32[1,4], index: 3, kind: input, shape index: {}]
  %s4 = inlined_call_operand.vmem [shape: f32[1,6], index: 4, kind: input, shape index: {}]
  %s5 = inlined_call_operand.vmem [shape: f32[1,6], index: 5, kind: input, shape index: {}]
  %s6 = inlined_call_operand.vmem [shape: f32[1,8], index: 6, kind: input, shape index: {}]
  %s7 = inlined_call_operand.vmem [shape: f32[1,8], index: 7, kind: input, shape index: {}]
  %s8 = inlined_call_operand.vmem [shape: bf16[36,8], index: 8, kind: input, shape index: {}]
  %s9 = inlined_call_operand.vmem [shape: f32[1,8], index: 9, kind: input, shape index: {}]
  %s10 = inlined_call_operand.vmem [shape: bf16[54,8], index: 10, kind: input, shape index: {}]
  %s11 = inlined_call_operand.vmem [shape: f32[1,8], index: 11, kind: input, shape index: {}]
  %s12 = inlined_call_operand.vmem [shape: f32[1,8], index: 12, kind: input, shape index: {}]
  %s13 = inlined_call_operand.<no memory space> [shape: f32[1,1], index: 13, kind: input, shape index: {}]
  %s14 = inlined_call_operand.vmem [shape: f32[2,8,8,6], index: 14, kind: output, shape index: {}]
  %s15 = sld [smem:[#allocation0]]
  $region89: #{tpu_custom_call.1} parent=0
    _
  %s17 = ssub.s32 1, %s15
  %s18 = scalar_select 0, %s17, %s15
  %v19 = vstv %s13
  %20 = vst [vmem:[#allocation6] sm:$0x1] %v19
  loop: start=0, step=1, limit=4
  $region2: #{tpu_custom_call.1} parent=0 // loop_pre_header
    _
  $region3: #{tpu_custom_call.1} parent=0 // loop_header
    %s22 = sphi 0, %s26
    %p23 = scmp.ge.s32.totalorder %s22, 4
    %s32 = sphi 0, %s34
    %s35 = sphi 0, %s32
    %s36 = sphi 0, %s35
    %s52 = sphi 0, %s36
    %s58 = sphi 0, %s60
    %s61 = sphi 0, %s58
    %s62 = sphi 0, %s61
    %s78 = sphi 0, %s62
    %s82 = sphi 0, %s82
    %s84 = sphi 0, %s82
    %s85 = sphi 0, %s84
    %s99 = sphi 0, %s85
    %s103 = sphi 0, %s103
    %s105 = sphi 0, %s103
    %s106 = sphi 0, %s105
    %s120 = sphi 0, %s106
    %s124 = sphi 0, %s124
    %s126 = sphi 0, %s124
    %s127 = sphi 0, %s126
    %s141 = sphi 0, %s127
    %s145 = sphi 0, %s145
    %s147 = sphi 0, %s145
    %s148 = sphi 0, %s147
    %s162 = sphi 0, %s148
    %s166 = sphi 0, %s166
    %s168 = sphi 0, %s166
    %s169 = sphi 0, %s168
    %s183 = sphi 0, %s169
    %s187 = sphi 0, %s187
    %s189 = sphi 0, %s187
    %s190 = sphi 0, %s189
    %s204 = sphi 0, %s190
    %s208 = sphi 0, %s208
    %s210 = sphi 0, %s208
    %s211 = sphi 0, %s210
    %s225 = sphi 0, %s211
    %s229 = sphi 0, %s229
    %s231 = sphi 0, %s229
    %s232 = sphi 0, %s231
    %s246 = sphi 0, %s232
    %s250 = sphi 0, %s250
    %s252 = sphi 0, %s250
    %s253 = sphi 0, %s252
    %s267 = sphi 0, %s253
    %s271 = sphi 0, %s271
    %s273 = sphi 0, %s271
    %s274 = sphi 0, %s273
    %s288 = sphi 0, %s274
    %s292 = sphi 0, %s292
    %s294 = sphi 0, %s292
    %s295 = sphi 0, %s294
    %s309 = sphi 0, %s295
    %s313 = sphi 0, %s313
    %s315 = sphi 0, %s313
    %s316 = sphi 0, %s315
    %s330 = sphi 0, %s316
    %s336 = sphi 0, %s338
    %s339 = sphi 0, %s336
    %s340 = sphi 0, %s339
    %s356 = sphi 0, %s340
  $region4: #{tpu_custom_call.1} parent=0 // loop_header_branch
    %25 = sbr.rel (%p23) target = $region8
  $region5: #{tpu_custom_call.1} parent=0 // loop_body
    %s27 = ssub.s32 %s22, 1
    %s28 = ssub.s32 %s22, 2
    %s29 = sadd.s32 %s22, 1
    %s30 = ssub.s32 %s22, %s29
    %p31 = scmp.eq.s32.totalorder %s30, 0
    %s33 = sadd.s32 %s32, 1
    %s34 = scalar_select %p31, %s32, %s33
    %p37 = pneg %p31
    %p38 = scmp.eq.s32.totalorder %s22, 1
    %p39 = por %p37, %p38
    %p40 = scmp.ne.s32.totalorder %s32, %s35
    %p41 = scmp.eq.s32.totalorder %s22, 0
    %p42 = por %p40, %p41
    %p43 = scmp.ne.s32.totalorder %s32, %s35
    %p44 = scmp.eq.s32.totalorder %s27, 1
    %p45 = por %p43, %p44
    %p46 = scmp.ne.s32.totalorder %s35, %s36
    %p47 = scmp.eq.s32.totalorder %s27, 0
    %p48 = por %p46, %p47
    %p49 = scmp.ne.s32.totalorder %s35, %s36
    %p50 = scmp.eq.s32.totalorder %s28, 1
    %p51 = por %p49, %p50
    %p53 = scmp.ne.s32.totalorder %s36, %s52
    %p54 = scmp.eq.s32.totalorder %s28, 0
    %p55 = por %p53, %p54
    %s56 = ssub.s32 %s22, %s29
    %p57 = scmp.eq.s32.totalorder %s56, 0
    %s59 = sadd.s32 %s58, 1
    %s60 = scalar_select %p57, %s58, %s59
    %p63 = pneg %p57
    %p64 = scmp.eq.s32.totalorder %s22, 1
    %p65 = por %p63, %p64
    %p66 = scmp.ne.s32.totalorder %s58, %s61
    %p67 = scmp.eq.s32.totalorder %s22, 0
    %p68 = por %p66, %p67
    %p69 = scmp.ne.s32.totalorder %s58, %s61
    %p70 = scmp.eq.s32.totalorder %s27, 1
    %p71 = por %p69, %p70
    %p72 = scmp.ne.s32.totalorder %s61, %s62
    %p73 = scmp.eq.s32.totalorder %s27, 0
    %p74 = por %p72, %p73
    %p75 = scmp.ne.s32.totalorder %s61, %s62
    %p76 = scmp.eq.s32.totalorder %s28, 1
    %p77 = por %p75, %p76
    %p79 = scmp.ne.s32.totalorder %s62, %s78
    %p80 = scmp.eq.s32.totalorder %s28, 0
    %p81 = por %p79, %p80
    %s83 = sadd.s32 %s82, 1
    %p86 = scmp.eq.s32.totalorder %s22, 1
    %p87 = scmp.ne.s32.totalorder %s82, %s84
    %p88 = scmp.eq.s32.totalorder %s22, 0
    %p89 = por %p87, %p88
    %p90 = scmp.ne.s32.totalorder %s82, %s84
    %p91 = scmp.eq.s32.totalorder %s27, 1
    %p92 = por %p90, %p91
    %p93 = scmp.ne.s32.totalorder %s84, %s85
    %p94 = scmp.eq.s32.totalorder %s27, 0
    %p95 = por %p93, %p94
    %p96 = scmp.ne.s32.totalorder %s84, %s85
    %p97 = scmp.eq.s32.totalorder %s28, 1
    %p98 = por %p96, %p97
    %p100 = scmp.ne.s32.totalorder %s85, %s99
    %p101 = scmp.eq.s32.totalorder %s28, 0
    %p102 = por %p100, %p101
    %s104 = sadd.s32 %s103, 1
    %p107 = scmp.eq.s32.totalorder %s22, 1
    %p108 = scmp.ne.s32.totalorder %s103, %s105
    %p109 = scmp.eq.s32.totalorder %s22, 0
    %p110 = por %p108, %p109
    %p111 = scmp.ne.s32.totalorder %s103, %s105
    %p112 = scmp.eq.s32.totalorder %s27, 1
    %p113 = por %p111, %p112
    %p114 = scmp.ne.s32.totalorder %s105, %s106
    %p115 = scmp.eq.s32.totalorder %s27, 0
    %p116 = por %p114, %p115
    %p117 = scmp.ne.s32.totalorder %s105, %s106
    %p118 = scmp.eq.s32.totalorder %s28, 1
    %p119 = por %p117, %p118
    %p121 = scmp.ne.s32.totalorder %s106, %s120
    %p122 = scmp.eq.s32.totalorder %s28, 0
    %p123 = por %p121, %p122
    %s125 = sadd.s32 %s124, 1
    %p128 = scmp.eq.s32.totalorder %s22, 1
    %p129 = scmp.ne.s32.totalorder %s124, %s126
    %p130 = scmp.eq.s32.totalorder %s22, 0
    %p131 = por %p129, %p130
    %p132 = scmp.ne.s32.totalorder %s124, %s126
    %p133 = scmp.eq.s32.totalorder %s27, 1
    %p134 = por %p132, %p133
    %p135 = scmp.ne.s32.totalorder %s126, %s127
    %p136 = scmp.eq.s32.totalorder %s27, 0
    %p137 = por %p135, %p136
    %p138 = scmp.ne.s32.totalorder %s126, %s127
    %p139 = scmp.eq.s32.totalorder %s28, 1
    %p140 = por %p138, %p139
    %p142 = scmp.ne.s32.totalorder %s127, %s141
    %p143 = scmp.eq.s32.totalorder %s28, 0
    %p144 = por %p142, %p143
    %s146 = sadd.s32 %s145, 1
    %p149 = scmp.eq.s32.totalorder %s22, 1
    %p150 = scmp.ne.s32.totalorder %s145, %s147
    %p151 = scmp.eq.s32.totalorder %s22, 0
    %p152 = por %p150, %p151
    %p153 = scmp.ne.s32.totalorder %s145, %s147
    %p154 = scmp.eq.s32.totalorder %s27, 1
    %p155 = por %p153, %p154
    %p156 = scmp.ne.s32.totalorder %s147, %s148
    %p157 = scmp.eq.s32.totalorder %s27, 0
    %p158 = por %p156, %p157
    %p159 = scmp.ne.s32.totalorder %s147, %s148
    %p160 = scmp.eq.s32.totalorder %s28, 1
    %p161 = por %p159, %p160
    %p163 = scmp.ne.s32.totalorder %s148, %s162
    %p164 = scmp.eq.s32.totalorder %s28, 0
    %p165 = por %p163, %p164
    %s167 = sadd.s32 %s166, 1
    %p170 = scmp.eq.s32.totalorder %s22, 1
    %p171 = scmp.ne.s32.totalorder %s166, %s168
    %p172 = scmp.eq.s32.totalorder %s22, 0
    %p173 = por %p171, %p172
    %p174 = scmp.ne.s32.totalorder %s166, %s168
    %p175 = scmp.eq.s32.totalorder %s27, 1
    %p176 = por %p174, %p175
    %p177 = scmp.ne.s32.totalorder %s168, %s169
    %p178 = scmp.eq.s32.totalorder %s27, 0
    %p179 = por %p177, %p178
    %p180 = scmp.ne.s32.totalorder %s168, %s169
    %p181 = scmp.eq.s32.totalorder %s28, 1
    %p182 = por %p180, %p181
    %p184 = scmp.ne.s32.totalorder %s169, %s183
    %p185 = scmp.eq.s32.totalorder %s28, 0
    %p186 = por %p184, %p185
    %s188 = sadd.s32 %s187, 1
    %p191 = scmp.eq.s32.totalorder %s22, 1
    %p192 = scmp.ne.s32.totalorder %s187, %s189
    %p193 = scmp.eq.s32.totalorder %s22, 0
    %p194 = por %p192, %p193
    %p195 = scmp.ne.s32.totalorder %s187, %s189
    %p196 = scmp.eq.s32.totalorder %s27, 1
    %p197 = por %p195, %p196
    %p198 = scmp.ne.s32.totalorder %s189, %s190
    %p199 = scmp.eq.s32.totalorder %s27, 0
    %p200 = por %p198, %p199
    %p201 = scmp.ne.s32.totalorder %s189, %s190
    %p202 = scmp.eq.s32.totalorder %s28, 1
    %p203 = por %p201, %p202
    %p205 = scmp.ne.s32.totalorder %s190, %s204
    %p206 = scmp.eq.s32.totalorder %s28, 0
    %p207 = por %p205, %p206
    %s209 = sadd.s32 %s208, 1
    %p212 = scmp.eq.s32.totalorder %s22, 1
    %p213 = scmp.ne.s32.totalorder %s208, %s210
    %p214 = scmp.eq.s32.totalorder %s22, 0
    %p215 = por %p213, %p214
    %p216 = scmp.ne.s32.totalorder %s208, %s210
    %p217 = scmp.eq.s32.totalorder %s27, 1
    %p218 = por %p216, %p217
    %p219 = scmp.ne.s32.totalorder %s210, %s211
    %p220 = scmp.eq.s32.totalorder %s27, 0
    %p221 = por %p219, %p220
    %p222 = scmp.ne.s32.totalorder %s210, %s211
    %p223 = scmp.eq.s32.totalorder %s28, 1
    %p224 = por %p222, %p223
    %p226 = scmp.ne.s32.totalorder %s211, %s225
    %p227 = scmp.eq.s32.totalorder %s28, 0
    %p228 = por %p226, %p227
    %s230 = sadd.s32 %s229, 1
    %p233 = scmp.eq.s32.totalorder %s22, 1
    %p234 = scmp.ne.s32.totalorder %s229, %s231
    %p235 = scmp.eq.s32.totalorder %s22, 0
    %p236 = por %p234, %p235
    %p237 = scmp.ne.s32.totalorder %s229, %s231
    %p238 = scmp.eq.s32.totalorder %s27, 1
    %p239 = por %p237, %p238
    %p240 = scmp.ne.s32.totalorder %s231, %s232
    %p241 = scmp.eq.s32.totalorder %s27, 0
    %p242 = por %p240, %p241
    %p243 = scmp.ne.s32.totalorder %s231, %s232
    %p244 = scmp.eq.s32.totalorder %s28, 1
    %p245 = por %p243, %p244
    %p247 = scmp.ne.s32.totalorder %s232, %s246
    %p248 = scmp.eq.s32.totalorder %s28, 0
    %p249 = por %p247, %p248
    %s251 = sadd.s32 %s250, 1
    %p254 = scmp.eq.s32.totalorder %s22, 1
    %p255 = scmp.ne.s32.totalorder %s250, %s252
    %p256 = scmp.eq.s32.totalorder %s22, 0
    %p257 = por %p255, %p256
    %p258 = scmp.ne.s32.totalorder %s250, %s252
    %p259 = scmp.eq.s32.totalorder %s27, 1
    %p260 = por %p258, %p259
    %p261 = scmp.ne.s32.totalorder %s252, %s253
    %p262 = scmp.eq.s32.totalorder %s27, 0
    %p263 = por %p261, %p262
    %p264 = scmp.ne.s32.totalorder %s252, %s253
    %p265 = scmp.eq.s32.totalorder %s28, 1
    %p266 = por %p264, %p265
    %p268 = scmp.ne.s32.totalorder %s253, %s267
    %p269 = scmp.eq.s32.totalorder %s28, 0
    %p270 = por %p268, %p269
    %s272 = sadd.s32 %s271, 1
    %p275 = scmp.eq.s32.totalorder %s22, 1
    %p276 = scmp.ne.s32.totalorder %s271, %s273
    %p277 = scmp.eq.s32.totalorder %s22, 0
    %p278 = por %p276, %p277
    %p279 = scmp.ne.s32.totalorder %s271, %s273
    %p280 = scmp.eq.s32.totalorder %s27, 1
    %p281 = por %p279, %p280
    %p282 = scmp.ne.s32.totalorder %s273, %s274
    %p283 = scmp.eq.s32.totalorder %s27, 0
    %p284 = por %p282, %p283
    %p285 = scmp.ne.s32.totalorder %s273, %s274
    %p286 = scmp.eq.s32.totalorder %s28, 1
    %p287 = por %p285, %p286
    %p289 = scmp.ne.s32.totalorder %s274, %s288
    %p290 = scmp.eq.s32.totalorder %s28, 0
    %p291 = por %p289, %p290
    %s293 = sadd.s32 %s292, 1
    %p296 = scmp.eq.s32.totalorder %s22, 1
    %p297 = scmp.ne.s32.totalorder %s292, %s294
    %p298 = scmp.eq.s32.totalorder %s22, 0
    %p299 = por %p297, %p298
    %p300 = scmp.ne.s32.totalorder %s292, %s294
    %p301 = scmp.eq.s32.totalorder %s27, 1
    %p302 = por %p300, %p301
    %p303 = scmp.ne.s32.totalorder %s294, %s295
    %p304 = scmp.eq.s32.totalorder %s27, 0
    %p305 = por %p303, %p304
    %p306 = scmp.ne.s32.totalorder %s294, %s295
    %p307 = scmp.eq.s32.totalorder %s28, 1
    %p308 = por %p306, %p307
    %p310 = scmp.ne.s32.totalorder %s295, %s309
    %p311 = scmp.eq.s32.totalorder %s28, 0
    %p312 = por %p310, %p311
    %s314 = sadd.s32 %s313, 1
    %p317 = scmp.eq.s32.totalorder %s22, 1
    %p318 = scmp.ne.s32.totalorder %s313, %s315
    %p319 = scmp.eq.s32.totalorder %s22, 0
    %p320 = por %p318, %p319
    %p321 = scmp.ne.s32.totalorder %s313, %s315
    %p322 = scmp.eq.s32.totalorder %s27, 1
    %p323 = por %p321, %p322
    %p324 = scmp.ne.s32.totalorder %s315, %s316
    %p325 = scmp.eq.s32.totalorder %s27, 0
    %p326 = por %p324, %p325
    %p327 = scmp.ne.s32.totalorder %s315, %s316
    %p328 = scmp.eq.s32.totalorder %s28, 1
    %p329 = por %p327, %p328
    %p331 = scmp.ne.s32.totalorder %s316, %s330
    %p332 = scmp.eq.s32.totalorder %s28, 0
    %p333 = por %p331, %p332
    %s334 = ssub.s32 %s22, %s29
    %p335 = scmp.eq.s32.totalorder %s334, 0
    %s337 = sadd.s32 %s336, 1
    %s338 = scalar_select %p335, %s336, %s337
    %p341 = pneg %p335
    %p342 = scmp.eq.s32.totalorder %s22, 1
    %p343 = por %p341, %p342
    %p344 = scmp.ne.s32.totalorder %s336, %s339
    %p345 = scmp.eq.s32.totalorder %s22, 0
    %p346 = por %p344, %p345
    %p347 = scmp.ne.s32.totalorder %s336, %s339
    %p348 = scmp.eq.s32.totalorder %s27, 1
    %p349 = por %p347, %p348
    %p350 = scmp.ne.s32.totalorder %s339, %s340
    %p351 = scmp.eq.s32.totalorder %s27, 0
    %p352 = por %p350, %p351
    %p353 = scmp.ne.s32.totalorder %s339, %s340
    %p354 = scmp.eq.s32.totalorder %s28, 1
    %p355 = por %p353, %p354
    %p357 = scmp.ne.s32.totalorder %s340, %s356
    %p358 = scmp.eq.s32.totalorder %s28, 0
    %p359 = por %p357, %p358
    %p360 = scmp.le.s32.totalorder 1, %s22
    %p361 = scmp.lt.s32.totalorder %s22, 3
    %p362 = pnand %p360, %p361
    %p363 = pneg %p362
    // Predicated region
    $region9: #{tpu_custom_call.1} parent=5 // pred_check
      _
    $region10: #{tpu_custom_call.1} parent=5 // pred_check_branch
      %365 = sbr.rel (%p362) target = $region12
    $region11: #{tpu_custom_call.1} parent=5 // pred_region
      %s366 = ssub.s32 %s22, 1
      // Predicated region
      $region13: #{tpu_custom_call.1} parent=11 // pred_check
        %p367 = pneg %p95
      $region14: #{tpu_custom_call.1} parent=11 // pred_check_branch
        %369 = sbr.rel (%p367) target = $region16
      $region15: #{tpu_custom_call.1} parent=11 // pred_region
        _
      $region16: #{tpu_custom_call.1} parent=11 // pred_fallthru
        _
      // Predicated region
      $region17: #{tpu_custom_call.1} parent=11 // pred_check
        %p370 = pneg %p116
      $region18: #{tpu_custom_call.1} parent=11 // pred_check_branch
        %372 = sbr.rel (%p370) target = $region20
      $region19: #{tpu_custom_call.1} parent=11 // pred_region
        _
      $region20: #{tpu_custom_call.1} parent=11 // pred_fallthru
        _
      // Predicated region
      $region21: #{tpu_custom_call.1} parent=11 // pred_check
        %p373 = pneg %p137
      $region22: #{tpu_custom_call.1} parent=11 // pred_check_branch
        %375 = sbr.rel (%p373) target = $region24
      $region23: #{tpu_custom_call.1} parent=11 // pred_region
        _
      $region24: #{tpu_custom_call.1} parent=11 // pred_fallthru
        _
      // Predicated region
      $region25: #{tpu_custom_call.1} parent=11 // pred_check
        %p376 = pneg %p158
      $region26: #{tpu_custom_call.1} parent=11 // pred_check_branch
        %378 = sbr.rel (%p376) target = $region28
      $region27: #{tpu_custom_call.1} parent=11 // pred_region
        _
      $region28: #{tpu_custom_call.1} parent=11 // pred_fallthru
        _
      // Predicated region
      $region29: #{tpu_custom_call.1} parent=11 // pred_check
        %p379 = pneg %p179
      $region30: #{tpu_custom_call.1} parent=11 // pred_check_branch
        %381 = sbr.rel (%p379) target = $region32
      $region31: #{tpu_custom_call.1} parent=11 // pred_region
        _
      $region32: #{tpu_custom_call.1} parent=11 // pred_fallthru
        _
      // Predicated region
      $region33: #{tpu_custom_call.1} parent=11 // pred_check
        %p382 = pneg %p200
      $region34: #{tpu_custom_call.1} parent=11 // pred_check_branch
        %384 = sbr.rel (%p382) target = $region36
      $region35: #{tpu_custom_call.1} parent=11 // pred_region
        _
      $region36: #{tpu_custom_call.1} parent=11 // pred_fallthru
        _
      // Predicated region
      $region37: #{tpu_custom_call.1} parent=11 // pred_check
        %p385 = pneg %p221
      $region38: #{tpu_custom_call.1} parent=11 // pred_check_branch
        %387 = sbr.rel (%p385) target = $region40
      $region39: #{tpu_custom_call.1} parent=11 // pred_region
        _
      $region40: #{tpu_custom_call.1} parent=11 // pred_fallthru
        _
      // Predicated region
      $region41: #{tpu_custom_call.1} parent=11 // pred_check
        %p388 = pneg %p242
      $region42: #{tpu_custom_call.1} parent=11 // pred_check_branch
        %390 = sbr.rel (%p388) target = $region44
      $region43: #{tpu_custom_call.1} parent=11 // pred_region
        _
      $region44: #{tpu_custom_call.1} parent=11 // pred_fallthru
        _
      // Predicated region
      $region45: #{tpu_custom_call.1} parent=11 // pred_check
        %p391 = pneg %p263
      $region46: #{tpu_custom_call.1} parent=11 // pred_check_branch
        %393 = sbr.rel (%p391) target = $region48
      $region47: #{tpu_custom_call.1} parent=11 // pred_region
        _
      $region48: #{tpu_custom_call.1} parent=11 // pred_fallthru
        _
      // Predicated region
      $region49: #{tpu_custom_call.1} parent=11 // pred_check
        %p394 = pneg %p284
      $region50: #{tpu_custom_call.1} parent=11 // pred_check_branch
        %396 = sbr.rel (%p394) target = $region52
      $region51: #{tpu_custom_call.1} parent=11 // pred_region
        _
      $region52: #{tpu_custom_call.1} parent=11 // pred_fallthru
        _
      // Predicated region
      $region53: #{tpu_custom_call.1} parent=11 // pred_check
        %p397 = pneg %p305
      $region54: #{tpu_custom_call.1} parent=11 // pred_check_branch
        %399 = sbr.rel (%p397) target = $region56
      $region55: #{tpu_custom_call.1} parent=11 // pred_region
        _
      $region56: #{tpu_custom_call.1} parent=11 // pred_fallthru
        _
      // Predicated region
      $region57: #{tpu_custom_call.1} parent=11 // pred_check
        %p400 = pneg %p326
      $region58: #{tpu_custom_call.1} parent=11 // pred_check_branch
        %402 = sbr.rel (%p400) target = $region60
      $region59: #{tpu_custom_call.1} parent=11 // pred_region
        _
      $region60: #{tpu_custom_call.1} parent=11 // pred_fallthru
        _
    $region12: #{tpu_custom_call.1} parent=5 // pred_fallthru
      _
    %p403 = scmp.lt.s32.totalorder %s22, 2
    // Predicated region
    $region61: #{tpu_custom_call.1} parent=5 // pred_check
      %p404 = pneg %p403
    $region62: #{tpu_custom_call.1} parent=5 // pred_check_branch
      %406 = sbr.rel (%p404) target = $region64
    $region63: #{tpu_custom_call.1} parent=5 // pred_region
      // Predicated region
      $region65: #{tpu_custom_call.1} parent=63 // pred_check
        %p407 = pneg %p42
      $region66: #{tpu_custom_call.1} parent=63 // pred_check_branch
        %409 = sbr.rel (%p407) target = $region68
      $region67: #{tpu_custom_call.1} parent=63 // pred_region
        %p410 = scmp.lt.s32.totalorder %s22, 1
        %s411 = scalar_select %p410, %s22, 1
        %s412 = smul.addr %s411, 32
        %s413 = smul.addr %s412, 8
        %s414 = scalar_lea.vmem %s0, %s413
      $region68: #{tpu_custom_call.1} parent=63 // pred_fallthru
        _
      // Predicated region
      $region69: #{tpu_custom_call.1} parent=63 // pred_check
        %p415 = pneg %p68
      $region70: #{tpu_custom_call.1} parent=63 // pred_check_branch
        %417 = sbr.rel (%p415) target = $region72
      $region71: #{tpu_custom_call.1} parent=63 // pred_region
        %p418 = scmp.lt.s32.totalorder %s22, 1
        %s419 = scalar_select %p418, %s22, 1
        %s420 = smul.addr %s419, 8
        %s421 = smul.addr %s420, 8
        %s422 = scalar_lea.vmem %s1, %s421
      $region72: #{tpu_custom_call.1} parent=63 // pred_fallthru
        _
    $region64: #{tpu_custom_call.1} parent=5 // pred_fallthru
      _
    %p423 = scmp.le.s32.totalorder 1, %s22
    %p424 = scmp.lt.s32.totalorder %s22, 3
    %p425 = pnand %p423, %p424
    %p426 = pneg %p425
    // Predicated region
    $region73: #{tpu_custom_call.1} parent=5 // pred_check
      _
    $region74: #{tpu_custom_call.1} parent=5 // pred_check_branch
      %428 = sbr.rel (%p425) target = $region76
    $region75: #{tpu_custom_call.1} parent=5 // pred_region
      %s429 = ssub.s32 %s22, 1
      %p430 = scmp.lt.s32.totalorder %s27, 1
      %s431 = scalar_select %p430, %s27, 1
      %s432 = smul.addr %s431, 32
      %s433 = smul.addr %s432, 8
      %s434 = scalar_lea.vmem %s0, %s433
      %p435 = pneg %p48
      %p436 = pneg %p45
      %p437 = scmp.lt.s32.totalorder %s27, 1
      %s438 = scalar_select %p437, %s27, 1
      %s439 = smul.addr %s438, 8
      %s440 = smul.addr %s439, 8
      %s441 = scalar_lea.vmem %s1, %s440
      %p442 = pneg %p74
      %p443 = pneg %p71
      %p444 = pneg %p95
      %p445 = pneg %p92
      %p446 = pneg %p116
      %p447 = pneg %p113
      %p448 = pneg %p137
      %p449 = pneg %p134
      %p450 = pneg %p158
      %p451 = pneg %p155
      %p452 = pneg %p179
      %p453 = pneg %p176
      %p454 = pneg %p200
      %p455 = pneg %p197
      %p456 = pneg %p221
      %p457 = pneg %p218
      %p458 = pneg %p242
      %p459 = pneg %p239
      %p460 = pneg %p263
      %p461 = pneg %p260
      %p462 = pneg %p284
      %p463 = pneg %p281
      %p464 = pneg %p305
      %p465 = pneg %p302
      %p466 = pneg %p326
      %p467 = pneg %p323
      %p468 = pneg %p352
      %p469 = pneg %p349
      %p470 = scmp.lt.s32.totalorder %s27, 1
      %s471 = scalar_select %p470, %s27, 1
      %s472 = smul.addr %s471, 8
      %s473 = smul.addr %s472, 8
      %s474 = scalar_lea.vmem %s14, %s473
      %p475 = scmp.lt.s32.totalorder %s27, 1
      %s476 = scalar_select %p475, %s27, 1
      %s477 = smul.addr %s476, 32
      %s478 = smul.addr %s477, 8
      %s479 = scalar_lea.vmem %s0, %s478
      %p480 = scmp.lt.s32.totalorder %s27, 1
      %s481 = scalar_select %p480, %s27, 1
      %s482 = smul.addr %s481, 8
      %s483 = smul.addr %s482, 8
      %s484 = scalar_lea.vmem %s1, %s483
      %p485 = scmp.lt.s32.totalorder %s27, 1
      %s486 = scalar_select %p485, %s27, 1
      %s487 = smul.addr %s486, 8
      %s488 = smul.addr %s487, 8
      %s489 = scalar_lea.vmem %s14, %s488
      %vm491 = vcmask 27648
      %492 = vst.msk [vmem:[#allocation2] sm:$0xf] %vm491, 0
      %vm493 = vcmask 24576
      %494 = vst.msk [vmem:[#allocation2 + $0x4] sm:$0x1] %vm493, 0
      %495 = vst.msk [vmem:[#allocation2 + $0x50] sm:$0xf] %vm491, 0
      %496 = vst.msk [vmem:[#allocation2 + $0x54] sm:$0x1] %vm493, 0
      %497 = vst.msk [vmem:[#allocation2 + $0xa0] sm:$0xf] %vm491, 0
      %498 = vst.msk [vmem:[#allocation2 + $0xa4] sm:$0x1] %vm493, 0
      %499 = vst.msk [vmem:[#allocation2 + $0xf0] sm:$0xf] %vm491, 0
      %500 = vst.msk [vmem:[#allocation2 + $0xf4] sm:$0x1] %vm493, 0
      %s501 = scalar_lea.vmem [#allocation2], 72
      %502 = vst.msk [vmem:[%s501] sm:$0xf] %vm491, 0
      %503 = vst.msk [vmem:[%s501 + $0x4] sm:$0x1] %vm493, 0
      %504 = vst.msk [vmem:[%s501 + $0x50] sm:$0xf] %vm491, 0
      %505 = vst.msk [vmem:[%s501 + $0x54] sm:$0x1] %vm493, 0
      %506 = vst.msk [vmem:[%s501 + $0xa0] sm:$0xf] %vm491, 0
      %507 = vst.msk [vmem:[%s501 + $0xa4] sm:$0x1] %vm493, 0
      %508 = vst.msk [vmem:[%s501 + $0xf0] sm:$0xf] %vm491, 0
      %509 = vst.msk [vmem:[%s501 + $0xf4] sm:$0x1] %vm493, 0
      %vm510 = vcmask 24576
      %vm511 = vsmask.f32 256
      %vm512 = vmand %vm510, %vm511
      %v513 = vld [vmem:[#allocation2] sm:$0x1]
      %v514 = vsel %vm512, 0, %v513
      %515 = vst [vmem:[#allocation2] sm:$0x1] %v514
      %v516 = vld [vmem:[#allocation2 + $0x8] sm:$0x1]
      %v517 = vsel %vm512, 0, %v516
      %518 = vst [vmem:[#allocation2 + $0x8] sm:$0x1] %v517
      %v519 = vld [vmem:[#allocation2 + $0x10] sm:$0x1]
      %v520 = vsel %vm512, 0, %v519
      %521 = vst [vmem:[#allocation2 + $0x10] sm:$0x1] %v520
      %v522 = vld [vmem:[#allocation2 + $0x18] sm:$0x1]
      %v523 = vsel %vm512, 0, %v522
      %524 = vst [vmem:[#allocation2 + $0x18] sm:$0x1] %v523
      %v525 = vld [vmem:[#allocation2 + $0x20] sm:$0x1]
      %v526 = vsel %vm512, 0, %v525
      %527 = vst [vmem:[#allocation2 + $0x20] sm:$0x1] %v526
      %v528 = vld [vmem:[#allocation2 + $0x28] sm:$0x1]
      %v529 = vsel %vm512, 0, %v528
      %530 = vst [vmem:[#allocation2 + $0x28] sm:$0x1] %v529
      %v531 = vld [vmem:[#allocation2 + $0x30] sm:$0x1]
      %v532 = vsel %vm512, 0, %v531
      %533 = vst [vmem:[#allocation2 + $0x30] sm:$0x1] %v532
      %v534 = vld [vmem:[#allocation2 + $0x38] sm:$0x1]
      %v535 = vsel %vm512, 0, %v534
      %536 = vst [vmem:[#allocation2 + $0x38] sm:$0x1] %v535
      %v537 = vld [vmem:[#allocation2 + $0x40] sm:$0x1]
      %v538 = vsel %vm512, 0, %v537
      %539 = vst [vmem:[#allocation2 + $0x40] sm:$0x1] %v538
      %v540 = vld [vmem:[#allocation2 + $0x48] sm:$0x1]
      %v541 = vsel %vm512, 0, %v540
      %542 = vst [vmem:[#allocation2 + $0x48] sm:$0x1] %v541
      %v543 = vld [vmem:[#allocation2 + $0x50] sm:$0x1]
      %v544 = vsel %vm512, 0, %v543
      %545 = vst [vmem:[#allocation2 + $0x50] sm:$0x1] %v544
      %v546 = vld [vmem:[#allocation2 + $0x58] sm:$0x1]
      %v547 = vsel %vm512, 0, %v546
      %548 = vst [vmem:[#allocation2 + $0x58] sm:$0x1] %v547
      %v549 = vld [vmem:[#allocation2 + $0x60] sm:$0x1]
      %v550 = vsel %vm512, 0, %v549
      %551 = vst [vmem:[#allocation2 + $0x60] sm:$0x1] %v550
      %v552 = vld [vmem:[#allocation2 + $0x68] sm:$0x1]
      %v553 = vsel %vm512, 0, %v552
      %554 = vst [vmem:[#allocation2 + $0x68] sm:$0x1] %v553
      %v555 = vld [vmem:[#allocation2 + $0x70] sm:$0x1]
      %v556 = vsel %vm512, 0, %v555
      %557 = vst [vmem:[#allocation2 + $0x70] sm:$0x1] %v556
      %v558 = vld [vmem:[#allocation2 + $0x78] sm:$0x1]
      %v559 = vsel %vm512, 0, %v558
      %560 = vst [vmem:[#allocation2 + $0x78] sm:$0x1] %v559
      %v561 = vld [vmem:[#allocation2 + $0x80] sm:$0x1]
      %v562 = vsel %vm512, 0, %v561
      %563 = vst [vmem:[#allocation2 + $0x80] sm:$0x1] %v562
      %v564 = vld [vmem:[#allocation2 + $0x88] sm:$0x1]
      %v565 = vsel %vm512, 0, %v564
      %566 = vst [vmem:[#allocation2 + $0x88] sm:$0x1] %v565
      %v567 = vld [vmem:[#allocation2 + $0x90] sm:$0x1]
      %v568 = vsel %vm512, 0, %v567
      %569 = vst [vmem:[#allocation2 + $0x90] sm:$0x1] %v568
      %v570 = vld [vmem:[#allocation2 + $0x98] sm:$0x1]
      %v571 = vsel %vm512, 0, %v570
      %572 = vst [vmem:[#allocation2 + $0x98] sm:$0x1] %v571
      %v573 = vld [vmem:[#allocation2 + $0xa0] sm:$0x1]
      %v574 = vsel %vm512, 0, %v573
      %575 = vst [vmem:[#allocation2 + $0xa0] sm:$0x1] %v574
      %v576 = vld [vmem:[#allocation2 + $0xa8] sm:$0x1]
      %v577 = vsel %vm512, 0, %v576
      %578 = vst [vmem:[#allocation2 + $0xa8] sm:$0x1] %v577
      %v579 = vld [vmem:[#allocation2 + $0xb0] sm:$0x1]
      %v580 = vsel %vm512, 0, %v579
      %581 = vst [vmem:[#allocation2 + $0xb0] sm:$0x1] %v580
      %v582 = vld [vmem:[#allocation2 + $0xb8] sm:$0x1]
      %v583 = vsel %vm512, 0, %v582
      %584 = vst [vmem:[#allocation2 + $0xb8] sm:$0x1] %v583
      %v585 = vld [vmem:[#allocation2 + $0xc0] sm:$0x1]
      %v586 = vsel %vm512, 0, %v585
      %587 = vst [vmem:[#allocation2 + $0xc0] sm:$0x1] %v586
      %v588 = vld [vmem:[#allocation2 + $0xc8] sm:$0x1]
      %v589 = vsel %vm512, 0, %v588
      %590 = vst [vmem:[#allocation2 + $0xc8] sm:$0x1] %v589
      %v591 = vld [vmem:[#allocation2 + $0xd0] sm:$0x1]
      %v592 = vsel %vm512, 0, %v591
      %593 = vst [vmem:[#allocation2 + $0xd0] sm:$0x1] %v592
      %v594 = vld [vmem:[#allocation2 + $0xd8] sm:$0x1]
      %v595 = vsel %vm512, 0, %v594
      %596 = vst [vmem:[#allocation2 + $0xd8] sm:$0x1] %v595
      %v597 = vld [vmem:[#allocation2 + $0xe0] sm:$0x1]
      %v598 = vsel %vm512, 0, %v597
      %599 = vst [vmem:[#allocation2 + $0xe0] sm:$0x1] %v598
      %v600 = vld [vmem:[#allocation2 + $0xe8] sm:$0x1]
      %v601 = vsel %vm512, 0, %v600
      %602 = vst [vmem:[#allocation2 + $0xe8] sm:$0x1] %v601
      %v603 = vld [vmem:[#allocation2 + $0xf0] sm:$0x1]
      %v604 = vsel %vm512, 0, %v603
      %605 = vst [vmem:[#allocation2 + $0xf0] sm:$0x1] %v604
      %v606 = vld [vmem:[#allocation2 + $0xf8] sm:$0x1]
      %v607 = vsel %vm512, 0, %v606
      %608 = vst [vmem:[#allocation2 + $0xf8] sm:$0x1] %v607
      %v609 = vld [vmem:[#allocation2 + $0x100] sm:$0x1]
      %v610 = vsel %vm512, 0, %v609
      %611 = vst [vmem:[#allocation2 + $0x100] sm:$0x1] %v610
      %v612 = vld [vmem:[#allocation2 + $0x108] sm:$0x1]
      %v613 = vsel %vm512, 0, %v612
      %614 = vst [vmem:[#allocation2 + $0x108] sm:$0x1] %v613
      %v615 = vld [vmem:[#allocation2 + $0x110] sm:$0x1]
      %v616 = vsel %vm512, 0, %v615
      %617 = vst [vmem:[#allocation2 + $0x110] sm:$0x1] %v616
      %v618 = vld [vmem:[#allocation2 + $0x118] sm:$0x1]
      %v619 = vsel %vm512, 0, %v618
      %620 = vst [vmem:[#allocation2 + $0x118] sm:$0x1] %v619
      %v621 = vld [vmem:[#allocation2 + $0x120] sm:$0x1]
      %v622 = vsel %vm512, 0, %v621
      %623 = vst [vmem:[#allocation2 + $0x120] sm:$0x1] %v622
      %v624 = vld [vmem:[#allocation2 + $0x128] sm:$0x1]
      %v625 = vsel %vm512, 0, %v624
      %626 = vst [vmem:[#allocation2 + $0x128] sm:$0x1] %v625
      %v627 = vld [vmem:[#allocation2 + $0x130] sm:$0x1]
      %v628 = vsel %vm512, 0, %v627
      %629 = vst [vmem:[#allocation2 + $0x130] sm:$0x1] %v628
      %v630 = vld [vmem:[#allocation2 + $0x138] sm:$0x1]
      %v631 = vsel %vm512, 0, %v630
      %632 = vst [vmem:[#allocation2 + $0x138] sm:$0x1] %v631
      %vm633 = vsmask.f32 7938
      %vm634 = vmand %vm510, %vm633
      %v635 = vld [vmem:[#allocation2 + $0x4] sm:$0x1]
      %v636 = vsel %vm634, 0, %v635
      %637 = vst [vmem:[#allocation2 + $0x4] sm:$0x1] %v636
      %v638 = vld [vmem:[#allocation2 + $0xc] sm:$0x1]
      %v639 = vsel %vm634, 0, %v638
      %640 = vst [vmem:[#allocation2 + $0xc] sm:$0x1] %v639
      %v641 = vld [vmem:[#allocation2 + $0x14] sm:$0x1]
      %v642 = vsel %vm634, 0, %v641
      %643 = vst [vmem:[#allocation2 + $0x14] sm:$0x1] %v642
      %v644 = vld [vmem:[#allocation2 + $0x1c] sm:$0x1]
      %v645 = vsel %vm634, 0, %v644
      %646 = vst [vmem:[#allocation2 + $0x1c] sm:$0x1] %v645
      %v647 = vld [vmem:[#allocation2 + $0x24] sm:$0x1]
      %v648 = vsel %vm634, 0, %v647
      %649 = vst [vmem:[#allocation2 + $0x24] sm:$0x1] %v648
      %v650 = vld [vmem:[#allocation2 + $0x2c] sm:$0x1]
      %v651 = vsel %vm634, 0, %v650
      %652 = vst [vmem:[#allocation2 + $0x2c] sm:$0x1] %v651
      %v653 = vld [vmem:[#allocation2 + $0x34] sm:$0x1]
      %v654 = vsel %vm634, 0, %v653
      %655 = vst [vmem:[#allocation2 + $0x34] sm:$0x1] %v654
      %v656 = vld [vmem:[#allocation2 + $0x3c] sm:$0x1]
      %v657 = vsel %vm634, 0, %v656
      %658 = vst [vmem:[#allocation2 + $0x3c] sm:$0x1] %v657
      %v659 = vld [vmem:[#allocation2 + $0x44] sm:$0x1]
      %v660 = vsel %vm634, 0, %v659
      %661 = vst [vmem:[#allocation2 + $0x44] sm:$0x1] %v660
      %v662 = vld [vmem:[#allocation2 + $0x4c] sm:$0x1]
      %v663 = vsel %vm634, 0, %v662
      %664 = vst [vmem:[#allocation2 + $0x4c] sm:$0x1] %v663
      %v665 = vld [vmem:[#allocation2 + $0x54] sm:$0x1]
      %v666 = vsel %vm634, 0, %v665
      %667 = vst [vmem:[#allocation2 + $0x54] sm:$0x1] %v666
      %v668 = vld [vmem:[#allocation2 + $0x5c] sm:$0x1]
      %v669 = vsel %vm634, 0, %v668
      %670 = vst [vmem:[#allocation2 + $0x5c] sm:$0x1] %v669
      %v671 = vld [vmem:[#allocation2 + $0x64] sm:$0x1]
      %v672 = vsel %vm634, 0, %v671
      %673 = vst [vmem:[#allocation2 + $0x64] sm:$0x1] %v672
      %v674 = vld [vmem:[#allocation2 + $0x6c] sm:$0x1]
      %v675 = vsel %vm634, 0, %v674
      %676 = vst [vmem:[#allocation2 + $0x6c] sm:$0x1] %v675
      %v677 = vld [vmem:[#allocation2 + $0x74] sm:$0x1]
      %v678 = vsel %vm634, 0, %v677
      %679 = vst [vmem:[#allocation2 + $0x74] sm:$0x1] %v678
      %v680 = vld [vmem:[#allocation2 + $0x7c] sm:$0x1]
      %v681 = vsel %vm634, 0, %v680
      %682 = vst [vmem:[#allocation2 + $0x7c] sm:$0x1] %v681
      %v683 = vld [vmem:[#allocation2 + $0x84] sm:$0x1]
      %v684 = vsel %vm634, 0, %v683
      %685 = vst [vmem:[#allocation2 + $0x84] sm:$0x1] %v684
      %v686 = vld [vmem:[#allocation2 + $0x8c] sm:$0x1]
      %v687 = vsel %vm634, 0, %v686
      %688 = vst [vmem:[#allocation2 + $0x8c] sm:$0x1] %v687
      %v689 = vld [vmem:[#allocation2 + $0x94] sm:$0x1]
      %v690 = vsel %vm634, 0, %v689
      %691 = vst [vmem:[#allocation2 + $0x94] sm:$0x1] %v690
      %v692 = vld [vmem:[#allocation2 + $0x9c] sm:$0x1]
      %v693 = vsel %vm634, 0, %v692
      %694 = vst [vmem:[#allocation2 + $0x9c] sm:$0x1] %v693
      %v695 = vld [vmem:[#allocation2 + $0xa4] sm:$0x1]
      %v696 = vsel %vm634, 0, %v695
      %697 = vst [vmem:[#allocation2 + $0xa4] sm:$0x1] %v696
      %v698 = vld [vmem:[#allocation2 + $0xac] sm:$0x1]
      %v699 = vsel %vm634, 0, %v698
      %700 = vst [vmem:[#allocation2 + $0xac] sm:$0x1] %v699
      %v701 = vld [vmem:[#allocation2 + $0xb4] sm:$0x1]
      %v702 = vsel %vm634, 0, %v701
      %703 = vst [vmem:[#allocation2 + $0xb4] sm:$0x1] %v702
      %v704 = vld [vmem:[#allocation2 + $0xbc] sm:$0x1]
      %v705 = vsel %vm634, 0, %v704
      %706 = vst [vmem:[#allocation2 + $0xbc] sm:$0x1] %v705
      %v707 = vld [vmem:[#allocation2 + $0xc4] sm:$0x1]
      %v708 = vsel %vm634, 0, %v707
      %709 = vst [vmem:[#allocation2 + $0xc4] sm:$0x1] %v708
      %v710 = vld [vmem:[#allocation2 + $0xcc] sm:$0x1]
      %v711 = vsel %vm634, 0, %v710
      %712 = vst [vmem:[#allocation2 + $0xcc] sm:$0x1] %v711
      %v713 = vld [vmem:[#allocation2 + $0xd4] sm:$0x1]
      %v714 = vsel %vm634, 0, %v713
      %715 = vst [vmem:[#allocation2 + $0xd4] sm:$0x1] %v714
      %v716 = vld [vmem:[#allocation2 + $0xdc] sm:$0x1]
      %v717 = vsel %vm634, 0, %v716
      %718 = vst [vmem:[#allocation2 + $0xdc] sm:$0x1] %v717
      %v719 = vld [vmem:[#allocation2 + $0xe4] sm:$0x1]
      %v720 = vsel %vm634, 0, %v719
      %721 = vst [vmem:[#allocation2 + $0xe4] sm:$0x1] %v720
      %v722 = vld [vmem:[#allocation2 + $0xec] sm:$0x1]
      %v723 = vsel %vm634, 0, %v722
      %724 = vst [vmem:[#allocation2 + $0xec] sm:$0x1] %v723
      %v725 = vld [vmem:[#allocation2 + $0xf4] sm:$0x1]
      %v726 = vsel %vm634, 0, %v725
      %727 = vst [vmem:[#allocation2 + $0xf4] sm:$0x1] %v726
      %v728 = vld [vmem:[#allocation2 + $0xfc] sm:$0x1]
      %v729 = vsel %vm634, 0, %v728
      %730 = vst [vmem:[#allocation2 + $0xfc] sm:$0x1] %v729
      %v731 = vld [vmem:[#allocation2 + $0x104] sm:$0x1]
      %v732 = vsel %vm634, 0, %v731
      %733 = vst [vmem:[#allocation2 + $0x104] sm:$0x1] %v732
      %v734 = vld [vmem:[#allocation2 + $0x10c] sm:$0x1]
      %v735 = vsel %vm634, 0, %v734
      %736 = vst [vmem:[#allocation2 + $0x10c] sm:$0x1] %v735
      %v737 = vld [vmem:[#allocation2 + $0x114] sm:$0x1]
      %v738 = vsel %vm634, 0, %v737
      %739 = vst [vmem:[#allocation2 + $0x114] sm:$0x1] %v738
      %v740 = vld [vmem:[#allocation2 + $0x11c] sm:$0x1]
      %v741 = vsel %vm634, 0, %v740
      %742 = vst [vmem:[#allocation2 + $0x11c] sm:$0x1] %v741
      %v743 = vld [vmem:[#allocation2 + $0x124] sm:$0x1]
      %v744 = vsel %vm634, 0, %v743
      %745 = vst [vmem:[#allocation2 + $0x124] sm:$0x1] %v744
      %v746 = vld [vmem:[#allocation2 + $0x12c] sm:$0x1]
      %v747 = vsel %vm634, 0, %v746
      %748 = vst [vmem:[#allocation2 + $0x12c] sm:$0x1] %v747
      %v749 = vld [vmem:[#allocation2 + $0x134] sm:$0x1]
      %v750 = vsel %vm634, 0, %v749
      %751 = vst [vmem:[#allocation2 + $0x134] sm:$0x1] %v750
      %v752 = vld [vmem:[#allocation2 + $0x13c] sm:$0x1]
      %v753 = vsel %vm634, 0, %v752
      %754 = vst [vmem:[#allocation2 + $0x13c] sm:$0x1] %v753
      %vm755 = vcmask 44032
      %756 = vst.msk [vmem:[#allocation4] sm:$0xf] %vm755, 0
      %vm757 = vcmask 40960
      %758 = vst.msk [vmem:[#allocation4 + $0x4] sm:$0x1] %vm757, 0
      %s759 = scalar_lea.vmem [#allocation4], 72
      %760 = vst.msk [vmem:[%s759] sm:$0xf] %vm755, 0
      %761 = vst.msk [vmem:[%s759 + $0x4] sm:$0x1] %vm757, 0
      %vm762 = vcmask 40960
      %vm763 = vmand %vm762, %vm511
      %v764 = vld [vmem:[#allocation4] sm:$0x1]
      %v765 = vsel %vm763, 0, %v764
      %766 = vst [vmem:[#allocation4] sm:$0x1] %v765
      %v767 = vld [vmem:[#allocation4 + $0x8] sm:$0x1]
      %v768 = vsel %vm763, 0, %v767
      %769 = vst [vmem:[#allocation4 + $0x8] sm:$0x1] %v768
      %v770 = vld [vmem:[#allocation4 + $0x10] sm:$0x1]
      %v771 = vsel %vm763, 0, %v770
      %772 = vst [vmem:[#allocation4 + $0x10] sm:$0x1] %v771
      %v773 = vld [vmem:[#allocation4 + $0x18] sm:$0x1]
      %v774 = vsel %vm763, 0, %v773
      %775 = vst [vmem:[#allocation4 + $0x18] sm:$0x1] %v774
      %v776 = vld [vmem:[#allocation4 + $0x20] sm:$0x1]
      %v777 = vsel %vm763, 0, %v776
      %778 = vst [vmem:[#allocation4 + $0x20] sm:$0x1] %v777
      %v779 = vld [vmem:[#allocation4 + $0x28] sm:$0x1]
      %v780 = vsel %vm763, 0, %v779
      %781 = vst [vmem:[#allocation4 + $0x28] sm:$0x1] %v780
      %v782 = vld [vmem:[#allocation4 + $0x30] sm:$0x1]
      %v783 = vsel %vm763, 0, %v782
      %784 = vst [vmem:[#allocation4 + $0x30] sm:$0x1] %v783
      %v785 = vld [vmem:[#allocation4 + $0x38] sm:$0x1]
      %v786 = vsel %vm763, 0, %v785
      %787 = vst [vmem:[#allocation4 + $0x38] sm:$0x1] %v786
      %v788 = vld [vmem:[#allocation4 + $0x40] sm:$0x1]
      %v789 = vsel %vm763, 0, %v788
      %790 = vst [vmem:[#allocation4 + $0x40] sm:$0x1] %v789
      %v791 = vld [vmem:[#allocation4 + $0x48] sm:$0x1]
      %v792 = vsel %vm763, 0, %v791
      %793 = vst [vmem:[#allocation4 + $0x48] sm:$0x1] %v792
      %vm794 = vmand %vm762, %vm633
      %v795 = vld [vmem:[#allocation4 + $0x4] sm:$0x1]
      %v796 = vsel %vm794, 0, %v795
      %797 = vst [vmem:[#allocation4 + $0x4] sm:$0x1] %v796
      %v798 = vld [vmem:[#allocation4 + $0xc] sm:$0x1]
      %v799 = vsel %vm794, 0, %v798
      %800 = vst [vmem:[#allocation4 + $0xc] sm:$0x1] %v799
      %v801 = vld [vmem:[#allocation4 + $0x14] sm:$0x1]
      %v802 = vsel %vm794, 0, %v801
      %803 = vst [vmem:[#allocation4 + $0x14] sm:$0x1] %v802
      %v804 = vld [vmem:[#allocation4 + $0x1c] sm:$0x1]
      %v805 = vsel %vm794, 0, %v804
      %806 = vst [vmem:[#allocation4 + $0x1c] sm:$0x1] %v805
      %v807 = vld [vmem:[#allocation4 + $0x24] sm:$0x1]
      %v808 = vsel %vm794, 0, %v807
      %809 = vst [vmem:[#allocation4 + $0x24] sm:$0x1] %v808
      %v810 = vld [vmem:[#allocation4 + $0x2c] sm:$0x1]
      %v811 = vsel %vm794, 0, %v810
      %812 = vst [vmem:[#allocation4 + $0x2c] sm:$0x1] %v811
      %v813 = vld [vmem:[#allocation4 + $0x34] sm:$0x1]
      %v814 = vsel %vm794, 0, %v813
      %815 = vst [vmem:[#allocation4 + $0x34] sm:$0x1] %v814
      %v816 = vld [vmem:[#allocation4 + $0x3c] sm:$0x1]
      %v817 = vsel %vm794, 0, %v816
      %818 = vst [vmem:[#allocation4 + $0x3c] sm:$0x1] %v817
      %v819 = vld [vmem:[#allocation4 + $0x44] sm:$0x1]
      %v820 = vsel %vm794, 0, %v819
      %821 = vst [vmem:[#allocation4 + $0x44] sm:$0x1] %v820
      %v822 = vld [vmem:[#allocation4 + $0x4c] sm:$0x1]
      %v823 = vsel %vm794, 0, %v822
      %824 = vst [vmem:[#allocation4 + $0x4c] sm:$0x1] %v823
      %v825 = vld [vmem:[%s479] sm:$0xff]
      %v826 = vld [vmem:[%s479 + $0x8] sm:$0xff]
      %v827 = vld [vmem:[%s479 + $0x10] sm:$0xff]
      %v828 = vld [vmem:[%s479 + $0x18] sm:$0xff]
      %v829 = vld [vmem:[%s479 + $0x20] sm:$0xff]
      %v830 = vld [vmem:[%s479 + $0x28] sm:$0xff]
      %v831 = vld [vmem:[%s479 + $0x30] sm:$0xff]
      %v832 = vld [vmem:[%s479 + $0x38] sm:$0xff]
      %v833 = vld [vmem:[%s479 + $0x40] sm:$0xff]
      %v834 = vld [vmem:[%s479 + $0x48] sm:$0xff]
      %v835 = vld [vmem:[%s479 + $0x50] sm:$0xff]
      %v836 = vld [vmem:[%s479 + $0x58] sm:$0xff]
      %v837 = vld [vmem:[%s479 + $0x60] sm:$0xff]
      %v838 = vld [vmem:[%s479 + $0x68] sm:$0xff]
      %v839 = vld [vmem:[%s479 + $0x70] sm:$0xff]
      %v840 = vld [vmem:[%s479 + $0x78] sm:$0xff]
      %v841 = vld [vmem:[%s479 + $0x80] sm:$0xff]
      %v842 = vld [vmem:[%s479 + $0x88] sm:$0xff]
      %v843 = vld [vmem:[%s479 + $0x90] sm:$0xff]
      %v844 = vld [vmem:[%s479 + $0x98] sm:$0xff]
      %v845 = vld [vmem:[%s479 + $0xa0] sm:$0xff]
      %v846 = vld [vmem:[%s479 + $0xa8] sm:$0xff]
      %v847 = vld [vmem:[%s479 + $0xb0] sm:$0xff]
      %v848 = vld [vmem:[%s479 + $0xb8] sm:$0xff]
      %v849 = vld [vmem:[%s479 + $0xc0] sm:$0xff]
      %v850 = vld [vmem:[%s479 + $0xc8] sm:$0xff]
      %v851 = vld [vmem:[%s479 + $0xd0] sm:$0xff]
      %v852 = vld [vmem:[%s479 + $0xd8] sm:$0xff]
      %v853 = vld [vmem:[%s479 + $0xe0] sm:$0xff]
      %v854 = vld [vmem:[%s479 + $0xe8] sm:$0xff]
      %v855 = vld [vmem:[%s479 + $0xf0] sm:$0xff]
      %v856 = vld [vmem:[%s479 + $0xf8] sm:$0xff]
      %v857 = vld [vmem:[%s2] sm:$0x1]
      %v859 = vlaneseq
      %v860 = vshrl.u32 %v859, 7
      %v861 = vsub.s32 0, %v860
      %v862 = vrot.slane %v857, %v861
      %v864 = vmul.f32 %v825, %v862
      %v865 = vmul.f32 %v826, %v862
      %v866 = vmul.f32 %v827, %v862
      %v867 = vmul.f32 %v828, %v862
      %v868 = vmul.f32 %v829, %v862
      %v869 = vmul.f32 %v830, %v862
      %v870 = vmul.f32 %v831, %v862
      %v871 = vmul.f32 %v832, %v862
      %v872 = vmul.f32 %v833, %v862
      %v873 = vmul.f32 %v834, %v862
      %v874 = vmul.f32 %v835, %v862
      %v875 = vmul.f32 %v836, %v862
      %v876 = vmul.f32 %v837, %v862
      %v877 = vmul.f32 %v838, %v862
      %v878 = vmul.f32 %v839, %v862
      %v879 = vmul.f32 %v840, %v862
      %v880 = vmul.f32 %v841, %v862
      %v881 = vmul.f32 %v842, %v862
      %v882 = vmul.f32 %v843, %v862
      %v883 = vmul.f32 %v844, %v862
      %v884 = vmul.f32 %v845, %v862
      %v885 = vmul.f32 %v846, %v862
      %v886 = vmul.f32 %v847, %v862
      %v887 = vmul.f32 %v848, %v862
      %v888 = vmul.f32 %v849, %v862
      %v889 = vmul.f32 %v850, %v862
      %v890 = vmul.f32 %v851, %v862
      %v891 = vmul.f32 %v852, %v862
      %v892 = vmul.f32 %v853, %v862
      %v893 = vmul.f32 %v854, %v862
      %v894 = vmul.f32 %v855, %v862
      %v895 = vmul.f32 %v856, %v862
      %v896 = vld [vmem:[%s3] sm:$0x1]
      %v898 = vlaneseq
      %v899 = vshrl.u32 %v898, 7
      %v900 = vsub.s32 0, %v899
      %v901 = vrot.slane %v896, %v900
      %v903 = vadd.f32 %v864, %v901
      %v904 = vadd.f32 %v865, %v901
      %v905 = vadd.f32 %v866, %v901
      %v906 = vadd.f32 %v867, %v901
      %v907 = vadd.f32 %v868, %v901
      %v908 = vadd.f32 %v869, %v901
      %v909 = vadd.f32 %v870, %v901
      %v910 = vadd.f32 %v871, %v901
      %v911 = vadd.f32 %v872, %v901
      %v912 = vadd.f32 %v873, %v901
      %v913 = vadd.f32 %v874, %v901
      %v914 = vadd.f32 %v875, %v901
      %v915 = vadd.f32 %v876, %v901
      %v916 = vadd.f32 %v877, %v901
      %v917 = vadd.f32 %v878, %v901
      %v918 = vadd.f32 %v879, %v901
      %v919 = vadd.f32 %v880, %v901
      %v920 = vadd.f32 %v881, %v901
      %v921 = vadd.f32 %v882, %v901
      %v922 = vadd.f32 %v883, %v901
      %v923 = vadd.f32 %v884, %v901
      %v924 = vadd.f32 %v885, %v901
      %v925 = vadd.f32 %v886, %v901
      %v926 = vadd.f32 %v887, %v901
      %v927 = vadd.f32 %v888, %v901
      %v928 = vadd.f32 %v889, %v901
      %v929 = vadd.f32 %v890, %v901
      %v930 = vadd.f32 %v891, %v901
      %v931 = vadd.f32 %v892, %v901
      %v932 = vadd.f32 %v893, %v901
      %v933 = vadd.f32 %v894, %v901
      %v934 = vadd.f32 %v895, %v901
      %v935 = vmax.f32 %v903, 0.0
      %v936 = vmax.f32 %v904, 0.0
      %v937 = vmax.f32 %v905, 0.0
      %v938 = vmax.f32 %v906, 0.0
      %v939 = vmax.f32 %v907, 0.0
      %v940 = vmax.f32 %v908, 0.0
      %v941 = vmax.f32 %v909, 0.0
      %v942 = vmax.f32 %v910, 0.0
      %v943 = vmax.f32 %v911, 0.0
      %v944 = vmax.f32 %v912, 0.0
      %v945 = vmax.f32 %v913, 0.0
      %v946 = vmax.f32 %v914, 0.0
      %v947 = vmax.f32 %v915, 0.0
      %v948 = vmax.f32 %v916, 0.0
      %v949 = vmax.f32 %v917, 0.0
      %v950 = vmax.f32 %v918, 0.0
      %v951 = vmax.f32 %v919, 0.0
      %v952 = vmax.f32 %v920, 0.0
      %v953 = vmax.f32 %v921, 0.0
      %v954 = vmax.f32 %v922, 0.0
      %v955 = vmax.f32 %v923, 0.0
      %v956 = vmax.f32 %v924, 0.0
      %v957 = vmax.f32 %v925, 0.0
      %v958 = vmax.f32 %v926, 0.0
      %v959 = vmax.f32 %v927, 0.0
      %v960 = vmax.f32 %v928, 0.0
      %v961 = vmax.f32 %v929, 0.0
      %v962 = vmax.f32 %v930, 0.0
      %v963 = vmax.f32 %v931, 0.0
      %v964 = vmax.f32 %v932, 0.0
      %v965 = vmax.f32 %v933, 0.0
      %v966 = vmax.f32 %v934, 0.0
      %v967 = vpack.c.bf16 %v935, %v935
      %v968 = vpack.c.bf16 %v936, %v936
      %v969 = vpack.c.bf16 %v937, %v937
      %v970 = vpack.c.bf16 %v938, %v938
      %v971 = vpack.c.bf16 %v939, %v939
      %v972 = vpack.c.bf16 %v940, %v940
      %v973 = vpack.c.bf16 %v941, %v941
      %v974 = vpack.c.bf16 %v942, %v942
      %v975 = vpack.c.bf16 %v943, %v943
      %v976 = vpack.c.bf16 %v944, %v944
      %v977 = vpack.c.bf16 %v945, %v945
      %v978 = vpack.c.bf16 %v946, %v946
      %v979 = vpack.c.bf16 %v947, %v947
      %v980 = vpack.c.bf16 %v948, %v948
      %v981 = vpack.c.bf16 %v949, %v949
      %v982 = vpack.c.bf16 %v950, %v950
      %v983 = vpack.c.bf16 %v951, %v951
      %v984 = vpack.c.bf16 %v952, %v952
      %v985 = vpack.c.bf16 %v953, %v953
      %v986 = vpack.c.bf16 %v954, %v954
      %v987 = vpack.c.bf16 %v955, %v955
      %v988 = vpack.c.bf16 %v956, %v956
      %v989 = vpack.c.bf16 %v957, %v957
      %v990 = vpack.c.bf16 %v958, %v958
      %v991 = vpack.c.bf16 %v959, %v959
      %v992 = vpack.c.bf16 %v960, %v960
      %v993 = vpack.c.bf16 %v961, %v961
      %v994 = vpack.c.bf16 %v962, %v962
      %v995 = vpack.c.bf16 %v963, %v963
      %v996 = vpack.c.bf16 %v964, %v964
      %v997 = vpack.c.bf16 %v965, %v965
      %v998 = vpack.c.bf16 %v966, %v966
      %v1007 = vunpack.c.l.b16 %v967
      %v1008 = vunpack.c.l.b16 %v968
      %v1009 = vunpack.c.l.b16 %v969
      %v1010 = vunpack.c.l.b16 %v970
      %v1011 = vunpack.c.l.b16 %v971
      %v1012 = vunpack.c.l.b16 %v972
      %v1013 = vunpack.c.l.b16 %v973
      %v1014 = vunpack.c.l.b16 %v974
      %v1015 = vpack.c.b16 %v1007, %v1007
      %v1016 = vpack.c.b16 %v1008, %v1008
      %v1017 = vpack.c.b16 %v1009, %v1009
      %v1018 = vpack.c.b16 %v1010, %v1010
      %v1019 = vpack.c.b16 %v1011, %v1011
      %v1020 = vpack.c.b16 %v1012, %v1012
      %v1021 = vpack.c.b16 %v1013, %v1013
      %v1022 = vpack.c.b16 %v1014, %v1014
      %v1024 = vshrl.u32 %v1015, 16
      %v1026 = vrot.slane %v1024, 7
      %v1027 = vshll.u32 %v1015, 16
      %v1029 = vor.u32 %v1026, %v1027
      %v1030 = vrot.slane %v1026, 4
      %v1032 = vshrl.u32 %v1016, 16
      %v1034 = vrot.slane %v1032, 7
      %v1035 = vshll.u32 %v1016, 16
      %v1037 = vor.u32 %v1034, %v1035
      %v1038 = vrot.slane %v1034, 4
      %v1040 = vshrl.u32 %v1017, 16
      %v1042 = vrot.slane %v1040, 7
      %v1043 = vshll.u32 %v1017, 16
      %v1045 = vor.u32 %v1042, %v1043
      %v1046 = vrot.slane %v1042, 4
      %v1048 = vshrl.u32 %v1018, 16
      %v1050 = vrot.slane %v1048, 7
      %v1051 = vshll.u32 %v1018, 16
      %v1053 = vor.u32 %v1050, %v1051
      %v1054 = vrot.slane %v1050, 4
      %v1056 = vshrl.u32 %v1019, 16
      %v1058 = vrot.slane %v1056, 7
      %v1059 = vshll.u32 %v1019, 16
      %v1061 = vor.u32 %v1058, %v1059
      %v1062 = vrot.slane %v1058, 4
      %v1064 = vshrl.u32 %v1020, 16
      %v1066 = vrot.slane %v1064, 7
      %v1067 = vshll.u32 %v1020, 16
      %v1069 = vor.u32 %v1066, %v1067
      %v1070 = vrot.slane %v1066, 4
      %v1072 = vshrl.u32 %v1021, 16
      %v1074 = vrot.slane %v1072, 7
      %v1075 = vshll.u32 %v1021, 16
      %v1077 = vor.u32 %v1074, %v1075
      %v1078 = vrot.slane %v1074, 4
      %v1080 = vshrl.u32 %v1022, 16
      %v1082 = vrot.slane %v1080, 7
      %v1083 = vshll.u32 %v1022, 16
      %v1085 = vor.u32 %v1082, %v1083
      %v1086 = vrot.slane %v1082, 4
      %s1103 = scalar_lea.vmem [#allocation2], 8
      %vm1104 = vcmask 27648
      %vm1105 = vmand %vm1104, %vm633
      %v1106 = vld [vmem:[%s1103] sm:$0xf]
      %v1107 = vsel %vm1105, %v1029, %v1106
      %1108 = vst [vmem:[%s1103] sm:$0xf] %v1107
      %v1109 = vld [vmem:[%s1103 + $0x4] sm:$0x1]
      %v1110 = vsel %vm512, %v1030, %v1109
      %1111 = vst [vmem:[%s1103 + $0x4] sm:$0x1] %v1110
      %v1112 = vld [vmem:[%s1103 + $0x8] sm:$0xf]
      %v1113 = vsel %vm1105, %v1037, %v1112
      %1114 = vst [vmem:[%s1103 + $0x8] sm:$0xf] %v1113
      %v1115 = vld [vmem:[%s1103 + $0xc] sm:$0x1]
      %v1116 = vsel %vm512, %v1038, %v1115
      %1117 = vst [vmem:[%s1103 + $0xc] sm:$0x1] %v1116
      %v1118 = vld [vmem:[%s1103 + $0x10] sm:$0xf]
      %v1119 = vsel %vm1105, %v1045, %v1118
      %1120 = vst [vmem:[%s1103 + $0x10] sm:$0xf] %v1119
      %v1121 = vld [vmem:[%s1103 + $0x14] sm:$0x1]
      %v1122 = vsel %vm512, %v1046, %v1121
      %1123 = vst [vmem:[%s1103 + $0x14] sm:$0x1] %v1122
      %v1124 = vld [vmem:[%s1103 + $0x18] sm:$0xf]
      %v1125 = vsel %vm1105, %v1053, %v1124
      %1126 = vst [vmem:[%s1103 + $0x18] sm:$0xf] %v1125
      %v1127 = vld [vmem:[%s1103 + $0x1c] sm:$0x1]
      %v1128 = vsel %vm512, %v1054, %v1127
      %1129 = vst [vmem:[%s1103 + $0x1c] sm:$0x1] %v1128
      %v1130 = vld [vmem:[%s1103 + $0x20] sm:$0xf]
      %v1131 = vsel %vm1105, %v1061, %v1130
      %1132 = vst [vmem:[%s1103 + $0x20] sm:$0xf] %v1131
      %v1133 = vld [vmem:[%s1103 + $0x24] sm:$0x1]
      %v1134 = vsel %vm512, %v1062, %v1133
      %1135 = vst [vmem:[%s1103 + $0x24] sm:$0x1] %v1134
      %v1136 = vld [vmem:[%s1103 + $0x28] sm:$0xf]
      %v1137 = vsel %vm1105, %v1069, %v1136
      %1138 = vst [vmem:[%s1103 + $0x28] sm:$0xf] %v1137
      %v1139 = vld [vmem:[%s1103 + $0x2c] sm:$0x1]
      %v1140 = vsel %vm512, %v1070, %v1139
      %1141 = vst [vmem:[%s1103 + $0x2c] sm:$0x1] %v1140
      %v1142 = vld [vmem:[%s1103 + $0x30] sm:$0xf]
      %v1143 = vsel %vm1105, %v1077, %v1142
      %1144 = vst [vmem:[%s1103 + $0x30] sm:$0xf] %v1143
      %v1145 = vld [vmem:[%s1103 + $0x34] sm:$0x1]
      %v1146 = vsel %vm512, %v1078, %v1145
      %1147 = vst [vmem:[%s1103 + $0x34] sm:$0x1] %v1146
      %v1148 = vld [vmem:[%s1103 + $0x38] sm:$0xf]
      %v1149 = vsel %vm1105, %v1085, %v1148
      %1150 = vst [vmem:[%s1103 + $0x38] sm:$0xf] %v1149
      %v1151 = vld [vmem:[%s1103 + $0x3c] sm:$0x1]
      %v1152 = vsel %vm512, %v1086, %v1151
      %1153 = vst [vmem:[%s1103 + $0x3c] sm:$0x1] %v1152
      %v1162 = vunpack.c.l.b16 %v975
      %v1163 = vunpack.c.l.b16 %v976
      %v1164 = vunpack.c.l.b16 %v977
      %v1165 = vunpack.c.l.b16 %v978
      %v1166 = vunpack.c.l.b16 %v979
      %v1167 = vunpack.c.l.b16 %v980
      %v1168 = vunpack.c.l.b16 %v981
      %v1169 = vunpack.c.l.b16 %v982
      %v1170 = vpack.c.b16 %v1162, %v1162
      %v1171 = vpack.c.b16 %v1163, %v1163
      %v1172 = vpack.c.b16 %v1164, %v1164
      %v1173 = vpack.c.b16 %v1165, %v1165
      %v1174 = vpack.c.b16 %v1166, %v1166
      %v1175 = vpack.c.b16 %v1167, %v1167
      %v1176 = vpack.c.b16 %v1168, %v1168
      %v1177 = vpack.c.b16 %v1169, %v1169
      %v1179 = vshrl.u32 %v1170, 16
      %v1181 = vrot.slane %v1179, 7
      %v1182 = vshll.u32 %v1170, 16
      %v1184 = vor.u32 %v1181, %v1182
      %v1185 = vrot.slane %v1181, 4
      %v1187 = vshrl.u32 %v1171, 16
      %v1189 = vrot.slane %v1187, 7
      %v1190 = vshll.u32 %v1171, 16
      %v1192 = vor.u32 %v1189, %v1190
      %v1193 = vrot.slane %v1189, 4
      %v1195 = vshrl.u32 %v1172, 16
      %v1197 = vrot.slane %v1195, 7
      %v1198 = vshll.u32 %v1172, 16
      %v1200 = vor.u32 %v1197, %v1198
      %v1201 = vrot.slane %v1197, 4
      %v1203 = vshrl.u32 %v1173, 16
      %v1205 = vrot.slane %v1203, 7
      %v1206 = vshll.u32 %v1173, 16
      %v1208 = vor.u32 %v1205, %v1206
      %v1209 = vrot.slane %v1205, 4
      %v1211 = vshrl.u32 %v1174, 16
      %v1213 = vrot.slane %v1211, 7
      %v1214 = vshll.u32 %v1174, 16
      %v1216 = vor.u32 %v1213, %v1214
      %v1217 = vrot.slane %v1213, 4
      %v1219 = vshrl.u32 %v1175, 16
      %v1221 = vrot.slane %v1219, 7
      %v1222 = vshll.u32 %v1175, 16
      %v1224 = vor.u32 %v1221, %v1222
      %v1225 = vrot.slane %v1221, 4
      %v1227 = vshrl.u32 %v1176, 16
      %v1229 = vrot.slane %v1227, 7
      %v1230 = vshll.u32 %v1176, 16
      %v1232 = vor.u32 %v1229, %v1230
      %v1233 = vrot.slane %v1229, 4
      %v1235 = vshrl.u32 %v1177, 16
      %v1237 = vrot.slane %v1235, 7
      %v1238 = vshll.u32 %v1177, 16
      %v1240 = vor.u32 %v1237, %v1238
      %v1241 = vrot.slane %v1237, 4
      %s1258 = scalar_lea.vmem [#allocation2], 88
      %v1259 = vld [vmem:[%s1258] sm:$0xf]
      %v1260 = vsel %vm1105, %v1184, %v1259
      %1261 = vst [vmem:[%s1258] sm:$0xf] %v1260
      %v1262 = vld [vmem:[%s1258 + $0x4] sm:$0x1]
      %v1263 = vsel %vm512, %v1185, %v1262
      %1264 = vst [vmem:[%s1258 + $0x4] sm:$0x1] %v1263
      %v1265 = vld [vmem:[%s1258 + $0x8] sm:$0xf]
      %v1266 = vsel %vm1105, %v1192, %v1265
      %1267 = vst [vmem:[%s1258 + $0x8] sm:$0xf] %v1266
      %v1268 = vld [vmem:[%s1258 + $0xc] sm:$0x1]
      %v1269 = vsel %vm512, %v1193, %v1268
      %1270 = vst [vmem:[%s1258 + $0xc] sm:$0x1] %v1269
      %v1271 = vld [vmem:[%s1258 + $0x10] sm:$0xf]
      %v1272 = vsel %vm1105, %v1200, %v1271
      %1273 = vst [vmem:[%s1258 + $0x10] sm:$0xf] %v1272
      %v1274 = vld [vmem:[%s1258 + $0x14] sm:$0x1]
      %v1275 = vsel %vm512, %v1201, %v1274
      %1276 = vst [vmem:[%s1258 + $0x14] sm:$0x1] %v1275
      %v1277 = vld [vmem:[%s1258 + $0x18] sm:$0xf]
      %v1278 = vsel %vm1105, %v1208, %v1277
      %1279 = vst [vmem:[%s1258 + $0x18] sm:$0xf] %v1278
      %v1280 = vld [vmem:[%s1258 + $0x1c] sm:$0x1]
      %v1281 = vsel %vm512, %v1209, %v1280
      %1282 = vst [vmem:[%s1258 + $0x1c] sm:$0x1] %v1281
      %v1283 = vld [vmem:[%s1258 + $0x20] sm:$0xf]
      %v1284 = vsel %vm1105, %v1216, %v1283
      %1285 = vst [vmem:[%s1258 + $0x20] sm:$0xf] %v1284
      %v1286 = vld [vmem:[%s1258 + $0x24] sm:$0x1]
      %v1287 = vsel %vm512, %v1217, %v1286
      %1288 = vst [vmem:[%s1258 + $0x24] sm:$0x1] %v1287
      %v1289 = vld [vmem:[%s1258 + $0x28] sm:$0xf]
      %v1290 = vsel %vm1105, %v1224, %v1289
      %1291 = vst [vmem:[%s1258 + $0x28] sm:$0xf] %v1290
      %v1292 = vld [vmem:[%s1258 + $0x2c] sm:$0x1]
      %v1293 = vsel %vm512, %v1225, %v1292
      %1294 = vst [vmem:[%s1258 + $0x2c] sm:$0x1] %v1293
      %v1295 = vld [vmem:[%s1258 + $0x30] sm:$0xf]
      %v1296 = vsel %vm1105, %v1232, %v1295
      %1297 = vst [vmem:[%s1258 + $0x30] sm:$0xf] %v1296
      %v1298 = vld [vmem:[%s1258 + $0x34] sm:$0x1]
      %v1299 = vsel %vm512, %v1233, %v1298
      %1300 = vst [vmem:[%s1258 + $0x34] sm:$0x1] %v1299
      %v1301 = vld [vmem:[%s1258 + $0x38] sm:$0xf]
      %v1302 = vsel %vm1105, %v1240, %v1301
      %1303 = vst [vmem:[%s1258 + $0x38] sm:$0xf] %v1302
      %v1304 = vld [vmem:[%s1258 + $0x3c] sm:$0x1]
      %v1305 = vsel %vm512, %v1241, %v1304
      %1306 = vst [vmem:[%s1258 + $0x3c] sm:$0x1] %v1305
      %v1315 = vunpack.c.l.b16 %v983
      %v1316 = vunpack.c.l.b16 %v984
      %v1317 = vunpack.c.l.b16 %v985
      %v1318 = vunpack.c.l.b16 %v986
      %v1319 = vunpack.c.l.b16 %v987
      %v1320 = vunpack.c.l.b16 %v988
      %v1321 = vunpack.c.l.b16 %v989
      %v1322 = vunpack.c.l.b16 %v990
      %v1323 = vpack.c.b16 %v1315, %v1315
      %v1324 = vpack.c.b16 %v1316, %v1316
      %v1325 = vpack.c.b16 %v1317, %v1317
      %v1326 = vpack.c.b16 %v1318, %v1318
      %v1327 = vpack.c.b16 %v1319, %v1319
      %v1328 = vpack.c.b16 %v1320, %v1320
      %v1329 = vpack.c.b16 %v1321, %v1321
      %v1330 = vpack.c.b16 %v1322, %v1322
      %v1332 = vshrl.u32 %v1323, 16
      %v1334 = vrot.slane %v1332, 7
      %v1335 = vshll.u32 %v1323, 16
      %v1337 = vor.u32 %v1334, %v1335
      %v1338 = vrot.slane %v1334, 4
      %v1340 = vshrl.u32 %v1324, 16
      %v1342 = vrot.slane %v1340, 7
      %v1343 = vshll.u32 %v1324, 16
      %v1345 = vor.u32 %v1342, %v1343
      %v1346 = vrot.slane %v1342, 4
      %v1348 = vshrl.u32 %v1325, 16
      %v1350 = vrot.slane %v1348, 7
      %v1351 = vshll.u32 %v1325, 16
      %v1353 = vor.u32 %v1350, %v1351
      %v1354 = vrot.slane %v1350, 4
      %v1356 = vshrl.u32 %v1326, 16
      %v1358 = vrot.slane %v1356, 7
      %v1359 = vshll.u32 %v1326, 16
      %v1361 = vor.u32 %v1358, %v1359
      %v1362 = vrot.slane %v1358, 4
      %v1364 = vshrl.u32 %v1327, 16
      %v1366 = vrot.slane %v1364, 7
      %v1367 = vshll.u32 %v1327, 16
      %v1369 = vor.u32 %v1366, %v1367
      %v1370 = vrot.slane %v1366, 4
      %v1372 = vshrl.u32 %v1328, 16
      %v1374 = vrot.slane %v1372, 7
      %v1375 = vshll.u32 %v1328, 16
      %v1377 = vor.u32 %v1374, %v1375
      %v1378 = vrot.slane %v1374, 4
      %v1380 = vshrl.u32 %v1329, 16
      %v1382 = vrot.slane %v1380, 7
      %v1383 = vshll.u32 %v1329, 16
      %v1385 = vor.u32 %v1382, %v1383
      %v1386 = vrot.slane %v1382, 4
      %v1388 = vshrl.u32 %v1330, 16
      %v1390 = vrot.slane %v1388, 7
      %v1391 = vshll.u32 %v1330, 16
      %v1393 = vor.u32 %v1390, %v1391
      %v1394 = vrot.slane %v1390, 4
      %s1411 = scalar_lea.vmem [#allocation2], 168
      %v1412 = vld [vmem:[%s1411] sm:$0xf]
      %v1413 = vsel %vm1105, %v1337, %v1412
      %1414 = vst [vmem:[%s1411] sm:$0xf] %v1413
      %v1415 = vld [vmem:[%s1411 + $0x4] sm:$0x1]
      %v1416 = vsel %vm512, %v1338, %v1415
      %1417 = vst [vmem:[%s1411 + $0x4] sm:$0x1] %v1416
      %v1418 = vld [vmem:[%s1411 + $0x8] sm:$0xf]
      %v1419 = vsel %vm1105, %v1345, %v1418
      %1420 = vst [vmem:[%s1411 + $0x8] sm:$0xf] %v1419
      %v1421 = vld [vmem:[%s1411 + $0xc] sm:$0x1]
      %v1422 = vsel %vm512, %v1346, %v1421
      %1423 = vst [vmem:[%s1411 + $0xc] sm:$0x1] %v1422
      %v1424 = vld [vmem:[%s1411 + $0x10] sm:$0xf]
      %v1425 = vsel %vm1105, %v1353, %v1424
      %1426 = vst [vmem:[%s1411 + $0x10] sm:$0xf] %v1425
      %v1427 = vld [vmem:[%s1411 + $0x14] sm:$0x1]
      %v1428 = vsel %vm512, %v1354, %v1427
      %1429 = vst [vmem:[%s1411 + $0x14] sm:$0x1] %v1428
      %v1430 = vld [vmem:[%s1411 + $0x18] sm:$0xf]
      %v1431 = vsel %vm1105, %v1361, %v1430
      %1432 = vst [vmem:[%s1411 + $0x18] sm:$0xf] %v1431
      %v1433 = vld [vmem:[%s1411 + $0x1c] sm:$0x1]
      %v1434 = vsel %vm512, %v1362, %v1433
      %1435 = vst [vmem:[%s1411 + $0x1c] sm:$0x1] %v1434
      %v1436 = vld [vmem:[%s1411 + $0x20] sm:$0xf]
      %v1437 = vsel %vm1105, %v1369, %v1436
      %1438 = vst [vmem:[%s1411 + $0x20] sm:$0xf] %v1437
      %v1439 = vld [vmem:[%s1411 + $0x24] sm:$0x1]
      %v1440 = vsel %vm512, %v1370, %v1439
      %1441 = vst [vmem:[%s1411 + $0x24] sm:$0x1] %v1440
      %v1442 = vld [vmem:[%s1411 + $0x28] sm:$0xf]
      %v1443 = vsel %vm1105, %v1377, %v1442
      %1444 = vst [vmem:[%s1411 + $0x28] sm:$0xf] %v1443
      %v1445 = vld [vmem:[%s1411 + $0x2c] sm:$0x1]
      %v1446 = vsel %vm512, %v1378, %v1445
      %1447 = vst [vmem:[%s1411 + $0x2c] sm:$0x1] %v1446
      %v1448 = vld [vmem:[%s1411 + $0x30] sm:$0xf]
      %v1449 = vsel %vm1105, %v1385, %v1448
      %1450 = vst [vmem:[%s1411 + $0x30] sm:$0xf] %v1449
      %v1451 = vld [vmem:[%s1411 + $0x34] sm:$0x1]
      %v1452 = vsel %vm512, %v1386, %v1451
      %1453 = vst [vmem:[%s1411 + $0x34] sm:$0x1] %v1452
      %v1454 = vld [vmem:[%s1411 + $0x38] sm:$0xf]
      %v1455 = vsel %vm1105, %v1393, %v1454
      %1456 = vst [vmem:[%s1411 + $0x38] sm:$0xf] %v1455
      %v1457 = vld [vmem:[%s1411 + $0x3c] sm:$0x1]
      %v1458 = vsel %vm512, %v1394, %v1457
      %1459 = vst [vmem:[%s1411 + $0x3c] sm:$0x1] %v1458
      %v1468 = vunpack.c.l.b16 %v991
      %v1469 = vunpack.c.l.b16 %v992
      %v1470 = vunpack.c.l.b16 %v993
      %v1471 = vunpack.c.l.b16 %v994
      %v1472 = vunpack.c.l.b16 %v995
      %v1473 = vunpack.c.l.b16 %v996
      %v1474 = vunpack.c.l.b16 %v997
      %v1475 = vunpack.c.l.b16 %v998
      %v1476 = vpack.c.b16 %v1468, %v1468
      %v1477 = vpack.c.b16 %v1469, %v1469
      %v1478 = vpack.c.b16 %v1470, %v1470
      %v1479 = vpack.c.b16 %v1471, %v1471
      %v1480 = vpack.c.b16 %v1472, %v1472
      %v1481 = vpack.c.b16 %v1473, %v1473
      %v1482 = vpack.c.b16 %v1474, %v1474
      %v1483 = vpack.c.b16 %v1475, %v1475
      %v1485 = vshrl.u32 %v1476, 16
      %v1487 = vrot.slane %v1485, 7
      %v1488 = vshll.u32 %v1476, 16
      %v1490 = vor.u32 %v1487, %v1488
      %v1491 = vrot.slane %v1487, 4
      %v1493 = vshrl.u32 %v1477, 16
      %v1495 = vrot.slane %v1493, 7
      %v1496 = vshll.u32 %v1477, 16
      %v1498 = vor.u32 %v1495, %v1496
      %v1499 = vrot.slane %v1495, 4
      %v1501 = vshrl.u32 %v1478, 16
      %v1503 = vrot.slane %v1501, 7
      %v1504 = vshll.u32 %v1478, 16
      %v1506 = vor.u32 %v1503, %v1504
      %v1507 = vrot.slane %v1503, 4
      %v1509 = vshrl.u32 %v1479, 16
      %v1511 = vrot.slane %v1509, 7
      %v1512 = vshll.u32 %v1479, 16
      %v1514 = vor.u32 %v1511, %v1512
      %v1515 = vrot.slane %v1511, 4
      %v1517 = vshrl.u32 %v1480, 16
      %v1519 = vrot.slane %v1517, 7
      %v1520 = vshll.u32 %v1480, 16
      %v1522 = vor.u32 %v1519, %v1520
      %v1523 = vrot.slane %v1519, 4
      %v1525 = vshrl.u32 %v1481, 16
      %v1527 = vrot.slane %v1525, 7
      %v1528 = vshll.u32 %v1481, 16
      %v1530 = vor.u32 %v1527, %v1528
      %v1531 = vrot.slane %v1527, 4
      %v1533 = vshrl.u32 %v1482, 16
      %v1535 = vrot.slane %v1533, 7
      %v1536 = vshll.u32 %v1482, 16
      %v1538 = vor.u32 %v1535, %v1536
      %v1539 = vrot.slane %v1535, 4
      %v1541 = vshrl.u32 %v1483, 16
      %v1543 = vrot.slane %v1541, 7
      %v1544 = vshll.u32 %v1483, 16
      %v1546 = vor.u32 %v1543, %v1544
      %v1547 = vrot.slane %v1543, 4
      %s1564 = scalar_lea.vmem [#allocation2], 248
      %v1565 = vld [vmem:[%s1564] sm:$0xf]
      %v1566 = vsel %vm1105, %v1490, %v1565
      %1567 = vst [vmem:[%s1564] sm:$0xf] %v1566
      %v1568 = vld [vmem:[%s1564 + $0x4] sm:$0x1]
      %v1569 = vsel %vm512, %v1491, %v1568
      %1570 = vst [vmem:[%s1564 + $0x4] sm:$0x1] %v1569
      %v1571 = vld [vmem:[%s1564 + $0x8] sm:$0xf]
      %v1572 = vsel %vm1105, %v1498, %v1571
      %1573 = vst [vmem:[%s1564 + $0x8] sm:$0xf] %v1572
      %v1574 = vld [vmem:[%s1564 + $0xc] sm:$0x1]
      %v1575 = vsel %vm512, %v1499, %v1574
      %1576 = vst [vmem:[%s1564 + $0xc] sm:$0x1] %v1575
      %v1577 = vld [vmem:[%s1564 + $0x10] sm:$0xf]
      %v1578 = vsel %vm1105, %v1506, %v1577
      %1579 = vst [vmem:[%s1564 + $0x10] sm:$0xf] %v1578
      %v1580 = vld [vmem:[%s1564 + $0x14] sm:$0x1]
      %v1581 = vsel %vm512, %v1507, %v1580
      %1582 = vst [vmem:[%s1564 + $0x14] sm:$0x1] %v1581
      %v1583 = vld [vmem:[%s1564 + $0x18] sm:$0xf]
      %v1584 = vsel %vm1105, %v1514, %v1583
      %1585 = vst [vmem:[%s1564 + $0x18] sm:$0xf] %v1584
      %v1586 = vld [vmem:[%s1564 + $0x1c] sm:$0x1]
      %v1587 = vsel %vm512, %v1515, %v1586
      %1588 = vst [vmem:[%s1564 + $0x1c] sm:$0x1] %v1587
      %v1589 = vld [vmem:[%s1564 + $0x20] sm:$0xf]
      %v1590 = vsel %vm1105, %v1522, %v1589
      %1591 = vst [vmem:[%s1564 + $0x20] sm:$0xf] %v1590
      %v1592 = vld [vmem:[%s1564 + $0x24] sm:$0x1]
      %v1593 = vsel %vm512, %v1523, %v1592
      %1594 = vst [vmem:[%s1564 + $0x24] sm:$0x1] %v1593
      %v1595 = vld [vmem:[%s1564 + $0x28] sm:$0xf]
      %v1596 = vsel %vm1105, %v1530, %v1595
      %1597 = vst [vmem:[%s1564 + $0x28] sm:$0xf] %v1596
      %v1598 = vld [vmem:[%s1564 + $0x2c] sm:$0x1]
      %v1599 = vsel %vm512, %v1531, %v1598
      %1600 = vst [vmem:[%s1564 + $0x2c] sm:$0x1] %v1599
      %v1601 = vld [vmem:[%s1564 + $0x30] sm:$0xf]
      %v1602 = vsel %vm1105, %v1538, %v1601
      %1603 = vst [vmem:[%s1564 + $0x30] sm:$0xf] %v1602
      %v1604 = vld [vmem:[%s1564 + $0x34] sm:$0x1]
      %v1605 = vsel %vm512, %v1539, %v1604
      %1606 = vst [vmem:[%s1564 + $0x34] sm:$0x1] %v1605
      %v1607 = vld [vmem:[%s1564 + $0x38] sm:$0xf]
      %v1608 = vsel %vm1105, %v1546, %v1607
      %1609 = vst [vmem:[%s1564 + $0x38] sm:$0xf] %v1608
      %v1610 = vld [vmem:[%s1564 + $0x3c] sm:$0x1]
      %v1611 = vsel %vm512, %v1547, %v1610
      %1612 = vst [vmem:[%s1564 + $0x3c] sm:$0x1] %v1611
      %s1613 = scalar_lea.vmem [#allocation2], 240
      %v1614 = vld [vmem:[%s1613] sm:$0xf]
      %v1615 = vld [vmem:[%s1613 + $0x8] sm:$0xf]
      %v1616 = vld [vmem:[%s1613 + $0x10] sm:$0xf]
      %v1617 = vld [vmem:[%s1613 + $0x18] sm:$0xf]
      %v1618 = vld [vmem:[%s1613 + $0x20] sm:$0xf]
      %v1619 = vld [vmem:[%s1613 + $0x28] sm:$0xf]
      %v1620 = vld [vmem:[%s1613 + $0x30] sm:$0xf]
      %v1621 = vld [vmem:[%s1613 + $0x38] sm:$0xf]
      %1622 = vst.msk [vmem:[#allocation3] sm:$0xf] %vm491, %v1614
      %1623 = vst.msk [vmem:[#allocation3 + $0x4] sm:$0xf] %vm491, %v1615
      %1624 = vst.msk [vmem:[#allocation3 + $0x8] sm:$0xf] %vm491, %v1616
      %1625 = vst.msk [vmem:[#allocation3 + $0xc] sm:$0xf] %vm491, %v1617
      %1626 = vst.msk [vmem:[#allocation3 + $0x10] sm:$0xf] %vm491, %v1618
      %1627 = vst.msk [vmem:[#allocation3 + $0x14] sm:$0xf] %vm491, %v1619
      %1628 = vst.msk [vmem:[#allocation3 + $0x18] sm:$0xf] %vm491, %v1620
      %1629 = vst.msk [vmem:[#allocation3 + $0x1c] sm:$0xf] %vm491, %v1621
      %s1630 = scalar_lea.vmem [#allocation2], 160
      %v1631 = vld [vmem:[%s1630] sm:$0xf]
      %v1632 = vld [vmem:[%s1630 + $0x4] sm:$0x1]
      %v1633 = vld [vmem:[%s1630 + $0x8] sm:$0xf]
      %v1634 = vld [vmem:[%s1630 + $0xc] sm:$0x1]
      %v1635 = vld [vmem:[%s1630 + $0x10] sm:$0xf]
      %v1636 = vld [vmem:[%s1630 + $0x14] sm:$0x1]
      %v1637 = vld [vmem:[%s1630 + $0x18] sm:$0xf]
      %v1638 = vld [vmem:[%s1630 + $0x1c] sm:$0x1]
      %v1639 = vld [vmem:[%s1630 + $0x20] sm:$0xf]
      %v1640 = vld [vmem:[%s1630 + $0x24] sm:$0x1]
      %v1641 = vld [vmem:[%s1630 + $0x28] sm:$0xf]
      %v1642 = vld [vmem:[%s1630 + $0x2c] sm:$0x1]
      %v1643 = vld [vmem:[%s1630 + $0x30] sm:$0xf]
      %v1644 = vld [vmem:[%s1630 + $0x34] sm:$0x1]
      %v1645 = vld [vmem:[%s1630 + $0x38] sm:$0xf]
      %v1646 = vld [vmem:[%s1630 + $0x3c] sm:$0x1]
      %vm1647 = vsmask.f32 3328
      %vm1648 = vsmask.f32 7440
      %vm1649 = vmor %vm1647, %vm1648
      %v1651 = vshrl.u32 %v1631, 16
      %v1653 = vrot.slane %v1651, 4
      %v1654 = vshll.u32 %v1631, 16
      %v1656 = vrot.slane %v1654, 5
      %v1657 = vor.u32 %v1653, %v1656
      %v1658 = vrot.slane %v1657, 4
      %v1660 = vshll.u32 %v1632, 16
      %v1662 = vrot.slane %v1660, 5
      %v1663 = vsel %vm1649, %v1658, %v1662
      %v1665 = vshrl.u32 %v1633, 16
      %v1667 = vrot.slane %v1665, 4
      %v1668 = vshll.u32 %v1633, 16
      %v1670 = vrot.slane %v1668, 5
      %v1671 = vor.u32 %v1667, %v1670
      %v1672 = vrot.slane %v1671, 4
      %v1674 = vshll.u32 %v1634, 16
      %v1676 = vrot.slane %v1674, 5
      %v1677 = vsel %vm1649, %v1672, %v1676
      %v1679 = vshrl.u32 %v1635, 16
      %v1681 = vrot.slane %v1679, 4
      %v1682 = vshll.u32 %v1635, 16
      %v1684 = vrot.slane %v1682, 5
      %v1685 = vor.u32 %v1681, %v1684
      %v1686 = vrot.slane %v1685, 4
      %v1688 = vshll.u32 %v1636, 16
      %v1690 = vrot.slane %v1688, 5
      %v1691 = vsel %vm1649, %v1686, %v1690
      %v1693 = vshrl.u32 %v1637, 16
      %v1695 = vrot.slane %v1693, 4
      %v1696 = vshll.u32 %v1637, 16
      %v1698 = vrot.slane %v1696, 5
      %v1699 = vor.u32 %v1695, %v1698
      %v1700 = vrot.slane %v1699, 4
      %v1702 = vshll.u32 %v1638, 16
      %v1704 = vrot.slane %v1702, 5
      %v1705 = vsel %vm1649, %v1700, %v1704
      %v1707 = vshrl.u32 %v1639, 16
      %v1709 = vrot.slane %v1707, 4
      %v1710 = vshll.u32 %v1639, 16
      %v1712 = vrot.slane %v1710, 5
      %v1713 = vor.u32 %v1709, %v1712
      %v1714 = vrot.slane %v1713, 4
      %v1716 = vshll.u32 %v1640, 16
      %v1718 = vrot.slane %v1716, 5
      %v1719 = vsel %vm1649, %v1714, %v1718
      %v1721 = vshrl.u32 %v1641, 16
      %v1723 = vrot.slane %v1721, 4
      %v1724 = vshll.u32 %v1641, 16
      %v1726 = vrot.slane %v1724, 5
      %v1727 = vor.u32 %v1723, %v1726
      %v1728 = vrot.slane %v1727, 4
      %v1730 = vshll.u32 %v1642, 16
      %v1732 = vrot.slane %v1730, 5
      %v1733 = vsel %vm1649, %v1728, %v1732
      %v1735 = vshrl.u32 %v1643, 16
      %v1737 = vrot.slane %v1735, 4
      %v1738 = vshll.u32 %v1643, 16
      %v1740 = vrot.slane %v1738, 5
      %v1741 = vor.u32 %v1737, %v1740
      %v1742 = vrot.slane %v1741, 4
      %v1744 = vshll.u32 %v1644, 16
      %v1746 = vrot.slane %v1744, 5
      %v1747 = vsel %vm1649, %v1742, %v1746
      %v1749 = vshrl.u32 %v1645, 16
      %v1751 = vrot.slane %v1749, 4
      %v1752 = vshll.u32 %v1645, 16
      %v1754 = vrot.slane %v1752, 5
      %v1755 = vor.u32 %v1751, %v1754
      %v1756 = vrot.slane %v1755, 4
      %v1758 = vshll.u32 %v1646, 16
      %v1760 = vrot.slane %v1758, 5
      %v1761 = vsel %vm1649, %v1756, %v1760
      %1762 = vrot.lane.b32.xlu0 %v1663, 4
      %v1763 = vpop.permute.xlu0 %1762
      %1764 = vrot.lane.b32.xlu0 %v1677, 4
      %v1765 = vpop.permute.xlu0 %1764
      %1766 = vrot.lane.b32.xlu0 %v1691, 4
      %v1767 = vpop.permute.xlu0 %1766
      %1768 = vrot.lane.b32.xlu0 %v1705, 4
      %v1769 = vpop.permute.xlu0 %1768
      %1770 = vrot.lane.b32.xlu0 %v1719, 4
      %v1771 = vpop.permute.xlu0 %1770
      %1772 = vrot.lane.b32.xlu0 %v1733, 4
      %v1773 = vpop.permute.xlu0 %1772
      %1774 = vrot.lane.b32.xlu0 %v1747, 4
      %v1775 = vpop.permute.xlu0 %1774
      %1776 = vrot.lane.b32.xlu0 %v1761, 4
      %v1777 = vpop.permute.xlu0 %1776
      %vm1786 = vcmask 60448
      %1787 = vst.msk [vmem:[#allocation3] sm:$0xf] %vm1786, %v1763
      %1788 = vst.msk [vmem:[#allocation3 + $0x4] sm:$0xf] %vm1786, %v1765
      %1789 = vst.msk [vmem:[#allocation3 + $0x8] sm:$0xf] %vm1786, %v1767
      %1790 = vst.msk [vmem:[#allocation3 + $0xc] sm:$0xf] %vm1786, %v1769
      %1791 = vst.msk [vmem:[#allocation3 + $0x10] sm:$0xf] %vm1786, %v1771
      %1792 = vst.msk [vmem:[#allocation3 + $0x14] sm:$0xf] %vm1786, %v1773
      %1793 = vst.msk [vmem:[#allocation3 + $0x18] sm:$0xf] %vm1786, %v1775
      %1794 = vst.msk [vmem:[#allocation3 + $0x1c] sm:$0xf] %vm1786, %v1777
      %v1795 = vld [vmem:[%s1613] sm:$0xf]
      %v1796 = vld [vmem:[%s1613 + $0x4] sm:$0x1]
      %v1797 = vld [vmem:[%s1613 + $0x8] sm:$0xf]
      %v1798 = vld [vmem:[%s1613 + $0xc] sm:$0x1]
      %v1799 = vld [vmem:[%s1613 + $0x10] sm:$0xf]
      %v1800 = vld [vmem:[%s1613 + $0x14] sm:$0x1]
      %v1801 = vld [vmem:[%s1613 + $0x18] sm:$0xf]
      %v1802 = vld [vmem:[%s1613 + $0x1c] sm:$0x1]
      %v1803 = vld [vmem:[%s1613 + $0x20] sm:$0xf]
      %v1804 = vld [vmem:[%s1613 + $0x24] sm:$0x1]
      %v1805 = vld [vmem:[%s1613 + $0x28] sm:$0xf]
      %v1806 = vld [vmem:[%s1613 + $0x2c] sm:$0x1]
      %v1807 = vld [vmem:[%s1613 + $0x30] sm:$0xf]
      %v1808 = vld [vmem:[%s1613 + $0x34] sm:$0x1]
      %v1809 = vld [vmem:[%s1613 + $0x38] sm:$0xf]
      %v1810 = vld [vmem:[%s1613 + $0x3c] sm:$0x1]
      %v1812 = vshrl.u32 %v1795, 16
      %v1814 = vrot.slane %v1812, 4
      %v1815 = vshll.u32 %v1795, 16
      %v1817 = vrot.slane %v1815, 5
      %v1818 = vor.u32 %v1814, %v1817
      %v1819 = vrot.slane %v1818, 4
      %v1821 = vshll.u32 %v1796, 16
      %v1823 = vrot.slane %v1821, 5
      %v1824 = vsel %vm1649, %v1819, %v1823
      %v1826 = vshrl.u32 %v1797, 16
      %v1828 = vrot.slane %v1826, 4
      %v1829 = vshll.u32 %v1797, 16
      %v1831 = vrot.slane %v1829, 5
      %v1832 = vor.u32 %v1828, %v1831
      %v1833 = vrot.slane %v1832, 4
      %v1835 = vshll.u32 %v1798, 16
      %v1837 = vrot.slane %v1835, 5
      %v1838 = vsel %vm1649, %v1833, %v1837
      %v1840 = vshrl.u32 %v1799, 16
      %v1842 = vrot.slane %v1840, 4
      %v1843 = vshll.u32 %v1799, 16
      %v1845 = vrot.slane %v1843, 5
      %v1846 = vor.u32 %v1842, %v1845
      %v1847 = vrot.slane %v1846, 4
      %v1849 = vshll.u32 %v1800, 16
      %v1851 = vrot.slane %v1849, 5
      %v1852 = vsel %vm1649, %v1847, %v1851
      %v1854 = vshrl.u32 %v1801, 16
      %v1856 = vrot.slane %v1854, 4
      %v1857 = vshll.u32 %v1801, 16
      %v1859 = vrot.slane %v1857, 5
      %v1860 = vor.u32 %v1856, %v1859
      %v1861 = vrot.slane %v1860, 4
      %v1863 = vshll.u32 %v1802, 16
      %v1865 = vrot.slane %v1863, 5
      %v1866 = vsel %vm1649, %v1861, %v1865
      %v1868 = vshrl.u32 %v1803, 16
      %v1870 = vrot.slane %v1868, 4
      %v1871 = vshll.u32 %v1803, 16
      %v1873 = vrot.slane %v1871, 5
      %v1874 = vor.u32 %v1870, %v1873
      %v1875 = vrot.slane %v1874, 4
      %v1877 = vshll.u32 %v1804, 16
      %v1879 = vrot.slane %v1877, 5
      %v1880 = vsel %vm1649, %v1875, %v1879
      %v1882 = vshrl.u32 %v1805, 16
      %v1884 = vrot.slane %v1882, 4
      %v1885 = vshll.u32 %v1805, 16
      %v1887 = vrot.slane %v1885, 5
      %v1888 = vor.u32 %v1884, %v1887
      %v1889 = vrot.slane %v1888, 4
      %v1891 = vshll.u32 %v1806, 16
      %v1893 = vrot.slane %v1891, 5
      %v1894 = vsel %vm1649, %v1889, %v1893
      %v1896 = vshrl.u32 %v1807, 16
      %v1898 = vrot.slane %v1896, 4
      %v1899 = vshll.u32 %v1807, 16
      %v1901 = vrot.slane %v1899, 5
      %v1902 = vor.u32 %v1898, %v1901
      %v1903 = vrot.slane %v1902, 4
      %v1905 = vshll.u32 %v1808, 16
      %v1907 = vrot.slane %v1905, 5
      %v1908 = vsel %vm1649, %v1903, %v1907
      %v1910 = vshrl.u32 %v1809, 16
      %v1912 = vrot.slane %v1910, 4
      %v1913 = vshll.u32 %v1809, 16
      %v1915 = vrot.slane %v1913, 5
      %v1916 = vor.u32 %v1912, %v1915
      %v1917 = vrot.slane %v1916, 4
      %v1919 = vshll.u32 %v1810, 16
      %v1921 = vrot.slane %v1919, 5
      %v1922 = vsel %vm1649, %v1917, %v1921
      %1923 = vrot.lane.b32.xlu0 %v1824, 8
      %v1924 = vpop.permute.xlu0 %1923
      %1925 = vrot.lane.b32.xlu0 %v1838, 8
      %v1926 = vpop.permute.xlu0 %1925
      %1927 = vrot.lane.b32.xlu0 %v1852, 8
      %v1928 = vpop.permute.xlu0 %1927
      %1929 = vrot.lane.b32.xlu0 %v1866, 8
      %v1930 = vpop.permute.xlu0 %1929
      %1931 = vrot.lane.b32.xlu0 %v1880, 8
      %v1932 = vpop.permute.xlu0 %1931
      %1933 = vrot.lane.b32.xlu0 %v1894, 8
      %v1934 = vpop.permute.xlu0 %1933
      %1935 = vrot.lane.b32.xlu0 %v1908, 8
      %v1936 = vpop.permute.xlu0 %1935
      %1937 = vrot.lane.b32.xlu0 %v1922, 8
      %v1938 = vpop.permute.xlu0 %1937
      %vm1947 = vcmask 93248
      %1948 = vst.msk [vmem:[#allocation3] sm:$0xf] %vm1947, %v1924
      %1949 = vst.msk [vmem:[#allocation3 + $0x4] sm:$0xf] %vm1947, %v1926
      %1950 = vst.msk [vmem:[#allocation3 + $0x8] sm:$0xf] %vm1947, %v1928
      %1951 = vst.msk [vmem:[#allocation3 + $0xc] sm:$0xf] %vm1947, %v1930
      %1952 = vst.msk [vmem:[#allocation3 + $0x10] sm:$0xf] %vm1947, %v1932
      %1953 = vst.msk [vmem:[#allocation3 + $0x14] sm:$0xf] %vm1947, %v1934
      %1954 = vst.msk [vmem:[#allocation3 + $0x18] sm:$0xf] %vm1947, %v1936
      %1955 = vst.msk [vmem:[#allocation3 + $0x1c] sm:$0xf] %vm1947, %v1938
      %v1956 = vld [vmem:[%s1258] sm:$0xf]
      %v1957 = vld [vmem:[%s1258 + $0x8] sm:$0xf]
      %v1958 = vld [vmem:[%s1258 + $0x10] sm:$0xf]
      %v1959 = vld [vmem:[%s1258 + $0x18] sm:$0xf]
      %v1960 = vld [vmem:[%s1258 + $0x20] sm:$0xf]
      %v1961 = vld [vmem:[%s1258 + $0x28] sm:$0xf]
      %v1962 = vld [vmem:[%s1258 + $0x30] sm:$0xf]
      %v1963 = vld [vmem:[%s1258 + $0x38] sm:$0xf]
      %1972 = vrot.lane.b32.xlu0 %v1956, 12
      %v1973 = vpop.permute.xlu0 %1972
      %1974 = vrot.lane.b32.xlu0 %v1957, 12
      %v1975 = vpop.permute.xlu0 %1974
      %1976 = vrot.lane.b32.xlu0 %v1958, 12
      %v1977 = vpop.permute.xlu0 %1976
      %1978 = vrot.lane.b32.xlu0 %v1959, 12
      %v1979 = vpop.permute.xlu0 %1978
      %1980 = vrot.lane.b32.xlu0 %v1960, 12
      %v1981 = vpop.permute.xlu0 %1980
      %1982 = vrot.lane.b32.xlu0 %v1961, 12
      %v1983 = vpop.permute.xlu0 %1982
      %1984 = vrot.lane.b32.xlu0 %v1962, 12
      %v1985 = vpop.permute.xlu0 %1984
      %1986 = vrot.lane.b32.xlu0 %v1963, 12
      %v1987 = vpop.permute.xlu0 %1986
      %vm1996 = vcmask 126048
      %1997 = vst.msk [vmem:[#allocation3] sm:$0xf] %vm1996, %v1973
      %1998 = vst.msk [vmem:[#allocation3 + $0x4] sm:$0xf] %vm1996, %v1975
      %1999 = vst.msk [vmem:[#allocation3 + $0x8] sm:$0xf] %vm1996, %v1977
      %2000 = vst.msk [vmem:[#allocation3 + $0xc] sm:$0xf] %vm1996, %v1979
      %2001 = vst.msk [vmem:[#allocation3 + $0x10] sm:$0xf] %vm1996, %v1981
      %2002 = vst.msk [vmem:[#allocation3 + $0x14] sm:$0xf] %vm1996, %v1983
      %2003 = vst.msk [vmem:[#allocation3 + $0x18] sm:$0xf] %vm1996, %v1985
      %2004 = vst.msk [vmem:[#allocation3 + $0x1c] sm:$0xf] %vm1996, %v1987
      %v2005 = vld [vmem:[%s1103] sm:$0xf]
      %v2006 = vld [vmem:[%s1103 + $0x4] sm:$0x1]
      %v2007 = vld [vmem:[%s1103 + $0x8] sm:$0xf]
      %v2008 = vld [vmem:[%s1103 + $0xc] sm:$0x1]
      %v2009 = vld [vmem:[%s1103 + $0x10] sm:$0xf]
      %v2010 = vld [vmem:[%s1103 + $0x14] sm:$0x1]
      %v2011 = vld [vmem:[%s1103 + $0x18] sm:$0xf]
      %v2012 = vld [vmem:[%s1103 + $0x1c] sm:$0x1]
      %v2013 = vld [vmem:[%s1103 + $0x20] sm:$0xf]
      %v2014 = vld [vmem:[%s1103 + $0x24] sm:$0x1]
      %v2015 = vld [vmem:[%s1103 + $0x28] sm:$0xf]
      %v2016 = vld [vmem:[%s1103 + $0x2c] sm:$0x1]
      %v2017 = vld [vmem:[%s1103 + $0x30] sm:$0xf]
      %v2018 = vld [vmem:[%s1103 + $0x34] sm:$0x1]
      %v2019 = vld [vmem:[%s1103 + $0x38] sm:$0xf]
      %v2020 = vld [vmem:[%s1103 + $0x3c] sm:$0x1]
      %v2022 = vshrl.u32 %v2005, 16
      %v2024 = vrot.slane %v2022, 4
      %v2025 = vshll.u32 %v2005, 16
      %v2027 = vrot.slane %v2025, 5
      %v2028 = vor.u32 %v2024, %v2027
      %v2029 = vrot.slane %v2028, 4
      %v2031 = vshll.u32 %v2006, 16
      %v2033 = vrot.slane %v2031, 5
      %v2034 = vsel %vm1649, %v2029, %v2033
      %v2036 = vshrl.u32 %v2007, 16
      %v2038 = vrot.slane %v2036, 4
      %v2039 = vshll.u32 %v2007, 16
      %v2041 = vrot.slane %v2039, 5
      %v2042 = vor.u32 %v2038, %v2041
      %v2043 = vrot.slane %v2042, 4
      %v2045 = vshll.u32 %v2008, 16
      %v2047 = vrot.slane %v2045, 5
      %v2048 = vsel %vm1649, %v2043, %v2047
      %v2050 = vshrl.u32 %v2009, 16
      %v2052 = vrot.slane %v2050, 4
      %v2053 = vshll.u32 %v2009, 16
      %v2055 = vrot.slane %v2053, 5
      %v2056 = vor.u32 %v2052, %v2055
      %v2057 = vrot.slane %v2056, 4
      %v2059 = vshll.u32 %v2010, 16
      %v2061 = vrot.slane %v2059, 5
      %v2062 = vsel %vm1649, %v2057, %v2061
      %v2064 = vshrl.u32 %v2011, 16
      %v2066 = vrot.slane %v2064, 4
      %v2067 = vshll.u32 %v2011, 16
      %v2069 = vrot.slane %v2067, 5
      %v2070 = vor.u32 %v2066, %v2069
      %v2071 = vrot.slane %v2070, 4
      %v2073 = vshll.u32 %v2012, 16
      %v2075 = vrot.slane %v2073, 5
      %v2076 = vsel %vm1649, %v2071, %v2075
      %v2078 = vshrl.u32 %v2013, 16
      %v2080 = vrot.slane %v2078, 4
      %v2081 = vshll.u32 %v2013, 16
      %v2083 = vrot.slane %v2081, 5
      %v2084 = vor.u32 %v2080, %v2083
      %v2085 = vrot.slane %v2084, 4
      %v2087 = vshll.u32 %v2014, 16
      %v2089 = vrot.slane %v2087, 5
      %v2090 = vsel %vm1649, %v2085, %v2089
      %v2092 = vshrl.u32 %v2015, 16
      %v2094 = vrot.slane %v2092, 4
      %v2095 = vshll.u32 %v2015, 16
      %v2097 = vrot.slane %v2095, 5
      %v2098 = vor.u32 %v2094, %v2097
      %v2099 = vrot.slane %v2098, 4
      %v2101 = vshll.u32 %v2016, 16
      %v2103 = vrot.slane %v2101, 5
      %v2104 = vsel %vm1649, %v2099, %v2103
      %v2106 = vshrl.u32 %v2017, 16
      %v2108 = vrot.slane %v2106, 4
      %v2109 = vshll.u32 %v2017, 16
      %v2111 = vrot.slane %v2109, 5
      %v2112 = vor.u32 %v2108, %v2111
      %v2113 = vrot.slane %v2112, 4
      %v2115 = vshll.u32 %v2018, 16
      %v2117 = vrot.slane %v2115, 5
      %v2118 = vsel %vm1649, %v2113, %v2117
      %v2120 = vshrl.u32 %v2019, 16
      %v2122 = vrot.slane %v2120, 4
      %v2123 = vshll.u32 %v2019, 16
      %v2125 = vrot.slane %v2123, 5
      %v2126 = vor.u32 %v2122, %v2125
      %v2127 = vrot.slane %v2126, 4
      %v2129 = vshll.u32 %v2020, 16
      %v2131 = vrot.slane %v2129, 5
      %v2132 = vsel %vm1649, %v2127, %v2131
      %2133 = vrot.lane.b32.xlu0 %v2034, 16
      %v2134 = vpop.permute.xlu0 %2133
      %2135 = vrot.lane.b32.xlu0 %v2048, 16
      %v2136 = vpop.permute.xlu0 %2135
      %2137 = vrot.lane.b32.xlu0 %v2062, 16
      %v2138 = vpop.permute.xlu0 %2137
      %2139 = vrot.lane.b32.xlu0 %v2076, 16
      %v2140 = vpop.permute.xlu0 %2139
      %2141 = vrot.lane.b32.xlu0 %v2090, 16
      %v2142 = vpop.permute.xlu0 %2141
      %2143 = vrot.lane.b32.xlu0 %v2104, 16
      %v2144 = vpop.permute.xlu0 %2143
      %2145 = vrot.lane.b32.xlu0 %v2118, 16
      %v2146 = vpop.permute.xlu0 %2145
      %2147 = vrot.lane.b32.xlu0 %v2132, 16
      %v2148 = vpop.permute.xlu0 %2147
      %vm2157 = vcmask 158848
      %2158 = vst.msk [vmem:[#allocation3] sm:$0xf] %vm2157, %v2134
      %2159 = vst.msk [vmem:[#allocation3 + $0x4] sm:$0xf] %vm2157, %v2136
      %2160 = vst.msk [vmem:[#allocation3 + $0x8] sm:$0xf] %vm2157, %v2138
      %2161 = vst.msk [vmem:[#allocation3 + $0xc] sm:$0xf] %vm2157, %v2140
      %2162 = vst.msk [vmem:[#allocation3 + $0x10] sm:$0xf] %vm2157, %v2142
      %2163 = vst.msk [vmem:[#allocation3 + $0x14] sm:$0xf] %vm2157, %v2144
      %2164 = vst.msk [vmem:[#allocation3 + $0x18] sm:$0xf] %vm2157, %v2146
      %2165 = vst.msk [vmem:[#allocation3 + $0x1c] sm:$0xf] %vm2157, %v2148
      %v2166 = vld [vmem:[%s1258] sm:$0xf]
      %v2167 = vld [vmem:[%s1258 + $0x4] sm:$0x1]
      %v2168 = vld [vmem:[%s1258 + $0x8] sm:$0xf]
      %v2169 = vld [vmem:[%s1258 + $0xc] sm:$0x1]
      %v2170 = vld [vmem:[%s1258 + $0x10] sm:$0xf]
      %v2171 = vld [vmem:[%s1258 + $0x14] sm:$0x1]
      %v2172 = vld [vmem:[%s1258 + $0x18] sm:$0xf]
      %v2173 = vld [vmem:[%s1258 + $0x1c] sm:$0x1]
      %v2174 = vld [vmem:[%s1258 + $0x20] sm:$0xf]
      %v2175 = vld [vmem:[%s1258 + $0x24] sm:$0x1]
      %v2176 = vld [vmem:[%s1258 + $0x28] sm:$0xf]
      %v2177 = vld [vmem:[%s1258 + $0x2c] sm:$0x1]
      %v2178 = vld [vmem:[%s1258 + $0x30] sm:$0xf]
      %v2179 = vld [vmem:[%s1258 + $0x34] sm:$0x1]
      %v2180 = vld [vmem:[%s1258 + $0x38] sm:$0xf]
      %v2181 = vld [vmem:[%s1258 + $0x3c] sm:$0x1]
      %v2183 = vshrl.u32 %v2166, 16
      %v2185 = vrot.slane %v2183, 4
      %v2186 = vshll.u32 %v2166, 16
      %v2188 = vrot.slane %v2186, 5
      %v2189 = vor.u32 %v2185, %v2188
      %v2190 = vrot.slane %v2189, 4
      %v2192 = vshll.u32 %v2167, 16
      %v2194 = vrot.slane %v2192, 5
      %v2195 = vsel %vm1649, %v2190, %v2194
      %v2197 = vshrl.u32 %v2168, 16
      %v2199 = vrot.slane %v2197, 4
      %v2200 = vshll.u32 %v2168, 16
      %v2202 = vrot.slane %v2200, 5
      %v2203 = vor.u32 %v2199, %v2202
      %v2204 = vrot.slane %v2203, 4
      %v2206 = vshll.u32 %v2169, 16
      %v2208 = vrot.slane %v2206, 5
      %v2209 = vsel %vm1649, %v2204, %v2208
      %v2211 = vshrl.u32 %v2170, 16
      %v2213 = vrot.slane %v2211, 4
      %v2214 = vshll.u32 %v2170, 16
      %v2216 = vrot.slane %v2214, 5
      %v2217 = vor.u32 %v2213, %v2216
      %v2218 = vrot.slane %v2217, 4
      %v2220 = vshll.u32 %v2171, 16
      %v2222 = vrot.slane %v2220, 5
      %v2223 = vsel %vm1649, %v2218, %v2222
      %v2225 = vshrl.u32 %v2172, 16
      %v2227 = vrot.slane %v2225, 4
      %v2228 = vshll.u32 %v2172, 16
      %v2230 = vrot.slane %v2228, 5
      %v2231 = vor.u32 %v2227, %v2230
      %v2232 = vrot.slane %v2231, 4
      %v2234 = vshll.u32 %v2173, 16
      %v2236 = vrot.slane %v2234, 5
      %v2237 = vsel %vm1649, %v2232, %v2236
      %v2239 = vshrl.u32 %v2174, 16
      %v2241 = vrot.slane %v2239, 4
      %v2242 = vshll.u32 %v2174, 16
      %v2244 = vrot.slane %v2242, 5
      %v2245 = vor.u32 %v2241, %v2244
      %v2246 = vrot.slane %v2245, 4
      %v2248 = vshll.u32 %v2175, 16
      %v2250 = vrot.slane %v2248, 5
      %v2251 = vsel %vm1649, %v2246, %v2250
      %v2253 = vshrl.u32 %v2176, 16
      %v2255 = vrot.slane %v2253, 4
      %v2256 = vshll.u32 %v2176, 16
      %v2258 = vrot.slane %v2256, 5
      %v2259 = vor.u32 %v2255, %v2258
      %v2260 = vrot.slane %v2259, 4
      %v2262 = vshll.u32 %v2177, 16
      %v2264 = vrot.slane %v2262, 5
      %v2265 = vsel %vm1649, %v2260, %v2264
      %v2267 = vshrl.u32 %v2178, 16
      %v2269 = vrot.slane %v2267, 4
      %v2270 = vshll.u32 %v2178, 16
      %v2272 = vrot.slane %v2270, 5
      %v2273 = vor.u32 %v2269, %v2272
      %v2274 = vrot.slane %v2273, 4
      %v2276 = vshll.u32 %v2179, 16
      %v2278 = vrot.slane %v2276, 5
      %v2279 = vsel %vm1649, %v2274, %v2278
      %v2281 = vshrl.u32 %v2180, 16
      %v2283 = vrot.slane %v2281, 4
      %v2284 = vshll.u32 %v2180, 16
      %v2286 = vrot.slane %v2284, 5
      %v2287 = vor.u32 %v2283, %v2286
      %v2288 = vrot.slane %v2287, 4
      %v2290 = vshll.u32 %v2181, 16
      %v2292 = vrot.slane %v2290, 5
      %v2293 = vsel %vm1649, %v2288, %v2292
      %2294 = vrot.lane.b32.xlu0 %v2195, 20
      %v2295 = vpop.permute.xlu0 %2294
      %2296 = vrot.lane.b32.xlu0 %v2209, 20
      %v2297 = vpop.permute.xlu0 %2296
      %2298 = vrot.lane.b32.xlu0 %v2223, 20
      %v2299 = vpop.permute.xlu0 %2298
      %2300 = vrot.lane.b32.xlu0 %v2237, 20
      %v2301 = vpop.permute.xlu0 %2300
      %2302 = vrot.lane.b32.xlu0 %v2251, 20
      %v2303 = vpop.permute.xlu0 %2302
      %2304 = vrot.lane.b32.xlu0 %v2265, 20
      %v2305 = vpop.permute.xlu0 %2304
      %2306 = vrot.lane.b32.xlu0 %v2279, 20
      %v2307 = vpop.permute.xlu0 %2306
      %2308 = vrot.lane.b32.xlu0 %v2293, 20
      %v2309 = vpop.permute.xlu0 %2308
      %vm2318 = vcmask 191648
      %2319 = vst.msk [vmem:[#allocation3] sm:$0xf] %vm2318, %v2295
      %2320 = vst.msk [vmem:[#allocation3 + $0x4] sm:$0xf] %vm2318, %v2297
      %2321 = vst.msk [vmem:[#allocation3 + $0x8] sm:$0xf] %vm2318, %v2299
      %2322 = vst.msk [vmem:[#allocation3 + $0xc] sm:$0xf] %vm2318, %v2301
      %2323 = vst.msk [vmem:[#allocation3 + $0x10] sm:$0xf] %vm2318, %v2303
      %2324 = vst.msk [vmem:[#allocation3 + $0x14] sm:$0xf] %vm2318, %v2305
      %2325 = vst.msk [vmem:[#allocation3 + $0x18] sm:$0xf] %vm2318, %v2307
      %2326 = vst.msk [vmem:[#allocation3 + $0x1c] sm:$0xf] %vm2318, %v2309
      %v2327 = vld [vmem:[%s1564] sm:$0xf]
      %v2328 = vld [vmem:[%s1564 + $0x8] sm:$0xf]
      %v2329 = vld [vmem:[%s1564 + $0x10] sm:$0xf]
      %v2330 = vld [vmem:[%s1564 + $0x18] sm:$0xf]
      %v2331 = vld [vmem:[%s1564 + $0x20] sm:$0xf]
      %v2332 = vld [vmem:[%s1564 + $0x28] sm:$0xf]
      %v2333 = vld [vmem:[%s1564 + $0x30] sm:$0xf]
      %v2334 = vld [vmem:[%s1564 + $0x38] sm:$0xf]
      %2343 = vrot.lane.b32.xlu0 %v2327, 24
      %v2344 = vpop.permute.xlu0 %2343
      %2345 = vrot.lane.b32.xlu0 %v2328, 24
      %v2346 = vpop.permute.xlu0 %2345
      %2347 = vrot.lane.b32.xlu0 %v2329, 24
      %v2348 = vpop.permute.xlu0 %2347
      %2349 = vrot.lane.b32.xlu0 %v2330, 24
      %v2350 = vpop.permute.xlu0 %2349
      %2351 = vrot.lane.b32.xlu0 %v2331, 24
      %v2352 = vpop.permute.xlu0 %2351
      %2353 = vrot.lane.b32.xlu0 %v2332, 24
      %v2354 = vpop.permute.xlu0 %2353
      %2355 = vrot.lane.b32.xlu0 %v2333, 24
      %v2356 = vpop.permute.xlu0 %2355
      %2357 = vrot.lane.b32.xlu0 %v2334, 24
      %v2358 = vpop.permute.xlu0 %2357
      %vm2367 = vcmask 224448
      %2368 = vst.msk [vmem:[#allocation3] sm:$0xf] %vm2367, %v2344
      %2369 = vst.msk [vmem:[#allocation3 + $0x4] sm:$0xf] %vm2367, %v2346
      %2370 = vst.msk [vmem:[#allocation3 + $0x8] sm:$0xf] %vm2367, %v2348
      %2371 = vst.msk [vmem:[#allocation3 + $0xc] sm:$0xf] %vm2367, %v2350
      %2372 = vst.msk [vmem:[#allocation3 + $0x10] sm:$0xf] %vm2367, %v2352
      %2373 = vst.msk [vmem:[#allocation3 + $0x14] sm:$0xf] %vm2367, %v2354
      %2374 = vst.msk [vmem:[#allocation3 + $0x18] sm:$0xf] %vm2367, %v2356
      %2375 = vst.msk [vmem:[#allocation3 + $0x1c] sm:$0xf] %vm2367, %v2358
      %v2376 = vld [vmem:[%s1411] sm:$0xf]
      %v2377 = vld [vmem:[%s1411 + $0x4] sm:$0x1]
      %v2378 = vld [vmem:[%s1411 + $0x8] sm:$0xf]
      %v2379 = vld [vmem:[%s1411 + $0xc] sm:$0x1]
      %v2380 = vld [vmem:[%s1411 + $0x10] sm:$0xf]
      %v2381 = vld [vmem:[%s1411 + $0x14] sm:$0x1]
      %v2382 = vld [vmem:[%s1411 + $0x18] sm:$0xf]
      %v2383 = vld [vmem:[%s1411 + $0x1c] sm:$0x1]
      %v2384 = vld [vmem:[%s1411 + $0x20] sm:$0xf]
      %v2385 = vld [vmem:[%s1411 + $0x24] sm:$0x1]
      %v2386 = vld [vmem:[%s1411 + $0x28] sm:$0xf]
      %v2387 = vld [vmem:[%s1411 + $0x2c] sm:$0x1]
      %v2388 = vld [vmem:[%s1411 + $0x30] sm:$0xf]
      %v2389 = vld [vmem:[%s1411 + $0x34] sm:$0x1]
      %v2390 = vld [vmem:[%s1411 + $0x38] sm:$0xf]
      %v2391 = vld [vmem:[%s1411 + $0x3c] sm:$0x1]
      %v2393 = vshrl.u32 %v2376, 16
      %v2395 = vrot.slane %v2393, 4
      %v2396 = vshll.u32 %v2376, 16
      %v2398 = vrot.slane %v2396, 5
      %v2399 = vor.u32 %v2395, %v2398
      %v2400 = vrot.slane %v2399, 4
      %v2402 = vshll.u32 %v2377, 16
      %v2404 = vrot.slane %v2402, 5
      %v2405 = vsel %vm1649, %v2400, %v2404
      %v2407 = vshrl.u32 %v2378, 16
      %v2409 = vrot.slane %v2407, 4
      %v2410 = vshll.u32 %v2378, 16
      %v2412 = vrot.slane %v2410, 5
      %v2413 = vor.u32 %v2409, %v2412
      %v2414 = vrot.slane %v2413, 4
      %v2416 = vshll.u32 %v2379, 16
      %v2418 = vrot.slane %v2416, 5
      %v2419 = vsel %vm1649, %v2414, %v2418
      %v2421 = vshrl.u32 %v2380, 16
      %v2423 = vrot.slane %v2421, 4
      %v2424 = vshll.u32 %v2380, 16
      %v2426 = vrot.slane %v2424, 5
      %v2427 = vor.u32 %v2423, %v2426
      %v2428 = vrot.slane %v2427, 4
      %v2430 = vshll.u32 %v2381, 16
      %v2432 = vrot.slane %v2430, 5
      %v2433 = vsel %vm1649, %v2428, %v2432
      %v2435 = vshrl.u32 %v2382, 16
      %v2437 = vrot.slane %v2435, 4
      %v2438 = vshll.u32 %v2382, 16
      %v2440 = vrot.slane %v2438, 5
      %v2441 = vor.u32 %v2437, %v2440
      %v2442 = vrot.slane %v2441, 4
      %v2444 = vshll.u32 %v2383, 16
      %v2446 = vrot.slane %v2444, 5
      %v2447 = vsel %vm1649, %v2442, %v2446
      %v2449 = vshrl.u32 %v2384, 16
      %v2451 = vrot.slane %v2449, 4
      %v2452 = vshll.u32 %v2384, 16
      %v2454 = vrot.slane %v2452, 5
      %v2455 = vor.u32 %v2451, %v2454
      %v2456 = vrot.slane %v2455, 4
      %v2458 = vshll.u32 %v2385, 16
      %v2460 = vrot.slane %v2458, 5
      %v2461 = vsel %vm1649, %v2456, %v2460
      %v2463 = vshrl.u32 %v2386, 16
      %v2465 = vrot.slane %v2463, 4
      %v2466 = vshll.u32 %v2386, 16
      %v2468 = vrot.slane %v2466, 5
      %v2469 = vor.u32 %v2465, %v2468
      %v2470 = vrot.slane %v2469, 4
      %v2472 = vshll.u32 %v2387, 16
      %v2474 = vrot.slane %v2472, 5
      %v2475 = vsel %vm1649, %v2470, %v2474
      %v2477 = vshrl.u32 %v2388, 16
      %v2479 = vrot.slane %v2477, 4
      %v2480 = vshll.u32 %v2388, 16
      %v2482 = vrot.slane %v2480, 5
      %v2483 = vor.u32 %v2479, %v2482
      %v2484 = vrot.slane %v2483, 4
      %v2486 = vshll.u32 %v2389, 16
      %v2488 = vrot.slane %v2486, 5
      %v2489 = vsel %vm1649, %v2484, %v2488
      %v2491 = vshrl.u32 %v2390, 16
      %v2493 = vrot.slane %v2491, 4
      %v2494 = vshll.u32 %v2390, 16
      %v2496 = vrot.slane %v2494, 5
      %v2497 = vor.u32 %v2493, %v2496
      %v2498 = vrot.slane %v2497, 4
      %v2500 = vshll.u32 %v2391, 16
      %v2502 = vrot.slane %v2500, 5
      %v2503 = vsel %vm1649, %v2498, %v2502
      %2504 = vrot.lane.b32.xlu0 %v2405, 28
      %v2505 = vpop.permute.xlu0 %2504
      %2506 = vrot.lane.b32.xlu0 %v2419, 28
      %v2507 = vpop.permute.xlu0 %2506
      %2508 = vrot.lane.b32.xlu0 %v2433, 28
      %v2509 = vpop.permute.xlu0 %2508
      %2510 = vrot.lane.b32.xlu0 %v2447, 28
      %v2511 = vpop.permute.xlu0 %2510
      %2512 = vrot.lane.b32.xlu0 %v2461, 28
      %v2513 = vpop.permute.xlu0 %2512
      %2514 = vrot.lane.b32.xlu0 %v2475, 28
      %v2515 = vpop.permute.xlu0 %2514
      %2516 = vrot.lane.b32.xlu0 %v2489, 28
      %v2517 = vpop.permute.xlu0 %2516
      %2518 = vrot.lane.b32.xlu0 %v2503, 28
      %v2519 = vpop.permute.xlu0 %2518
      %vm2528 = vcmask 257248
      %2529 = vst.msk [vmem:[#allocation3] sm:$0xf] %vm2528, %v2505
      %2530 = vst.msk [vmem:[#allocation3 + $0x4] sm:$0xf] %vm2528, %v2507
      %2531 = vst.msk [vmem:[#allocation3 + $0x8] sm:$0xf] %vm2528, %v2509
      %2532 = vst.msk [vmem:[#allocation3 + $0xc] sm:$0xf] %vm2528, %v2511
      %2533 = vst.msk [vmem:[#allocation3 + $0x10] sm:$0xf] %vm2528, %v2513
      %2534 = vst.msk [vmem:[#allocation3 + $0x14] sm:$0xf] %vm2528, %v2515
      %2535 = vst.msk [vmem:[#allocation3 + $0x18] sm:$0xf] %vm2528, %v2517
      %2536 = vst.msk [vmem:[#allocation3 + $0x1c] sm:$0xf] %vm2528, %v2519
      %v2537 = vld [vmem:[%s1564] sm:$0xf]
      %v2538 = vld [vmem:[%s1564 + $0x4] sm:$0x1]
      %v2539 = vld [vmem:[%s1564 + $0x8] sm:$0xf]
      %v2540 = vld [vmem:[%s1564 + $0xc] sm:$0x1]
      %v2541 = vld [vmem:[%s1564 + $0x10] sm:$0xf]
      %v2542 = vld [vmem:[%s1564 + $0x14] sm:$0x1]
      %v2543 = vld [vmem:[%s1564 + $0x18] sm:$0xf]
      %v2544 = vld [vmem:[%s1564 + $0x1c] sm:$0x1]
      %v2545 = vld [vmem:[%s1564 + $0x20] sm:$0xf]
      %v2546 = vld [vmem:[%s1564 + $0x24] sm:$0x1]
      %v2547 = vld [vmem:[%s1564 + $0x28] sm:$0xf]
      %v2548 = vld [vmem:[%s1564 + $0x2c] sm:$0x1]
      %v2549 = vld [vmem:[%s1564 + $0x30] sm:$0xf]
      %v2550 = vld [vmem:[%s1564 + $0x34] sm:$0x1]
      %v2551 = vld [vmem:[%s1564 + $0x38] sm:$0xf]
      %v2552 = vld [vmem:[%s1564 + $0x3c] sm:$0x1]
      %v2554 = vshrl.u32 %v2537, 16
      %v2556 = vrot.slane %v2554, 4
      %v2557 = vshll.u32 %v2537, 16
      %v2559 = vrot.slane %v2557, 5
      %v2560 = vor.u32 %v2556, %v2559
      %v2561 = vrot.slane %v2560, 4
      %v2563 = vshll.u32 %v2538, 16
      %v2565 = vrot.slane %v2563, 5
      %v2566 = vsel %vm1649, %v2561, %v2565
      %v2568 = vshrl.u32 %v2539, 16
      %v2570 = vrot.slane %v2568, 4
      %v2571 = vshll.u32 %v2539, 16
      %v2573 = vrot.slane %v2571, 5
      %v2574 = vor.u32 %v2570, %v2573
      %v2575 = vrot.slane %v2574, 4
      %v2577 = vshll.u32 %v2540, 16
      %v2579 = vrot.slane %v2577, 5
      %v2580 = vsel %vm1649, %v2575, %v2579
      %v2582 = vshrl.u32 %v2541, 16
      %v2584 = vrot.slane %v2582, 4
      %v2585 = vshll.u32 %v2541, 16
      %v2587 = vrot.slane %v2585, 5
      %v2588 = vor.u32 %v2584, %v2587
      %v2589 = vrot.slane %v2588, 4
      %v2591 = vshll.u32 %v2542, 16
      %v2593 = vrot.slane %v2591, 5
      %v2594 = vsel %vm1649, %v2589, %v2593
      %v2596 = vshrl.u32 %v2543, 16
      %v2598 = vrot.slane %v2596, 4
      %v2599 = vshll.u32 %v2543, 16
      %v2601 = vrot.slane %v2599, 5
      %v2602 = vor.u32 %v2598, %v2601
      %v2603 = vrot.slane %v2602, 4
      %v2605 = vshll.u32 %v2544, 16
      %v2607 = vrot.slane %v2605, 5
      %v2608 = vsel %vm1649, %v2603, %v2607
      %v2610 = vshrl.u32 %v2545, 16
      %v2612 = vrot.slane %v2610, 4
      %v2613 = vshll.u32 %v2545, 16
      %v2615 = vrot.slane %v2613, 5
      %v2616 = vor.u32 %v2612, %v2615
      %v2617 = vrot.slane %v2616, 4
      %v2619 = vshll.u32 %v2546, 16
      %v2621 = vrot.slane %v2619, 5
      %v2622 = vsel %vm1649, %v2617, %v2621
      %v2624 = vshrl.u32 %v2547, 16
      %v2626 = vrot.slane %v2624, 4
      %v2627 = vshll.u32 %v2547, 16
      %v2629 = vrot.slane %v2627, 5
      %v2630 = vor.u32 %v2626, %v2629
      %v2631 = vrot.slane %v2630, 4
      %v2633 = vshll.u32 %v2548, 16
      %v2635 = vrot.slane %v2633, 5
      %v2636 = vsel %vm1649, %v2631, %v2635
      %v2638 = vshrl.u32 %v2549, 16
      %v2640 = vrot.slane %v2638, 4
      %v2641 = vshll.u32 %v2549, 16
      %v2643 = vrot.slane %v2641, 5
      %v2644 = vor.u32 %v2640, %v2643
      %v2645 = vrot.slane %v2644, 4
      %v2647 = vshll.u32 %v2550, 16
      %v2649 = vrot.slane %v2647, 5
      %v2650 = vsel %vm1649, %v2645, %v2649
      %v2652 = vshrl.u32 %v2551, 16
      %v2654 = vrot.slane %v2652, 4
      %v2655 = vshll.u32 %v2551, 16
      %v2657 = vrot.slane %v2655, 5
      %v2658 = vor.u32 %v2654, %v2657
      %v2659 = vrot.slane %v2658, 4
      %v2661 = vshll.u32 %v2552, 16
      %v2663 = vrot.slane %v2661, 5
      %v2664 = vsel %vm1649, %v2659, %v2663
      %2665 = vrot.lane.b32.xlu0 %v2566, 32
      %v2666 = vpop.permute.xlu0 %2665
      %2667 = vrot.lane.b32.xlu0 %v2580, 32
      %v2668 = vpop.permute.xlu0 %2667
      %2669 = vrot.lane.b32.xlu0 %v2594, 32
      %v2670 = vpop.permute.xlu0 %2669
      %2671 = vrot.lane.b32.xlu0 %v2608, 32
      %v2672 = vpop.permute.xlu0 %2671
      %2673 = vrot.lane.b32.xlu0 %v2622, 32
      %v2674 = vpop.permute.xlu0 %2673
      %2675 = vrot.lane.b32.xlu0 %v2636, 32
      %v2676 = vpop.permute.xlu0 %2675
      %2677 = vrot.lane.b32.xlu0 %v2650, 32
      %v2678 = vpop.permute.xlu0 %2677
      %2679 = vrot.lane.b32.xlu0 %v2664, 32
      %v2680 = vpop.permute.xlu0 %2679
      %vm2689 = vcmask 290048
      %2690 = vst.msk [vmem:[#allocation3] sm:$0xf] %vm2689, %v2666
      %2691 = vst.msk [vmem:[#allocation3 + $0x4] sm:$0xf] %vm2689, %v2668
      %2692 = vst.msk [vmem:[#allocation3 + $0x8] sm:$0xf] %vm2689, %v2670
      %2693 = vst.msk [vmem:[#allocation3 + $0xc] sm:$0xf] %vm2689, %v2672
      %2694 = vst.msk [vmem:[#allocation3 + $0x10] sm:$0xf] %vm2689, %v2674
      %2695 = vst.msk [vmem:[#allocation3 + $0x14] sm:$0xf] %vm2689, %v2676
      %2696 = vst.msk [vmem:[#allocation3 + $0x18] sm:$0xf] %vm2689, %v2678
      %2697 = vst.msk [vmem:[#allocation3 + $0x1c] sm:$0xf] %vm2689, %v2680
      %v2698 = vld [vmem:[%s1630] sm:$0xf]
      %v2699 = vld [vmem:[%s1630 + $0x4] sm:$0x1]
      %v2700 = vld [vmem:[%s1630 + $0x8] sm:$0xf]
      %v2701 = vld [vmem:[%s1630 + $0xc] sm:$0x1]
      %v2702 = vld [vmem:[%s1630 + $0x10] sm:$0xf]
      %v2703 = vld [vmem:[%s1630 + $0x14] sm:$0x1]
      %v2704 = vld [vmem:[%s1630 + $0x18] sm:$0xf]
      %v2705 = vld [vmem:[%s1630 + $0x1c] sm:$0x1]
      %v2706 = vld [vmem:[%s1630 + $0x20] sm:$0xf]
      %v2707 = vld [vmem:[%s1630 + $0x24] sm:$0x1]
      %v2708 = vld [vmem:[%s1630 + $0x28] sm:$0xf]
      %v2709 = vld [vmem:[%s1630 + $0x2c] sm:$0x1]
      %v2710 = vld [vmem:[%s1630 + $0x30] sm:$0xf]
      %v2711 = vld [vmem:[%s1630 + $0x34] sm:$0x1]
      %v2712 = vld [vmem:[%s1630 + $0x38] sm:$0xf]
      %v2713 = vld [vmem:[%s1630 + $0x3c] sm:$0x1]
      %v2715 = vshrl.u32 %v2698, 16
      %v2717 = vrot.slane %v2715, 4
      %v2718 = vshll.u32 %v2698, 16
      %v2720 = vrot.slane %v2718, 5
      %v2721 = vor.u32 %v2717, %v2720
      %v2722 = vrot.slane %v2721, 4
      %v2724 = vshll.u32 %v2699, 16
      %v2726 = vrot.slane %v2724, 5
      %v2727 = vsel %vm1649, %v2722, %v2726
      %v2729 = vshrl.u32 %v2700, 16
      %v2731 = vrot.slane %v2729, 4
      %v2732 = vshll.u32 %v2700, 16
      %v2734 = vrot.slane %v2732, 5
      %v2735 = vor.u32 %v2731, %v2734
      %v2736 = vrot.slane %v2735, 4
      %v2738 = vshll.u32 %v2701, 16
      %v2740 = vrot.slane %v2738, 5
      %v2741 = vsel %vm1649, %v2736, %v2740
      %v2743 = vshrl.u32 %v2702, 16
      %v2745 = vrot.slane %v2743, 4
      %v2746 = vshll.u32 %v2702, 16
      %v2748 = vrot.slane %v2746, 5
      %v2749 = vor.u32 %v2745, %v2748
      %v2750 = vrot.slane %v2749, 4
      %v2752 = vshll.u32 %v2703, 16
      %v2754 = vrot.slane %v2752, 5
      %v2755 = vsel %vm1649, %v2750, %v2754
      %v2757 = vshrl.u32 %v2704, 16
      %v2759 = vrot.slane %v2757, 4
      %v2760 = vshll.u32 %v2704, 16
      %v2762 = vrot.slane %v2760, 5
      %v2763 = vor.u32 %v2759, %v2762
      %v2764 = vrot.slane %v2763, 4
      %v2766 = vshll.u32 %v2705, 16
      %v2768 = vrot.slane %v2766, 5
      %v2769 = vsel %vm1649, %v2764, %v2768
      %v2771 = vshrl.u32 %v2706, 16
      %v2773 = vrot.slane %v2771, 4
      %v2774 = vshll.u32 %v2706, 16
      %v2776 = vrot.slane %v2774, 5
      %v2777 = vor.u32 %v2773, %v2776
      %v2778 = vrot.slane %v2777, 4
      %v2780 = vshll.u32 %v2707, 16
      %v2782 = vrot.slane %v2780, 5
      %v2783 = vsel %vm1649, %v2778, %v2782
      %v2785 = vshrl.u32 %v2708, 16
      %v2787 = vrot.slane %v2785, 4
      %v2788 = vshll.u32 %v2708, 16
      %v2790 = vrot.slane %v2788, 5
      %v2791 = vor.u32 %v2787, %v2790
      %v2792 = vrot.slane %v2791, 4
      %v2794 = vshll.u32 %v2709, 16
      %v2796 = vrot.slane %v2794, 5
      %v2797 = vsel %vm1649, %v2792, %v2796
      %v2799 = vshrl.u32 %v2710, 16
      %v2801 = vrot.slane %v2799, 4
      %v2802 = vshll.u32 %v2710, 16
      %v2804 = vrot.slane %v2802, 5
      %v2805 = vor.u32 %v2801, %v2804
      %v2806 = vrot.slane %v2805, 4
      %v2808 = vshll.u32 %v2711, 16
      %v2810 = vrot.slane %v2808, 5
      %v2811 = vsel %vm1649, %v2806, %v2810
      %v2813 = vshrl.u32 %v2712, 16
      %v2815 = vrot.slane %v2813, 4
      %v2816 = vshll.u32 %v2712, 16
      %v2818 = vrot.slane %v2816, 5
      %v2819 = vor.u32 %v2815, %v2818
      %v2820 = vrot.slane %v2819, 4
      %v2822 = vshll.u32 %v2713, 16
      %v2824 = vrot.slane %v2822, 5
      %v2825 = vsel %vm1649, %v2820, %v2824
      %s2834 = scalar_lea.vmem [#allocation3], 32
      %2835 = vst.msk [vmem:[%s2834] sm:$0xf] %vm491, %v2727
      %2836 = vst.msk [vmem:[%s2834 + $0x4] sm:$0xf] %vm491, %v2741
      %2837 = vst.msk [vmem:[%s2834 + $0x8] sm:$0xf] %vm491, %v2755
      %2838 = vst.msk [vmem:[%s2834 + $0xc] sm:$0xf] %vm491, %v2769
      %2839 = vst.msk [vmem:[%s2834 + $0x10] sm:$0xf] %vm491, %v2783
      %2840 = vst.msk [vmem:[%s2834 + $0x14] sm:$0xf] %vm491, %v2797
      %2841 = vst.msk [vmem:[%s2834 + $0x18] sm:$0xf] %vm491, %v2811
      %2842 = vst.msk [vmem:[%s2834 + $0x1c] sm:$0xf] %vm491, %v2825
      %v2843 = vld [vmem:[%s1613] sm:$0xf]
      %v2844 = vld [vmem:[%s1613 + $0x4] sm:$0x1]
      %v2845 = vld [vmem:[%s1613 + $0x8] sm:$0xf]
      %v2846 = vld [vmem:[%s1613 + $0xc] sm:$0x1]
      %v2847 = vld [vmem:[%s1613 + $0x10] sm:$0xf]
      %v2848 = vld [vmem:[%s1613 + $0x14] sm:$0x1]
      %v2849 = vld [vmem:[%s1613 + $0x18] sm:$0xf]
      %v2850 = vld [vmem:[%s1613 + $0x1c] sm:$0x1]
      %v2851 = vld [vmem:[%s1613 + $0x20] sm:$0xf]
      %v2852 = vld [vmem:[%s1613 + $0x24] sm:$0x1]
      %v2853 = vld [vmem:[%s1613 + $0x28] sm:$0xf]
      %v2854 = vld [vmem:[%s1613 + $0x2c] sm:$0x1]
      %v2855 = vld [vmem:[%s1613 + $0x30] sm:$0xf]
      %v2856 = vld [vmem:[%s1613 + $0x34] sm:$0x1]
      %v2857 = vld [vmem:[%s1613 + $0x38] sm:$0xf]
      %v2858 = vld [vmem:[%s1613 + $0x3c] sm:$0x1]
      %v2860 = vshrl.u32 %v2843, 16
      %v2862 = vrot.slane %v2860, 4
      %v2863 = vshll.u32 %v2843, 16
      %v2865 = vrot.slane %v2863, 5
      %v2866 = vor.u32 %v2862, %v2865
      %v2867 = vrot.slane %v2866, 4
      %v2869 = vshll.u32 %v2844, 16
      %v2871 = vrot.slane %v2869, 5
      %v2872 = vsel %vm1649, %v2867, %v2871
      %v2874 = vshrl.u32 %v2845, 16
      %v2876 = vrot.slane %v2874, 4
      %v2877 = vshll.u32 %v2845, 16
      %v2879 = vrot.slane %v2877, 5
      %v2880 = vor.u32 %v2876, %v2879
      %v2881 = vrot.slane %v2880, 4
      %v2883 = vshll.u32 %v2846, 16
      %v2885 = vrot.slane %v2883, 5
      %v2886 = vsel %vm1649, %v2881, %v2885
      %v2888 = vshrl.u32 %v2847, 16
      %v2890 = vrot.slane %v2888, 4
      %v2891 = vshll.u32 %v2847, 16
      %v2893 = vrot.slane %v2891, 5
      %v2894 = vor.u32 %v2890, %v2893
      %v2895 = vrot.slane %v2894, 4
      %v2897 = vshll.u32 %v2848, 16
      %v2899 = vrot.slane %v2897, 5
      %v2900 = vsel %vm1649, %v2895, %v2899
      %v2902 = vshrl.u32 %v2849, 16
      %v2904 = vrot.slane %v2902, 4
      %v2905 = vshll.u32 %v2849, 16
      %v2907 = vrot.slane %v2905, 5
      %v2908 = vor.u32 %v2904, %v2907
      %v2909 = vrot.slane %v2908, 4
      %v2911 = vshll.u32 %v2850, 16
      %v2913 = vrot.slane %v2911, 5
      %v2914 = vsel %vm1649, %v2909, %v2913
      %v2916 = vshrl.u32 %v2851, 16
      %v2918 = vrot.slane %v2916, 4
      %v2919 = vshll.u32 %v2851, 16
      %v2921 = vrot.slane %v2919, 5
      %v2922 = vor.u32 %v2918, %v2921
      %v2923 = vrot.slane %v2922, 4
      %v2925 = vshll.u32 %v2852, 16
      %v2927 = vrot.slane %v2925, 5
      %v2928 = vsel %vm1649, %v2923, %v2927
      %v2930 = vshrl.u32 %v2853, 16
      %v2932 = vrot.slane %v2930, 4
      %v2933 = vshll.u32 %v2853, 16
      %v2935 = vrot.slane %v2933, 5
      %v2936 = vor.u32 %v2932, %v2935
      %v2937 = vrot.slane %v2936, 4
      %v2939 = vshll.u32 %v2854, 16
      %v2941 = vrot.slane %v2939, 5
      %v2942 = vsel %vm1649, %v2937, %v2941
      %v2944 = vshrl.u32 %v2855, 16
      %v2946 = vrot.slane %v2944, 4
      %v2947 = vshll.u32 %v2855, 16
      %v2949 = vrot.slane %v2947, 5
      %v2950 = vor.u32 %v2946, %v2949
      %v2951 = vrot.slane %v2950, 4
      %v2953 = vshll.u32 %v2856, 16
      %v2955 = vrot.slane %v2953, 5
      %v2956 = vsel %vm1649, %v2951, %v2955
      %v2958 = vshrl.u32 %v2857, 16
      %v2960 = vrot.slane %v2958, 4
      %v2961 = vshll.u32 %v2857, 16
      %v2963 = vrot.slane %v2961, 5
      %v2964 = vor.u32 %v2960, %v2963
      %v2965 = vrot.slane %v2964, 4
      %v2967 = vshll.u32 %v2858, 16
      %v2969 = vrot.slane %v2967, 5
      %v2970 = vsel %vm1649, %v2965, %v2969
      %2971 = vrot.lane.b32.xlu0 %v2872, 4
      %v2972 = vpop.permute.xlu0 %2971
      %2973 = vrot.lane.b32.xlu0 %v2886, 4
      %v2974 = vpop.permute.xlu0 %2973
      %2975 = vrot.lane.b32.xlu0 %v2900, 4
      %v2976 = vpop.permute.xlu0 %2975
      %2977 = vrot.lane.b32.xlu0 %v2914, 4
      %v2978 = vpop.permute.xlu0 %2977
      %2979 = vrot.lane.b32.xlu0 %v2928, 4
      %v2980 = vpop.permute.xlu0 %2979
      %2981 = vrot.lane.b32.xlu0 %v2942, 4
      %v2982 = vpop.permute.xlu0 %2981
      %2983 = vrot.lane.b32.xlu0 %v2956, 4
      %v2984 = vpop.permute.xlu0 %2983
      %2985 = vrot.lane.b32.xlu0 %v2970, 4
      %v2986 = vpop.permute.xlu0 %2985
      %2995 = vst.msk [vmem:[%s2834] sm:$0xf] %vm1786, %v2972
      %2996 = vst.msk [vmem:[%s2834 + $0x4] sm:$0xf] %vm1786, %v2974
      %2997 = vst.msk [vmem:[%s2834 + $0x8] sm:$0xf] %vm1786, %v2976
      %2998 = vst.msk [vmem:[%s2834 + $0xc] sm:$0xf] %vm1786, %v2978
      %2999 = vst.msk [vmem:[%s2834 + $0x10] sm:$0xf] %vm1786, %v2980
      %3000 = vst.msk [vmem:[%s2834 + $0x14] sm:$0xf] %vm1786, %v2982
      %3001 = vst.msk [vmem:[%s2834 + $0x18] sm:$0xf] %vm1786, %v2984
      %3002 = vst.msk [vmem:[%s2834 + $0x1c] sm:$0xf] %vm1786, %v2986
      %v3003 = vld [vmem:[%s1630] sm:$0xe]
      %v3004 = vld [vmem:[%s1630 + $0x4] sm:$0x1]
      %v3005 = vld [vmem:[%s1630 + $0x8] sm:$0xe]
      %v3006 = vld [vmem:[%s1630 + $0xc] sm:$0x1]
      %v3007 = vld [vmem:[%s1630 + $0x10] sm:$0xe]
      %v3008 = vld [vmem:[%s1630 + $0x14] sm:$0x1]
      %v3009 = vld [vmem:[%s1630 + $0x18] sm:$0xe]
      %v3010 = vld [vmem:[%s1630 + $0x1c] sm:$0x1]
      %v3011 = vld [vmem:[%s1630 + $0x20] sm:$0xe]
      %v3012 = vld [vmem:[%s1630 + $0x24] sm:$0x1]
      %v3013 = vld [vmem:[%s1630 + $0x28] sm:$0xe]
      %v3014 = vld [vmem:[%s1630 + $0x2c] sm:$0x1]
      %v3015 = vld [vmem:[%s1630 + $0x30] sm:$0xe]
      %v3016 = vld [vmem:[%s1630 + $0x34] sm:$0x1]
      %v3017 = vld [vmem:[%s1630 + $0x38] sm:$0xe]
      %v3018 = vld [vmem:[%s1630 + $0x3c] sm:$0x1]
      %vm3035 = vcmask 1042432
      %vm3036 = vcmask 1046532
      %vm3037 = vmor %vm3035, %vm3036
      %v3038 = vrot.slane %v3003, 5
      %v3039 = vrot.slane %v3038, 4
      %v3040 = vrot.slane %v3004, 5
      %v3041 = vsel %vm3037, %v3039, %v3040
      %v3042 = vrot.slane %v3005, 5
      %v3043 = vrot.slane %v3042, 4
      %v3044 = vrot.slane %v3006, 5
      %v3045 = vsel %vm3037, %v3043, %v3044
      %v3046 = vrot.slane %v3007, 5
      %v3047 = vrot.slane %v3046, 4
      %v3048 = vrot.slane %v3008, 5
      %v3049 = vsel %vm3037, %v3047, %v3048
      %v3050 = vrot.slane %v3009, 5
      %v3051 = vrot.slane %v3050, 4
      %v3052 = vrot.slane %v3010, 5
      %v3053 = vsel %vm3037, %v3051, %v3052
      %v3054 = vrot.slane %v3011, 5
      %v3055 = vrot.slane %v3054, 4
      %v3056 = vrot.slane %v3012, 5
      %v3057 = vsel %vm3037, %v3055, %v3056
      %v3058 = vrot.slane %v3013, 5
      %v3059 = vrot.slane %v3058, 4
      %v3060 = vrot.slane %v3014, 5
      %v3061 = vsel %vm3037, %v3059, %v3060
      %v3062 = vrot.slane %v3015, 5
      %v3063 = vrot.slane %v3062, 4
      %v3064 = vrot.slane %v3016, 5
      %v3065 = vsel %vm3037, %v3063, %v3064
      %v3066 = vrot.slane %v3017, 5
      %v3067 = vrot.slane %v3066, 4
      %v3068 = vrot.slane %v3018, 5
      %v3069 = vsel %vm3037, %v3067, %v3068
      %3070 = vrot.lane.b32.xlu0 %v3041, 8
      %v3071 = vpop.permute.xlu0 %3070
      %3072 = vrot.lane.b32.xlu0 %v3045, 8
      %v3073 = vpop.permute.xlu0 %3072
      %3074 = vrot.lane.b32.xlu0 %v3049, 8
      %v3075 = vpop.permute.xlu0 %3074
      %3076 = vrot.lane.b32.xlu0 %v3053, 8
      %v3077 = vpop.permute.xlu0 %3076
      %3078 = vrot.lane.b32.xlu0 %v3057, 8
      %v3079 = vpop.permute.xlu0 %3078
      %3080 = vrot.lane.b32.xlu0 %v3061, 8
      %v3081 = vpop.permute.xlu0 %3080
      %3082 = vrot.lane.b32.xlu0 %v3065, 8
      %v3083 = vpop.permute.xlu0 %3082
      %3084 = vrot.lane.b32.xlu0 %v3069, 8
      %v3085 = vpop.permute.xlu0 %3084
      %3094 = vst.msk [vmem:[%s2834] sm:$0xf] %vm1947, %v3071
      %3095 = vst.msk [vmem:[%s2834 + $0x4] sm:$0xf] %vm1947, %v3073
      %3096 = vst.msk [vmem:[%s2834 + $0x8] sm:$0xf] %vm1947, %v3075
      %3097 = vst.msk [vmem:[%s2834 + $0xc] sm:$0xf] %vm1947, %v3077
      %3098 = vst.msk [vmem:[%s2834 + $0x10] sm:$0xf] %vm1947, %v3079
      %3099 = vst.msk [vmem:[%s2834 + $0x14] sm:$0xf] %vm1947, %v3081
      %3100 = vst.msk [vmem:[%s2834 + $0x18] sm:$0xf] %vm1947, %v3083
      %3101 = vst.msk [vmem:[%s2834 + $0x1c] sm:$0xf] %vm1947, %v3085
      %v3102 = vld [vmem:[%s1103] sm:$0xf]
      %v3103 = vld [vmem:[%s1103 + $0x4] sm:$0x1]
      %v3104 = vld [vmem:[%s1103 + $0x8] sm:$0xf]
      %v3105 = vld [vmem:[%s1103 + $0xc] sm:$0x1]
      %v3106 = vld [vmem:[%s1103 + $0x10] sm:$0xf]
      %v3107 = vld [vmem:[%s1103 + $0x14] sm:$0x1]
      %v3108 = vld [vmem:[%s1103 + $0x18] sm:$0xf]
      %v3109 = vld [vmem:[%s1103 + $0x1c] sm:$0x1]
      %v3110 = vld [vmem:[%s1103 + $0x20] sm:$0xf]
      %v3111 = vld [vmem:[%s1103 + $0x24] sm:$0x1]
      %v3112 = vld [vmem:[%s1103 + $0x28] sm:$0xf]
      %v3113 = vld [vmem:[%s1103 + $0x2c] sm:$0x1]
      %v3114 = vld [vmem:[%s1103 + $0x30] sm:$0xf]
      %v3115 = vld [vmem:[%s1103 + $0x34] sm:$0x1]
      %v3116 = vld [vmem:[%s1103 + $0x38] sm:$0xf]
      %v3117 = vld [vmem:[%s1103 + $0x3c] sm:$0x1]
      %v3119 = vshrl.u32 %v3102, 16
      %v3121 = vrot.slane %v3119, 4
      %v3122 = vshll.u32 %v3102, 16
      %v3124 = vrot.slane %v3122, 5
      %v3125 = vor.u32 %v3121, %v3124
      %v3126 = vrot.slane %v3125, 4
      %v3128 = vshll.u32 %v3103, 16
      %v3130 = vrot.slane %v3128, 5
      %v3131 = vsel %vm1649, %v3126, %v3130
      %v3133 = vshrl.u32 %v3104, 16
      %v3135 = vrot.slane %v3133, 4
      %v3136 = vshll.u32 %v3104, 16
      %v3138 = vrot.slane %v3136, 5
      %v3139 = vor.u32 %v3135, %v3138
      %v3140 = vrot.slane %v3139, 4
      %v3142 = vshll.u32 %v3105, 16
      %v3144 = vrot.slane %v3142, 5
      %v3145 = vsel %vm1649, %v3140, %v3144
      %v3147 = vshrl.u32 %v3106, 16
      %v3149 = vrot.slane %v3147, 4
      %v3150 = vshll.u32 %v3106, 16
      %v3152 = vrot.slane %v3150, 5
      %v3153 = vor.u32 %v3149, %v3152
      %v3154 = vrot.slane %v3153, 4
      %v3156 = vshll.u32 %v3107, 16
      %v3158 = vrot.slane %v3156, 5
      %v3159 = vsel %vm1649, %v3154, %v3158
      %v3161 = vshrl.u32 %v3108, 16
      %v3163 = vrot.slane %v3161, 4
      %v3164 = vshll.u32 %v3108, 16
      %v3166 = vrot.slane %v3164, 5
      %v3167 = vor.u32 %v3163, %v3166
      %v3168 = vrot.slane %v3167, 4
      %v3170 = vshll.u32 %v3109, 16
      %v3172 = vrot.slane %v3170, 5
      %v3173 = vsel %vm1649, %v3168, %v3172
      %v3175 = vshrl.u32 %v3110, 16
      %v3177 = vrot.slane %v3175, 4
      %v3178 = vshll.u32 %v3110, 16
      %v3180 = vrot.slane %v3178, 5
      %v3181 = vor.u32 %v3177, %v3180
      %v3182 = vrot.slane %v3181, 4
      %v3184 = vshll.u32 %v3111, 16
      %v3186 = vrot.slane %v3184, 5
      %v3187 = vsel %vm1649, %v3182, %v3186
      %v3189 = vshrl.u32 %v3112, 16
      %v3191 = vrot.slane %v3189, 4
      %v3192 = vshll.u32 %v3112, 16
      %v3194 = vrot.slane %v3192, 5
      %v3195 = vor.u32 %v3191, %v3194
      %v3196 = vrot.slane %v3195, 4
      %v3198 = vshll.u32 %v3113, 16
      %v3200 = vrot.slane %v3198, 5
      %v3201 = vsel %vm1649, %v3196, %v3200
      %v3203 = vshrl.u32 %v3114, 16
      %v3205 = vrot.slane %v3203, 4
      %v3206 = vshll.u32 %v3114, 16
      %v3208 = vrot.slane %v3206, 5
      %v3209 = vor.u32 %v3205, %v3208
      %v3210 = vrot.slane %v3209, 4
      %v3212 = vshll.u32 %v3115, 16
      %v3214 = vrot.slane %v3212, 5
      %v3215 = vsel %vm1649, %v3210, %v3214
      %v3217 = vshrl.u32 %v3116, 16
      %v3219 = vrot.slane %v3217, 4
      %v3220 = vshll.u32 %v3116, 16
      %v3222 = vrot.slane %v3220, 5
      %v3223 = vor.u32 %v3219, %v3222
      %v3224 = vrot.slane %v3223, 4
      %v3226 = vshll.u32 %v3117, 16
      %v3228 = vrot.slane %v3226, 5
      %v3229 = vsel %vm1649, %v3224, %v3228
      %3230 = vrot.lane.b32.xlu0 %v3131, 12
      %v3231 = vpop.permute.xlu0 %3230
      %3232 = vrot.lane.b32.xlu0 %v3145, 12
      %v3233 = vpop.permute.xlu0 %3232
      %3234 = vrot.lane.b32.xlu0 %v3159, 12
      %v3235 = vpop.permute.xlu0 %3234
      %3236 = vrot.lane.b32.xlu0 %v3173, 12
      %v3237 = vpop.permute.xlu0 %3236
      %3238 = vrot.lane.b32.xlu0 %v3187, 12
      %v3239 = vpop.permute.xlu0 %3238
      %3240 = vrot.lane.b32.xlu0 %v3201, 12
      %v3241 = vpop.permute.xlu0 %3240
      %3242 = vrot.lane.b32.xlu0 %v3215, 12
      %v3243 = vpop.permute.xlu0 %3242
      %3244 = vrot.lane.b32.xlu0 %v3229, 12
      %v3245 = vpop.permute.xlu0 %3244
      %3254 = vst.msk [vmem:[%s2834] sm:$0xf] %vm1996, %v3231
      %3255 = vst.msk [vmem:[%s2834 + $0x4] sm:$0xf] %vm1996, %v3233
      %3256 = vst.msk [vmem:[%s2834 + $0x8] sm:$0xf] %vm1996, %v3235
      %3257 = vst.msk [vmem:[%s2834 + $0xc] sm:$0xf] %vm1996, %v3237
      %3258 = vst.msk [vmem:[%s2834 + $0x10] sm:$0xf] %vm1996, %v3239
      %3259 = vst.msk [vmem:[%s2834 + $0x14] sm:$0xf] %vm1996, %v3241
      %3260 = vst.msk [vmem:[%s2834 + $0x18] sm:$0xf] %vm1996, %v3243
      %3261 = vst.msk [vmem:[%s2834 + $0x1c] sm:$0xf] %vm1996, %v3245
      %v3262 = vld [vmem:[%s1258] sm:$0xf]
      %v3263 = vld [vmem:[%s1258 + $0x4] sm:$0x1]
      %v3264 = vld [vmem:[%s1258 + $0x8] sm:$0xf]
      %v3265 = vld [vmem:[%s1258 + $0xc] sm:$0x1]
      %v3266 = vld [vmem:[%s1258 + $0x10] sm:$0xf]
      %v3267 = vld [vmem:[%s1258 + $0x14] sm:$0x1]
      %v3268 = vld [vmem:[%s1258 + $0x18] sm:$0xf]
      %v3269 = vld [vmem:[%s1258 + $0x1c] sm:$0x1]
      %v3270 = vld [vmem:[%s1258 + $0x20] sm:$0xf]
      %v3271 = vld [vmem:[%s1258 + $0x24] sm:$0x1]
      %v3272 = vld [vmem:[%s1258 + $0x28] sm:$0xf]
      %v3273 = vld [vmem:[%s1258 + $0x2c] sm:$0x1]
      %v3274 = vld [vmem:[%s1258 + $0x30] sm:$0xf]
      %v3275 = vld [vmem:[%s1258 + $0x34] sm:$0x1]
      %v3276 = vld [vmem:[%s1258 + $0x38] sm:$0xf]
      %v3277 = vld [vmem:[%s1258 + $0x3c] sm:$0x1]
      %v3279 = vshrl.u32 %v3262, 16
      %v3281 = vrot.slane %v3279, 4
      %v3282 = vshll.u32 %v3262, 16
      %v3284 = vrot.slane %v3282, 5
      %v3285 = vor.u32 %v3281, %v3284
      %v3286 = vrot.slane %v3285, 4
      %v3288 = vshll.u32 %v3263, 16
      %v3290 = vrot.slane %v3288, 5
      %v3291 = vsel %vm1649, %v3286, %v3290
      %v3293 = vshrl.u32 %v3264, 16
      %v3295 = vrot.slane %v3293, 4
      %v3296 = vshll.u32 %v3264, 16
      %v3298 = vrot.slane %v3296, 5
      %v3299 = vor.u32 %v3295, %v3298
      %v3300 = vrot.slane %v3299, 4
      %v3302 = vshll.u32 %v3265, 16
      %v3304 = vrot.slane %v3302, 5
      %v3305 = vsel %vm1649, %v3300, %v3304
      %v3307 = vshrl.u32 %v3266, 16
      %v3309 = vrot.slane %v3307, 4
      %v3310 = vshll.u32 %v3266, 16
      %v3312 = vrot.slane %v3310, 5
      %v3313 = vor.u32 %v3309, %v3312
      %v3314 = vrot.slane %v3313, 4
      %v3316 = vshll.u32 %v3267, 16
      %v3318 = vrot.slane %v3316, 5
      %v3319 = vsel %vm1649, %v3314, %v3318
      %v3321 = vshrl.u32 %v3268, 16
      %v3323 = vrot.slane %v3321, 4
      %v3324 = vshll.u32 %v3268, 16
      %v3326 = vrot.slane %v3324, 5
      %v3327 = vor.u32 %v3323, %v3326
      %v3328 = vrot.slane %v3327, 4
      %v3330 = vshll.u32 %v3269, 16
      %v3332 = vrot.slane %v3330, 5
      %v3333 = vsel %vm1649, %v3328, %v3332
      %v3335 = vshrl.u32 %v3270, 16
      %v3337 = vrot.slane %v3335, 4
      %v3338 = vshll.u32 %v3270, 16
      %v3340 = vrot.slane %v3338, 5
      %v3341 = vor.u32 %v3337, %v3340
      %v3342 = vrot.slane %v3341, 4
      %v3344 = vshll.u32 %v3271, 16
      %v3346 = vrot.slane %v3344, 5
      %v3347 = vsel %vm1649, %v3342, %v3346
      %v3349 = vshrl.u32 %v3272, 16
      %v3351 = vrot.slane %v3349, 4
      %v3352 = vshll.u32 %v3272, 16
      %v3354 = vrot.slane %v3352, 5
      %v3355 = vor.u32 %v3351, %v3354
      %v3356 = vrot.slane %v3355, 4
      %v3358 = vshll.u32 %v3273, 16
      %v3360 = vrot.slane %v3358, 5
      %v3361 = vsel %vm1649, %v3356, %v3360
      %v3363 = vshrl.u32 %v3274, 16
      %v3365 = vrot.slane %v3363, 4
      %v3366 = vshll.u32 %v3274, 16
      %v3368 = vrot.slane %v3366, 5
      %v3369 = vor.u32 %v3365, %v3368
      %v3370 = vrot.slane %v3369, 4
      %v3372 = vshll.u32 %v3275, 16
      %v3374 = vrot.slane %v3372, 5
      %v3375 = vsel %vm1649, %v3370, %v3374
      %v3377 = vshrl.u32 %v3276, 16
      %v3379 = vrot.slane %v3377, 4
      %v3380 = vshll.u32 %v3276, 16
      %v3382 = vrot.slane %v3380, 5
      %v3383 = vor.u32 %v3379, %v3382
      %v3384 = vrot.slane %v3383, 4
      %v3386 = vshll.u32 %v3277, 16
      %v3388 = vrot.slane %v3386, 5
      %v3389 = vsel %vm1649, %v3384, %v3388
      %3390 = vrot.lane.b32.xlu0 %v3291, 16
      %v3391 = vpop.permute.xlu0 %3390
      %3392 = vrot.lane.b32.xlu0 %v3305, 16
      %v3393 = vpop.permute.xlu0 %3392
      %3394 = vrot.lane.b32.xlu0 %v3319, 16
      %v3395 = vpop.permute.xlu0 %3394
      %3396 = vrot.lane.b32.xlu0 %v3333, 16
      %v3397 = vpop.permute.xlu0 %3396
      %3398 = vrot.lane.b32.xlu0 %v3347, 16
      %v3399 = vpop.permute.xlu0 %3398
      %3400 = vrot.lane.b32.xlu0 %v3361, 16
      %v3401 = vpop.permute.xlu0 %3400
      %3402 = vrot.lane.b32.xlu0 %v3375, 16
      %v3403 = vpop.permute.xlu0 %3402
      %3404 = vrot.lane.b32.xlu0 %v3389, 16
      %v3405 = vpop.permute.xlu0 %3404
      %3414 = vst.msk [vmem:[%s2834] sm:$0xf] %vm2157, %v3391
      %3415 = vst.msk [vmem:[%s2834 + $0x4] sm:$0xf] %vm2157, %v3393
      %3416 = vst.msk [vmem:[%s2834 + $0x8] sm:$0xf] %vm2157, %v3395
      %3417 = vst.msk [vmem:[%s2834 + $0xc] sm:$0xf] %vm2157, %v3397
      %3418 = vst.msk [vmem:[%s2834 + $0x10] sm:$0xf] %vm2157, %v3399
      %3419 = vst.msk [vmem:[%s2834 + $0x14] sm:$0xf] %vm2157, %v3401
      %3420 = vst.msk [vmem:[%s2834 + $0x18] sm:$0xf] %vm2157, %v3403
      %3421 = vst.msk [vmem:[%s2834 + $0x1c] sm:$0xf] %vm2157, %v3405
      %v3422 = vld [vmem:[%s1103] sm:$0xe]
      %v3423 = vld [vmem:[%s1103 + $0x4] sm:$0x1]
      %v3424 = vld [vmem:[%s1103 + $0x8] sm:$0xe]
      %v3425 = vld [vmem:[%s1103 + $0xc] sm:$0x1]
      %v3426 = vld [vmem:[%s1103 + $0x10] sm:$0xe]
      %v3427 = vld [vmem:[%s1103 + $0x14] sm:$0x1]
      %v3428 = vld [vmem:[%s1103 + $0x18] sm:$0xe]
      %v3429 = vld [vmem:[%s1103 + $0x1c] sm:$0x1]
      %v3430 = vld [vmem:[%s1103 + $0x20] sm:$0xe]
      %v3431 = vld [vmem:[%s1103 + $0x24] sm:$0x1]
      %v3432 = vld [vmem:[%s1103 + $0x28] sm:$0xe]
      %v3433 = vld [vmem:[%s1103 + $0x2c] sm:$0x1]
      %v3434 = vld [vmem:[%s1103 + $0x30] sm:$0xe]
      %v3435 = vld [vmem:[%s1103 + $0x34] sm:$0x1]
      %v3436 = vld [vmem:[%s1103 + $0x38] sm:$0xe]
      %v3437 = vld [vmem:[%s1103 + $0x3c] sm:$0x1]
      %v3454 = vrot.slane %v3422, 5
      %v3455 = vrot.slane %v3454, 4
      %v3456 = vrot.slane %v3423, 5
      %v3457 = vsel %vm3037, %v3455, %v3456
      %v3458 = vrot.slane %v3424, 5
      %v3459 = vrot.slane %v3458, 4
      %v3460 = vrot.slane %v3425, 5
      %v3461 = vsel %vm3037, %v3459, %v3460
      %v3462 = vrot.slane %v3426, 5
      %v3463 = vrot.slane %v3462, 4
      %v3464 = vrot.slane %v3427, 5
      %v3465 = vsel %vm3037, %v3463, %v3464
      %v3466 = vrot.slane %v3428, 5
      %v3467 = vrot.slane %v3466, 4
      %v3468 = vrot.slane %v3429, 5
      %v3469 = vsel %vm3037, %v3467, %v3468
      %v3470 = vrot.slane %v3430, 5
      %v3471 = vrot.slane %v3470, 4
      %v3472 = vrot.slane %v3431, 5
      %v3473 = vsel %vm3037, %v3471, %v3472
      %v3474 = vrot.slane %v3432, 5
      %v3475 = vrot.slane %v3474, 4
      %v3476 = vrot.slane %v3433, 5
      %v3477 = vsel %vm3037, %v3475, %v3476
      %v3478 = vrot.slane %v3434, 5
      %v3479 = vrot.slane %v3478, 4
      %v3480 = vrot.slane %v3435, 5
      %v3481 = vsel %vm3037, %v3479, %v3480
      %v3482 = vrot.slane %v3436, 5
      %v3483 = vrot.slane %v3482, 4
      %v3484 = vrot.slane %v3437, 5
      %v3485 = vsel %vm3037, %v3483, %v3484
      %3486 = vrot.lane.b32.xlu0 %v3457, 20
      %v3487 = vpop.permute.xlu0 %3486
      %3488 = vrot.lane.b32.xlu0 %v3461, 20
      %v3489 = vpop.permute.xlu0 %3488
      %3490 = vrot.lane.b32.xlu0 %v3465, 20
      %v3491 = vpop.permute.xlu0 %3490
      %3492 = vrot.lane.b32.xlu0 %v3469, 20
      %v3493 = vpop.permute.xlu0 %3492
      %3494 = vrot.lane.b32.xlu0 %v3473, 20
      %v3495 = vpop.permute.xlu0 %3494
      %3496 = vrot.lane.b32.xlu0 %v3477, 20
      %v3497 = vpop.permute.xlu0 %3496
      %3498 = vrot.lane.b32.xlu0 %v3481, 20
      %v3499 = vpop.permute.xlu0 %3498
      %3500 = vrot.lane.b32.xlu0 %v3485, 20
      %v3501 = vpop.permute.xlu0 %3500
      %3510 = vst.msk [vmem:[%s2834] sm:$0xf] %vm2318, %v3487
      %3511 = vst.msk [vmem:[%s2834 + $0x4] sm:$0xf] %vm2318, %v3489
      %3512 = vst.msk [vmem:[%s2834 + $0x8] sm:$0xf] %vm2318, %v3491
      %3513 = vst.msk [vmem:[%s2834 + $0xc] sm:$0xf] %vm2318, %v3493
      %3514 = vst.msk [vmem:[%s2834 + $0x10] sm:$0xf] %vm2318, %v3495
      %3515 = vst.msk [vmem:[%s2834 + $0x14] sm:$0xf] %vm2318, %v3497
      %3516 = vst.msk [vmem:[%s2834 + $0x18] sm:$0xf] %vm2318, %v3499
      %3517 = vst.msk [vmem:[%s2834 + $0x1c] sm:$0xf] %vm2318, %v3501
      %v3518 = vld [vmem:[%s1411] sm:$0xf]
      %v3519 = vld [vmem:[%s1411 + $0x4] sm:$0x1]
      %v3520 = vld [vmem:[%s1411 + $0x8] sm:$0xf]
      %v3521 = vld [vmem:[%s1411 + $0xc] sm:$0x1]
      %v3522 = vld [vmem:[%s1411 + $0x10] sm:$0xf]
      %v3523 = vld [vmem:[%s1411 + $0x14] sm:$0x1]
      %v3524 = vld [vmem:[%s1411 + $0x18] sm:$0xf]
      %v3525 = vld [vmem:[%s1411 + $0x1c] sm:$0x1]
      %v3526 = vld [vmem:[%s1411 + $0x20] sm:$0xf]
      %v3527 = vld [vmem:[%s1411 + $0x24] sm:$0x1]
      %v3528 = vld [vmem:[%s1411 + $0x28] sm:$0xf]
      %v3529 = vld [vmem:[%s1411 + $0x2c] sm:$0x1]
      %v3530 = vld [vmem:[%s1411 + $0x30] sm:$0xf]
      %v3531 = vld [vmem:[%s1411 + $0x34] sm:$0x1]
      %v3532 = vld [vmem:[%s1411 + $0x38] sm:$0xf]
      %v3533 = vld [vmem:[%s1411 + $0x3c] sm:$0x1]
      %v3535 = vshrl.u32 %v3518, 16
      %v3537 = vrot.slane %v3535, 4
      %v3538 = vshll.u32 %v3518, 16
      %v3540 = vrot.slane %v3538, 5
      %v3541 = vor.u32 %v3537, %v3540
      %v3542 = vrot.slane %v3541, 4
      %v3544 = vshll.u32 %v3519, 16
      %v3546 = vrot.slane %v3544, 5
      %v3547 = vsel %vm1649, %v3542, %v3546
      %v3549 = vshrl.u32 %v3520, 16
      %v3551 = vrot.slane %v3549, 4
      %v3552 = vshll.u32 %v3520, 16
      %v3554 = vrot.slane %v3552, 5
      %v3555 = vor.u32 %v3551, %v3554
      %v3556 = vrot.slane %v3555, 4
      %v3558 = vshll.u32 %v3521, 16
      %v3560 = vrot.slane %v3558, 5
      %v3561 = vsel %vm1649, %v3556, %v3560
      %v3563 = vshrl.u32 %v3522, 16
      %v3565 = vrot.slane %v3563, 4
      %v3566 = vshll.u32 %v3522, 16
      %v3568 = vrot.slane %v3566, 5
      %v3569 = vor.u32 %v3565, %v3568
      %v3570 = vrot.slane %v3569, 4
      %v3572 = vshll.u32 %v3523, 16
      %v3574 = vrot.slane %v3572, 5
      %v3575 = vsel %vm1649, %v3570, %v3574
      %v3577 = vshrl.u32 %v3524, 16
      %v3579 = vrot.slane %v3577, 4
      %v3580 = vshll.u32 %v3524, 16
      %v3582 = vrot.slane %v3580, 5
      %v3583 = vor.u32 %v3579, %v3582
      %v3584 = vrot.slane %v3583, 4
      %v3586 = vshll.u32 %v3525, 16
      %v3588 = vrot.slane %v3586, 5
      %v3589 = vsel %vm1649, %v3584, %v3588
      %v3591 = vshrl.u32 %v3526, 16
      %v3593 = vrot.slane %v3591, 4
      %v3594 = vshll.u32 %v3526, 16
      %v3596 = vrot.slane %v3594, 5
      %v3597 = vor.u32 %v3593, %v3596
      %v3598 = vrot.slane %v3597, 4
      %v3600 = vshll.u32 %v3527, 16
      %v3602 = vrot.slane %v3600, 5
      %v3603 = vsel %vm1649, %v3598, %v3602
      %v3605 = vshrl.u32 %v3528, 16
      %v3607 = vrot.slane %v3605, 4
      %v3608 = vshll.u32 %v3528, 16
      %v3610 = vrot.slane %v3608, 5
      %v3611 = vor.u32 %v3607, %v3610
      %v3612 = vrot.slane %v3611, 4
      %v3614 = vshll.u32 %v3529, 16
      %v3616 = vrot.slane %v3614, 5
      %v3617 = vsel %vm1649, %v3612, %v3616
      %v3619 = vshrl.u32 %v3530, 16
      %v3621 = vrot.slane %v3619, 4
      %v3622 = vshll.u32 %v3530, 16
      %v3624 = vrot.slane %v3622, 5
      %v3625 = vor.u32 %v3621, %v3624
      %v3626 = vrot.slane %v3625, 4
      %v3628 = vshll.u32 %v3531, 16
      %v3630 = vrot.slane %v3628, 5
      %v3631 = vsel %vm1649, %v3626, %v3630
      %v3633 = vshrl.u32 %v3532, 16
      %v3635 = vrot.slane %v3633, 4
      %v3636 = vshll.u32 %v3532, 16
      %v3638 = vrot.slane %v3636, 5
      %v3639 = vor.u32 %v3635, %v3638
      %v3640 = vrot.slane %v3639, 4
      %v3642 = vshll.u32 %v3533, 16
      %v3644 = vrot.slane %v3642, 5
      %v3645 = vsel %vm1649, %v3640, %v3644
      %3646 = vrot.lane.b32.xlu0 %v3547, 24
      %v3647 = vpop.permute.xlu0 %3646
      %3648 = vrot.lane.b32.xlu0 %v3561, 24
      %v3649 = vpop.permute.xlu0 %3648
      %3650 = vrot.lane.b32.xlu0 %v3575, 24
      %v3651 = vpop.permute.xlu0 %3650
      %3652 = vrot.lane.b32.xlu0 %v3589, 24
      %v3653 = vpop.permute.xlu0 %3652
      %3654 = vrot.lane.b32.xlu0 %v3603, 24
      %v3655 = vpop.permute.xlu0 %3654
      %3656 = vrot.lane.b32.xlu0 %v3617, 24
      %v3657 = vpop.permute.xlu0 %3656
      %3658 = vrot.lane.b32.xlu0 %v3631, 24
      %v3659 = vpop.permute.xlu0 %3658
      %3660 = vrot.lane.b32.xlu0 %v3645, 24
      %v3661 = vpop.permute.xlu0 %3660
      %3670 = vst.msk [vmem:[%s2834] sm:$0xf] %vm2367, %v3647
      %3671 = vst.msk [vmem:[%s2834 + $0x4] sm:$0xf] %vm2367, %v3649
      %3672 = vst.msk [vmem:[%s2834 + $0x8] sm:$0xf] %vm2367, %v3651
      %3673 = vst.msk [vmem:[%s2834 + $0xc] sm:$0xf] %vm2367, %v3653
      %3674 = vst.msk [vmem:[%s2834 + $0x10] sm:$0xf] %vm2367, %v3655
      %3675 = vst.msk [vmem:[%s2834 + $0x14] sm:$0xf] %vm2367, %v3657
      %3676 = vst.msk [vmem:[%s2834 + $0x18] sm:$0xf] %vm2367, %v3659
      %3677 = vst.msk [vmem:[%s2834 + $0x1c] sm:$0xf] %vm2367, %v3661
      %v3678 = vld [vmem:[%s1564] sm:$0xf]
      %v3679 = vld [vmem:[%s1564 + $0x4] sm:$0x1]
      %v3680 = vld [vmem:[%s1564 + $0x8] sm:$0xf]
      %v3681 = vld [vmem:[%s1564 + $0xc] sm:$0x1]
      %v3682 = vld [vmem:[%s1564 + $0x10] sm:$0xf]
      %v3683 = vld [vmem:[%s1564 + $0x14] sm:$0x1]
      %v3684 = vld [vmem:[%s1564 + $0x18] sm:$0xf]
      %v3685 = vld [vmem:[%s1564 + $0x1c] sm:$0x1]
      %v3686 = vld [vmem:[%s1564 + $0x20] sm:$0xf]
      %v3687 = vld [vmem:[%s1564 + $0x24] sm:$0x1]
      %v3688 = vld [vmem:[%s1564 + $0x28] sm:$0xf]
      %v3689 = vld [vmem:[%s1564 + $0x2c] sm:$0x1]
      %v3690 = vld [vmem:[%s1564 + $0x30] sm:$0xf]
      %v3691 = vld [vmem:[%s1564 + $0x34] sm:$0x1]
      %v3692 = vld [vmem:[%s1564 + $0x38] sm:$0xf]
      %v3693 = vld [vmem:[%s1564 + $0x3c] sm:$0x1]
      %v3695 = vshrl.u32 %v3678, 16
      %v3697 = vrot.slane %v3695, 4
      %v3698 = vshll.u32 %v3678, 16
      %v3700 = vrot.slane %v3698, 5
      %v3701 = vor.u32 %v3697, %v3700
      %v3702 = vrot.slane %v3701, 4
      %v3704 = vshll.u32 %v3679, 16
      %v3706 = vrot.slane %v3704, 5
      %v3707 = vsel %vm1649, %v3702, %v3706
      %v3709 = vshrl.u32 %v3680, 16
      %v3711 = vrot.slane %v3709, 4
      %v3712 = vshll.u32 %v3680, 16
      %v3714 = vrot.slane %v3712, 5
      %v3715 = vor.u32 %v3711, %v3714
      %v3716 = vrot.slane %v3715, 4
      %v3718 = vshll.u32 %v3681, 16
      %v3720 = vrot.slane %v3718, 5
      %v3721 = vsel %vm1649, %v3716, %v3720
      %v3723 = vshrl.u32 %v3682, 16
      %v3725 = vrot.slane %v3723, 4
      %v3726 = vshll.u32 %v3682, 16
      %v3728 = vrot.slane %v3726, 5
      %v3729 = vor.u32 %v3725, %v3728
      %v3730 = vrot.slane %v3729, 4
      %v3732 = vshll.u32 %v3683, 16
      %v3734 = vrot.slane %v3732, 5
      %v3735 = vsel %vm1649, %v3730, %v3734
      %v3737 = vshrl.u32 %v3684, 16
      %v3739 = vrot.slane %v3737, 4
      %v3740 = vshll.u32 %v3684, 16
      %v3742 = vrot.slane %v3740, 5
      %v3743 = vor.u32 %v3739, %v3742
      %v3744 = vrot.slane %v3743, 4
      %v3746 = vshll.u32 %v3685, 16
      %v3748 = vrot.slane %v3746, 5
      %v3749 = vsel %vm1649, %v3744, %v3748
      %v3751 = vshrl.u32 %v3686, 16
      %v3753 = vrot.slane %v3751, 4
      %v3754 = vshll.u32 %v3686, 16
      %v3756 = vrot.slane %v3754, 5
      %v3757 = vor.u32 %v3753, %v3756
      %v3758 = vrot.slane %v3757, 4
      %v3760 = vshll.u32 %v3687, 16
      %v3762 = vrot.slane %v3760, 5
      %v3763 = vsel %vm1649, %v3758, %v3762
      %v3765 = vshrl.u32 %v3688, 16
      %v3767 = vrot.slane %v3765, 4
      %v3768 = vshll.u32 %v3688, 16
      %v3770 = vrot.slane %v3768, 5
      %v3771 = vor.u32 %v3767, %v3770
      %v3772 = vrot.slane %v3771, 4
      %v3774 = vshll.u32 %v3689, 16
      %v3776 = vrot.slane %v3774, 5
      %v3777 = vsel %vm1649, %v3772, %v3776
      %v3779 = vshrl.u32 %v3690, 16
      %v3781 = vrot.slane %v3779, 4
      %v3782 = vshll.u32 %v3690, 16
      %v3784 = vrot.slane %v3782, 5
      %v3785 = vor.u32 %v3781, %v3784
      %v3786 = vrot.slane %v3785, 4
      %v3788 = vshll.u32 %v3691, 16
      %v3790 = vrot.slane %v3788, 5
      %v3791 = vsel %vm1649, %v3786, %v3790
      %v3793 = vshrl.u32 %v3692, 16
      %v3795 = vrot.slane %v3793, 4
      %v3796 = vshll.u32 %v3692, 16
      %v3798 = vrot.slane %v3796, 5
      %v3799 = vor.u32 %v3795, %v3798
      %v3800 = vrot.slane %v3799, 4
      %v3802 = vshll.u32 %v3693, 16
      %v3804 = vrot.slane %v3802, 5
      %v3805 = vsel %vm1649, %v3800, %v3804
      %3806 = vrot.lane.b32.xlu0 %v3707, 28
      %v3807 = vpop.permute.xlu0 %3806
      %3808 = vrot.lane.b32.xlu0 %v3721, 28
      %v3809 = vpop.permute.xlu0 %3808
      %3810 = vrot.lane.b32.xlu0 %v3735, 28
      %v3811 = vpop.permute.xlu0 %3810
      %3812 = vrot.lane.b32.xlu0 %v3749, 28
      %v3813 = vpop.permute.xlu0 %3812
      %3814 = vrot.lane.b32.xlu0 %v3763, 28
      %v3815 = vpop.permute.xlu0 %3814
      %3816 = vrot.lane.b32.xlu0 %v3777, 28
      %v3817 = vpop.permute.xlu0 %3816
      %3818 = vrot.lane.b32.xlu0 %v3791, 28
      %v3819 = vpop.permute.xlu0 %3818
      %3820 = vrot.lane.b32.xlu0 %v3805, 28
      %v3821 = vpop.permute.xlu0 %3820
      %3830 = vst.msk [vmem:[%s2834] sm:$0xf] %vm2528, %v3807
      %3831 = vst.msk [vmem:[%s2834 + $0x4] sm:$0xf] %vm2528, %v3809
      %3832 = vst.msk [vmem:[%s2834 + $0x8] sm:$0xf] %vm2528, %v3811
      %3833 = vst.msk [vmem:[%s2834 + $0xc] sm:$0xf] %vm2528, %v3813
      %3834 = vst.msk [vmem:[%s2834 + $0x10] sm:$0xf] %vm2528, %v3815
      %3835 = vst.msk [vmem:[%s2834 + $0x14] sm:$0xf] %vm2528, %v3817
      %3836 = vst.msk [vmem:[%s2834 + $0x18] sm:$0xf] %vm2528, %v3819
      %3837 = vst.msk [vmem:[%s2834 + $0x1c] sm:$0xf] %vm2528, %v3821
      %v3838 = vld [vmem:[%s1411] sm:$0xe]
      %v3839 = vld [vmem:[%s1411 + $0x4] sm:$0x1]
      %v3840 = vld [vmem:[%s1411 + $0x8] sm:$0xe]
      %v3841 = vld [vmem:[%s1411 + $0xc] sm:$0x1]
      %v3842 = vld [vmem:[%s1411 + $0x10] sm:$0xe]
      %v3843 = vld [vmem:[%s1411 + $0x14] sm:$0x1]
      %v3844 = vld [vmem:[%s1411 + $0x18] sm:$0xe]
      %v3845 = vld [vmem:[%s1411 + $0x1c] sm:$0x1]
      %v3846 = vld [vmem:[%s1411 + $0x20] sm:$0xe]
      %v3847 = vld [vmem:[%s1411 + $0x24] sm:$0x1]
      %v3848 = vld [vmem:[%s1411 + $0x28] sm:$0xe]
      %v3849 = vld [vmem:[%s1411 + $0x2c] sm:$0x1]
      %v3850 = vld [vmem:[%s1411 + $0x30] sm:$0xe]
      %v3851 = vld [vmem:[%s1411 + $0x34] sm:$0x1]
      %v3852 = vld [vmem:[%s1411 + $0x38] sm:$0xe]
      %v3853 = vld [vmem:[%s1411 + $0x3c] sm:$0x1]
      %v3870 = vrot.slane %v3838, 5
      %v3871 = vrot.slane %v3870, 4
      %v3872 = vrot.slane %v3839, 5
      %v3873 = vsel %vm3037, %v3871, %v3872
      %v3874 = vrot.slane %v3840, 5
      %v3875 = vrot.slane %v3874, 4
      %v3876 = vrot.slane %v3841, 5
      %v3877 = vsel %vm3037, %v3875, %v3876
      %v3878 = vrot.slane %v3842, 5
      %v3879 = vrot.slane %v3878, 4
      %v3880 = vrot.slane %v3843, 5
      %v3881 = vsel %vm3037, %v3879, %v3880
      %v3882 = vrot.slane %v3844, 5
      %v3883 = vrot.slane %v3882, 4
      %v3884 = vrot.slane %v3845, 5
      %v3885 = vsel %vm3037, %v3883, %v3884
      %v3886 = vrot.slane %v3846, 5
      %v3887 = vrot.slane %v3886, 4
      %v3888 = vrot.slane %v3847, 5
      %v3889 = vsel %vm3037, %v3887, %v3888
      %v3890 = vrot.slane %v3848, 5
      %v3891 = vrot.slane %v3890, 4
      %v3892 = vrot.slane %v3849, 5
      %v3893 = vsel %vm3037, %v3891, %v3892
      %v3894 = vrot.slane %v3850, 5
      %v3895 = vrot.slane %v3894, 4
      %v3896 = vrot.slane %v3851, 5
      %v3897 = vsel %vm3037, %v3895, %v3896
      %v3898 = vrot.slane %v3852, 5
      %v3899 = vrot.slane %v3898, 4
      %v3900 = vrot.slane %v3853, 5
      %v3901 = vsel %vm3037, %v3899, %v3900
      %3902 = vrot.lane.b32.xlu0 %v3873, 32
      %v3903 = vpop.permute.xlu0 %3902
      %3904 = vrot.lane.b32.xlu0 %v3877, 32
      %v3905 = vpop.permute.xlu0 %3904
      %3906 = vrot.lane.b32.xlu0 %v3881, 32
      %v3907 = vpop.permute.xlu0 %3906
      %3908 = vrot.lane.b32.xlu0 %v3885, 32
      %v3909 = vpop.permute.xlu0 %3908
      %3910 = vrot.lane.b32.xlu0 %v3889, 32
      %v3911 = vpop.permute.xlu0 %3910
      %3912 = vrot.lane.b32.xlu0 %v3893, 32
      %v3913 = vpop.permute.xlu0 %3912
      %3914 = vrot.lane.b32.xlu0 %v3897, 32
      %v3915 = vpop.permute.xlu0 %3914
      %3916 = vrot.lane.b32.xlu0 %v3901, 32
      %v3917 = vpop.permute.xlu0 %3916
      %3926 = vst.msk [vmem:[%s2834] sm:$0xf] %vm2689, %v3903
      %3927 = vst.msk [vmem:[%s2834 + $0x4] sm:$0xf] %vm2689, %v3905
      %3928 = vst.msk [vmem:[%s2834 + $0x8] sm:$0xf] %vm2689, %v3907
      %3929 = vst.msk [vmem:[%s2834 + $0xc] sm:$0xf] %vm2689, %v3909
      %3930 = vst.msk [vmem:[%s2834 + $0x10] sm:$0xf] %vm2689, %v3911
      %3931 = vst.msk [vmem:[%s2834 + $0x14] sm:$0xf] %vm2689, %v3913
      %3932 = vst.msk [vmem:[%s2834 + $0x18] sm:$0xf] %vm2689, %v3915
      %3933 = vst.msk [vmem:[%s2834 + $0x1c] sm:$0xf] %vm2689, %v3917
      %v3934 = vld [vmem:[%s1258] sm:$0xf]
      %v3935 = vld [vmem:[%s1258 + $0x8] sm:$0xf]
      %v3936 = vld [vmem:[%s1258 + $0x10] sm:$0xf]
      %v3937 = vld [vmem:[%s1258 + $0x18] sm:$0xf]
      %v3938 = vld [vmem:[%s1258 + $0x20] sm:$0xf]
      %v3939 = vld [vmem:[%s1258 + $0x28] sm:$0xf]
      %v3940 = vld [vmem:[%s1258 + $0x30] sm:$0xf]
      %v3941 = vld [vmem:[%s1258 + $0x38] sm:$0xf]
      %s3942 = scalar_lea.vmem [#allocation3], 64
      %3943 = vst.msk [vmem:[%s3942] sm:$0xf] %vm491, %v3934
      %3944 = vst.msk [vmem:[%s3942 + $0x4] sm:$0xf] %vm491, %v3935
      %3945 = vst.msk [vmem:[%s3942 + $0x8] sm:$0xf] %vm491, %v3936
      %3946 = vst.msk [vmem:[%s3942 + $0xc] sm:$0xf] %vm491, %v3937
      %3947 = vst.msk [vmem:[%s3942 + $0x10] sm:$0xf] %vm491, %v3938
      %3948 = vst.msk [vmem:[%s3942 + $0x14] sm:$0xf] %vm491, %v3939
      %3949 = vst.msk [vmem:[%s3942 + $0x18] sm:$0xf] %vm491, %v3940
      %3950 = vst.msk [vmem:[%s3942 + $0x1c] sm:$0xf] %vm491, %v3941
      %v3951 = vld [vmem:[%s1103] sm:$0xf]
      %v3952 = vld [vmem:[%s1103 + $0x4] sm:$0x1]
      %v3953 = vld [vmem:[%s1103 + $0x8] sm:$0xf]
      %v3954 = vld [vmem:[%s1103 + $0xc] sm:$0x1]
      %v3955 = vld [vmem:[%s1103 + $0x10] sm:$0xf]
      %v3956 = vld [vmem:[%s1103 + $0x14] sm:$0x1]
      %v3957 = vld [vmem:[%s1103 + $0x18] sm:$0xf]
      %v3958 = vld [vmem:[%s1103 + $0x1c] sm:$0x1]
      %v3959 = vld [vmem:[%s1103 + $0x20] sm:$0xf]
      %v3960 = vld [vmem:[%s1103 + $0x24] sm:$0x1]
      %v3961 = vld [vmem:[%s1103 + $0x28] sm:$0xf]
      %v3962 = vld [vmem:[%s1103 + $0x2c] sm:$0x1]
      %v3963 = vld [vmem:[%s1103 + $0x30] sm:$0xf]
      %v3964 = vld [vmem:[%s1103 + $0x34] sm:$0x1]
      %v3965 = vld [vmem:[%s1103 + $0x38] sm:$0xf]
      %v3966 = vld [vmem:[%s1103 + $0x3c] sm:$0x1]
      %v3968 = vshrl.u32 %v3951, 16
      %v3970 = vrot.slane %v3968, 4
      %v3971 = vshll.u32 %v3951, 16
      %v3973 = vrot.slane %v3971, 5
      %v3974 = vor.u32 %v3970, %v3973
      %v3975 = vrot.slane %v3974, 4
      %v3977 = vshll.u32 %v3952, 16
      %v3979 = vrot.slane %v3977, 5
      %v3980 = vsel %vm1649, %v3975, %v3979
      %v3982 = vshrl.u32 %v3953, 16
      %v3984 = vrot.slane %v3982, 4
      %v3985 = vshll.u32 %v3953, 16
      %v3987 = vrot.slane %v3985, 5
      %v3988 = vor.u32 %v3984, %v3987
      %v3989 = vrot.slane %v3988, 4
      %v3991 = vshll.u32 %v3954, 16
      %v3993 = vrot.slane %v3991, 5
      %v3994 = vsel %vm1649, %v3989, %v3993
      %v3996 = vshrl.u32 %v3955, 16
      %v3998 = vrot.slane %v3996, 4
      %v3999 = vshll.u32 %v3955, 16
      %v4001 = vrot.slane %v3999, 5
      %v4002 = vor.u32 %v3998, %v4001
      %v4003 = vrot.slane %v4002, 4
      %v4005 = vshll.u32 %v3956, 16
      %v4007 = vrot.slane %v4005, 5
      %v4008 = vsel %vm1649, %v4003, %v4007
      %v4010 = vshrl.u32 %v3957, 16
      %v4012 = vrot.slane %v4010, 4
      %v4013 = vshll.u32 %v3957, 16
      %v4015 = vrot.slane %v4013, 5
      %v4016 = vor.u32 %v4012, %v4015
      %v4017 = vrot.slane %v4016, 4
      %v4019 = vshll.u32 %v3958, 16
      %v4021 = vrot.slane %v4019, 5
      %v4022 = vsel %vm1649, %v4017, %v4021
      %v4024 = vshrl.u32 %v3959, 16
      %v4026 = vrot.slane %v4024, 4
      %v4027 = vshll.u32 %v3959, 16
      %v4029 = vrot.slane %v4027, 5
      %v4030 = vor.u32 %v4026, %v4029
      %v4031 = vrot.slane %v4030, 4
      %v4033 = vshll.u32 %v3960, 16
      %v4035 = vrot.slane %v4033, 5
      %v4036 = vsel %vm1649, %v4031, %v4035
      %v4038 = vshrl.u32 %v3961, 16
      %v4040 = vrot.slane %v4038, 4
      %v4041 = vshll.u32 %v3961, 16
      %v4043 = vrot.slane %v4041, 5
      %v4044 = vor.u32 %v4040, %v4043
      %v4045 = vrot.slane %v4044, 4
      %v4047 = vshll.u32 %v3962, 16
      %v4049 = vrot.slane %v4047, 5
      %v4050 = vsel %vm1649, %v4045, %v4049
      %v4052 = vshrl.u32 %v3963, 16
      %v4054 = vrot.slane %v4052, 4
      %v4055 = vshll.u32 %v3963, 16
      %v4057 = vrot.slane %v4055, 5
      %v4058 = vor.u32 %v4054, %v4057
      %v4059 = vrot.slane %v4058, 4
      %v4061 = vshll.u32 %v3964, 16
      %v4063 = vrot.slane %v4061, 5
      %v4064 = vsel %vm1649, %v4059, %v4063
      %v4066 = vshrl.u32 %v3965, 16
      %v4068 = vrot.slane %v4066, 4
      %v4069 = vshll.u32 %v3965, 16
      %v4071 = vrot.slane %v4069, 5
      %v4072 = vor.u32 %v4068, %v4071
      %v4073 = vrot.slane %v4072, 4
      %v4075 = vshll.u32 %v3966, 16
      %v4077 = vrot.slane %v4075, 5
      %v4078 = vsel %vm1649, %v4073, %v4077
      %4079 = vrot.lane.b32.xlu0 %v3980, 4
      %v4080 = vpop.permute.xlu0 %4079
      %4081 = vrot.lane.b32.xlu0 %v3994, 4
      %v4082 = vpop.permute.xlu0 %4081
      %4083 = vrot.lane.b32.xlu0 %v4008, 4
      %v4084 = vpop.permute.xlu0 %4083
      %4085 = vrot.lane.b32.xlu0 %v4022, 4
      %v4086 = vpop.permute.xlu0 %4085
      %4087 = vrot.lane.b32.xlu0 %v4036, 4
      %v4088 = vpop.permute.xlu0 %4087
      %4089 = vrot.lane.b32.xlu0 %v4050, 4
      %v4090 = vpop.permute.xlu0 %4089
      %4091 = vrot.lane.b32.xlu0 %v4064, 4
      %v4092 = vpop.permute.xlu0 %4091
      %4093 = vrot.lane.b32.xlu0 %v4078, 4
      %v4094 = vpop.permute.xlu0 %4093
      %4103 = vst.msk [vmem:[%s3942] sm:$0xf] %vm1786, %v4080
      %4104 = vst.msk [vmem:[%s3942 + $0x4] sm:$0xf] %vm1786, %v4082
      %4105 = vst.msk [vmem:[%s3942 + $0x8] sm:$0xf] %vm1786, %v4084
      %4106 = vst.msk [vmem:[%s3942 + $0xc] sm:$0xf] %vm1786, %v4086
      %4107 = vst.msk [vmem:[%s3942 + $0x10] sm:$0xf] %vm1786, %v4088
      %4108 = vst.msk [vmem:[%s3942 + $0x14] sm:$0xf] %vm1786, %v4090
      %4109 = vst.msk [vmem:[%s3942 + $0x18] sm:$0xf] %vm1786, %v4092
      %4110 = vst.msk [vmem:[%s3942 + $0x1c] sm:$0xf] %vm1786, %v4094
      %v4111 = vld [vmem:[%s1258] sm:$0xf]
      %v4112 = vld [vmem:[%s1258 + $0x4] sm:$0x1]
      %v4113 = vld [vmem:[%s1258 + $0x8] sm:$0xf]
      %v4114 = vld [vmem:[%s1258 + $0xc] sm:$0x1]
      %v4115 = vld [vmem:[%s1258 + $0x10] sm:$0xf]
      %v4116 = vld [vmem:[%s1258 + $0x14] sm:$0x1]
      %v4117 = vld [vmem:[%s1258 + $0x18] sm:$0xf]
      %v4118 = vld [vmem:[%s1258 + $0x1c] sm:$0x1]
      %v4119 = vld [vmem:[%s1258 + $0x20] sm:$0xf]
      %v4120 = vld [vmem:[%s1258 + $0x24] sm:$0x1]
      %v4121 = vld [vmem:[%s1258 + $0x28] sm:$0xf]
      %v4122 = vld [vmem:[%s1258 + $0x2c] sm:$0x1]
      %v4123 = vld [vmem:[%s1258 + $0x30] sm:$0xf]
      %v4124 = vld [vmem:[%s1258 + $0x34] sm:$0x1]
      %v4125 = vld [vmem:[%s1258 + $0x38] sm:$0xf]
      %v4126 = vld [vmem:[%s1258 + $0x3c] sm:$0x1]
      %v4128 = vshrl.u32 %v4111, 16
      %v4130 = vrot.slane %v4128, 4
      %v4131 = vshll.u32 %v4111, 16
      %v4133 = vrot.slane %v4131, 5
      %v4134 = vor.u32 %v4130, %v4133
      %v4135 = vrot.slane %v4134, 4
      %v4137 = vshll.u32 %v4112, 16
      %v4139 = vrot.slane %v4137, 5
      %v4140 = vsel %vm1649, %v4135, %v4139
      %v4142 = vshrl.u32 %v4113, 16
      %v4144 = vrot.slane %v4142, 4
      %v4145 = vshll.u32 %v4113, 16
      %v4147 = vrot.slane %v4145, 5
      %v4148 = vor.u32 %v4144, %v4147
      %v4149 = vrot.slane %v4148, 4
      %v4151 = vshll.u32 %v4114, 16
      %v4153 = vrot.slane %v4151, 5
      %v4154 = vsel %vm1649, %v4149, %v4153
      %v4156 = vshrl.u32 %v4115, 16
      %v4158 = vrot.slane %v4156, 4
      %v4159 = vshll.u32 %v4115, 16
      %v4161 = vrot.slane %v4159, 5
      %v4162 = vor.u32 %v4158, %v4161
      %v4163 = vrot.slane %v4162, 4
      %v4165 = vshll.u32 %v4116, 16
      %v4167 = vrot.slane %v4165, 5
      %v4168 = vsel %vm1649, %v4163, %v4167
      %v4170 = vshrl.u32 %v4117, 16
      %v4172 = vrot.slane %v4170, 4
      %v4173 = vshll.u32 %v4117, 16
      %v4175 = vrot.slane %v4173, 5
      %v4176 = vor.u32 %v4172, %v4175
      %v4177 = vrot.slane %v4176, 4
      %v4179 = vshll.u32 %v4118, 16
      %v4181 = vrot.slane %v4179, 5
      %v4182 = vsel %vm1649, %v4177, %v4181
      %v4184 = vshrl.u32 %v4119, 16
      %v4186 = vrot.slane %v4184, 4
      %v4187 = vshll.u32 %v4119, 16
      %v4189 = vrot.slane %v4187, 5
      %v4190 = vor.u32 %v4186, %v4189
      %v4191 = vrot.slane %v4190, 4
      %v4193 = vshll.u32 %v4120, 16
      %v4195 = vrot.slane %v4193, 5
      %v4196 = vsel %vm1649, %v4191, %v4195
      %v4198 = vshrl.u32 %v4121, 16
      %v4200 = vrot.slane %v4198, 4
      %v4201 = vshll.u32 %v4121, 16
      %v4203 = vrot.slane %v4201, 5
      %v4204 = vor.u32 %v4200, %v4203
      %v4205 = vrot.slane %v4204, 4
      %v4207 = vshll.u32 %v4122, 16
      %v4209 = vrot.slane %v4207, 5
      %v4210 = vsel %vm1649, %v4205, %v4209
      %v4212 = vshrl.u32 %v4123, 16
      %v4214 = vrot.slane %v4212, 4
      %v4215 = vshll.u32 %v4123, 16
      %v4217 = vrot.slane %v4215, 5
      %v4218 = vor.u32 %v4214, %v4217
      %v4219 = vrot.slane %v4218, 4
      %v4221 = vshll.u32 %v4124, 16
      %v4223 = vrot.slane %v4221, 5
      %v4224 = vsel %vm1649, %v4219, %v4223
      %v4226 = vshrl.u32 %v4125, 16
      %v4228 = vrot.slane %v4226, 4
      %v4229 = vshll.u32 %v4125, 16
      %v4231 = vrot.slane %v4229, 5
      %v4232 = vor.u32 %v4228, %v4231
      %v4233 = vrot.slane %v4232, 4
      %v4235 = vshll.u32 %v4126, 16
      %v4237 = vrot.slane %v4235, 5
      %v4238 = vsel %vm1649, %v4233, %v4237
      %4239 = vrot.lane.b32.xlu0 %v4140, 8
      %v4240 = vpop.permute.xlu0 %4239
      %4241 = vrot.lane.b32.xlu0 %v4154, 8
      %v4242 = vpop.permute.xlu0 %4241
      %4243 = vrot.lane.b32.xlu0 %v4168, 8
      %v4244 = vpop.permute.xlu0 %4243
      %4245 = vrot.lane.b32.xlu0 %v4182, 8
      %v4246 = vpop.permute.xlu0 %4245
      %4247 = vrot.lane.b32.xlu0 %v4196, 8
      %v4248 = vpop.permute.xlu0 %4247
      %4249 = vrot.lane.b32.xlu0 %v4210, 8
      %v4250 = vpop.permute.xlu0 %4249
      %4251 = vrot.lane.b32.xlu0 %v4224, 8
      %v4252 = vpop.permute.xlu0 %4251
      %4253 = vrot.lane.b32.xlu0 %v4238, 8
      %v4254 = vpop.permute.xlu0 %4253
      %4263 = vst.msk [vmem:[%s3942] sm:$0xf] %vm1947, %v4240
      %4264 = vst.msk [vmem:[%s3942 + $0x4] sm:$0xf] %vm1947, %v4242
      %4265 = vst.msk [vmem:[%s3942 + $0x8] sm:$0xf] %vm1947, %v4244
      %4266 = vst.msk [vmem:[%s3942 + $0xc] sm:$0xf] %vm1947, %v4246
      %4267 = vst.msk [vmem:[%s3942 + $0x10] sm:$0xf] %vm1947, %v4248
      %4268 = vst.msk [vmem:[%s3942 + $0x14] sm:$0xf] %vm1947, %v4250
      %4269 = vst.msk [vmem:[%s3942 + $0x18] sm:$0xf] %vm1947, %v4252
      %4270 = vst.msk [vmem:[%s3942 + $0x1c] sm:$0xf] %vm1947, %v4254
      %v4271 = vld [vmem:[%s1564] sm:$0xf]
      %v4272 = vld [vmem:[%s1564 + $0x8] sm:$0xf]
      %v4273 = vld [vmem:[%s1564 + $0x10] sm:$0xf]
      %v4274 = vld [vmem:[%s1564 + $0x18] sm:$0xf]
      %v4275 = vld [vmem:[%s1564 + $0x20] sm:$0xf]
      %v4276 = vld [vmem:[%s1564 + $0x28] sm:$0xf]
      %v4277 = vld [vmem:[%s1564 + $0x30] sm:$0xf]
      %v4278 = vld [vmem:[%s1564 + $0x38] sm:$0xf]
      %4287 = vrot.lane.b32.xlu0 %v4271, 12
      %v4288 = vpop.permute.xlu0 %4287
      %4289 = vrot.lane.b32.xlu0 %v4272, 12
      %v4290 = vpop.permute.xlu0 %4289
      %4291 = vrot.lane.b32.xlu0 %v4273, 12
      %v4292 = vpop.permute.xlu0 %4291
      %4293 = vrot.lane.b32.xlu0 %v4274, 12
      %v4294 = vpop.permute.xlu0 %4293
      %4295 = vrot.lane.b32.xlu0 %v4275, 12
      %v4296 = vpop.permute.xlu0 %4295
      %4297 = vrot.lane.b32.xlu0 %v4276, 12
      %v4298 = vpop.permute.xlu0 %4297
      %4299 = vrot.lane.b32.xlu0 %v4277, 12
      %v4300 = vpop.permute.xlu0 %4299
      %4301 = vrot.lane.b32.xlu0 %v4278, 12
      %v4302 = vpop.permute.xlu0 %4301
      %4311 = vst.msk [vmem:[%s3942] sm:$0xf] %vm1996, %v4288
      %4312 = vst.msk [vmem:[%s3942 + $0x4] sm:$0xf] %vm1996, %v4290
      %4313 = vst.msk [vmem:[%s3942 + $0x8] sm:$0xf] %vm1996, %v4292
      %4314 = vst.msk [vmem:[%s3942 + $0xc] sm:$0xf] %vm1996, %v4294
      %4315 = vst.msk [vmem:[%s3942 + $0x10] sm:$0xf] %vm1996, %v4296
      %4316 = vst.msk [vmem:[%s3942 + $0x14] sm:$0xf] %vm1996, %v4298
      %4317 = vst.msk [vmem:[%s3942 + $0x18] sm:$0xf] %vm1996, %v4300
      %4318 = vst.msk [vmem:[%s3942 + $0x1c] sm:$0xf] %vm1996, %v4302
      %v4319 = vld [vmem:[%s1411] sm:$0xf]
      %v4320 = vld [vmem:[%s1411 + $0x4] sm:$0x1]
      %v4321 = vld [vmem:[%s1411 + $0x8] sm:$0xf]
      %v4322 = vld [vmem:[%s1411 + $0xc] sm:$0x1]
      %v4323 = vld [vmem:[%s1411 + $0x10] sm:$0xf]
      %v4324 = vld [vmem:[%s1411 + $0x14] sm:$0x1]
      %v4325 = vld [vmem:[%s1411 + $0x18] sm:$0xf]
      %v4326 = vld [vmem:[%s1411 + $0x1c] sm:$0x1]
      %v4327 = vld [vmem:[%s1411 + $0x20] sm:$0xf]
      %v4328 = vld [vmem:[%s1411 + $0x24] sm:$0x1]
      %v4329 = vld [vmem:[%s1411 + $0x28] sm:$0xf]
      %v4330 = vld [vmem:[%s1411 + $0x2c] sm:$0x1]
      %v4331 = vld [vmem:[%s1411 + $0x30] sm:$0xf]
      %v4332 = vld [vmem:[%s1411 + $0x34] sm:$0x1]
      %v4333 = vld [vmem:[%s1411 + $0x38] sm:$0xf]
      %v4334 = vld [vmem:[%s1411 + $0x3c] sm:$0x1]
      %v4336 = vshrl.u32 %v4319, 16
      %v4338 = vrot.slane %v4336, 4
      %v4339 = vshll.u32 %v4319, 16
      %v4341 = vrot.slane %v4339, 5
      %v4342 = vor.u32 %v4338, %v4341
      %v4343 = vrot.slane %v4342, 4
      %v4345 = vshll.u32 %v4320, 16
      %v4347 = vrot.slane %v4345, 5
      %v4348 = vsel %vm1649, %v4343, %v4347
      %v4350 = vshrl.u32 %v4321, 16
      %v4352 = vrot.slane %v4350, 4
      %v4353 = vshll.u32 %v4321, 16
      %v4355 = vrot.slane %v4353, 5
      %v4356 = vor.u32 %v4352, %v4355
      %v4357 = vrot.slane %v4356, 4
      %v4359 = vshll.u32 %v4322, 16
      %v4361 = vrot.slane %v4359, 5
      %v4362 = vsel %vm1649, %v4357, %v4361
      %v4364 = vshrl.u32 %v4323, 16
      %v4366 = vrot.slane %v4364, 4
      %v4367 = vshll.u32 %v4323, 16
      %v4369 = vrot.slane %v4367, 5
      %v4370 = vor.u32 %v4366, %v4369
      %v4371 = vrot.slane %v4370, 4
      %v4373 = vshll.u32 %v4324, 16
      %v4375 = vrot.slane %v4373, 5
      %v4376 = vsel %vm1649, %v4371, %v4375
      %v4378 = vshrl.u32 %v4325, 16
      %v4380 = vrot.slane %v4378, 4
      %v4381 = vshll.u32 %v4325, 16
      %v4383 = vrot.slane %v4381, 5
      %v4384 = vor.u32 %v4380, %v4383
      %v4385 = vrot.slane %v4384, 4
      %v4387 = vshll.u32 %v4326, 16
      %v4389 = vrot.slane %v4387, 5
      %v4390 = vsel %vm1649, %v4385, %v4389
      %v4392 = vshrl.u32 %v4327, 16
      %v4394 = vrot.slane %v4392, 4
      %v4395 = vshll.u32 %v4327, 16
      %v4397 = vrot.slane %v4395, 5
      %v4398 = vor.u32 %v4394, %v4397
      %v4399 = vrot.slane %v4398, 4
      %v4401 = vshll.u32 %v4328, 16
      %v4403 = vrot.slane %v4401, 5
      %v4404 = vsel %vm1649, %v4399, %v4403
      %v4406 = vshrl.u32 %v4329, 16
      %v4408 = vrot.slane %v4406, 4
      %v4409 = vshll.u32 %v4329, 16
      %v4411 = vrot.slane %v4409, 5
      %v4412 = vor.u32 %v4408, %v4411
      %v4413 = vrot.slane %v4412, 4
      %v4415 = vshll.u32 %v4330, 16
      %v4417 = vrot.slane %v4415, 5
      %v4418 = vsel %vm1649, %v4413, %v4417
      %v4420 = vshrl.u32 %v4331, 16
      %v4422 = vrot.slane %v4420, 4
      %v4423 = vshll.u32 %v4331, 16
      %v4425 = vrot.slane %v4423, 5
      %v4426 = vor.u32 %v4422, %v4425
      %v4427 = vrot.slane %v4426, 4
      %v4429 = vshll.u32 %v4332, 16
      %v4431 = vrot.slane %v4429, 5
      %v4432 = vsel %vm1649, %v4427, %v4431
      %v4434 = vshrl.u32 %v4333, 16
      %v4436 = vrot.slane %v4434, 4
      %v4437 = vshll.u32 %v4333, 16
      %v4439 = vrot.slane %v4437, 5
      %v4440 = vor.u32 %v4436, %v4439
      %v4441 = vrot.slane %v4440, 4
      %v4443 = vshll.u32 %v4334, 16
      %v4445 = vrot.slane %v4443, 5
      %v4446 = vsel %vm1649, %v4441, %v4445
      %4447 = vrot.lane.b32.xlu0 %v4348, 16
      %v4448 = vpop.permute.xlu0 %4447
      %4449 = vrot.lane.b32.xlu0 %v4362, 16
      %v4450 = vpop.permute.xlu0 %4449
      %4451 = vrot.lane.b32.xlu0 %v4376, 16
      %v4452 = vpop.permute.xlu0 %4451
      %4453 = vrot.lane.b32.xlu0 %v4390, 16
      %v4454 = vpop.permute.xlu0 %4453
      %4455 = vrot.lane.b32.xlu0 %v4404, 16
      %v4456 = vpop.permute.xlu0 %4455
      %4457 = vrot.lane.b32.xlu0 %v4418, 16
      %v4458 = vpop.permute.xlu0 %4457
      %4459 = vrot.lane.b32.xlu0 %v4432, 16
      %v4460 = vpop.permute.xlu0 %4459
      %4461 = vrot.lane.b32.xlu0 %v4446, 16
      %v4462 = vpop.permute.xlu0 %4461
      %4471 = vst.msk [vmem:[%s3942] sm:$0xf] %vm2157, %v4448
      %4472 = vst.msk [vmem:[%s3942 + $0x4] sm:$0xf] %vm2157, %v4450
      %4473 = vst.msk [vmem:[%s3942 + $0x8] sm:$0xf] %vm2157, %v4452
      %4474 = vst.msk [vmem:[%s3942 + $0xc] sm:$0xf] %vm2157, %v4454
      %4475 = vst.msk [vmem:[%s3942 + $0x10] sm:$0xf] %vm2157, %v4456
      %4476 = vst.msk [vmem:[%s3942 + $0x14] sm:$0xf] %vm2157, %v4458
      %4477 = vst.msk [vmem:[%s3942 + $0x18] sm:$0xf] %vm2157, %v4460
      %4478 = vst.msk [vmem:[%s3942 + $0x1c] sm:$0xf] %vm2157, %v4462
      %v4479 = vld [vmem:[%s1564] sm:$0xf]
      %v4480 = vld [vmem:[%s1564 + $0x4] sm:$0x1]
      %v4481 = vld [vmem:[%s1564 + $0x8] sm:$0xf]
      %v4482 = vld [vmem:[%s1564 + $0xc] sm:$0x1]
      %v4483 = vld [vmem:[%s1564 + $0x10] sm:$0xf]
      %v4484 = vld [vmem:[%s1564 + $0x14] sm:$0x1]
      %v4485 = vld [vmem:[%s1564 + $0x18] sm:$0xf]
      %v4486 = vld [vmem:[%s1564 + $0x1c] sm:$0x1]
      %v4487 = vld [vmem:[%s1564 + $0x20] sm:$0xf]
      %v4488 = vld [vmem:[%s1564 + $0x24] sm:$0x1]
      %v4489 = vld [vmem:[%s1564 + $0x28] sm:$0xf]
      %v4490 = vld [vmem:[%s1564 + $0x2c] sm:$0x1]
      %v4491 = vld [vmem:[%s1564 + $0x30] sm:$0xf]
      %v4492 = vld [vmem:[%s1564 + $0x34] sm:$0x1]
      %v4493 = vld [vmem:[%s1564 + $0x38] sm:$0xf]
      %v4494 = vld [vmem:[%s1564 + $0x3c] sm:$0x1]
      %v4496 = vshrl.u32 %v4479, 16
      %v4498 = vrot.slane %v4496, 4
      %v4499 = vshll.u32 %v4479, 16
      %v4501 = vrot.slane %v4499, 5
      %v4502 = vor.u32 %v4498, %v4501
      %v4503 = vrot.slane %v4502, 4
      %v4505 = vshll.u32 %v4480, 16
      %v4507 = vrot.slane %v4505, 5
      %v4508 = vsel %vm1649, %v4503, %v4507
      %v4510 = vshrl.u32 %v4481, 16
      %v4512 = vrot.slane %v4510, 4
      %v4513 = vshll.u32 %v4481, 16
      %v4515 = vrot.slane %v4513, 5
      %v4516 = vor.u32 %v4512, %v4515
      %v4517 = vrot.slane %v4516, 4
      %v4519 = vshll.u32 %v4482, 16
      %v4521 = vrot.slane %v4519, 5
      %v4522 = vsel %vm1649, %v4517, %v4521
      %v4524 = vshrl.u32 %v4483, 16
      %v4526 = vrot.slane %v4524, 4
      %v4527 = vshll.u32 %v4483, 16
      %v4529 = vrot.slane %v4527, 5
      %v4530 = vor.u32 %v4526, %v4529
      %v4531 = vrot.slane %v4530, 4
      %v4533 = vshll.u32 %v4484, 16
      %v4535 = vrot.slane %v4533, 5
      %v4536 = vsel %vm1649, %v4531, %v4535
      %v4538 = vshrl.u32 %v4485, 16
      %v4540 = vrot.slane %v4538, 4
      %v4541 = vshll.u32 %v4485, 16
      %v4543 = vrot.slane %v4541, 5
      %v4544 = vor.u32 %v4540, %v4543
      %v4545 = vrot.slane %v4544, 4
      %v4547 = vshll.u32 %v4486, 16
      %v4549 = vrot.slane %v4547, 5
      %v4550 = vsel %vm1649, %v4545, %v4549
      %v4552 = vshrl.u32 %v4487, 16
      %v4554 = vrot.slane %v4552, 4
      %v4555 = vshll.u32 %v4487, 16
      %v4557 = vrot.slane %v4555, 5
      %v4558 = vor.u32 %v4554, %v4557
      %v4559 = vrot.slane %v4558, 4
      %v4561 = vshll.u32 %v4488, 16
      %v4563 = vrot.slane %v4561, 5
      %v4564 = vsel %vm1649, %v4559, %v4563
      %v4566 = vshrl.u32 %v4489, 16
      %v4568 = vrot.slane %v4566, 4
      %v4569 = vshll.u32 %v4489, 16
      %v4571 = vrot.slane %v4569, 5
      %v4572 = vor.u32 %v4568, %v4571
      %v4573 = vrot.slane %v4572, 4
      %v4575 = vshll.u32 %v4490, 16
      %v4577 = vrot.slane %v4575, 5
      %v4578 = vsel %vm1649, %v4573, %v4577
      %v4580 = vshrl.u32 %v4491, 16
      %v4582 = vrot.slane %v4580, 4
      %v4583 = vshll.u32 %v4491, 16
      %v4585 = vrot.slane %v4583, 5
      %v4586 = vor.u32 %v4582, %v4585
      %v4587 = vrot.slane %v4586, 4
      %v4589 = vshll.u32 %v4492, 16
      %v4591 = vrot.slane %v4589, 5
      %v4592 = vsel %vm1649, %v4587, %v4591
      %v4594 = vshrl.u32 %v4493, 16
      %v4596 = vrot.slane %v4594, 4
      %v4597 = vshll.u32 %v4493, 16
      %v4599 = vrot.slane %v4597, 5
      %v4600 = vor.u32 %v4596, %v4599
      %v4601 = vrot.slane %v4600, 4
      %v4603 = vshll.u32 %v4494, 16
      %v4605 = vrot.slane %v4603, 5
      %v4606 = vsel %vm1649, %v4601, %v4605
      %4607 = vrot.lane.b32.xlu0 %v4508, 20
      %v4608 = vpop.permute.xlu0 %4607
      %4609 = vrot.lane.b32.xlu0 %v4522, 20
      %v4610 = vpop.permute.xlu0 %4609
      %4611 = vrot.lane.b32.xlu0 %v4536, 20
      %v4612 = vpop.permute.xlu0 %4611
      %4613 = vrot.lane.b32.xlu0 %v4550, 20
      %v4614 = vpop.permute.xlu0 %4613
      %4615 = vrot.lane.b32.xlu0 %v4564, 20
      %v4616 = vpop.permute.xlu0 %4615
      %4617 = vrot.lane.b32.xlu0 %v4578, 20
      %v4618 = vpop.permute.xlu0 %4617
      %4619 = vrot.lane.b32.xlu0 %v4592, 20
      %v4620 = vpop.permute.xlu0 %4619
      %4621 = vrot.lane.b32.xlu0 %v4606, 20
      %v4622 = vpop.permute.xlu0 %4621
      %4631 = vst.msk [vmem:[%s3942] sm:$0xf] %vm2318, %v4608
      %4632 = vst.msk [vmem:[%s3942 + $0x4] sm:$0xf] %vm2318, %v4610
      %4633 = vst.msk [vmem:[%s3942 + $0x8] sm:$0xf] %vm2318, %v4612
      %4634 = vst.msk [vmem:[%s3942 + $0xc] sm:$0xf] %vm2318, %v4614
      %4635 = vst.msk [vmem:[%s3942 + $0x10] sm:$0xf] %vm2318, %v4616
      %4636 = vst.msk [vmem:[%s3942 + $0x14] sm:$0xf] %vm2318, %v4618
      %4637 = vst.msk [vmem:[%s3942 + $0x18] sm:$0xf] %vm2318, %v4620
      %4638 = vst.msk [vmem:[%s3942 + $0x1c] sm:$0xf] %vm2318, %v4622
      %s4639 = scalar_lea.vmem [#allocation2], 96
      %v4640 = vld [vmem:[%s4639] sm:$0xf]
      %v4641 = vld [vmem:[%s4639 + $0x8] sm:$0xf]
      %v4642 = vld [vmem:[%s4639 + $0x10] sm:$0xf]
      %v4643 = vld [vmem:[%s4639 + $0x18] sm:$0xf]
      %v4644 = vld [vmem:[%s4639 + $0x20] sm:$0xf]
      %v4645 = vld [vmem:[%s4639 + $0x28] sm:$0xf]
      %v4646 = vld [vmem:[%s4639 + $0x30] sm:$0xf]
      %v4647 = vld [vmem:[%s4639 + $0x38] sm:$0xf]
      %4656 = vrot.lane.b32.xlu0 %v4640, 24
      %v4657 = vpop.permute.xlu0 %4656
      %4658 = vrot.lane.b32.xlu0 %v4641, 24
      %v4659 = vpop.permute.xlu0 %4658
      %4660 = vrot.lane.b32.xlu0 %v4642, 24
      %v4661 = vpop.permute.xlu0 %4660
      %4662 = vrot.lane.b32.xlu0 %v4643, 24
      %v4663 = vpop.permute.xlu0 %4662
      %4664 = vrot.lane.b32.xlu0 %v4644, 24
      %v4665 = vpop.permute.xlu0 %4664
      %4666 = vrot.lane.b32.xlu0 %v4645, 24
      %v4667 = vpop.permute.xlu0 %4666
      %4668 = vrot.lane.b32.xlu0 %v4646, 24
      %v4669 = vpop.permute.xlu0 %4668
      %4670 = vrot.lane.b32.xlu0 %v4647, 24
      %v4671 = vpop.permute.xlu0 %4670
      %4680 = vst.msk [vmem:[%s3942] sm:$0xf] %vm2367, %v4657
      %4681 = vst.msk [vmem:[%s3942 + $0x4] sm:$0xf] %vm2367, %v4659
      %4682 = vst.msk [vmem:[%s3942 + $0x8] sm:$0xf] %vm2367, %v4661
      %4683 = vst.msk [vmem:[%s3942 + $0xc] sm:$0xf] %vm2367, %v4663
      %4684 = vst.msk [vmem:[%s3942 + $0x10] sm:$0xf] %vm2367, %v4665
      %4685 = vst.msk [vmem:[%s3942 + $0x14] sm:$0xf] %vm2367, %v4667
      %4686 = vst.msk [vmem:[%s3942 + $0x18] sm:$0xf] %vm2367, %v4669
      %4687 = vst.msk [vmem:[%s3942 + $0x1c] sm:$0xf] %vm2367, %v4671
      %s4688 = scalar_lea.vmem [#allocation2], 16
      %v4689 = vld [vmem:[%s4688] sm:$0xf]
      %v4690 = vld [vmem:[%s4688 + $0x4] sm:$0x1]
      %v4691 = vld [vmem:[%s4688 + $0x8] sm:$0xf]
      %v4692 = vld [vmem:[%s4688 + $0xc] sm:$0x1]
      %v4693 = vld [vmem:[%s4688 + $0x10] sm:$0xf]
      %v4694 = vld [vmem:[%s4688 + $0x14] sm:$0x1]
      %v4695 = vld [vmem:[%s4688 + $0x18] sm:$0xf]
      %v4696 = vld [vmem:[%s4688 + $0x1c] sm:$0x1]
      %v4697 = vld [vmem:[%s4688 + $0x20] sm:$0xf]
      %v4698 = vld [vmem:[%s4688 + $0x24] sm:$0x1]
      %v4699 = vld [vmem:[%s4688 + $0x28] sm:$0xf]
      %v4700 = vld [vmem:[%s4688 + $0x2c] sm:$0x1]
      %v4701 = vld [vmem:[%s4688 + $0x30] sm:$0xf]
      %v4702 = vld [vmem:[%s4688 + $0x34] sm:$0x1]
      %v4703 = vld [vmem:[%s4688 + $0x38] sm:$0xf]
      %v4704 = vld [vmem:[%s4688 + $0x3c] sm:$0x1]
      %v4706 = vshrl.u32 %v4689, 16
      %v4708 = vrot.slane %v4706, 4
      %v4709 = vshll.u32 %v4689, 16
      %v4711 = vrot.slane %v4709, 5
      %v4712 = vor.u32 %v4708, %v4711
      %v4713 = vrot.slane %v4712, 4
      %v4715 = vshll.u32 %v4690, 16
      %v4717 = vrot.slane %v4715, 5
      %v4718 = vsel %vm1649, %v4713, %v4717
      %v4720 = vshrl.u32 %v4691, 16
      %v4722 = vrot.slane %v4720, 4
      %v4723 = vshll.u32 %v4691, 16
      %v4725 = vrot.slane %v4723, 5
      %v4726 = vor.u32 %v4722, %v4725
      %v4727 = vrot.slane %v4726, 4
      %v4729 = vshll.u32 %v4692, 16
      %v4731 = vrot.slane %v4729, 5
      %v4732 = vsel %vm1649, %v4727, %v4731
      %v4734 = vshrl.u32 %v4693, 16
      %v4736 = vrot.slane %v4734, 4
      %v4737 = vshll.u32 %v4693, 16
      %v4739 = vrot.slane %v4737, 5
      %v4740 = vor.u32 %v4736, %v4739
      %v4741 = vrot.slane %v4740, 4
      %v4743 = vshll.u32 %v4694, 16
      %v4745 = vrot.slane %v4743, 5
      %v4746 = vsel %vm1649, %v4741, %v4745
      %v4748 = vshrl.u32 %v4695, 16
      %v4750 = vrot.slane %v4748, 4
      %v4751 = vshll.u32 %v4695, 16
      %v4753 = vrot.slane %v4751, 5
      %v4754 = vor.u32 %v4750, %v4753
      %v4755 = vrot.slane %v4754, 4
      %v4757 = vshll.u32 %v4696, 16
      %v4759 = vrot.slane %v4757, 5
      %v4760 = vsel %vm1649, %v4755, %v4759
      %v4762 = vshrl.u32 %v4697, 16
      %v4764 = vrot.slane %v4762, 4
      %v4765 = vshll.u32 %v4697, 16
      %v4767 = vrot.slane %v4765, 5
      %v4768 = vor.u32 %v4764, %v4767
      %v4769 = vrot.slane %v4768, 4
      %v4771 = vshll.u32 %v4698, 16
      %v4773 = vrot.slane %v4771, 5
      %v4774 = vsel %vm1649, %v4769, %v4773
      %v4776 = vshrl.u32 %v4699, 16
      %v4778 = vrot.slane %v4776, 4
      %v4779 = vshll.u32 %v4699, 16
      %v4781 = vrot.slane %v4779, 5
      %v4782 = vor.u32 %v4778, %v4781
      %v4783 = vrot.slane %v4782, 4
      %v4785 = vshll.u32 %v4700, 16
      %v4787 = vrot.slane %v4785, 5
      %v4788 = vsel %vm1649, %v4783, %v4787
      %v4790 = vshrl.u32 %v4701, 16
      %v4792 = vrot.slane %v4790, 4
      %v4793 = vshll.u32 %v4701, 16
      %v4795 = vrot.slane %v4793, 5
      %v4796 = vor.u32 %v4792, %v4795
      %v4797 = vrot.slane %v4796, 4
      %v4799 = vshll.u32 %v4702, 16
      %v4801 = vrot.slane %v4799, 5
      %v4802 = vsel %vm1649, %v4797, %v4801
      %v4804 = vshrl.u32 %v4703, 16
      %v4806 = vrot.slane %v4804, 4
      %v4807 = vshll.u32 %v4703, 16
      %v4809 = vrot.slane %v4807, 5
      %v4810 = vor.u32 %v4806, %v4809
      %v4811 = vrot.slane %v4810, 4
      %v4813 = vshll.u32 %v4704, 16
      %v4815 = vrot.slane %v4813, 5
      %v4816 = vsel %vm1649, %v4811, %v4815
      %4817 = vrot.lane.b32.xlu0 %v4718, 28
      %v4818 = vpop.permute.xlu0 %4817
      %4819 = vrot.lane.b32.xlu0 %v4732, 28
      %v4820 = vpop.permute.xlu0 %4819
      %4821 = vrot.lane.b32.xlu0 %v4746, 28
      %v4822 = vpop.permute.xlu0 %4821
      %4823 = vrot.lane.b32.xlu0 %v4760, 28
      %v4824 = vpop.permute.xlu0 %4823
      %4825 = vrot.lane.b32.xlu0 %v4774, 28
      %v4826 = vpop.permute.xlu0 %4825
      %4827 = vrot.lane.b32.xlu0 %v4788, 28
      %v4828 = vpop.permute.xlu0 %4827
      %4829 = vrot.lane.b32.xlu0 %v4802, 28
      %v4830 = vpop.permute.xlu0 %4829
      %4831 = vrot.lane.b32.xlu0 %v4816, 28
      %v4832 = vpop.permute.xlu0 %4831
      %4841 = vst.msk [vmem:[%s3942] sm:$0xf] %vm2528, %v4818
      %4842 = vst.msk [vmem:[%s3942 + $0x4] sm:$0xf] %vm2528, %v4820
      %4843 = vst.msk [vmem:[%s3942 + $0x8] sm:$0xf] %vm2528, %v4822
      %4844 = vst.msk [vmem:[%s3942 + $0xc] sm:$0xf] %vm2528, %v4824
      %4845 = vst.msk [vmem:[%s3942 + $0x10] sm:$0xf] %vm2528, %v4826
      %4846 = vst.msk [vmem:[%s3942 + $0x14] sm:$0xf] %vm2528, %v4828
      %4847 = vst.msk [vmem:[%s3942 + $0x18] sm:$0xf] %vm2528, %v4830
      %4848 = vst.msk [vmem:[%s3942 + $0x1c] sm:$0xf] %vm2528, %v4832
      %v4849 = vld [vmem:[%s4639] sm:$0xf]
      %v4850 = vld [vmem:[%s4639 + $0x4] sm:$0x1]
      %v4851 = vld [vmem:[%s4639 + $0x8] sm:$0xf]
      %v4852 = vld [vmem:[%s4639 + $0xc] sm:$0x1]
      %v4853 = vld [vmem:[%s4639 + $0x10] sm:$0xf]
      %v4854 = vld [vmem:[%s4639 + $0x14] sm:$0x1]
      %v4855 = vld [vmem:[%s4639 + $0x18] sm:$0xf]
      %v4856 = vld [vmem:[%s4639 + $0x1c] sm:$0x1]
      %v4857 = vld [vmem:[%s4639 + $0x20] sm:$0xf]
      %v4858 = vld [vmem:[%s4639 + $0x24] sm:$0x1]
      %v4859 = vld [vmem:[%s4639 + $0x28] sm:$0xf]
      %v4860 = vld [vmem:[%s4639 + $0x2c] sm:$0x1]
      %v4861 = vld [vmem:[%s4639 + $0x30] sm:$0xf]
      %v4862 = vld [vmem:[%s4639 + $0x34] sm:$0x1]
      %v4863 = vld [vmem:[%s4639 + $0x38] sm:$0xf]
      %v4864 = vld [vmem:[%s4639 + $0x3c] sm:$0x1]
      %v4866 = vshrl.u32 %v4849, 16
      %v4868 = vrot.slane %v4866, 4
      %v4869 = vshll.u32 %v4849, 16
      %v4871 = vrot.slane %v4869, 5
      %v4872 = vor.u32 %v4868, %v4871
      %v4873 = vrot.slane %v4872, 4
      %v4875 = vshll.u32 %v4850, 16
      %v4877 = vrot.slane %v4875, 5
      %v4878 = vsel %vm1649, %v4873, %v4877
      %v4880 = vshrl.u32 %v4851, 16
      %v4882 = vrot.slane %v4880, 4
      %v4883 = vshll.u32 %v4851, 16
      %v4885 = vrot.slane %v4883, 5
      %v4886 = vor.u32 %v4882, %v4885
      %v4887 = vrot.slane %v4886, 4
      %v4889 = vshll.u32 %v4852, 16
      %v4891 = vrot.slane %v4889, 5
      %v4892 = vsel %vm1649, %v4887, %v4891
      %v4894 = vshrl.u32 %v4853, 16
      %v4896 = vrot.slane %v4894, 4
      %v4897 = vshll.u32 %v4853, 16
      %v4899 = vrot.slane %v4897, 5
      %v4900 = vor.u32 %v4896, %v4899
      %v4901 = vrot.slane %v4900, 4
      %v4903 = vshll.u32 %v4854, 16
      %v4905 = vrot.slane %v4903, 5
      %v4906 = vsel %vm1649, %v4901, %v4905
      %v4908 = vshrl.u32 %v4855, 16
      %v4910 = vrot.slane %v4908, 4
      %v4911 = vshll.u32 %v4855, 16
      %v4913 = vrot.slane %v4911, 5
      %v4914 = vor.u32 %v4910, %v4913
      %v4915 = vrot.slane %v4914, 4
      %v4917 = vshll.u32 %v4856, 16
      %v4919 = vrot.slane %v4917, 5
      %v4920 = vsel %vm1649, %v4915, %v4919
      %v4922 = vshrl.u32 %v4857, 16
      %v4924 = vrot.slane %v4922, 4
      %v4925 = vshll.u32 %v4857, 16
      %v4927 = vrot.slane %v4925, 5
      %v4928 = vor.u32 %v4924, %v4927
      %v4929 = vrot.slane %v4928, 4
      %v4931 = vshll.u32 %v4858, 16
      %v4933 = vrot.slane %v4931, 5
      %v4934 = vsel %vm1649, %v4929, %v4933
      %v4936 = vshrl.u32 %v4859, 16
      %v4938 = vrot.slane %v4936, 4
      %v4939 = vshll.u32 %v4859, 16
      %v4941 = vrot.slane %v4939, 5
      %v4942 = vor.u32 %v4938, %v4941
      %v4943 = vrot.slane %v4942, 4
      %v4945 = vshll.u32 %v4860, 16
      %v4947 = vrot.slane %v4945, 5
      %v4948 = vsel %vm1649, %v4943, %v4947
      %v4950 = vshrl.u32 %v4861, 16
      %v4952 = vrot.slane %v4950, 4
      %v4953 = vshll.u32 %v4861, 16
      %v4955 = vrot.slane %v4953, 5
      %v4956 = vor.u32 %v4952, %v4955
      %v4957 = vrot.slane %v4956, 4
      %v4959 = vshll.u32 %v4862, 16
      %v4961 = vrot.slane %v4959, 5
      %v4962 = vsel %vm1649, %v4957, %v4961
      %v4964 = vshrl.u32 %v4863, 16
      %v4966 = vrot.slane %v4964, 4
      %v4967 = vshll.u32 %v4863, 16
      %v4969 = vrot.slane %v4967, 5
      %v4970 = vor.u32 %v4966, %v4969
      %v4971 = vrot.slane %v4970, 4
      %v4973 = vshll.u32 %v4864, 16
      %v4975 = vrot.slane %v4973, 5
      %v4976 = vsel %vm1649, %v4971, %v4975
      %4977 = vrot.lane.b32.xlu0 %v4878, 32
      %v4978 = vpop.permute.xlu0 %4977
      %4979 = vrot.lane.b32.xlu0 %v4892, 32
      %v4980 = vpop.permute.xlu0 %4979
      %4981 = vrot.lane.b32.xlu0 %v4906, 32
      %v4982 = vpop.permute.xlu0 %4981
      %4983 = vrot.lane.b32.xlu0 %v4920, 32
      %v4984 = vpop.permute.xlu0 %4983
      %4985 = vrot.lane.b32.xlu0 %v4934, 32
      %v4986 = vpop.permute.xlu0 %4985
      %4987 = vrot.lane.b32.xlu0 %v4948, 32
      %v4988 = vpop.permute.xlu0 %4987
      %4989 = vrot.lane.b32.xlu0 %v4962, 32
      %v4990 = vpop.permute.xlu0 %4989
      %4991 = vrot.lane.b32.xlu0 %v4976, 32
      %v4992 = vpop.permute.xlu0 %4991
      %5001 = vst.msk [vmem:[%s3942] sm:$0xf] %vm2689, %v4978
      %5002 = vst.msk [vmem:[%s3942 + $0x4] sm:$0xf] %vm2689, %v4980
      %5003 = vst.msk [vmem:[%s3942 + $0x8] sm:$0xf] %vm2689, %v4982
      %5004 = vst.msk [vmem:[%s3942 + $0xc] sm:$0xf] %vm2689, %v4984
      %5005 = vst.msk [vmem:[%s3942 + $0x10] sm:$0xf] %vm2689, %v4986
      %5006 = vst.msk [vmem:[%s3942 + $0x14] sm:$0xf] %vm2689, %v4988
      %5007 = vst.msk [vmem:[%s3942 + $0x18] sm:$0xf] %vm2689, %v4990
      %5008 = vst.msk [vmem:[%s3942 + $0x1c] sm:$0xf] %vm2689, %v4992
      %v5009 = vld [vmem:[%s1103] sm:$0xf]
      %v5010 = vld [vmem:[%s1103 + $0x4] sm:$0x1]
      %v5011 = vld [vmem:[%s1103 + $0x8] sm:$0xf]
      %v5012 = vld [vmem:[%s1103 + $0xc] sm:$0x1]
      %v5013 = vld [vmem:[%s1103 + $0x10] sm:$0xf]
      %v5014 = vld [vmem:[%s1103 + $0x14] sm:$0x1]
      %v5015 = vld [vmem:[%s1103 + $0x18] sm:$0xf]
      %v5016 = vld [vmem:[%s1103 + $0x1c] sm:$0x1]
      %v5017 = vld [vmem:[%s1103 + $0x20] sm:$0xf]
      %v5018 = vld [vmem:[%s1103 + $0x24] sm:$0x1]
      %v5019 = vld [vmem:[%s1103 + $0x28] sm:$0xf]
      %v5020 = vld [vmem:[%s1103 + $0x2c] sm:$0x1]
      %v5021 = vld [vmem:[%s1103 + $0x30] sm:$0xf]
      %v5022 = vld [vmem:[%s1103 + $0x34] sm:$0x1]
      %v5023 = vld [vmem:[%s1103 + $0x38] sm:$0xf]
      %v5024 = vld [vmem:[%s1103 + $0x3c] sm:$0x1]
      %v5026 = vshrl.u32 %v5009, 16
      %v5028 = vrot.slane %v5026, 4
      %v5029 = vshll.u32 %v5009, 16
      %v5031 = vrot.slane %v5029, 5
      %v5032 = vor.u32 %v5028, %v5031
      %v5033 = vrot.slane %v5032, 4
      %v5035 = vshll.u32 %v5010, 16
      %v5037 = vrot.slane %v5035, 5
      %v5038 = vsel %vm1649, %v5033, %v5037
      %v5040 = vshrl.u32 %v5011, 16
      %v5042 = vrot.slane %v5040, 4
      %v5043 = vshll.u32 %v5011, 16
      %v5045 = vrot.slane %v5043, 5
      %v5046 = vor.u32 %v5042, %v5045
      %v5047 = vrot.slane %v5046, 4
      %v5049 = vshll.u32 %v5012, 16
      %v5051 = vrot.slane %v5049, 5
      %v5052 = vsel %vm1649, %v5047, %v5051
      %v5054 = vshrl.u32 %v5013, 16
      %v5056 = vrot.slane %v5054, 4
      %v5057 = vshll.u32 %v5013, 16
      %v5059 = vrot.slane %v5057, 5
      %v5060 = vor.u32 %v5056, %v5059
      %v5061 = vrot.slane %v5060, 4
      %v5063 = vshll.u32 %v5014, 16
      %v5065 = vrot.slane %v5063, 5
      %v5066 = vsel %vm1649, %v5061, %v5065
      %v5068 = vshrl.u32 %v5015, 16
      %v5070 = vrot.slane %v5068, 4
      %v5071 = vshll.u32 %v5015, 16
      %v5073 = vrot.slane %v5071, 5
      %v5074 = vor.u32 %v5070, %v5073
      %v5075 = vrot.slane %v5074, 4
      %v5077 = vshll.u32 %v5016, 16
      %v5079 = vrot.slane %v5077, 5
      %v5080 = vsel %vm1649, %v5075, %v5079
      %v5082 = vshrl.u32 %v5017, 16
      %v5084 = vrot.slane %v5082, 4
      %v5085 = vshll.u32 %v5017, 16
      %v5087 = vrot.slane %v5085, 5
      %v5088 = vor.u32 %v5084, %v5087
      %v5089 = vrot.slane %v5088, 4
      %v5091 = vshll.u32 %v5018, 16
      %v5093 = vrot.slane %v5091, 5
      %v5094 = vsel %vm1649, %v5089, %v5093
      %v5096 = vshrl.u32 %v5019, 16
      %v5098 = vrot.slane %v5096, 4
      %v5099 = vshll.u32 %v5019, 16
      %v5101 = vrot.slane %v5099, 5
      %v5102 = vor.u32 %v5098, %v5101
      %v5103 = vrot.slane %v5102, 4
      %v5105 = vshll.u32 %v5020, 16
      %v5107 = vrot.slane %v5105, 5
      %v5108 = vsel %vm1649, %v5103, %v5107
      %v5110 = vshrl.u32 %v5021, 16
      %v5112 = vrot.slane %v5110, 4
      %v5113 = vshll.u32 %v5021, 16
      %v5115 = vrot.slane %v5113, 5
      %v5116 = vor.u32 %v5112, %v5115
      %v5117 = vrot.slane %v5116, 4
      %v5119 = vshll.u32 %v5022, 16
      %v5121 = vrot.slane %v5119, 5
      %v5122 = vsel %vm1649, %v5117, %v5121
      %v5124 = vshrl.u32 %v5023, 16
      %v5126 = vrot.slane %v5124, 4
      %v5127 = vshll.u32 %v5023, 16
      %v5129 = vrot.slane %v5127, 5
      %v5130 = vor.u32 %v5126, %v5129
      %v5131 = vrot.slane %v5130, 4
      %v5133 = vshll.u32 %v5024, 16
      %v5135 = vrot.slane %v5133, 5
      %v5136 = vsel %vm1649, %v5131, %v5135
      %s5145 = scalar_lea.vmem [#allocation3], 96
      %5146 = vst.msk [vmem:[%s5145] sm:$0xf] %vm491, %v5038
      %5147 = vst.msk [vmem:[%s5145 + $0x4] sm:$0xf] %vm491, %v5052
      %5148 = vst.msk [vmem:[%s5145 + $0x8] sm:$0xf] %vm491, %v5066
      %5149 = vst.msk [vmem:[%s5145 + $0xc] sm:$0xf] %vm491, %v5080
      %5150 = vst.msk [vmem:[%s5145 + $0x10] sm:$0xf] %vm491, %v5094
      %5151 = vst.msk [vmem:[%s5145 + $0x14] sm:$0xf] %vm491, %v5108
      %5152 = vst.msk [vmem:[%s5145 + $0x18] sm:$0xf] %vm491, %v5122
      %5153 = vst.msk [vmem:[%s5145 + $0x1c] sm:$0xf] %vm491, %v5136
      %v5154 = vld [vmem:[%s1258] sm:$0xf]
      %v5155 = vld [vmem:[%s1258 + $0x4] sm:$0x1]
      %v5156 = vld [vmem:[%s1258 + $0x8] sm:$0xf]
      %v5157 = vld [vmem:[%s1258 + $0xc] sm:$0x1]
      %v5158 = vld [vmem:[%s1258 + $0x10] sm:$0xf]
      %v5159 = vld [vmem:[%s1258 + $0x14] sm:$0x1]
      %v5160 = vld [vmem:[%s1258 + $0x18] sm:$0xf]
      %v5161 = vld [vmem:[%s1258 + $0x1c] sm:$0x1]
      %v5162 = vld [vmem:[%s1258 + $0x20] sm:$0xf]
      %v5163 = vld [vmem:[%s1258 + $0x24] sm:$0x1]
      %v5164 = vld [vmem:[%s1258 + $0x28] sm:$0xf]
      %v5165 = vld [vmem:[%s1258 + $0x2c] sm:$0x1]
      %v5166 = vld [vmem:[%s1258 + $0x30] sm:$0xf]
      %v5167 = vld [vmem:[%s1258 + $0x34] sm:$0x1]
      %v5168 = vld [vmem:[%s1258 + $0x38] sm:$0xf]
      %v5169 = vld [vmem:[%s1258 + $0x3c] sm:$0x1]
      %v5171 = vshrl.u32 %v5154, 16
      %v5173 = vrot.slane %v5171, 4
      %v5174 = vshll.u32 %v5154, 16
      %v5176 = vrot.slane %v5174, 5
      %v5177 = vor.u32 %v5173, %v5176
      %v5178 = vrot.slane %v5177, 4
      %v5180 = vshll.u32 %v5155, 16
      %v5182 = vrot.slane %v5180, 5
      %v5183 = vsel %vm1649, %v5178, %v5182
      %v5185 = vshrl.u32 %v5156, 16
      %v5187 = vrot.slane %v5185, 4
      %v5188 = vshll.u32 %v5156, 16
      %v5190 = vrot.slane %v5188, 5
      %v5191 = vor.u32 %v5187, %v5190
      %v5192 = vrot.slane %v5191, 4
      %v5194 = vshll.u32 %v5157, 16
      %v5196 = vrot.slane %v5194, 5
      %v5197 = vsel %vm1649, %v5192, %v5196
      %v5199 = vshrl.u32 %v5158, 16
      %v5201 = vrot.slane %v5199, 4
      %v5202 = vshll.u32 %v5158, 16
      %v5204 = vrot.slane %v5202, 5
      %v5205 = vor.u32 %v5201, %v5204
      %v5206 = vrot.slane %v5205, 4
      %v5208 = vshll.u32 %v5159, 16
      %v5210 = vrot.slane %v5208, 5
      %v5211 = vsel %vm1649, %v5206, %v5210
      %v5213 = vshrl.u32 %v5160, 16
      %v5215 = vrot.slane %v5213, 4
      %v5216 = vshll.u32 %v5160, 16
      %v5218 = vrot.slane %v5216, 5
      %v5219 = vor.u32 %v5215, %v5218
      %v5220 = vrot.slane %v5219, 4
      %v5222 = vshll.u32 %v5161, 16
      %v5224 = vrot.slane %v5222, 5
      %v5225 = vsel %vm1649, %v5220, %v5224
      %v5227 = vshrl.u32 %v5162, 16
      %v5229 = vrot.slane %v5227, 4
      %v5230 = vshll.u32 %v5162, 16
      %v5232 = vrot.slane %v5230, 5
      %v5233 = vor.u32 %v5229, %v5232
      %v5234 = vrot.slane %v5233, 4
      %v5236 = vshll.u32 %v5163, 16
      %v5238 = vrot.slane %v5236, 5
      %v5239 = vsel %vm1649, %v5234, %v5238
      %v5241 = vshrl.u32 %v5164, 16
      %v5243 = vrot.slane %v5241, 4
      %v5244 = vshll.u32 %v5164, 16
      %v5246 = vrot.slane %v5244, 5
      %v5247 = vor.u32 %v5243, %v5246
      %v5248 = vrot.slane %v5247, 4
      %v5250 = vshll.u32 %v5165, 16
      %v5252 = vrot.slane %v5250, 5
      %v5253 = vsel %vm1649, %v5248, %v5252
      %v5255 = vshrl.u32 %v5166, 16
      %v5257 = vrot.slane %v5255, 4
      %v5258 = vshll.u32 %v5166, 16
      %v5260 = vrot.slane %v5258, 5
      %v5261 = vor.u32 %v5257, %v5260
      %v5262 = vrot.slane %v5261, 4
      %v5264 = vshll.u32 %v5167, 16
      %v5266 = vrot.slane %v5264, 5
      %v5267 = vsel %vm1649, %v5262, %v5266
      %v5269 = vshrl.u32 %v5168, 16
      %v5271 = vrot.slane %v5269, 4
      %v5272 = vshll.u32 %v5168, 16
      %v5274 = vrot.slane %v5272, 5
      %v5275 = vor.u32 %v5271, %v5274
      %v5276 = vrot.slane %v5275, 4
      %v5278 = vshll.u32 %v5169, 16
      %v5280 = vrot.slane %v5278, 5
      %v5281 = vsel %vm1649, %v5276, %v5280
      %5282 = vrot.lane.b32.xlu0 %v5183, 4
      %v5283 = vpop.permute.xlu0 %5282
      %5284 = vrot.lane.b32.xlu0 %v5197, 4
      %v5285 = vpop.permute.xlu0 %5284
      %5286 = vrot.lane.b32.xlu0 %v5211, 4
      %v5287 = vpop.permute.xlu0 %5286
      %5288 = vrot.lane.b32.xlu0 %v5225, 4
      %v5289 = vpop.permute.xlu0 %5288
      %5290 = vrot.lane.b32.xlu0 %v5239, 4
      %v5291 = vpop.permute.xlu0 %5290
      %5292 = vrot.lane.b32.xlu0 %v5253, 4
      %v5293 = vpop.permute.xlu0 %5292
      %5294 = vrot.lane.b32.xlu0 %v5267, 4
      %v5295 = vpop.permute.xlu0 %5294
      %5296 = vrot.lane.b32.xlu0 %v5281, 4
      %v5297 = vpop.permute.xlu0 %5296
      %5306 = vst.msk [vmem:[%s5145] sm:$0xf] %vm1786, %v5283
      %5307 = vst.msk [vmem:[%s5145 + $0x4] sm:$0xf] %vm1786, %v5285
      %5308 = vst.msk [vmem:[%s5145 + $0x8] sm:$0xf] %vm1786, %v5287
      %5309 = vst.msk [vmem:[%s5145 + $0xc] sm:$0xf] %vm1786, %v5289
      %5310 = vst.msk [vmem:[%s5145 + $0x10] sm:$0xf] %vm1786, %v5291
      %5311 = vst.msk [vmem:[%s5145 + $0x14] sm:$0xf] %vm1786, %v5293
      %5312 = vst.msk [vmem:[%s5145 + $0x18] sm:$0xf] %vm1786, %v5295
      %5313 = vst.msk [vmem:[%s5145 + $0x1c] sm:$0xf] %vm1786, %v5297
      %v5314 = vld [vmem:[%s1103] sm:$0xe]
      %v5315 = vld [vmem:[%s1103 + $0x4] sm:$0x1]
      %v5316 = vld [vmem:[%s1103 + $0x8] sm:$0xe]
      %v5317 = vld [vmem:[%s1103 + $0xc] sm:$0x1]
      %v5318 = vld [vmem:[%s1103 + $0x10] sm:$0xe]
      %v5319 = vld [vmem:[%s1103 + $0x14] sm:$0x1]
      %v5320 = vld [vmem:[%s1103 + $0x18] sm:$0xe]
      %v5321 = vld [vmem:[%s1103 + $0x1c] sm:$0x1]
      %v5322 = vld [vmem:[%s1103 + $0x20] sm:$0xe]
      %v5323 = vld [vmem:[%s1103 + $0x24] sm:$0x1]
      %v5324 = vld [vmem:[%s1103 + $0x28] sm:$0xe]
      %v5325 = vld [vmem:[%s1103 + $0x2c] sm:$0x1]
      %v5326 = vld [vmem:[%s1103 + $0x30] sm:$0xe]
      %v5327 = vld [vmem:[%s1103 + $0x34] sm:$0x1]
      %v5328 = vld [vmem:[%s1103 + $0x38] sm:$0xe]
      %v5329 = vld [vmem:[%s1103 + $0x3c] sm:$0x1]
      %v5346 = vrot.slane %v5314, 5
      %v5347 = vrot.slane %v5346, 4
      %v5348 = vrot.slane %v5315, 5
      %v5349 = vsel %vm3037, %v5347, %v5348
      %v5350 = vrot.slane %v5316, 5
      %v5351 = vrot.slane %v5350, 4
      %v5352 = vrot.slane %v5317, 5
      %v5353 = vsel %vm3037, %v5351, %v5352
      %v5354 = vrot.slane %v5318, 5
      %v5355 = vrot.slane %v5354, 4
      %v5356 = vrot.slane %v5319, 5
      %v5357 = vsel %vm3037, %v5355, %v5356
      %v5358 = vrot.slane %v5320, 5
      %v5359 = vrot.slane %v5358, 4
      %v5360 = vrot.slane %v5321, 5
      %v5361 = vsel %vm3037, %v5359, %v5360
      %v5362 = vrot.slane %v5322, 5
      %v5363 = vrot.slane %v5362, 4
      %v5364 = vrot.slane %v5323, 5
      %v5365 = vsel %vm3037, %v5363, %v5364
      %v5366 = vrot.slane %v5324, 5
      %v5367 = vrot.slane %v5366, 4
      %v5368 = vrot.slane %v5325, 5
      %v5369 = vsel %vm3037, %v5367, %v5368
      %v5370 = vrot.slane %v5326, 5
      %v5371 = vrot.slane %v5370, 4
      %v5372 = vrot.slane %v5327, 5
      %v5373 = vsel %vm3037, %v5371, %v5372
      %v5374 = vrot.slane %v5328, 5
      %v5375 = vrot.slane %v5374, 4
      %v5376 = vrot.slane %v5329, 5
      %v5377 = vsel %vm3037, %v5375, %v5376
      %5378 = vrot.lane.b32.xlu0 %v5349, 8
      %v5379 = vpop.permute.xlu0 %5378
      %5380 = vrot.lane.b32.xlu0 %v5353, 8
      %v5381 = vpop.permute.xlu0 %5380
      %5382 = vrot.lane.b32.xlu0 %v5357, 8
      %v5383 = vpop.permute.xlu0 %5382
      %5384 = vrot.lane.b32.xlu0 %v5361, 8
      %v5385 = vpop.permute.xlu0 %5384
      %5386 = vrot.lane.b32.xlu0 %v5365, 8
      %v5387 = vpop.permute.xlu0 %5386
      %5388 = vrot.lane.b32.xlu0 %v5369, 8
      %v5389 = vpop.permute.xlu0 %5388
      %5390 = vrot.lane.b32.xlu0 %v5373, 8
      %v5391 = vpop.permute.xlu0 %5390
      %5392 = vrot.lane.b32.xlu0 %v5377, 8
      %v5393 = vpop.permute.xlu0 %5392
      %5402 = vst.msk [vmem:[%s5145] sm:$0xf] %vm1947, %v5379
      %5403 = vst.msk [vmem:[%s5145 + $0x4] sm:$0xf] %vm1947, %v5381
      %5404 = vst.msk [vmem:[%s5145 + $0x8] sm:$0xf] %vm1947, %v5383
      %5405 = vst.msk [vmem:[%s5145 + $0xc] sm:$0xf] %vm1947, %v5385
      %5406 = vst.msk [vmem:[%s5145 + $0x10] sm:$0xf] %vm1947, %v5387
      %5407 = vst.msk [vmem:[%s5145 + $0x14] sm:$0xf] %vm1947, %v5389
      %5408 = vst.msk [vmem:[%s5145 + $0x18] sm:$0xf] %vm1947, %v5391
      %5409 = vst.msk [vmem:[%s5145 + $0x1c] sm:$0xf] %vm1947, %v5393
      %v5410 = vld [vmem:[%s1411] sm:$0xf]
      %v5411 = vld [vmem:[%s1411 + $0x4] sm:$0x1]
      %v5412 = vld [vmem:[%s1411 + $0x8] sm:$0xf]
      %v5413 = vld [vmem:[%s1411 + $0xc] sm:$0x1]
      %v5414 = vld [vmem:[%s1411 + $0x10] sm:$0xf]
      %v5415 = vld [vmem:[%s1411 + $0x14] sm:$0x1]
      %v5416 = vld [vmem:[%s1411 + $0x18] sm:$0xf]
      %v5417 = vld [vmem:[%s1411 + $0x1c] sm:$0x1]
      %v5418 = vld [vmem:[%s1411 + $0x20] sm:$0xf]
      %v5419 = vld [vmem:[%s1411 + $0x24] sm:$0x1]
      %v5420 = vld [vmem:[%s1411 + $0x28] sm:$0xf]
      %v5421 = vld [vmem:[%s1411 + $0x2c] sm:$0x1]
      %v5422 = vld [vmem:[%s1411 + $0x30] sm:$0xf]
      %v5423 = vld [vmem:[%s1411 + $0x34] sm:$0x1]
      %v5424 = vld [vmem:[%s1411 + $0x38] sm:$0xf]
      %v5425 = vld [vmem:[%s1411 + $0x3c] sm:$0x1]
      %v5427 = vshrl.u32 %v5410, 16
      %v5429 = vrot.slane %v5427, 4
      %v5430 = vshll.u32 %v5410, 16
      %v5432 = vrot.slane %v5430, 5
      %v5433 = vor.u32 %v5429, %v5432
      %v5434 = vrot.slane %v5433, 4
      %v5436 = vshll.u32 %v5411, 16
      %v5438 = vrot.slane %v5436, 5
      %v5439 = vsel %vm1649, %v5434, %v5438
      %v5441 = vshrl.u32 %v5412, 16
      %v5443 = vrot.slane %v5441, 4
      %v5444 = vshll.u32 %v5412, 16
      %v5446 = vrot.slane %v5444, 5
      %v5447 = vor.u32 %v5443, %v5446
      %v5448 = vrot.slane %v5447, 4
      %v5450 = vshll.u32 %v5413, 16
      %v5452 = vrot.slane %v5450, 5
      %v5453 = vsel %vm1649, %v5448, %v5452
      %v5455 = vshrl.u32 %v5414, 16
      %v5457 = vrot.slane %v5455, 4
      %v5458 = vshll.u32 %v5414, 16
      %v5460 = vrot.slane %v5458, 5
      %v5461 = vor.u32 %v5457, %v5460
      %v5462 = vrot.slane %v5461, 4
      %v5464 = vshll.u32 %v5415, 16
      %v5466 = vrot.slane %v5464, 5
      %v5467 = vsel %vm1649, %v5462, %v5466
      %v5469 = vshrl.u32 %v5416, 16
      %v5471 = vrot.slane %v5469, 4
      %v5472 = vshll.u32 %v5416, 16
      %v5474 = vrot.slane %v5472, 5
      %v5475 = vor.u32 %v5471, %v5474
      %v5476 = vrot.slane %v5475, 4
      %v5478 = vshll.u32 %v5417, 16
      %v5480 = vrot.slane %v5478, 5
      %v5481 = vsel %vm1649, %v5476, %v5480
      %v5483 = vshrl.u32 %v5418, 16
      %v5485 = vrot.slane %v5483, 4
      %v5486 = vshll.u32 %v5418, 16
      %v5488 = vrot.slane %v5486, 5
      %v5489 = vor.u32 %v5485, %v5488
      %v5490 = vrot.slane %v5489, 4
      %v5492 = vshll.u32 %v5419, 16
      %v5494 = vrot.slane %v5492, 5
      %v5495 = vsel %vm1649, %v5490, %v5494
      %v5497 = vshrl.u32 %v5420, 16
      %v5499 = vrot.slane %v5497, 4
      %v5500 = vshll.u32 %v5420, 16
      %v5502 = vrot.slane %v5500, 5
      %v5503 = vor.u32 %v5499, %v5502
      %v5504 = vrot.slane %v5503, 4
      %v5506 = vshll.u32 %v5421, 16
      %v5508 = vrot.slane %v5506, 5
      %v5509 = vsel %vm1649, %v5504, %v5508
      %v5511 = vshrl.u32 %v5422, 16
      %v5513 = vrot.slane %v5511, 4
      %v5514 = vshll.u32 %v5422, 16
      %v5516 = vrot.slane %v5514, 5
      %v5517 = vor.u32 %v5513, %v5516
      %v5518 = vrot.slane %v5517, 4
      %v5520 = vshll.u32 %v5423, 16
      %v5522 = vrot.slane %v5520, 5
      %v5523 = vsel %vm1649, %v5518, %v5522
      %v5525 = vshrl.u32 %v5424, 16
      %v5527 = vrot.slane %v5525, 4
      %v5528 = vshll.u32 %v5424, 16
      %v5530 = vrot.slane %v5528, 5
      %v5531 = vor.u32 %v5527, %v5530
      %v5532 = vrot.slane %v5531, 4
      %v5534 = vshll.u32 %v5425, 16
      %v5536 = vrot.slane %v5534, 5
      %v5537 = vsel %vm1649, %v5532, %v5536
      %5538 = vrot.lane.b32.xlu0 %v5439, 12
      %v5539 = vpop.permute.xlu0 %5538
      %5540 = vrot.lane.b32.xlu0 %v5453, 12
      %v5541 = vpop.permute.xlu0 %5540
      %5542 = vrot.lane.b32.xlu0 %v5467, 12
      %v5543 = vpop.permute.xlu0 %5542
      %5544 = vrot.lane.b32.xlu0 %v5481, 12
      %v5545 = vpop.permute.xlu0 %5544
      %5546 = vrot.lane.b32.xlu0 %v5495, 12
      %v5547 = vpop.permute.xlu0 %5546
      %5548 = vrot.lane.b32.xlu0 %v5509, 12
      %v5549 = vpop.permute.xlu0 %5548
      %5550 = vrot.lane.b32.xlu0 %v5523, 12
      %v5551 = vpop.permute.xlu0 %5550
      %5552 = vrot.lane.b32.xlu0 %v5537, 12
      %v5553 = vpop.permute.xlu0 %5552
      %5562 = vst.msk [vmem:[%s5145] sm:$0xf] %vm1996, %v5539
      %5563 = vst.msk [vmem:[%s5145 + $0x4] sm:$0xf] %vm1996, %v5541
      %5564 = vst.msk [vmem:[%s5145 + $0x8] sm:$0xf] %vm1996, %v5543
      %5565 = vst.msk [vmem:[%s5145 + $0xc] sm:$0xf] %vm1996, %v5545
      %5566 = vst.msk [vmem:[%s5145 + $0x10] sm:$0xf] %vm1996, %v5547
      %5567 = vst.msk [vmem:[%s5145 + $0x14] sm:$0xf] %vm1996, %v5549
      %5568 = vst.msk [vmem:[%s5145 + $0x18] sm:$0xf] %vm1996, %v5551
      %5569 = vst.msk [vmem:[%s5145 + $0x1c] sm:$0xf] %vm1996, %v5553
      %v5570 = vld [vmem:[%s1564] sm:$0xf]
      %v5571 = vld [vmem:[%s1564 + $0x4] sm:$0x1]
      %v5572 = vld [vmem:[%s1564 + $0x8] sm:$0xf]
      %v5573 = vld [vmem:[%s1564 + $0xc] sm:$0x1]
      %v5574 = vld [vmem:[%s1564 + $0x10] sm:$0xf]
      %v5575 = vld [vmem:[%s1564 + $0x14] sm:$0x1]
      %v5576 = vld [vmem:[%s1564 + $0x18] sm:$0xf]
      %v5577 = vld [vmem:[%s1564 + $0x1c] sm:$0x1]
      %v5578 = vld [vmem:[%s1564 + $0x20] sm:$0xf]
      %v5579 = vld [vmem:[%s1564 + $0x24] sm:$0x1]
      %v5580 = vld [vmem:[%s1564 + $0x28] sm:$0xf]
      %v5581 = vld [vmem:[%s1564 + $0x2c] sm:$0x1]
      %v5582 = vld [vmem:[%s1564 + $0x30] sm:$0xf]
      %v5583 = vld [vmem:[%s1564 + $0x34] sm:$0x1]
      %v5584 = vld [vmem:[%s1564 + $0x38] sm:$0xf]
      %v5585 = vld [vmem:[%s1564 + $0x3c] sm:$0x1]
      %v5587 = vshrl.u32 %v5570, 16
      %v5589 = vrot.slane %v5587, 4
      %v5590 = vshll.u32 %v5570, 16
      %v5592 = vrot.slane %v5590, 5
      %v5593 = vor.u32 %v5589, %v5592
      %v5594 = vrot.slane %v5593, 4
      %v5596 = vshll.u32 %v5571, 16
      %v5598 = vrot.slane %v5596, 5
      %v5599 = vsel %vm1649, %v5594, %v5598
      %v5601 = vshrl.u32 %v5572, 16
      %v5603 = vrot.slane %v5601, 4
      %v5604 = vshll.u32 %v5572, 16
      %v5606 = vrot.slane %v5604, 5
      %v5607 = vor.u32 %v5603, %v5606
      %v5608 = vrot.slane %v5607, 4
      %v5610 = vshll.u32 %v5573, 16
      %v5612 = vrot.slane %v5610, 5
      %v5613 = vsel %vm1649, %v5608, %v5612
      %v5615 = vshrl.u32 %v5574, 16
      %v5617 = vrot.slane %v5615, 4
      %v5618 = vshll.u32 %v5574, 16
      %v5620 = vrot.slane %v5618, 5
      %v5621 = vor.u32 %v5617, %v5620
      %v5622 = vrot.slane %v5621, 4
      %v5624 = vshll.u32 %v5575, 16
      %v5626 = vrot.slane %v5624, 5
      %v5627 = vsel %vm1649, %v5622, %v5626
      %v5629 = vshrl.u32 %v5576, 16
      %v5631 = vrot.slane %v5629, 4
      %v5632 = vshll.u32 %v5576, 16
      %v5634 = vrot.slane %v5632, 5
      %v5635 = vor.u32 %v5631, %v5634
      %v5636 = vrot.slane %v5635, 4
      %v5638 = vshll.u32 %v5577, 16
      %v5640 = vrot.slane %v5638, 5
      %v5641 = vsel %vm1649, %v5636, %v5640
      %v5643 = vshrl.u32 %v5578, 16
      %v5645 = vrot.slane %v5643, 4
      %v5646 = vshll.u32 %v5578, 16
      %v5648 = vrot.slane %v5646, 5
      %v5649 = vor.u32 %v5645, %v5648
      %v5650 = vrot.slane %v5649, 4
      %v5652 = vshll.u32 %v5579, 16
      %v5654 = vrot.slane %v5652, 5
      %v5655 = vsel %vm1649, %v5650, %v5654
      %v5657 = vshrl.u32 %v5580, 16
      %v5659 = vrot.slane %v5657, 4
      %v5660 = vshll.u32 %v5580, 16
      %v5662 = vrot.slane %v5660, 5
      %v5663 = vor.u32 %v5659, %v5662
      %v5664 = vrot.slane %v5663, 4
      %v5666 = vshll.u32 %v5581, 16
      %v5668 = vrot.slane %v5666, 5
      %v5669 = vsel %vm1649, %v5664, %v5668
      %v5671 = vshrl.u32 %v5582, 16
      %v5673 = vrot.slane %v5671, 4
      %v5674 = vshll.u32 %v5582, 16
      %v5676 = vrot.slane %v5674, 5
      %v5677 = vor.u32 %v5673, %v5676
      %v5678 = vrot.slane %v5677, 4
      %v5680 = vshll.u32 %v5583, 16
      %v5682 = vrot.slane %v5680, 5
      %v5683 = vsel %vm1649, %v5678, %v5682
      %v5685 = vshrl.u32 %v5584, 16
      %v5687 = vrot.slane %v5685, 4
      %v5688 = vshll.u32 %v5584, 16
      %v5690 = vrot.slane %v5688, 5
      %v5691 = vor.u32 %v5687, %v5690
      %v5692 = vrot.slane %v5691, 4
      %v5694 = vshll.u32 %v5585, 16
      %v5696 = vrot.slane %v5694, 5
      %v5697 = vsel %vm1649, %v5692, %v5696
      %5698 = vrot.lane.b32.xlu0 %v5599, 16
      %v5699 = vpop.permute.xlu0 %5698
      %5700 = vrot.lane.b32.xlu0 %v5613, 16
      %v5701 = vpop.permute.xlu0 %5700
      %5702 = vrot.lane.b32.xlu0 %v5627, 16
      %v5703 = vpop.permute.xlu0 %5702
      %5704 = vrot.lane.b32.xlu0 %v5641, 16
      %v5705 = vpop.permute.xlu0 %5704
      %5706 = vrot.lane.b32.xlu0 %v5655, 16
      %v5707 = vpop.permute.xlu0 %5706
      %5708 = vrot.lane.b32.xlu0 %v5669, 16
      %v5709 = vpop.permute.xlu0 %5708
      %5710 = vrot.lane.b32.xlu0 %v5683, 16
      %v5711 = vpop.permute.xlu0 %5710
      %5712 = vrot.lane.b32.xlu0 %v5697, 16
      %v5713 = vpop.permute.xlu0 %5712
      %5722 = vst.msk [vmem:[%s5145] sm:$0xf] %vm2157, %v5699
      %5723 = vst.msk [vmem:[%s5145 + $0x4] sm:$0xf] %vm2157, %v5701
      %5724 = vst.msk [vmem:[%s5145 + $0x8] sm:$0xf] %vm2157, %v5703
      %5725 = vst.msk [vmem:[%s5145 + $0xc] sm:$0xf] %vm2157, %v5705
      %5726 = vst.msk [vmem:[%s5145 + $0x10] sm:$0xf] %vm2157, %v5707
      %5727 = vst.msk [vmem:[%s5145 + $0x14] sm:$0xf] %vm2157, %v5709
      %5728 = vst.msk [vmem:[%s5145 + $0x18] sm:$0xf] %vm2157, %v5711
      %5729 = vst.msk [vmem:[%s5145 + $0x1c] sm:$0xf] %vm2157, %v5713
      %v5730 = vld [vmem:[%s1411] sm:$0xe]
      %v5731 = vld [vmem:[%s1411 + $0x4] sm:$0x1]
      %v5732 = vld [vmem:[%s1411 + $0x8] sm:$0xe]
      %v5733 = vld [vmem:[%s1411 + $0xc] sm:$0x1]
      %v5734 = vld [vmem:[%s1411 + $0x10] sm:$0xe]
      %v5735 = vld [vmem:[%s1411 + $0x14] sm:$0x1]
      %v5736 = vld [vmem:[%s1411 + $0x18] sm:$0xe]
      %v5737 = vld [vmem:[%s1411 + $0x1c] sm:$0x1]
      %v5738 = vld [vmem:[%s1411 + $0x20] sm:$0xe]
      %v5739 = vld [vmem:[%s1411 + $0x24] sm:$0x1]
      %v5740 = vld [vmem:[%s1411 + $0x28] sm:$0xe]
      %v5741 = vld [vmem:[%s1411 + $0x2c] sm:$0x1]
      %v5742 = vld [vmem:[%s1411 + $0x30] sm:$0xe]
      %v5743 = vld [vmem:[%s1411 + $0x34] sm:$0x1]
      %v5744 = vld [vmem:[%s1411 + $0x38] sm:$0xe]
      %v5745 = vld [vmem:[%s1411 + $0x3c] sm:$0x1]
      %v5762 = vrot.slane %v5730, 5
      %v5763 = vrot.slane %v5762, 4
      %v5764 = vrot.slane %v5731, 5
      %v5765 = vsel %vm3037, %v5763, %v5764
      %v5766 = vrot.slane %v5732, 5
      %v5767 = vrot.slane %v5766, 4
      %v5768 = vrot.slane %v5733, 5
      %v5769 = vsel %vm3037, %v5767, %v5768
      %v5770 = vrot.slane %v5734, 5
      %v5771 = vrot.slane %v5770, 4
      %v5772 = vrot.slane %v5735, 5
      %v5773 = vsel %vm3037, %v5771, %v5772
      %v5774 = vrot.slane %v5736, 5
      %v5775 = vrot.slane %v5774, 4
      %v5776 = vrot.slane %v5737, 5
      %v5777 = vsel %vm3037, %v5775, %v5776
      %v5778 = vrot.slane %v5738, 5
      %v5779 = vrot.slane %v5778, 4
      %v5780 = vrot.slane %v5739, 5
      %v5781 = vsel %vm3037, %v5779, %v5780
      %v5782 = vrot.slane %v5740, 5
      %v5783 = vrot.slane %v5782, 4
      %v5784 = vrot.slane %v5741, 5
      %v5785 = vsel %vm3037, %v5783, %v5784
      %v5786 = vrot.slane %v5742, 5
      %v5787 = vrot.slane %v5786, 4
      %v5788 = vrot.slane %v5743, 5
      %v5789 = vsel %vm3037, %v5787, %v5788
      %v5790 = vrot.slane %v5744, 5
      %v5791 = vrot.slane %v5790, 4
      %v5792 = vrot.slane %v5745, 5
      %v5793 = vsel %vm3037, %v5791, %v5792
      %5794 = vrot.lane.b32.xlu0 %v5765, 20
      %v5795 = vpop.permute.xlu0 %5794
      %5796 = vrot.lane.b32.xlu0 %v5769, 20
      %v5797 = vpop.permute.xlu0 %5796
      %5798 = vrot.lane.b32.xlu0 %v5773, 20
      %v5799 = vpop.permute.xlu0 %5798
      %5800 = vrot.lane.b32.xlu0 %v5777, 20
      %v5801 = vpop.permute.xlu0 %5800
      %5802 = vrot.lane.b32.xlu0 %v5781, 20
      %v5803 = vpop.permute.xlu0 %5802
      %5804 = vrot.lane.b32.xlu0 %v5785, 20
      %v5805 = vpop.permute.xlu0 %5804
      %5806 = vrot.lane.b32.xlu0 %v5789, 20
      %v5807 = vpop.permute.xlu0 %5806
      %5808 = vrot.lane.b32.xlu0 %v5793, 20
      %v5809 = vpop.permute.xlu0 %5808
      %5818 = vst.msk [vmem:[%s5145] sm:$0xf] %vm2318, %v5795
      %5819 = vst.msk [vmem:[%s5145 + $0x4] sm:$0xf] %vm2318, %v5797
      %5820 = vst.msk [vmem:[%s5145 + $0x8] sm:$0xf] %vm2318, %v5799
      %5821 = vst.msk [vmem:[%s5145 + $0xc] sm:$0xf] %vm2318, %v5801
      %5822 = vst.msk [vmem:[%s5145 + $0x10] sm:$0xf] %vm2318, %v5803
      %5823 = vst.msk [vmem:[%s5145 + $0x14] sm:$0xf] %vm2318, %v5805
      %5824 = vst.msk [vmem:[%s5145 + $0x18] sm:$0xf] %vm2318, %v5807
      %5825 = vst.msk [vmem:[%s5145 + $0x1c] sm:$0xf] %vm2318, %v5809
      %v5826 = vld [vmem:[%s4688] sm:$0xf]
      %v5827 = vld [vmem:[%s4688 + $0x4] sm:$0x1]
      %v5828 = vld [vmem:[%s4688 + $0x8] sm:$0xf]
      %v5829 = vld [vmem:[%s4688 + $0xc] sm:$0x1]
      %v5830 = vld [vmem:[%s4688 + $0x10] sm:$0xf]
      %v5831 = vld [vmem:[%s4688 + $0x14] sm:$0x1]
      %v5832 = vld [vmem:[%s4688 + $0x18] sm:$0xf]
      %v5833 = vld [vmem:[%s4688 + $0x1c] sm:$0x1]
      %v5834 = vld [vmem:[%s4688 + $0x20] sm:$0xf]
      %v5835 = vld [vmem:[%s4688 + $0x24] sm:$0x1]
      %v5836 = vld [vmem:[%s4688 + $0x28] sm:$0xf]
      %v5837 = vld [vmem:[%s4688 + $0x2c] sm:$0x1]
      %v5838 = vld [vmem:[%s4688 + $0x30] sm:$0xf]
      %v5839 = vld [vmem:[%s4688 + $0x34] sm:$0x1]
      %v5840 = vld [vmem:[%s4688 + $0x38] sm:$0xf]
      %v5841 = vld [vmem:[%s4688 + $0x3c] sm:$0x1]
      %v5843 = vshrl.u32 %v5826, 16
      %v5845 = vrot.slane %v5843, 4
      %v5846 = vshll.u32 %v5826, 16
      %v5848 = vrot.slane %v5846, 5
      %v5849 = vor.u32 %v5845, %v5848
      %v5850 = vrot.slane %v5849, 4
      %v5852 = vshll.u32 %v5827, 16
      %v5854 = vrot.slane %v5852, 5
      %v5855 = vsel %vm1649, %v5850, %v5854
      %v5857 = vshrl.u32 %v5828, 16
      %v5859 = vrot.slane %v5857, 4
      %v5860 = vshll.u32 %v5828, 16
      %v5862 = vrot.slane %v5860, 5
      %v5863 = vor.u32 %v5859, %v5862
      %v5864 = vrot.slane %v5863, 4
      %v5866 = vshll.u32 %v5829, 16
      %v5868 = vrot.slane %v5866, 5
      %v5869 = vsel %vm1649, %v5864, %v5868
      %v5871 = vshrl.u32 %v5830, 16
      %v5873 = vrot.slane %v5871, 4
      %v5874 = vshll.u32 %v5830, 16
      %v5876 = vrot.slane %v5874, 5
      %v5877 = vor.u32 %v5873, %v5876
      %v5878 = vrot.slane %v5877, 4
      %v5880 = vshll.u32 %v5831, 16
      %v5882 = vrot.slane %v5880, 5
      %v5883 = vsel %vm1649, %v5878, %v5882
      %v5885 = vshrl.u32 %v5832, 16
      %v5887 = vrot.slane %v5885, 4
      %v5888 = vshll.u32 %v5832, 16
      %v5890 = vrot.slane %v5888, 5
      %v5891 = vor.u32 %v5887, %v5890
      %v5892 = vrot.slane %v5891, 4
      %v5894 = vshll.u32 %v5833, 16
      %v5896 = vrot.slane %v5894, 5
      %v5897 = vsel %vm1649, %v5892, %v5896
      %v5899 = vshrl.u32 %v5834, 16
      %v5901 = vrot.slane %v5899, 4
      %v5902 = vshll.u32 %v5834, 16
      %v5904 = vrot.slane %v5902, 5
      %v5905 = vor.u32 %v5901, %v5904
      %v5906 = vrot.slane %v5905, 4
      %v5908 = vshll.u32 %v5835, 16
      %v5910 = vrot.slane %v5908, 5
      %v5911 = vsel %vm1649, %v5906, %v5910
      %v5913 = vshrl.u32 %v5836, 16
      %v5915 = vrot.slane %v5913, 4
      %v5916 = vshll.u32 %v5836, 16
      %v5918 = vrot.slane %v5916, 5
      %v5919 = vor.u32 %v5915, %v5918
      %v5920 = vrot.slane %v5919, 4
      %v5922 = vshll.u32 %v5837, 16
      %v5924 = vrot.slane %v5922, 5
      %v5925 = vsel %vm1649, %v5920, %v5924
      %v5927 = vshrl.u32 %v5838, 16
      %v5929 = vrot.slane %v5927, 4
      %v5930 = vshll.u32 %v5838, 16
      %v5932 = vrot.slane %v5930, 5
      %v5933 = vor.u32 %v5929, %v5932
      %v5934 = vrot.slane %v5933, 4
      %v5936 = vshll.u32 %v5839, 16
      %v5938 = vrot.slane %v5936, 5
      %v5939 = vsel %vm1649, %v5934, %v5938
      %v5941 = vshrl.u32 %v5840, 16
      %v5943 = vrot.slane %v5941, 4
      %v5944 = vshll.u32 %v5840, 16
      %v5946 = vrot.slane %v5944, 5
      %v5947 = vor.u32 %v5943, %v5946
      %v5948 = vrot.slane %v5947, 4
      %v5950 = vshll.u32 %v5841, 16
      %v5952 = vrot.slane %v5950, 5
      %v5953 = vsel %vm1649, %v5948, %v5952
      %5954 = vrot.lane.b32.xlu0 %v5855, 24
      %v5955 = vpop.permute.xlu0 %5954
      %5956 = vrot.lane.b32.xlu0 %v5869, 24
      %v5957 = vpop.permute.xlu0 %5956
      %5958 = vrot.lane.b32.xlu0 %v5883, 24
      %v5959 = vpop.permute.xlu0 %5958
      %5960 = vrot.lane.b32.xlu0 %v5897, 24
      %v5961 = vpop.permute.xlu0 %5960
      %5962 = vrot.lane.b32.xlu0 %v5911, 24
      %v5963 = vpop.permute.xlu0 %5962
      %5964 = vrot.lane.b32.xlu0 %v5925, 24
      %v5965 = vpop.permute.xlu0 %5964
      %5966 = vrot.lane.b32.xlu0 %v5939, 24
      %v5967 = vpop.permute.xlu0 %5966
      %5968 = vrot.lane.b32.xlu0 %v5953, 24
      %v5969 = vpop.permute.xlu0 %5968
      %5978 = vst.msk [vmem:[%s5145] sm:$0xf] %vm2367, %v5955
      %5979 = vst.msk [vmem:[%s5145 + $0x4] sm:$0xf] %vm2367, %v5957
      %5980 = vst.msk [vmem:[%s5145 + $0x8] sm:$0xf] %vm2367, %v5959
      %5981 = vst.msk [vmem:[%s5145 + $0xc] sm:$0xf] %vm2367, %v5961
      %5982 = vst.msk [vmem:[%s5145 + $0x10] sm:$0xf] %vm2367, %v5963
      %5983 = vst.msk [vmem:[%s5145 + $0x14] sm:$0xf] %vm2367, %v5965
      %5984 = vst.msk [vmem:[%s5145 + $0x18] sm:$0xf] %vm2367, %v5967
      %5985 = vst.msk [vmem:[%s5145 + $0x1c] sm:$0xf] %vm2367, %v5969
      %v5986 = vld [vmem:[%s4639] sm:$0xf]
      %v5987 = vld [vmem:[%s4639 + $0x4] sm:$0x1]
      %v5988 = vld [vmem:[%s4639 + $0x8] sm:$0xf]
      %v5989 = vld [vmem:[%s4639 + $0xc] sm:$0x1]
      %v5990 = vld [vmem:[%s4639 + $0x10] sm:$0xf]
      %v5991 = vld [vmem:[%s4639 + $0x14] sm:$0x1]
      %v5992 = vld [vmem:[%s4639 + $0x18] sm:$0xf]
      %v5993 = vld [vmem:[%s4639 + $0x1c] sm:$0x1]
      %v5994 = vld [vmem:[%s4639 + $0x20] sm:$0xf]
      %v5995 = vld [vmem:[%s4639 + $0x24] sm:$0x1]
      %v5996 = vld [vmem:[%s4639 + $0x28] sm:$0xf]
      %v5997 = vld [vmem:[%s4639 + $0x2c] sm:$0x1]
      %v5998 = vld [vmem:[%s4639 + $0x30] sm:$0xf]
      %v5999 = vld [vmem:[%s4639 + $0x34] sm:$0x1]
      %v6000 = vld [vmem:[%s4639 + $0x38] sm:$0xf]
      %v6001 = vld [vmem:[%s4639 + $0x3c] sm:$0x1]
      %v6003 = vshrl.u32 %v5986, 16
      %v6005 = vrot.slane %v6003, 4
      %v6006 = vshll.u32 %v5986, 16
      %v6008 = vrot.slane %v6006, 5
      %v6009 = vor.u32 %v6005, %v6008
      %v6010 = vrot.slane %v6009, 4
      %v6012 = vshll.u32 %v5987, 16
      %v6014 = vrot.slane %v6012, 5
      %v6015 = vsel %vm1649, %v6010, %v6014
      %v6017 = vshrl.u32 %v5988, 16
      %v6019 = vrot.slane %v6017, 4
      %v6020 = vshll.u32 %v5988, 16
      %v6022 = vrot.slane %v6020, 5
      %v6023 = vor.u32 %v6019, %v6022
      %v6024 = vrot.slane %v6023, 4
      %v6026 = vshll.u32 %v5989, 16
      %v6028 = vrot.slane %v6026, 5
      %v6029 = vsel %vm1649, %v6024, %v6028
      %v6031 = vshrl.u32 %v5990, 16
      %v6033 = vrot.slane %v6031, 4
      %v6034 = vshll.u32 %v5990, 16
      %v6036 = vrot.slane %v6034, 5
      %v6037 = vor.u32 %v6033, %v6036
      %v6038 = vrot.slane %v6037, 4
      %v6040 = vshll.u32 %v5991, 16
      %v6042 = vrot.slane %v6040, 5
      %v6043 = vsel %vm1649, %v6038, %v6042
      %v6045 = vshrl.u32 %v5992, 16
      %v6047 = vrot.slane %v6045, 4
      %v6048 = vshll.u32 %v5992, 16
      %v6050 = vrot.slane %v6048, 5
      %v6051 = vor.u32 %v6047, %v6050
      %v6052 = vrot.slane %v6051, 4
      %v6054 = vshll.u32 %v5993, 16
      %v6056 = vrot.slane %v6054, 5
      %v6057 = vsel %vm1649, %v6052, %v6056
      %v6059 = vshrl.u32 %v5994, 16
      %v6061 = vrot.slane %v6059, 4
      %v6062 = vshll.u32 %v5994, 16
      %v6064 = vrot.slane %v6062, 5
      %v6065 = vor.u32 %v6061, %v6064
      %v6066 = vrot.slane %v6065, 4
      %v6068 = vshll.u32 %v5995, 16
      %v6070 = vrot.slane %v6068, 5
      %v6071 = vsel %vm1649, %v6066, %v6070
      %v6073 = vshrl.u32 %v5996, 16
      %v6075 = vrot.slane %v6073, 4
      %v6076 = vshll.u32 %v5996, 16
      %v6078 = vrot.slane %v6076, 5
      %v6079 = vor.u32 %v6075, %v6078
      %v6080 = vrot.slane %v6079, 4
      %v6082 = vshll.u32 %v5997, 16
      %v6084 = vrot.slane %v6082, 5
      %v6085 = vsel %vm1649, %v6080, %v6084
      %v6087 = vshrl.u32 %v5998, 16
      %v6089 = vrot.slane %v6087, 4
      %v6090 = vshll.u32 %v5998, 16
      %v6092 = vrot.slane %v6090, 5
      %v6093 = vor.u32 %v6089, %v6092
      %v6094 = vrot.slane %v6093, 4
      %v6096 = vshll.u32 %v5999, 16
      %v6098 = vrot.slane %v6096, 5
      %v6099 = vsel %vm1649, %v6094, %v6098
      %v6101 = vshrl.u32 %v6000, 16
      %v6103 = vrot.slane %v6101, 4
      %v6104 = vshll.u32 %v6000, 16
      %v6106 = vrot.slane %v6104, 5
      %v6107 = vor.u32 %v6103, %v6106
      %v6108 = vrot.slane %v6107, 4
      %v6110 = vshll.u32 %v6001, 16
      %v6112 = vrot.slane %v6110, 5
      %v6113 = vsel %vm1649, %v6108, %v6112
      %6114 = vrot.lane.b32.xlu0 %v6015, 28
      %v6115 = vpop.permute.xlu0 %6114
      %6116 = vrot.lane.b32.xlu0 %v6029, 28
      %v6117 = vpop.permute.xlu0 %6116
      %6118 = vrot.lane.b32.xlu0 %v6043, 28
      %v6119 = vpop.permute.xlu0 %6118
      %6120 = vrot.lane.b32.xlu0 %v6057, 28
      %v6121 = vpop.permute.xlu0 %6120
      %6122 = vrot.lane.b32.xlu0 %v6071, 28
      %v6123 = vpop.permute.xlu0 %6122
      %6124 = vrot.lane.b32.xlu0 %v6085, 28
      %v6125 = vpop.permute.xlu0 %6124
      %6126 = vrot.lane.b32.xlu0 %v6099, 28
      %v6127 = vpop.permute.xlu0 %6126
      %6128 = vrot.lane.b32.xlu0 %v6113, 28
      %v6129 = vpop.permute.xlu0 %6128
      %6138 = vst.msk [vmem:[%s5145] sm:$0xf] %vm2528, %v6115
      %6139 = vst.msk [vmem:[%s5145 + $0x4] sm:$0xf] %vm2528, %v6117
      %6140 = vst.msk [vmem:[%s5145 + $0x8] sm:$0xf] %vm2528, %v6119
      %6141 = vst.msk [vmem:[%s5145 + $0xc] sm:$0xf] %vm2528, %v6121
      %6142 = vst.msk [vmem:[%s5145 + $0x10] sm:$0xf] %vm2528, %v6123
      %6143 = vst.msk [vmem:[%s5145 + $0x14] sm:$0xf] %vm2528, %v6125
      %6144 = vst.msk [vmem:[%s5145 + $0x18] sm:$0xf] %vm2528, %v6127
      %6145 = vst.msk [vmem:[%s5145 + $0x1c] sm:$0xf] %vm2528, %v6129
      %v6146 = vld [vmem:[%s4688] sm:$0xe]
      %v6147 = vld [vmem:[%s4688 + $0x4] sm:$0x1]
      %v6148 = vld [vmem:[%s4688 + $0x8] sm:$0xe]
      %v6149 = vld [vmem:[%s4688 + $0xc] sm:$0x1]
      %v6150 = vld [vmem:[%s4688 + $0x10] sm:$0xe]
      %v6151 = vld [vmem:[%s4688 + $0x14] sm:$0x1]
      %v6152 = vld [vmem:[%s4688 + $0x18] sm:$0xe]
      %v6153 = vld [vmem:[%s4688 + $0x1c] sm:$0x1]
      %v6154 = vld [vmem:[%s4688 + $0x20] sm:$0xe]
      %v6155 = vld [vmem:[%s4688 + $0x24] sm:$0x1]
      %v6156 = vld [vmem:[%s4688 + $0x28] sm:$0xe]
      %v6157 = vld [vmem:[%s4688 + $0x2c] sm:$0x1]
      %v6158 = vld [vmem:[%s4688 + $0x30] sm:$0xe]
      %v6159 = vld [vmem:[%s4688 + $0x34] sm:$0x1]
      %v6160 = vld [vmem:[%s4688 + $0x38] sm:$0xe]
      %v6161 = vld [vmem:[%s4688 + $0x3c] sm:$0x1]
      %v6178 = vrot.slane %v6146, 5
      %v6179 = vrot.slane %v6178, 4
      %v6180 = vrot.slane %v6147, 5
      %v6181 = vsel %vm3037, %v6179, %v6180
      %v6182 = vrot.slane %v6148, 5
      %v6183 = vrot.slane %v6182, 4
      %v6184 = vrot.slane %v6149, 5
      %v6185 = vsel %vm3037, %v6183, %v6184
      %v6186 = vrot.slane %v6150, 5
      %v6187 = vrot.slane %v6186, 4
      %v6188 = vrot.slane %v6151, 5
      %v6189 = vsel %vm3037, %v6187, %v6188
      %v6190 = vrot.slane %v6152, 5
      %v6191 = vrot.slane %v6190, 4
      %v6192 = vrot.slane %v6153, 5
      %v6193 = vsel %vm3037, %v6191, %v6192
      %v6194 = vrot.slane %v6154, 5
      %v6195 = vrot.slane %v6194, 4
      %v6196 = vrot.slane %v6155, 5
      %v6197 = vsel %vm3037, %v6195, %v6196
      %v6198 = vrot.slane %v6156, 5
      %v6199 = vrot.slane %v6198, 4
      %v6200 = vrot.slane %v6157, 5
      %v6201 = vsel %vm3037, %v6199, %v6200
      %v6202 = vrot.slane %v6158, 5
      %v6203 = vrot.slane %v6202, 4
      %v6204 = vrot.slane %v6159, 5
      %v6205 = vsel %vm3037, %v6203, %v6204
      %v6206 = vrot.slane %v6160, 5
      %v6207 = vrot.slane %v6206, 4
      %v6208 = vrot.slane %v6161, 5
      %v6209 = vsel %vm3037, %v6207, %v6208
      %6210 = vrot.lane.b32.xlu0 %v6181, 32
      %v6211 = vpop.permute.xlu0 %6210
      %6212 = vrot.lane.b32.xlu0 %v6185, 32
      %v6213 = vpop.permute.xlu0 %6212
      %6214 = vrot.lane.b32.xlu0 %v6189, 32
      %v6215 = vpop.permute.xlu0 %6214
      %6216 = vrot.lane.b32.xlu0 %v6193, 32
      %v6217 = vpop.permute.xlu0 %6216
      %6218 = vrot.lane.b32.xlu0 %v6197, 32
      %v6219 = vpop.permute.xlu0 %6218
      %6220 = vrot.lane.b32.xlu0 %v6201, 32
      %v6221 = vpop.permute.xlu0 %6220
      %6222 = vrot.lane.b32.xlu0 %v6205, 32
      %v6223 = vpop.permute.xlu0 %6222
      %6224 = vrot.lane.b32.xlu0 %v6209, 32
      %v6225 = vpop.permute.xlu0 %6224
      %6234 = vst.msk [vmem:[%s5145] sm:$0xf] %vm2689, %v6211
      %6235 = vst.msk [vmem:[%s5145 + $0x4] sm:$0xf] %vm2689, %v6213
      %6236 = vst.msk [vmem:[%s5145 + $0x8] sm:$0xf] %vm2689, %v6215
      %6237 = vst.msk [vmem:[%s5145 + $0xc] sm:$0xf] %vm2689, %v6217
      %6238 = vst.msk [vmem:[%s5145 + $0x10] sm:$0xf] %vm2689, %v6219
      %6239 = vst.msk [vmem:[%s5145 + $0x14] sm:$0xf] %vm2689, %v6221
      %6240 = vst.msk [vmem:[%s5145 + $0x18] sm:$0xf] %vm2689, %v6223
      %6241 = vst.msk [vmem:[%s5145 + $0x1c] sm:$0xf] %vm2689, %v6225
      %v6242 = vld [vmem:[#allocation3] sm:$0xf]
      %v6243 = vld [vmem:[#allocation3 + $0x4] sm:$0xf]
      %v6244 = vld [vmem:[#allocation3 + $0x8] sm:$0xf]
      %v6245 = vld [vmem:[#allocation3 + $0xc] sm:$0xf]
      %v6246 = vld [vmem:[#allocation3 + $0x10] sm:$0xf]
      %v6247 = vld [vmem:[#allocation3 + $0x14] sm:$0xf]
      %v6248 = vld [vmem:[#allocation3 + $0x18] sm:$0xf]
      %v6249 = vld [vmem:[#allocation3 + $0x1c] sm:$0xf]
      %v6250 = vld [vmem:[#allocation3 + $0x20] sm:$0xf]
      %v6251 = vld [vmem:[#allocation3 + $0x24] sm:$0xf]
      %v6252 = vld [vmem:[#allocation3 + $0x28] sm:$0xf]
      %v6253 = vld [vmem:[#allocation3 + $0x2c] sm:$0xf]
      %v6254 = vld [vmem:[#allocation3 + $0x30] sm:$0xf]
      %v6255 = vld [vmem:[#allocation3 + $0x34] sm:$0xf]
      %v6256 = vld [vmem:[#allocation3 + $0x38] sm:$0xf]
      %v6257 = vld [vmem:[#allocation3 + $0x3c] sm:$0xf]
      %v6258 = vld [vmem:[#allocation3 + $0x40] sm:$0xf]
      %v6259 = vld [vmem:[#allocation3 + $0x44] sm:$0xf]
      %v6260 = vld [vmem:[#allocation3 + $0x48] sm:$0xf]
      %v6261 = vld [vmem:[#allocation3 + $0x4c] sm:$0xf]
      %v6262 = vld [vmem:[#allocation3 + $0x50] sm:$0xf]
      %v6263 = vld [vmem:[#allocation3 + $0x54] sm:$0xf]
      %v6264 = vld [vmem:[#allocation3 + $0x58] sm:$0xf]
      %v6265 = vld [vmem:[#allocation3 + $0x5c] sm:$0xf]
      %v6266 = vld [vmem:[#allocation3 + $0x60] sm:$0xf]
      %v6267 = vld [vmem:[#allocation3 + $0x64] sm:$0xf]
      %v6268 = vld [vmem:[#allocation3 + $0x68] sm:$0xf]
      %v6269 = vld [vmem:[#allocation3 + $0x6c] sm:$0xf]
      %v6270 = vld [vmem:[#allocation3 + $0x70] sm:$0xf]
      %v6271 = vld [vmem:[#allocation3 + $0x74] sm:$0xf]
      %v6272 = vld [vmem:[#allocation3 + $0x78] sm:$0xf]
      %v6273 = vld [vmem:[#allocation3 + $0x7c] sm:$0xf]
      %v6274 = vld [vmem:[%s8] sm:$0xf]
      %v6275 = vld [vmem:[%s8 + $0x4] sm:$0xf]
      %v6276 = vld [vmem:[%s8 + $0x8] sm:$0xf]
      %v6277 = vld [vmem:[%s8 + $0xc] sm:$0xf]
      %v6278 = vld [vmem:[%s8 + $0x10] sm:$0x3]
      %v6311 = vunpack.c.l.b16 %v6242
      %v6312 = vunpack.c.l.b16 %v6243
      %v6313 = vunpack.c.l.b16 %v6244
      %v6314 = vunpack.c.l.b16 %v6245
      %v6315 = vunpack.c.l.b16 %v6246
      %v6316 = vunpack.c.l.b16 %v6247
      %v6317 = vunpack.c.l.b16 %v6248
      %v6318 = vunpack.c.l.b16 %v6249
      %v6319 = vunpack.c.l.b16 %v6250
      %v6320 = vunpack.c.l.b16 %v6251
      %v6321 = vunpack.c.l.b16 %v6252
      %v6322 = vunpack.c.l.b16 %v6253
      %v6323 = vunpack.c.l.b16 %v6254
      %v6324 = vunpack.c.l.b16 %v6255
      %v6325 = vunpack.c.l.b16 %v6256
      %v6326 = vunpack.c.l.b16 %v6257
      %v6327 = vunpack.c.l.b16 %v6258
      %v6328 = vunpack.c.l.b16 %v6259
      %v6329 = vunpack.c.l.b16 %v6260
      %v6330 = vunpack.c.l.b16 %v6261
      %v6331 = vunpack.c.l.b16 %v6262
      %v6332 = vunpack.c.l.b16 %v6263
      %v6333 = vunpack.c.l.b16 %v6264
      %v6334 = vunpack.c.l.b16 %v6265
      %v6335 = vunpack.c.l.b16 %v6266
      %v6336 = vunpack.c.l.b16 %v6267
      %v6337 = vunpack.c.l.b16 %v6268
      %v6338 = vunpack.c.l.b16 %v6269
      %v6339 = vunpack.c.l.b16 %v6270
      %v6340 = vunpack.c.l.b16 %v6271
      %v6341 = vunpack.c.l.b16 %v6272
      %v6342 = vunpack.c.l.b16 %v6273
      %v6343 = vpack.c.b16 %v6312, %v6311
      %v6344 = vpack.c.b16 %v6314, %v6313
      %v6345 = vpack.c.b16 %v6316, %v6315
      %v6346 = vpack.c.b16 %v6318, %v6317
      %v6347 = vpack.c.b16 %v6320, %v6319
      %v6348 = vpack.c.b16 %v6322, %v6321
      %v6349 = vpack.c.b16 %v6324, %v6323
      %v6350 = vpack.c.b16 %v6326, %v6325
      %v6351 = vpack.c.b16 %v6328, %v6327
      %v6352 = vpack.c.b16 %v6330, %v6329
      %v6353 = vpack.c.b16 %v6332, %v6331
      %v6354 = vpack.c.b16 %v6334, %v6333
      %v6355 = vpack.c.b16 %v6336, %v6335
      %v6356 = vpack.c.b16 %v6338, %v6337
      %v6357 = vpack.c.b16 %v6340, %v6339
      %v6358 = vpack.c.b16 %v6342, %v6341
      %v6364 = vunpack.c.l.b16 %v6274
      %v6365 = vunpack.c.l.b16 %v6275
      %v6366 = vunpack.c.l.b16 %v6276
      %v6367 = vunpack.c.l.b16 %v6277
      %v6368 = vunpack.c.l.b16 %v6278
      %v6369 = vpack.c.b16 %v6365, %v6364
      %v6370 = vpack.c.b16 %v6367, %v6366
      %v6371 = vpack.c.b16 %v6368, %v6368
      %vm6374 = vcmask 293888
      %v6376 = vsel %vm6374, %v6343, 0
      %v6379 = vsel %vm6374, %v6344, 0
      %v6382 = vsel %vm6374, %v6345, 0
      %v6385 = vsel %vm6374, %v6346, 0
      %v6388 = vsel %vm6374, %v6347, 0
      %v6391 = vsel %vm6374, %v6348, 0
      %v6394 = vsel %vm6374, %v6349, 0
      %v6397 = vsel %vm6374, %v6350, 0
      %v6400 = vsel %vm6374, %v6351, 0
      %v6403 = vsel %vm6374, %v6352, 0
      %v6406 = vsel %vm6374, %v6353, 0
      %v6409 = vsel %vm6374, %v6354, 0
      %v6412 = vsel %vm6374, %v6355, 0
      %v6415 = vsel %vm6374, %v6356, 0
      %v6418 = vsel %vm6374, %v6357, 0
      %v6421 = vsel %vm6374, %v6358, 0
      %vm6423 = vcmask 1041408
      %v6425 = vsel %vm6423, %v6371, 0
      %6427 = vmatprep.subr.bf16.mxu0 0
      %6428 = vmatpush1.bf16.msra.mxu0 0
      %6429 = vmatprep.subr.bf16.mxu0 0
      %6430 = vmatpush1.bf16.msra.mxu0 0
      %6431 = vmatprep.subr.bf16.mxu0 0
      %6432 = vmatpush1.bf16.msra.mxu0 0
      %6433 = vmatprep.subr.bf16.mxu0 0
      %6434 = vmatpush1.bf16.msra.mxu0 0
      %6435 = vmatprep.subr.bf16.mxu0 0
      %6436 = vmatpush1.bf16.msra.mxu0 0
      %6437 = vmatprep.subr.bf16.mxu0 0
      %6438 = vmatpush1.bf16.msra.mxu0 %v6425
      %6439 = vmatprep.subr.bf16.mxu0 0
      %6440 = vmatpush1.bf16.msra.mxu0 %v6370
      %6441 = vmatprep.subr.bf16.mxu0 0
      %6442 = vmatpush1.bf16.msra.mxu0 %v6369
      %6443 = vmatprep.subr.bf16.mxu0 0
      %6444 = vmatpush2.bf16.msra.mxu0 0
      %6445 = vmatprep.subr.bf16.mxu0 0
      %6446 = vmatpush2.bf16.msra.mxu0 0
      %6447 = vmatprep.subr.bf16.mxu0 0
      %6448 = vmatpush2.bf16.msra.mxu0 0
      %6449 = vmatprep.subr.bf16.mxu0 0
      %6450 = vmatpush2.bf16.msra.mxu0 0
      %6451 = vmatprep.subr.bf16.mxu0 0
      %6452 = vmatpush2.bf16.msra.mxu0 0
      %6453 = vmatprep.subr.bf16.mxu0 0
      %6454 = vmatpush2.bf16.msra.mxu0 0
      %6455 = vmatprep.subr.bf16.mxu0 0
      %6456 = vmatpush2.bf16.msra.mxu0 0
      %6457 = vmatprep.subr.bf16.mxu0 0
      %6458 = vmatpush2.bf16.msra.mxu0 0
      %6459 = vmatprep.mubr.bf16.mxu0 0
      %6460 = vmatmul.mubr.bf16.gmra.mxu0 %v6376
      %v6461 = vpop.f32.mrf.mxu0
      %v6462 = vadd.f32 0.0, %v6461
      %v6463 = vpop.f32.mrf.mxu0
      %v6464 = vpop.f32.mrf.mxu0
      %v6465 = vadd.f32 0.0, %v6464
      %v6466 = vpop.f32.mrf.mxu0
      %6467 = vmatprep.mubr.bf16.mxu0 0
      %6468 = vmatmul.mubr.bf16.gmra.mxu0 %v6379
      %v6469 = vpop.f32.mrf.mxu0
      %v6470 = vadd.f32 0.0, %v6469
      %v6471 = vpop.f32.mrf.mxu0
      %v6472 = vpop.f32.mrf.mxu0
      %v6473 = vadd.f32 0.0, %v6472
      %v6474 = vpop.f32.mrf.mxu0
      %6475 = vmatprep.mubr.bf16.mxu0 0
      %6476 = vmatmul.mubr.bf16.gmra.mxu0 %v6382
      %v6477 = vpop.f32.mrf.mxu0
      %v6478 = vadd.f32 0.0, %v6477
      %v6479 = vpop.f32.mrf.mxu0
      %v6480 = vpop.f32.mrf.mxu0
      %v6481 = vadd.f32 0.0, %v6480
      %v6482 = vpop.f32.mrf.mxu0
      %6483 = vmatprep.mubr.bf16.mxu0 0
      %6484 = vmatmul.mubr.bf16.gmra.mxu0 %v6385
      %v6485 = vpop.f32.mrf.mxu0
      %v6486 = vadd.f32 0.0, %v6485
      %v6487 = vpop.f32.mrf.mxu0
      %v6488 = vpop.f32.mrf.mxu0
      %v6489 = vadd.f32 0.0, %v6488
      %v6490 = vpop.f32.mrf.mxu0
      %6491 = vmatprep.mubr.bf16.mxu0 0
      %6492 = vmatmul.mubr.bf16.gmra.mxu0 %v6388
      %v6493 = vpop.f32.mrf.mxu0
      %v6494 = vadd.f32 0.0, %v6493
      %v6495 = vpop.f32.mrf.mxu0
      %v6496 = vpop.f32.mrf.mxu0
      %v6497 = vadd.f32 0.0, %v6496
      %v6498 = vpop.f32.mrf.mxu0
      %6499 = vmatprep.mubr.bf16.mxu0 0
      %6500 = vmatmul.mubr.bf16.gmra.mxu0 %v6391
      %v6501 = vpop.f32.mrf.mxu0
      %v6502 = vadd.f32 0.0, %v6501
      %v6503 = vpop.f32.mrf.mxu0
      %v6504 = vpop.f32.mrf.mxu0
      %v6505 = vadd.f32 0.0, %v6504
      %v6506 = vpop.f32.mrf.mxu0
      %6507 = vmatprep.mubr.bf16.mxu0 0
      %6508 = vmatmul.mubr.bf16.gmra.mxu0 %v6394
      %v6509 = vpop.f32.mrf.mxu0
      %v6510 = vadd.f32 0.0, %v6509
      %v6511 = vpop.f32.mrf.mxu0
      %v6512 = vpop.f32.mrf.mxu0
      %v6513 = vadd.f32 0.0, %v6512
      %v6514 = vpop.f32.mrf.mxu0
      %6515 = vmatprep.mubr.bf16.mxu0 0
      %6516 = vmatmul.mubr.bf16.gmra.mxu0 %v6397
      %v6517 = vpop.f32.mrf.mxu0
      %v6518 = vadd.f32 0.0, %v6517
      %v6519 = vpop.f32.mrf.mxu0
      %v6520 = vpop.f32.mrf.mxu0
      %v6521 = vadd.f32 0.0, %v6520
      %v6522 = vpop.f32.mrf.mxu0
      %6523 = vmatprep.mubr.bf16.mxu0 0
      %6524 = vmatmul.mubr.bf16.gmra.mxu0 %v6400
      %v6525 = vpop.f32.mrf.mxu0
      %v6526 = vadd.f32 0.0, %v6525
      %v6527 = vpop.f32.mrf.mxu0
      %v6528 = vpop.f32.mrf.mxu0
      %v6529 = vadd.f32 0.0, %v6528
      %v6530 = vpop.f32.mrf.mxu0
      %6531 = vmatprep.mubr.bf16.mxu0 0
      %6532 = vmatmul.mubr.bf16.gmra.mxu0 %v6403
      %v6533 = vpop.f32.mrf.mxu0
      %v6534 = vadd.f32 0.0, %v6533
      %v6535 = vpop.f32.mrf.mxu0
      %v6536 = vpop.f32.mrf.mxu0
      %v6537 = vadd.f32 0.0, %v6536
      %v6538 = vpop.f32.mrf.mxu0
      %6539 = vmatprep.mubr.bf16.mxu0 0
      %6540 = vmatmul.mubr.bf16.gmra.mxu0 %v6406
      %v6541 = vpop.f32.mrf.mxu0
      %v6542 = vadd.f32 0.0, %v6541
      %v6543 = vpop.f32.mrf.mxu0
      %v6544 = vpop.f32.mrf.mxu0
      %v6545 = vadd.f32 0.0, %v6544
      %v6546 = vpop.f32.mrf.mxu0
      %6547 = vmatprep.mubr.bf16.mxu0 0
      %6548 = vmatmul.mubr.bf16.gmra.mxu0 %v6409
      %v6549 = vpop.f32.mrf.mxu0
      %v6550 = vadd.f32 0.0, %v6549
      %v6551 = vpop.f32.mrf.mxu0
      %v6552 = vpop.f32.mrf.mxu0
      %v6553 = vadd.f32 0.0, %v6552
      %v6554 = vpop.f32.mrf.mxu0
      %6555 = vmatprep.mubr.bf16.mxu0 0
      %6556 = vmatmul.mubr.bf16.gmra.mxu0 %v6412
      %v6557 = vpop.f32.mrf.mxu0
      %v6558 = vadd.f32 0.0, %v6557
      %v6559 = vpop.f32.mrf.mxu0
      %v6560 = vpop.f32.mrf.mxu0
      %v6561 = vadd.f32 0.0, %v6560
      %v6562 = vpop.f32.mrf.mxu0
      %6563 = vmatprep.mubr.bf16.mxu0 0
      %6564 = vmatmul.mubr.bf16.gmra.mxu0 %v6415
      %v6565 = vpop.f32.mrf.mxu0
      %v6566 = vadd.f32 0.0, %v6565
      %v6567 = vpop.f32.mrf.mxu0
      %v6568 = vpop.f32.mrf.mxu0
      %v6569 = vadd.f32 0.0, %v6568
      %v6570 = vpop.f32.mrf.mxu0
      %6571 = vmatprep.mubr.bf16.mxu0 0
      %6572 = vmatmul.mubr.bf16.gmra.mxu0 %v6418
      %v6573 = vpop.f32.mrf.mxu0
      %v6574 = vadd.f32 0.0, %v6573
      %v6575 = vpop.f32.mrf.mxu0
      %v6576 = vpop.f32.mrf.mxu0
      %v6577 = vadd.f32 0.0, %v6576
      %v6578 = vpop.f32.mrf.mxu0
      %6579 = vmatprep.mubr.bf16.mxu0 0
      %6580 = vmatmul.mubr.bf16.gmra.mxu0 %v6421
      %v6581 = vpop.f32.mrf.mxu0
      %v6582 = vadd.f32 0.0, %v6581
      %v6583 = vpop.f32.mrf.mxu0
      %v6584 = vpop.f32.mrf.mxu0
      %v6585 = vadd.f32 0.0, %v6584
      %v6586 = vpop.f32.mrf.mxu0
      %6587 = vdwg.mxu0
      %v6588 = vmax.f32 %v6462, %v6494
      %v6589 = vmax.f32 %v6465, %v6497
      %v6590 = vmax.f32 %v6470, %v6502
      %v6591 = vmax.f32 %v6473, %v6505
      %v6592 = vmax.f32 %v6478, %v6510
      %v6593 = vmax.f32 %v6481, %v6513
      %v6594 = vmax.f32 %v6486, %v6518
      %v6595 = vmax.f32 %v6489, %v6521
      %v6596 = vmax.f32 %v6526, %v6558
      %v6597 = vmax.f32 %v6529, %v6561
      %v6598 = vmax.f32 %v6534, %v6566
      %v6599 = vmax.f32 %v6537, %v6569
      %v6600 = vmax.f32 %v6542, %v6574
      %v6601 = vmax.f32 %v6545, %v6577
      %v6602 = vmax.f32 %v6550, %v6582
      %v6603 = vmax.f32 %v6553, %v6585
      %v6604 = vmax.f32 %v6588, %v6596
      %v6605 = vmax.f32 %v6589, %v6597
      %v6606 = vmax.f32 %v6590, %v6598
      %v6607 = vmax.f32 %v6591, %v6599
      %v6608 = vmax.f32 %v6592, %v6600
      %v6609 = vmax.f32 %v6593, %v6601
      %v6610 = vmax.f32 %v6594, %v6602
      %v6611 = vmax.f32 %v6595, %v6603
      %v6612 = vld [vmem:[%s9] sm:$0x1]
      %v6614 = vlaneseq
      %v6615 = vshrl.u32 %v6614, 7
      %v6616 = vsub.s32 0, %v6615
      %v6617 = vrot.slane %v6612, %v6616
      %v6619 = vadd.f32 %v6604, %v6617
      %v6620 = vadd.f32 %v6605, %v6617
      %v6621 = vadd.f32 %v6606, %v6617
      %v6622 = vadd.f32 %v6607, %v6617
      %v6623 = vadd.f32 %v6608, %v6617
      %v6624 = vadd.f32 %v6609, %v6617
      %v6625 = vadd.f32 %v6610, %v6617
      %v6626 = vadd.f32 %v6611, %v6617
      %v6627 = vld [vmem:[%s484] sm:$0xff]
      %v6628 = vld [vmem:[%s484 + $0x8] sm:$0xff]
      %v6629 = vld [vmem:[%s484 + $0x10] sm:$0xff]
      %v6630 = vld [vmem:[%s484 + $0x18] sm:$0xff]
      %v6631 = vld [vmem:[%s484 + $0x20] sm:$0xff]
      %v6632 = vld [vmem:[%s484 + $0x28] sm:$0xff]
      %v6633 = vld [vmem:[%s484 + $0x30] sm:$0xff]
      %v6634 = vld [vmem:[%s484 + $0x38] sm:$0xff]
      %v6635 = vld [vmem:[%s4] sm:$0x1]
      %v6637 = vlaneseq
      %v6638 = vshrl.u32 %v6637, 7
      %v6639 = vsub.s32 0, %v6638
      %v6640 = vrot.slane %v6635, %v6639
      %v6642 = vmul.f32 %v6627, %v6640
      %v6643 = vmul.f32 %v6628, %v6640
      %v6644 = vmul.f32 %v6629, %v6640
      %v6645 = vmul.f32 %v6630, %v6640
      %v6646 = vmul.f32 %v6631, %v6640
      %v6647 = vmul.f32 %v6632, %v6640
      %v6648 = vmul.f32 %v6633, %v6640
      %v6649 = vmul.f32 %v6634, %v6640
      %v6650 = vld [vmem:[%s5] sm:$0x1]
      %v6652 = vlaneseq
      %v6653 = vshrl.u32 %v6652, 7
      %v6654 = vsub.s32 0, %v6653
      %v6655 = vrot.slane %v6650, %v6654
      %v6657 = vadd.f32 %v6642, %v6655
      %v6658 = vadd.f32 %v6643, %v6655
      %v6659 = vadd.f32 %v6644, %v6655
      %v6660 = vadd.f32 %v6645, %v6655
      %v6661 = vadd.f32 %v6646, %v6655
      %v6662 = vadd.f32 %v6647, %v6655
      %v6663 = vadd.f32 %v6648, %v6655
      %v6664 = vadd.f32 %v6649, %v6655
      %v6665 = vmax.f32 %v6657, 0.0
      %v6666 = vmax.f32 %v6658, 0.0
      %v6667 = vmax.f32 %v6659, 0.0
      %v6668 = vmax.f32 %v6660, 0.0
      %v6669 = vmax.f32 %v6661, 0.0
      %v6670 = vmax.f32 %v6662, 0.0
      %v6671 = vmax.f32 %v6663, 0.0
      %v6672 = vmax.f32 %v6664, 0.0
      %v6673 = vpack.c.bf16 %v6665, %v6665
      %v6674 = vpack.c.bf16 %v6666, %v6666
      %v6675 = vpack.c.bf16 %v6667, %v6667
      %v6676 = vpack.c.bf16 %v6668, %v6668
      %v6677 = vpack.c.bf16 %v6669, %v6669
      %v6678 = vpack.c.bf16 %v6670, %v6670
      %v6679 = vpack.c.bf16 %v6671, %v6671
      %v6680 = vpack.c.bf16 %v6672, %v6672
      %v6689 = vunpack.c.l.b16 %v6673
      %v6690 = vunpack.c.l.b16 %v6674
      %v6691 = vunpack.c.l.b16 %v6675
      %v6692 = vunpack.c.l.b16 %v6676
      %v6693 = vunpack.c.l.b16 %v6677
      %v6694 = vunpack.c.l.b16 %v6678
      %v6695 = vunpack.c.l.b16 %v6679
      %v6696 = vunpack.c.l.b16 %v6680
      %v6697 = vpack.c.b16 %v6689, %v6689
      %v6698 = vpack.c.b16 %v6690, %v6690
      %v6699 = vpack.c.b16 %v6691, %v6691
      %v6700 = vpack.c.b16 %v6692, %v6692
      %v6701 = vpack.c.b16 %v6693, %v6693
      %v6702 = vpack.c.b16 %v6694, %v6694
      %v6703 = vpack.c.b16 %v6695, %v6695
      %v6704 = vpack.c.b16 %v6696, %v6696
      %v6706 = vshrl.u32 %v6697, 16
      %v6708 = vrot.slane %v6706, 7
      %v6709 = vshll.u32 %v6697, 16
      %v6711 = vor.u32 %v6708, %v6709
      %v6712 = vrot.slane %v6708, 4
      %v6714 = vshrl.u32 %v6698, 16
      %v6716 = vrot.slane %v6714, 7
      %v6717 = vshll.u32 %v6698, 16
      %v6719 = vor.u32 %v6716, %v6717
      %v6720 = vrot.slane %v6716, 4
      %v6722 = vshrl.u32 %v6699, 16
      %v6724 = vrot.slane %v6722, 7
      %v6725 = vshll.u32 %v6699, 16
      %v6727 = vor.u32 %v6724, %v6725
      %v6728 = vrot.slane %v6724, 4
      %v6730 = vshrl.u32 %v6700, 16
      %v6732 = vrot.slane %v6730, 7
      %v6733 = vshll.u32 %v6700, 16
      %v6735 = vor.u32 %v6732, %v6733
      %v6736 = vrot.slane %v6732, 4
      %v6738 = vshrl.u32 %v6701, 16
      %v6740 = vrot.slane %v6738, 7
      %v6741 = vshll.u32 %v6701, 16
      %v6743 = vor.u32 %v6740, %v6741
      %v6744 = vrot.slane %v6740, 4
      %v6746 = vshrl.u32 %v6702, 16
      %v6748 = vrot.slane %v6746, 7
      %v6749 = vshll.u32 %v6702, 16
      %v6751 = vor.u32 %v6748, %v6749
      %v6752 = vrot.slane %v6748, 4
      %v6754 = vshrl.u32 %v6703, 16
      %v6756 = vrot.slane %v6754, 7
      %v6757 = vshll.u32 %v6703, 16
      %v6759 = vor.u32 %v6756, %v6757
      %v6760 = vrot.slane %v6756, 4
      %v6762 = vshrl.u32 %v6704, 16
      %v6764 = vrot.slane %v6762, 7
      %v6765 = vshll.u32 %v6704, 16
      %v6767 = vor.u32 %v6764, %v6765
      %v6768 = vrot.slane %v6764, 4
      %s6785 = scalar_lea.vmem [#allocation4], 8
      %vm6786 = vcmask 44032
      %vm6787 = vmand %vm6786, %vm633
      %v6788 = vld [vmem:[%s6785] sm:$0xf]
      %v6789 = vsel %vm6787, %v6711, %v6788
      %6790 = vst [vmem:[%s6785] sm:$0xf] %v6789
      %v6791 = vld [vmem:[%s6785 + $0x4] sm:$0x1]
      %v6792 = vsel %vm763, %v6712, %v6791
      %6793 = vst [vmem:[%s6785 + $0x4] sm:$0x1] %v6792
      %v6794 = vld [vmem:[%s6785 + $0x8] sm:$0xf]
      %v6795 = vsel %vm6787, %v6719, %v6794
      %6796 = vst [vmem:[%s6785 + $0x8] sm:$0xf] %v6795
      %v6797 = vld [vmem:[%s6785 + $0xc] sm:$0x1]
      %v6798 = vsel %vm763, %v6720, %v6797
      %6799 = vst [vmem:[%s6785 + $0xc] sm:$0x1] %v6798
      %v6800 = vld [vmem:[%s6785 + $0x10] sm:$0xf]
      %v6801 = vsel %vm6787, %v6727, %v6800
      %6802 = vst [vmem:[%s6785 + $0x10] sm:$0xf] %v6801
      %v6803 = vld [vmem:[%s6785 + $0x14] sm:$0x1]
      %v6804 = vsel %vm763, %v6728, %v6803
      %6805 = vst [vmem:[%s6785 + $0x14] sm:$0x1] %v6804
      %v6806 = vld [vmem:[%s6785 + $0x18] sm:$0xf]
      %v6807 = vsel %vm6787, %v6735, %v6806
      %6808 = vst [vmem:[%s6785 + $0x18] sm:$0xf] %v6807
      %v6809 = vld [vmem:[%s6785 + $0x1c] sm:$0x1]
      %v6810 = vsel %vm763, %v6736, %v6809
      %6811 = vst [vmem:[%s6785 + $0x1c] sm:$0x1] %v6810
      %v6812 = vld [vmem:[%s6785 + $0x20] sm:$0xf]
      %v6813 = vsel %vm6787, %v6743, %v6812
      %6814 = vst [vmem:[%s6785 + $0x20] sm:$0xf] %v6813
      %v6815 = vld [vmem:[%s6785 + $0x24] sm:$0x1]
      %v6816 = vsel %vm763, %v6744, %v6815
      %6817 = vst [vmem:[%s6785 + $0x24] sm:$0x1] %v6816
      %v6818 = vld [vmem:[%s6785 + $0x28] sm:$0xf]
      %v6819 = vsel %vm6787, %v6751, %v6818
      %6820 = vst [vmem:[%s6785 + $0x28] sm:$0xf] %v6819
      %v6821 = vld [vmem:[%s6785 + $0x2c] sm:$0x1]
      %v6822 = vsel %vm763, %v6752, %v6821
      %6823 = vst [vmem:[%s6785 + $0x2c] sm:$0x1] %v6822
      %v6824 = vld [vmem:[%s6785 + $0x30] sm:$0xf]
      %v6825 = vsel %vm6787, %v6759, %v6824
      %6826 = vst [vmem:[%s6785 + $0x30] sm:$0xf] %v6825
      %v6827 = vld [vmem:[%s6785 + $0x34] sm:$0x1]
      %v6828 = vsel %vm763, %v6760, %v6827
      %6829 = vst [vmem:[%s6785 + $0x34] sm:$0x1] %v6828
      %v6830 = vld [vmem:[%s6785 + $0x38] sm:$0xf]
      %v6831 = vsel %vm6787, %v6767, %v6830
      %6832 = vst [vmem:[%s6785 + $0x38] sm:$0xf] %v6831
      %v6833 = vld [vmem:[%s6785 + $0x3c] sm:$0x1]
      %v6834 = vsel %vm763, %v6768, %v6833
      %6835 = vst [vmem:[%s6785 + $0x3c] sm:$0x1] %v6834
      %v6836 = vld [vmem:[#allocation4] sm:$0xf]
      %v6837 = vld [vmem:[#allocation4 + $0x8] sm:$0xf]
      %v6838 = vld [vmem:[#allocation4 + $0x10] sm:$0xf]
      %v6839 = vld [vmem:[#allocation4 + $0x18] sm:$0xf]
      %v6840 = vld [vmem:[#allocation4 + $0x20] sm:$0xf]
      %v6841 = vld [vmem:[#allocation4 + $0x28] sm:$0xf]
      %v6842 = vld [vmem:[#allocation4 + $0x30] sm:$0xf]
      %v6843 = vld [vmem:[#allocation4 + $0x38] sm:$0xf]
      %6844 = vst.msk [vmem:[#allocation5] sm:$0xf] %vm755, %v6836
      %6845 = vst.msk [vmem:[#allocation5 + $0x4] sm:$0xf] %vm755, %v6837
      %6846 = vst.msk [vmem:[#allocation5 + $0x8] sm:$0xf] %vm755, %v6838
      %6847 = vst.msk [vmem:[#allocation5 + $0xc] sm:$0xf] %vm755, %v6839
      %6848 = vst.msk [vmem:[#allocation5 + $0x10] sm:$0xf] %vm755, %v6840
      %6849 = vst.msk [vmem:[#allocation5 + $0x14] sm:$0xf] %vm755, %v6841
      %6850 = vst.msk [vmem:[#allocation5 + $0x18] sm:$0xf] %vm755, %v6842
      %6851 = vst.msk [vmem:[#allocation5 + $0x1c] sm:$0xf] %vm755, %v6843
      %v6852 = vld [vmem:[#allocation4] sm:$0xf]
      %v6853 = vld [vmem:[#allocation4 + $0x4] sm:$0x1]
      %v6854 = vld [vmem:[#allocation4 + $0x8] sm:$0xf]
      %v6855 = vld [vmem:[#allocation4 + $0xc] sm:$0x1]
      %v6856 = vld [vmem:[#allocation4 + $0x10] sm:$0xf]
      %v6857 = vld [vmem:[#allocation4 + $0x14] sm:$0x1]
      %v6858 = vld [vmem:[#allocation4 + $0x18] sm:$0xf]
      %v6859 = vld [vmem:[#allocation4 + $0x1c] sm:$0x1]
      %v6860 = vld [vmem:[#allocation4 + $0x20] sm:$0xf]
      %v6861 = vld [vmem:[#allocation4 + $0x24] sm:$0x1]
      %v6862 = vld [vmem:[#allocation4 + $0x28] sm:$0xf]
      %v6863 = vld [vmem:[#allocation4 + $0x2c] sm:$0x1]
      %v6864 = vld [vmem:[#allocation4 + $0x30] sm:$0xf]
      %v6865 = vld [vmem:[#allocation4 + $0x34] sm:$0x1]
      %v6866 = vld [vmem:[#allocation4 + $0x38] sm:$0xf]
      %v6867 = vld [vmem:[#allocation4 + $0x3c] sm:$0x1]
      %v6869 = vshrl.u32 %v6852, 16
      %v6871 = vrot.slane %v6869, 4
      %v6872 = vshll.u32 %v6852, 16
      %v6874 = vrot.slane %v6872, 5
      %v6875 = vor.u32 %v6871, %v6874
      %v6876 = vrot.slane %v6875, 4
      %v6878 = vshll.u32 %v6853, 16
      %v6880 = vrot.slane %v6878, 5
      %v6881 = vsel %vm1649, %v6876, %v6880
      %v6883 = vshrl.u32 %v6854, 16
      %v6885 = vrot.slane %v6883, 4
      %v6886 = vshll.u32 %v6854, 16
      %v6888 = vrot.slane %v6886, 5
      %v6889 = vor.u32 %v6885, %v6888
      %v6890 = vrot.slane %v6889, 4
      %v6892 = vshll.u32 %v6855, 16
      %v6894 = vrot.slane %v6892, 5
      %v6895 = vsel %vm1649, %v6890, %v6894
      %v6897 = vshrl.u32 %v6856, 16
      %v6899 = vrot.slane %v6897, 4
      %v6900 = vshll.u32 %v6856, 16
      %v6902 = vrot.slane %v6900, 5
      %v6903 = vor.u32 %v6899, %v6902
      %v6904 = vrot.slane %v6903, 4
      %v6906 = vshll.u32 %v6857, 16
      %v6908 = vrot.slane %v6906, 5
      %v6909 = vsel %vm1649, %v6904, %v6908
      %v6911 = vshrl.u32 %v6858, 16
      %v6913 = vrot.slane %v6911, 4
      %v6914 = vshll.u32 %v6858, 16
      %v6916 = vrot.slane %v6914, 5
      %v6917 = vor.u32 %v6913, %v6916
      %v6918 = vrot.slane %v6917, 4
      %v6920 = vshll.u32 %v6859, 16
      %v6922 = vrot.slane %v6920, 5
      %v6923 = vsel %vm1649, %v6918, %v6922
      %v6925 = vshrl.u32 %v6860, 16
      %v6927 = vrot.slane %v6925, 4
      %v6928 = vshll.u32 %v6860, 16
      %v6930 = vrot.slane %v6928, 5
      %v6931 = vor.u32 %v6927, %v6930
      %v6932 = vrot.slane %v6931, 4
      %v6934 = vshll.u32 %v6861, 16
      %v6936 = vrot.slane %v6934, 5
      %v6937 = vsel %vm1649, %v6932, %v6936
      %v6939 = vshrl.u32 %v6862, 16
      %v6941 = vrot.slane %v6939, 4
      %v6942 = vshll.u32 %v6862, 16
      %v6944 = vrot.slane %v6942, 5
      %v6945 = vor.u32 %v6941, %v6944
      %v6946 = vrot.slane %v6945, 4
      %v6948 = vshll.u32 %v6863, 16
      %v6950 = vrot.slane %v6948, 5
      %v6951 = vsel %vm1649, %v6946, %v6950
      %v6953 = vshrl.u32 %v6864, 16
      %v6955 = vrot.slane %v6953, 4
      %v6956 = vshll.u32 %v6864, 16
      %v6958 = vrot.slane %v6956, 5
      %v6959 = vor.u32 %v6955, %v6958
      %v6960 = vrot.slane %v6959, 4
      %v6962 = vshll.u32 %v6865, 16
      %v6964 = vrot.slane %v6962, 5
      %v6965 = vsel %vm1649, %v6960, %v6964
      %v6967 = vshrl.u32 %v6866, 16
      %v6969 = vrot.slane %v6967, 4
      %v6970 = vshll.u32 %v6866, 16
      %v6972 = vrot.slane %v6970, 5
      %v6973 = vor.u32 %v6969, %v6972
      %v6974 = vrot.slane %v6973, 4
      %v6976 = vshll.u32 %v6867, 16
      %v6978 = vrot.slane %v6976, 5
      %v6979 = vsel %vm1649, %v6974, %v6978
      %6980 = vrot.lane.b32.xlu0 %v6881, 6
      %v6981 = vpop.permute.xlu0 %6980
      %6982 = vrot.lane.b32.xlu0 %v6895, 6
      %v6983 = vpop.permute.xlu0 %6982
      %6984 = vrot.lane.b32.xlu0 %v6909, 6
      %v6985 = vpop.permute.xlu0 %6984
      %6986 = vrot.lane.b32.xlu0 %v6923, 6
      %v6987 = vpop.permute.xlu0 %6986
      %6988 = vrot.lane.b32.xlu0 %v6937, 6
      %v6989 = vpop.permute.xlu0 %6988
      %6990 = vrot.lane.b32.xlu0 %v6951, 6
      %v6991 = vpop.permute.xlu0 %6990
      %6992 = vrot.lane.b32.xlu0 %v6965, 6
      %v6993 = vpop.permute.xlu0 %6992
      %6994 = vrot.lane.b32.xlu0 %v6979, 6
      %v6995 = vpop.permute.xlu0 %6994
      %vm7004 = vcmask 93232
      %7005 = vst.msk [vmem:[#allocation5] sm:$0xf] %vm7004, %v6981
      %7006 = vst.msk [vmem:[#allocation5 + $0x4] sm:$0xf] %vm7004, %v6983
      %7007 = vst.msk [vmem:[#allocation5 + $0x8] sm:$0xf] %vm7004, %v6985
      %7008 = vst.msk [vmem:[#allocation5 + $0xc] sm:$0xf] %vm7004, %v6987
      %7009 = vst.msk [vmem:[#allocation5 + $0x10] sm:$0xf] %vm7004, %v6989
      %7010 = vst.msk [vmem:[#allocation5 + $0x14] sm:$0xf] %vm7004, %v6991
      %7011 = vst.msk [vmem:[#allocation5 + $0x18] sm:$0xf] %vm7004, %v6993
      %7012 = vst.msk [vmem:[#allocation5 + $0x1c] sm:$0xf] %vm7004, %v6995
      %v7013 = vld [vmem:[#allocation4] sm:$0xe]
      %v7014 = vld [vmem:[#allocation4 + $0x4] sm:$0x1]
      %v7015 = vld [vmem:[#allocation4 + $0x8] sm:$0xe]
      %v7016 = vld [vmem:[#allocation4 + $0xc] sm:$0x1]
      %v7017 = vld [vmem:[#allocation4 + $0x10] sm:$0xe]
      %v7018 = vld [vmem:[#allocation4 + $0x14] sm:$0x1]
      %v7019 = vld [vmem:[#allocation4 + $0x18] sm:$0xe]
      %v7020 = vld [vmem:[#allocation4 + $0x1c] sm:$0x1]
      %v7021 = vld [vmem:[#allocation4 + $0x20] sm:$0xe]
      %v7022 = vld [vmem:[#allocation4 + $0x24] sm:$0x1]
      %v7023 = vld [vmem:[#allocation4 + $0x28] sm:$0xe]
      %v7024 = vld [vmem:[#allocation4 + $0x2c] sm:$0x1]
      %v7025 = vld [vmem:[#allocation4 + $0x30] sm:$0xe]
      %v7026 = vld [vmem:[#allocation4 + $0x34] sm:$0x1]
      %v7027 = vld [vmem:[#allocation4 + $0x38] sm:$0xe]
      %v7028 = vld [vmem:[#allocation4 + $0x3c] sm:$0x1]
      %v7045 = vrot.slane %v7013, 5
      %v7046 = vrot.slane %v7045, 4
      %v7047 = vrot.slane %v7014, 5
      %v7048 = vsel %vm3037, %v7046, %v7047
      %v7049 = vrot.slane %v7015, 5
      %v7050 = vrot.slane %v7049, 4
      %v7051 = vrot.slane %v7016, 5
      %v7052 = vsel %vm3037, %v7050, %v7051
      %v7053 = vrot.slane %v7017, 5
      %v7054 = vrot.slane %v7053, 4
      %v7055 = vrot.slane %v7018, 5
      %v7056 = vsel %vm3037, %v7054, %v7055
      %v7057 = vrot.slane %v7019, 5
      %v7058 = vrot.slane %v7057, 4
      %v7059 = vrot.slane %v7020, 5
      %v7060 = vsel %vm3037, %v7058, %v7059
      %v7061 = vrot.slane %v7021, 5
      %v7062 = vrot.slane %v7061, 4
      %v7063 = vrot.slane %v7022, 5
      %v7064 = vsel %vm3037, %v7062, %v7063
      %v7065 = vrot.slane %v7023, 5
      %v7066 = vrot.slane %v7065, 4
      %v7067 = vrot.slane %v7024, 5
      %v7068 = vsel %vm3037, %v7066, %v7067
      %v7069 = vrot.slane %v7025, 5
      %v7070 = vrot.slane %v7069, 4
      %v7071 = vrot.slane %v7026, 5
      %v7072 = vsel %vm3037, %v7070, %v7071
      %v7073 = vrot.slane %v7027, 5
      %v7074 = vrot.slane %v7073, 4
      %v7075 = vrot.slane %v7028, 5
      %v7076 = vsel %vm3037, %v7074, %v7075
      %7077 = vrot.lane.b32.xlu0 %v7048, 12
      %v7078 = vpop.permute.xlu0 %7077
      %7079 = vrot.lane.b32.xlu0 %v7052, 12
      %v7080 = vpop.permute.xlu0 %7079
      %7081 = vrot.lane.b32.xlu0 %v7056, 12
      %v7082 = vpop.permute.xlu0 %7081
      %7083 = vrot.lane.b32.xlu0 %v7060, 12
      %v7084 = vpop.permute.xlu0 %7083
      %7085 = vrot.lane.b32.xlu0 %v7064, 12
      %v7086 = vpop.permute.xlu0 %7085
      %7087 = vrot.lane.b32.xlu0 %v7068, 12
      %v7088 = vpop.permute.xlu0 %7087
      %7089 = vrot.lane.b32.xlu0 %v7072, 12
      %v7090 = vpop.permute.xlu0 %7089
      %7091 = vrot.lane.b32.xlu0 %v7076, 12
      %v7092 = vpop.permute.xlu0 %7091
      %vm7101 = vcmask 142432
      %7102 = vst.msk [vmem:[#allocation5] sm:$0xf] %vm7101, %v7078
      %7103 = vst.msk [vmem:[#allocation5 + $0x4] sm:$0xf] %vm7101, %v7080
      %7104 = vst.msk [vmem:[#allocation5 + $0x8] sm:$0xf] %vm7101, %v7082
      %7105 = vst.msk [vmem:[#allocation5 + $0xc] sm:$0xf] %vm7101, %v7084
      %7106 = vst.msk [vmem:[#allocation5 + $0x10] sm:$0xf] %vm7101, %v7086
      %7107 = vst.msk [vmem:[#allocation5 + $0x14] sm:$0xf] %vm7101, %v7088
      %7108 = vst.msk [vmem:[#allocation5 + $0x18] sm:$0xf] %vm7101, %v7090
      %7109 = vst.msk [vmem:[#allocation5 + $0x1c] sm:$0xf] %vm7101, %v7092
      %v7110 = vld [vmem:[%s6785] sm:$0xf]
      %v7111 = vld [vmem:[%s6785 + $0x8] sm:$0xf]
      %v7112 = vld [vmem:[%s6785 + $0x10] sm:$0xf]
      %v7113 = vld [vmem:[%s6785 + $0x18] sm:$0xf]
      %v7114 = vld [vmem:[%s6785 + $0x20] sm:$0xf]
      %v7115 = vld [vmem:[%s6785 + $0x28] sm:$0xf]
      %v7116 = vld [vmem:[%s6785 + $0x30] sm:$0xf]
      %v7117 = vld [vmem:[%s6785 + $0x38] sm:$0xf]
      %7126 = vrot.lane.b32.xlu0 %v7110, 18
      %v7127 = vpop.permute.xlu0 %7126
      %7128 = vrot.lane.b32.xlu0 %v7111, 18
      %v7129 = vpop.permute.xlu0 %7128
      %7130 = vrot.lane.b32.xlu0 %v7112, 18
      %v7131 = vpop.permute.xlu0 %7130
      %7132 = vrot.lane.b32.xlu0 %v7113, 18
      %v7133 = vpop.permute.xlu0 %7132
      %7134 = vrot.lane.b32.xlu0 %v7114, 18
      %v7135 = vpop.permute.xlu0 %7134
      %7136 = vrot.lane.b32.xlu0 %v7115, 18
      %v7137 = vpop.permute.xlu0 %7136
      %7138 = vrot.lane.b32.xlu0 %v7116, 18
      %v7139 = vpop.permute.xlu0 %7138
      %7140 = vrot.lane.b32.xlu0 %v7117, 18
      %v7141 = vpop.permute.xlu0 %7140
      %vm7150 = vcmask 191632
      %7151 = vst.msk [vmem:[#allocation5] sm:$0xf] %vm7150, %v7127
      %7152 = vst.msk [vmem:[#allocation5 + $0x4] sm:$0xf] %vm7150, %v7129
      %7153 = vst.msk [vmem:[#allocation5 + $0x8] sm:$0xf] %vm7150, %v7131
      %7154 = vst.msk [vmem:[#allocation5 + $0xc] sm:$0xf] %vm7150, %v7133
      %7155 = vst.msk [vmem:[#allocation5 + $0x10] sm:$0xf] %vm7150, %v7135
      %7156 = vst.msk [vmem:[#allocation5 + $0x14] sm:$0xf] %vm7150, %v7137
      %7157 = vst.msk [vmem:[#allocation5 + $0x18] sm:$0xf] %vm7150, %v7139
      %7158 = vst.msk [vmem:[#allocation5 + $0x1c] sm:$0xf] %vm7150, %v7141
      %v7159 = vld [vmem:[%s6785] sm:$0xf]
      %v7160 = vld [vmem:[%s6785 + $0x4] sm:$0x1]
      %v7161 = vld [vmem:[%s6785 + $0x8] sm:$0xf]
      %v7162 = vld [vmem:[%s6785 + $0xc] sm:$0x1]
      %v7163 = vld [vmem:[%s6785 + $0x10] sm:$0xf]
      %v7164 = vld [vmem:[%s6785 + $0x14] sm:$0x1]
      %v7165 = vld [vmem:[%s6785 + $0x18] sm:$0xf]
      %v7166 = vld [vmem:[%s6785 + $0x1c] sm:$0x1]
      %v7167 = vld [vmem:[%s6785 + $0x20] sm:$0xf]
      %v7168 = vld [vmem:[%s6785 + $0x24] sm:$0x1]
      %v7169 = vld [vmem:[%s6785 + $0x28] sm:$0xf]
      %v7170 = vld [vmem:[%s6785 + $0x2c] sm:$0x1]
      %v7171 = vld [vmem:[%s6785 + $0x30] sm:$0xf]
      %v7172 = vld [vmem:[%s6785 + $0x34] sm:$0x1]
      %v7173 = vld [vmem:[%s6785 + $0x38] sm:$0xf]
      %v7174 = vld [vmem:[%s6785 + $0x3c] sm:$0x1]
      %v7176 = vshrl.u32 %v7159, 16
      %v7178 = vrot.slane %v7176, 4
      %v7179 = vshll.u32 %v7159, 16
      %v7181 = vrot.slane %v7179, 5
      %v7182 = vor.u32 %v7178, %v7181
      %v7183 = vrot.slane %v7182, 4
      %v7185 = vshll.u32 %v7160, 16
      %v7187 = vrot.slane %v7185, 5
      %v7188 = vsel %vm1649, %v7183, %v7187
      %v7190 = vshrl.u32 %v7161, 16
      %v7192 = vrot.slane %v7190, 4
      %v7193 = vshll.u32 %v7161, 16
      %v7195 = vrot.slane %v7193, 5
      %v7196 = vor.u32 %v7192, %v7195
      %v7197 = vrot.slane %v7196, 4
      %v7199 = vshll.u32 %v7162, 16
      %v7201 = vrot.slane %v7199, 5
      %v7202 = vsel %vm1649, %v7197, %v7201
      %v7204 = vshrl.u32 %v7163, 16
      %v7206 = vrot.slane %v7204, 4
      %v7207 = vshll.u32 %v7163, 16
      %v7209 = vrot.slane %v7207, 5
      %v7210 = vor.u32 %v7206, %v7209
      %v7211 = vrot.slane %v7210, 4
      %v7213 = vshll.u32 %v7164, 16
      %v7215 = vrot.slane %v7213, 5
      %v7216 = vsel %vm1649, %v7211, %v7215
      %v7218 = vshrl.u32 %v7165, 16
      %v7220 = vrot.slane %v7218, 4
      %v7221 = vshll.u32 %v7165, 16
      %v7223 = vrot.slane %v7221, 5
      %v7224 = vor.u32 %v7220, %v7223
      %v7225 = vrot.slane %v7224, 4
      %v7227 = vshll.u32 %v7166, 16
      %v7229 = vrot.slane %v7227, 5
      %v7230 = vsel %vm1649, %v7225, %v7229
      %v7232 = vshrl.u32 %v7167, 16
      %v7234 = vrot.slane %v7232, 4
      %v7235 = vshll.u32 %v7167, 16
      %v7237 = vrot.slane %v7235, 5
      %v7238 = vor.u32 %v7234, %v7237
      %v7239 = vrot.slane %v7238, 4
      %v7241 = vshll.u32 %v7168, 16
      %v7243 = vrot.slane %v7241, 5
      %v7244 = vsel %vm1649, %v7239, %v7243
      %v7246 = vshrl.u32 %v7169, 16
      %v7248 = vrot.slane %v7246, 4
      %v7249 = vshll.u32 %v7169, 16
      %v7251 = vrot.slane %v7249, 5
      %v7252 = vor.u32 %v7248, %v7251
      %v7253 = vrot.slane %v7252, 4
      %v7255 = vshll.u32 %v7170, 16
      %v7257 = vrot.slane %v7255, 5
      %v7258 = vsel %vm1649, %v7253, %v7257
      %v7260 = vshrl.u32 %v7171, 16
      %v7262 = vrot.slane %v7260, 4
      %v7263 = vshll.u32 %v7171, 16
      %v7265 = vrot.slane %v7263, 5
      %v7266 = vor.u32 %v7262, %v7265
      %v7267 = vrot.slane %v7266, 4
      %v7269 = vshll.u32 %v7172, 16
      %v7271 = vrot.slane %v7269, 5
      %v7272 = vsel %vm1649, %v7267, %v7271
      %v7274 = vshrl.u32 %v7173, 16
      %v7276 = vrot.slane %v7274, 4
      %v7277 = vshll.u32 %v7173, 16
      %v7279 = vrot.slane %v7277, 5
      %v7280 = vor.u32 %v7276, %v7279
      %v7281 = vrot.slane %v7280, 4
      %v7283 = vshll.u32 %v7174, 16
      %v7285 = vrot.slane %v7283, 5
      %v7286 = vsel %vm1649, %v7281, %v7285
      %7287 = vrot.lane.b32.xlu0 %v7188, 24
      %v7288 = vpop.permute.xlu0 %7287
      %7289 = vrot.lane.b32.xlu0 %v7202, 24
      %v7290 = vpop.permute.xlu0 %7289
      %7291 = vrot.lane.b32.xlu0 %v7216, 24
      %v7292 = vpop.permute.xlu0 %7291
      %7293 = vrot.lane.b32.xlu0 %v7230, 24
      %v7294 = vpop.permute.xlu0 %7293
      %7295 = vrot.lane.b32.xlu0 %v7244, 24
      %v7296 = vpop.permute.xlu0 %7295
      %7297 = vrot.lane.b32.xlu0 %v7258, 24
      %v7298 = vpop.permute.xlu0 %7297
      %7299 = vrot.lane.b32.xlu0 %v7272, 24
      %v7300 = vpop.permute.xlu0 %7299
      %7301 = vrot.lane.b32.xlu0 %v7286, 24
      %v7302 = vpop.permute.xlu0 %7301
      %vm7311 = vcmask 240832
      %7312 = vst.msk [vmem:[#allocation5] sm:$0xf] %vm7311, %v7288
      %7313 = vst.msk [vmem:[#allocation5 + $0x4] sm:$0xf] %vm7311, %v7290
      %7314 = vst.msk [vmem:[#allocation5 + $0x8] sm:$0xf] %vm7311, %v7292
      %7315 = vst.msk [vmem:[#allocation5 + $0xc] sm:$0xf] %vm7311, %v7294
      %7316 = vst.msk [vmem:[#allocation5 + $0x10] sm:$0xf] %vm7311, %v7296
      %7317 = vst.msk [vmem:[#allocation5 + $0x14] sm:$0xf] %vm7311, %v7298
      %7318 = vst.msk [vmem:[#allocation5 + $0x18] sm:$0xf] %vm7311, %v7300
      %7319 = vst.msk [vmem:[#allocation5 + $0x1c] sm:$0xf] %vm7311, %v7302
      %v7320 = vld [vmem:[%s6785] sm:$0xe]
      %v7321 = vld [vmem:[%s6785 + $0x4] sm:$0x1]
      %v7322 = vld [vmem:[%s6785 + $0x8] sm:$0xe]
      %v7323 = vld [vmem:[%s6785 + $0xc] sm:$0x1]
      %v7324 = vld [vmem:[%s6785 + $0x10] sm:$0xe]
      %v7325 = vld [vmem:[%s6785 + $0x14] sm:$0x1]
      %v7326 = vld [vmem:[%s6785 + $0x18] sm:$0xe]
      %v7327 = vld [vmem:[%s6785 + $0x1c] sm:$0x1]
      %v7328 = vld [vmem:[%s6785 + $0x20] sm:$0xe]
      %v7329 = vld [vmem:[%s6785 + $0x24] sm:$0x1]
      %v7330 = vld [vmem:[%s6785 + $0x28] sm:$0xe]
      %v7331 = vld [vmem:[%s6785 + $0x2c] sm:$0x1]
      %v7332 = vld [vmem:[%s6785 + $0x30] sm:$0xe]
      %v7333 = vld [vmem:[%s6785 + $0x34] sm:$0x1]
      %v7334 = vld [vmem:[%s6785 + $0x38] sm:$0xe]
      %v7335 = vld [vmem:[%s6785 + $0x3c] sm:$0x1]
      %v7352 = vrot.slane %v7320, 5
      %v7353 = vrot.slane %v7352, 4
      %v7354 = vrot.slane %v7321, 5
      %v7355 = vsel %vm3037, %v7353, %v7354
      %v7356 = vrot.slane %v7322, 5
      %v7357 = vrot.slane %v7356, 4
      %v7358 = vrot.slane %v7323, 5
      %v7359 = vsel %vm3037, %v7357, %v7358
      %v7360 = vrot.slane %v7324, 5
      %v7361 = vrot.slane %v7360, 4
      %v7362 = vrot.slane %v7325, 5
      %v7363 = vsel %vm3037, %v7361, %v7362
      %v7364 = vrot.slane %v7326, 5
      %v7365 = vrot.slane %v7364, 4
      %v7366 = vrot.slane %v7327, 5
      %v7367 = vsel %vm3037, %v7365, %v7366
      %v7368 = vrot.slane %v7328, 5
      %v7369 = vrot.slane %v7368, 4
      %v7370 = vrot.slane %v7329, 5
      %v7371 = vsel %vm3037, %v7369, %v7370
      %v7372 = vrot.slane %v7330, 5
      %v7373 = vrot.slane %v7372, 4
      %v7374 = vrot.slane %v7331, 5
      %v7375 = vsel %vm3037, %v7373, %v7374
      %v7376 = vrot.slane %v7332, 5
      %v7377 = vrot.slane %v7376, 4
      %v7378 = vrot.slane %v7333, 5
      %v7379 = vsel %vm3037, %v7377, %v7378
      %v7380 = vrot.slane %v7334, 5
      %v7381 = vrot.slane %v7380, 4
      %v7382 = vrot.slane %v7335, 5
      %v7383 = vsel %vm3037, %v7381, %v7382
      %7384 = vrot.lane.b32.xlu0 %v7355, 30
      %v7385 = vpop.permute.xlu0 %7384
      %7386 = vrot.lane.b32.xlu0 %v7359, 30
      %v7387 = vpop.permute.xlu0 %7386
      %7388 = vrot.lane.b32.xlu0 %v7363, 30
      %v7389 = vpop.permute.xlu0 %7388
      %7390 = vrot.lane.b32.xlu0 %v7367, 30
      %v7391 = vpop.permute.xlu0 %7390
      %7392 = vrot.lane.b32.xlu0 %v7371, 30
      %v7393 = vpop.permute.xlu0 %7392
      %7394 = vrot.lane.b32.xlu0 %v7375, 30
      %v7395 = vpop.permute.xlu0 %7394
      %7396 = vrot.lane.b32.xlu0 %v7379, 30
      %v7397 = vpop.permute.xlu0 %7396
      %7398 = vrot.lane.b32.xlu0 %v7383, 30
      %v7399 = vpop.permute.xlu0 %7398
      %vm7408 = vcmask 290032
      %7409 = vst.msk [vmem:[#allocation5] sm:$0xf] %vm7408, %v7385
      %7410 = vst.msk [vmem:[#allocation5 + $0x4] sm:$0xf] %vm7408, %v7387
      %7411 = vst.msk [vmem:[#allocation5 + $0x8] sm:$0xf] %vm7408, %v7389
      %7412 = vst.msk [vmem:[#allocation5 + $0xc] sm:$0xf] %vm7408, %v7391
      %7413 = vst.msk [vmem:[#allocation5 + $0x10] sm:$0xf] %vm7408, %v7393
      %7414 = vst.msk [vmem:[#allocation5 + $0x14] sm:$0xf] %vm7408, %v7395
      %7415 = vst.msk [vmem:[#allocation5 + $0x18] sm:$0xf] %vm7408, %v7397
      %7416 = vst.msk [vmem:[#allocation5 + $0x1c] sm:$0xf] %vm7408, %v7399
      %s7417 = scalar_lea.vmem [#allocation4], 16
      %v7418 = vld [vmem:[%s7417] sm:$0xf]
      %v7419 = vld [vmem:[%s7417 + $0x8] sm:$0xf]
      %v7420 = vld [vmem:[%s7417 + $0x10] sm:$0xf]
      %v7421 = vld [vmem:[%s7417 + $0x18] sm:$0xf]
      %v7422 = vld [vmem:[%s7417 + $0x20] sm:$0xf]
      %v7423 = vld [vmem:[%s7417 + $0x28] sm:$0xf]
      %v7424 = vld [vmem:[%s7417 + $0x30] sm:$0xf]
      %v7425 = vld [vmem:[%s7417 + $0x38] sm:$0xf]
      %7434 = vrot.lane.b32.xlu0 %v7418, 36
      %v7435 = vpop.permute.xlu0 %7434
      %7436 = vrot.lane.b32.xlu0 %v7419, 36
      %v7437 = vpop.permute.xlu0 %7436
      %7438 = vrot.lane.b32.xlu0 %v7420, 36
      %v7439 = vpop.permute.xlu0 %7438
      %7440 = vrot.lane.b32.xlu0 %v7421, 36
      %v7441 = vpop.permute.xlu0 %7440
      %7442 = vrot.lane.b32.xlu0 %v7422, 36
      %v7443 = vpop.permute.xlu0 %7442
      %7444 = vrot.lane.b32.xlu0 %v7423, 36
      %v7445 = vpop.permute.xlu0 %7444
      %7446 = vrot.lane.b32.xlu0 %v7424, 36
      %v7447 = vpop.permute.xlu0 %7446
      %7448 = vrot.lane.b32.xlu0 %v7425, 36
      %v7449 = vpop.permute.xlu0 %7448
      %vm7458 = vcmask 339232
      %7459 = vst.msk [vmem:[#allocation5] sm:$0xf] %vm7458, %v7435
      %7460 = vst.msk [vmem:[#allocation5 + $0x4] sm:$0xf] %vm7458, %v7437
      %7461 = vst.msk [vmem:[#allocation5 + $0x8] sm:$0xf] %vm7458, %v7439
      %7462 = vst.msk [vmem:[#allocation5 + $0xc] sm:$0xf] %vm7458, %v7441
      %7463 = vst.msk [vmem:[#allocation5 + $0x10] sm:$0xf] %vm7458, %v7443
      %7464 = vst.msk [vmem:[#allocation5 + $0x14] sm:$0xf] %vm7458, %v7445
      %7465 = vst.msk [vmem:[#allocation5 + $0x18] sm:$0xf] %vm7458, %v7447
      %7466 = vst.msk [vmem:[#allocation5 + $0x1c] sm:$0xf] %vm7458, %v7449
      %v7467 = vld [vmem:[%s7417] sm:$0xf]
      %v7468 = vld [vmem:[%s7417 + $0x4] sm:$0x1]
      %v7469 = vld [vmem:[%s7417 + $0x8] sm:$0xf]
      %v7470 = vld [vmem:[%s7417 + $0xc] sm:$0x1]
      %v7471 = vld [vmem:[%s7417 + $0x10] sm:$0xf]
      %v7472 = vld [vmem:[%s7417 + $0x14] sm:$0x1]
      %v7473 = vld [vmem:[%s7417 + $0x18] sm:$0xf]
      %v7474 = vld [vmem:[%s7417 + $0x1c] sm:$0x1]
      %v7475 = vld [vmem:[%s7417 + $0x20] sm:$0xf]
      %v7476 = vld [vmem:[%s7417 + $0x24] sm:$0x1]
      %v7477 = vld [vmem:[%s7417 + $0x28] sm:$0xf]
      %v7478 = vld [vmem:[%s7417 + $0x2c] sm:$0x1]
      %v7479 = vld [vmem:[%s7417 + $0x30] sm:$0xf]
      %v7480 = vld [vmem:[%s7417 + $0x34] sm:$0x1]
      %v7481 = vld [vmem:[%s7417 + $0x38] sm:$0xf]
      %v7482 = vld [vmem:[%s7417 + $0x3c] sm:$0x1]
      %v7484 = vshrl.u32 %v7467, 16
      %v7486 = vrot.slane %v7484, 4
      %v7487 = vshll.u32 %v7467, 16
      %v7489 = vrot.slane %v7487, 5
      %v7490 = vor.u32 %v7486, %v7489
      %v7491 = vrot.slane %v7490, 4
      %v7493 = vshll.u32 %v7468, 16
      %v7495 = vrot.slane %v7493, 5
      %v7496 = vsel %vm1649, %v7491, %v7495
      %v7498 = vshrl.u32 %v7469, 16
      %v7500 = vrot.slane %v7498, 4
      %v7501 = vshll.u32 %v7469, 16
      %v7503 = vrot.slane %v7501, 5
      %v7504 = vor.u32 %v7500, %v7503
      %v7505 = vrot.slane %v7504, 4
      %v7507 = vshll.u32 %v7470, 16
      %v7509 = vrot.slane %v7507, 5
      %v7510 = vsel %vm1649, %v7505, %v7509
      %v7512 = vshrl.u32 %v7471, 16
      %v7514 = vrot.slane %v7512, 4
      %v7515 = vshll.u32 %v7471, 16
      %v7517 = vrot.slane %v7515, 5
      %v7518 = vor.u32 %v7514, %v7517
      %v7519 = vrot.slane %v7518, 4
      %v7521 = vshll.u32 %v7472, 16
      %v7523 = vrot.slane %v7521, 5
      %v7524 = vsel %vm1649, %v7519, %v7523
      %v7526 = vshrl.u32 %v7473, 16
      %v7528 = vrot.slane %v7526, 4
      %v7529 = vshll.u32 %v7473, 16
      %v7531 = vrot.slane %v7529, 5
      %v7532 = vor.u32 %v7528, %v7531
      %v7533 = vrot.slane %v7532, 4
      %v7535 = vshll.u32 %v7474, 16
      %v7537 = vrot.slane %v7535, 5
      %v7538 = vsel %vm1649, %v7533, %v7537
      %v7540 = vshrl.u32 %v7475, 16
      %v7542 = vrot.slane %v7540, 4
      %v7543 = vshll.u32 %v7475, 16
      %v7545 = vrot.slane %v7543, 5
      %v7546 = vor.u32 %v7542, %v7545
      %v7547 = vrot.slane %v7546, 4
      %v7549 = vshll.u32 %v7476, 16
      %v7551 = vrot.slane %v7549, 5
      %v7552 = vsel %vm1649, %v7547, %v7551
      %v7554 = vshrl.u32 %v7477, 16
      %v7556 = vrot.slane %v7554, 4
      %v7557 = vshll.u32 %v7477, 16
      %v7559 = vrot.slane %v7557, 5
      %v7560 = vor.u32 %v7556, %v7559
      %v7561 = vrot.slane %v7560, 4
      %v7563 = vshll.u32 %v7478, 16
      %v7565 = vrot.slane %v7563, 5
      %v7566 = vsel %vm1649, %v7561, %v7565
      %v7568 = vshrl.u32 %v7479, 16
      %v7570 = vrot.slane %v7568, 4
      %v7571 = vshll.u32 %v7479, 16
      %v7573 = vrot.slane %v7571, 5
      %v7574 = vor.u32 %v7570, %v7573
      %v7575 = vrot.slane %v7574, 4
      %v7577 = vshll.u32 %v7480, 16
      %v7579 = vrot.slane %v7577, 5
      %v7580 = vsel %vm1649, %v7575, %v7579
      %v7582 = vshrl.u32 %v7481, 16
      %v7584 = vrot.slane %v7582, 4
      %v7585 = vshll.u32 %v7481, 16
      %v7587 = vrot.slane %v7585, 5
      %v7588 = vor.u32 %v7584, %v7587
      %v7589 = vrot.slane %v7588, 4
      %v7591 = vshll.u32 %v7482, 16
      %v7593 = vrot.slane %v7591, 5
      %v7594 = vsel %vm1649, %v7589, %v7593
      %7595 = vrot.lane.b32.xlu0 %v7496, 42
      %v7596 = vpop.permute.xlu0 %7595
      %7597 = vrot.lane.b32.xlu0 %v7510, 42
      %v7598 = vpop.permute.xlu0 %7597
      %7599 = vrot.lane.b32.xlu0 %v7524, 42
      %v7600 = vpop.permute.xlu0 %7599
      %7601 = vrot.lane.b32.xlu0 %v7538, 42
      %v7602 = vpop.permute.xlu0 %7601
      %7603 = vrot.lane.b32.xlu0 %v7552, 42
      %v7604 = vpop.permute.xlu0 %7603
      %7605 = vrot.lane.b32.xlu0 %v7566, 42
      %v7606 = vpop.permute.xlu0 %7605
      %7607 = vrot.lane.b32.xlu0 %v7580, 42
      %v7608 = vpop.permute.xlu0 %7607
      %7609 = vrot.lane.b32.xlu0 %v7594, 42
      %v7610 = vpop.permute.xlu0 %7609
      %vm7619 = vcmask 388432
      %7620 = vst.msk [vmem:[#allocation5] sm:$0xf] %vm7619, %v7596
      %7621 = vst.msk [vmem:[#allocation5 + $0x4] sm:$0xf] %vm7619, %v7598
      %7622 = vst.msk [vmem:[#allocation5 + $0x8] sm:$0xf] %vm7619, %v7600
      %7623 = vst.msk [vmem:[#allocation5 + $0xc] sm:$0xf] %vm7619, %v7602
      %7624 = vst.msk [vmem:[#allocation5 + $0x10] sm:$0xf] %vm7619, %v7604
      %7625 = vst.msk [vmem:[#allocation5 + $0x14] sm:$0xf] %vm7619, %v7606
      %7626 = vst.msk [vmem:[#allocation5 + $0x18] sm:$0xf] %vm7619, %v7608
      %7627 = vst.msk [vmem:[#allocation5 + $0x1c] sm:$0xf] %vm7619, %v7610
      %v7628 = vld [vmem:[%s7417] sm:$0xe]
      %v7629 = vld [vmem:[%s7417 + $0x4] sm:$0x1]
      %v7630 = vld [vmem:[%s7417 + $0x8] sm:$0xe]
      %v7631 = vld [vmem:[%s7417 + $0xc] sm:$0x1]
      %v7632 = vld [vmem:[%s7417 + $0x10] sm:$0xe]
      %v7633 = vld [vmem:[%s7417 + $0x14] sm:$0x1]
      %v7634 = vld [vmem:[%s7417 + $0x18] sm:$0xe]
      %v7635 = vld [vmem:[%s7417 + $0x1c] sm:$0x1]
      %v7636 = vld [vmem:[%s7417 + $0x20] sm:$0xe]
      %v7637 = vld [vmem:[%s7417 + $0x24] sm:$0x1]
      %v7638 = vld [vmem:[%s7417 + $0x28] sm:$0xe]
      %v7639 = vld [vmem:[%s7417 + $0x2c] sm:$0x1]
      %v7640 = vld [vmem:[%s7417 + $0x30] sm:$0xe]
      %v7641 = vld [vmem:[%s7417 + $0x34] sm:$0x1]
      %v7642 = vld [vmem:[%s7417 + $0x38] sm:$0xe]
      %v7643 = vld [vmem:[%s7417 + $0x3c] sm:$0x1]
      %v7660 = vrot.slane %v7628, 5
      %v7661 = vrot.slane %v7660, 4
      %v7662 = vrot.slane %v7629, 5
      %v7663 = vsel %vm3037, %v7661, %v7662
      %v7664 = vrot.slane %v7630, 5
      %v7665 = vrot.slane %v7664, 4
      %v7666 = vrot.slane %v7631, 5
      %v7667 = vsel %vm3037, %v7665, %v7666
      %v7668 = vrot.slane %v7632, 5
      %v7669 = vrot.slane %v7668, 4
      %v7670 = vrot.slane %v7633, 5
      %v7671 = vsel %vm3037, %v7669, %v7670
      %v7672 = vrot.slane %v7634, 5
      %v7673 = vrot.slane %v7672, 4
      %v7674 = vrot.slane %v7635, 5
      %v7675 = vsel %vm3037, %v7673, %v7674
      %v7676 = vrot.slane %v7636, 5
      %v7677 = vrot.slane %v7676, 4
      %v7678 = vrot.slane %v7637, 5
      %v7679 = vsel %vm3037, %v7677, %v7678
      %v7680 = vrot.slane %v7638, 5
      %v7681 = vrot.slane %v7680, 4
      %v7682 = vrot.slane %v7639, 5
      %v7683 = vsel %vm3037, %v7681, %v7682
      %v7684 = vrot.slane %v7640, 5
      %v7685 = vrot.slane %v7684, 4
      %v7686 = vrot.slane %v7641, 5
      %v7687 = vsel %vm3037, %v7685, %v7686
      %v7688 = vrot.slane %v7642, 5
      %v7689 = vrot.slane %v7688, 4
      %v7690 = vrot.slane %v7643, 5
      %v7691 = vsel %vm3037, %v7689, %v7690
      %7692 = vrot.lane.b32.xlu0 %v7663, 48
      %v7693 = vpop.permute.xlu0 %7692
      %7694 = vrot.lane.b32.xlu0 %v7667, 48
      %v7695 = vpop.permute.xlu0 %7694
      %7696 = vrot.lane.b32.xlu0 %v7671, 48
      %v7697 = vpop.permute.xlu0 %7696
      %7698 = vrot.lane.b32.xlu0 %v7675, 48
      %v7699 = vpop.permute.xlu0 %7698
      %7700 = vrot.lane.b32.xlu0 %v7679, 48
      %v7701 = vpop.permute.xlu0 %7700
      %7702 = vrot.lane.b32.xlu0 %v7683, 48
      %v7703 = vpop.permute.xlu0 %7702
      %7704 = vrot.lane.b32.xlu0 %v7687, 48
      %v7705 = vpop.permute.xlu0 %7704
      %7706 = vrot.lane.b32.xlu0 %v7691, 48
      %v7707 = vpop.permute.xlu0 %7706
      %vm7716 = vcmask 437632
      %7717 = vst.msk [vmem:[#allocation5] sm:$0xf] %vm7716, %v7693
      %7718 = vst.msk [vmem:[#allocation5 + $0x4] sm:$0xf] %vm7716, %v7695
      %7719 = vst.msk [vmem:[#allocation5 + $0x8] sm:$0xf] %vm7716, %v7697
      %7720 = vst.msk [vmem:[#allocation5 + $0xc] sm:$0xf] %vm7716, %v7699
      %7721 = vst.msk [vmem:[#allocation5 + $0x10] sm:$0xf] %vm7716, %v7701
      %7722 = vst.msk [vmem:[#allocation5 + $0x14] sm:$0xf] %vm7716, %v7703
      %7723 = vst.msk [vmem:[#allocation5 + $0x18] sm:$0xf] %vm7716, %v7705
      %7724 = vst.msk [vmem:[#allocation5 + $0x1c] sm:$0xf] %vm7716, %v7707
      %v7725 = vld [vmem:[#allocation5] sm:$0xf]
      %v7726 = vld [vmem:[#allocation5 + $0x4] sm:$0xf]
      %v7727 = vld [vmem:[#allocation5 + $0x8] sm:$0xf]
      %v7728 = vld [vmem:[#allocation5 + $0xc] sm:$0xf]
      %v7729 = vld [vmem:[#allocation5 + $0x10] sm:$0xf]
      %v7730 = vld [vmem:[#allocation5 + $0x14] sm:$0xf]
      %v7731 = vld [vmem:[#allocation5 + $0x18] sm:$0xf]
      %v7732 = vld [vmem:[#allocation5 + $0x1c] sm:$0xf]
      %v7733 = vld [vmem:[%s10] sm:$0xf]
      %v7734 = vld [vmem:[%s10 + $0x4] sm:$0xf]
      %v7735 = vld [vmem:[%s10 + $0x8] sm:$0xf]
      %v7736 = vld [vmem:[%s10 + $0xc] sm:$0xf]
      %v7737 = vld [vmem:[%s10 + $0x10] sm:$0xf]
      %v7738 = vld [vmem:[%s10 + $0x14] sm:$0xf]
      %v7739 = vld [vmem:[%s10 + $0x18] sm:$0x7]
      %v7740 = vld [vmem:[%s11] sm:$0x1]
      %v7742 = vlaneseq
      %v7743 = vshrl.u32 %v7742, 7
      %v7744 = vsub.s32 0, %v7743
      %v7745 = vrot.slane %v7740, %v7744
      %v7755 = vunpack.c.l.b16 %v7725
      %v7756 = vunpack.c.l.b16 %v7726
      %v7757 = vunpack.c.l.b16 %v7727
      %v7758 = vunpack.c.l.b16 %v7728
      %v7759 = vunpack.c.l.b16 %v7729
      %v7760 = vunpack.c.l.b16 %v7730
      %v7761 = vunpack.c.l.b16 %v7731
      %v7762 = vunpack.c.l.b16 %v7732
      %v7763 = vpack.c.b16 %v7756, %v7755
      %v7764 = vpack.c.b16 %v7758, %v7757
      %v7765 = vpack.c.b16 %v7760, %v7759
      %v7766 = vpack.c.b16 %v7762, %v7761
      %v7774 = vunpack.c.l.b16 %v7733
      %v7775 = vunpack.c.l.b16 %v7734
      %v7776 = vunpack.c.l.b16 %v7735
      %v7777 = vunpack.c.l.b16 %v7736
      %v7778 = vunpack.c.l.b16 %v7737
      %v7779 = vunpack.c.l.b16 %v7738
      %v7780 = vunpack.c.l.b16 %v7739
      %v7781 = vpack.c.b16 %v7775, %v7774
      %v7782 = vpack.c.b16 %v7777, %v7776
      %v7783 = vpack.c.b16 %v7779, %v7778
      %v7784 = vpack.c.b16 %v7780, %v7780
      %vm7788 = vcmask 441344
      %v7790 = vsel %vm7788, %v7763, 0
      %v7793 = vsel %vm7788, %v7764, 0
      %v7796 = vsel %vm7788, %v7765, 0
      %v7799 = vsel %vm7788, %v7766, 0
      %vm7801 = vcmask 1042432
      %v7803 = vsel %vm7801, %v7784, 0
      %7805 = vmatprep.subr.bf16.mxu0 0
      %7806 = vmatpush1.bf16.msra.mxu0 0
      %7807 = vmatprep.subr.bf16.mxu0 0
      %7808 = vmatpush1.bf16.msra.mxu0 0
      %7809 = vmatprep.subr.bf16.mxu0 0
      %7810 = vmatpush1.bf16.msra.mxu0 0
      %7811 = vmatprep.subr.bf16.mxu0 0
      %7812 = vmatpush1.bf16.msra.mxu0 0
      %7813 = vmatprep.subr.bf16.mxu0 0
      %7814 = vmatpush1.bf16.msra.mxu0 %v7803
      %7815 = vmatprep.subr.bf16.mxu0 0
      %7816 = vmatpush1.bf16.msra.mxu0 %v7783
      %7817 = vmatprep.subr.bf16.mxu0 0
      %7818 = vmatpush1.bf16.msra.mxu0 %v7782
      %7819 = vmatprep.subr.bf16.mxu0 0
      %7820 = vmatpush1.bf16.msra.mxu0 %v7781
      %7821 = vmatprep.subr.bf16.mxu0 0
      %7822 = vmatpush2.bf16.msra.mxu0 0
      %7823 = vmatprep.subr.bf16.mxu0 0
      %7824 = vmatpush2.bf16.msra.mxu0 0
      %7825 = vmatprep.subr.bf16.mxu0 0
      %7826 = vmatpush2.bf16.msra.mxu0 0
      %7827 = vmatprep.subr.bf16.mxu0 0
      %7828 = vmatpush2.bf16.msra.mxu0 0
      %7829 = vmatprep.subr.bf16.mxu0 0
      %7830 = vmatpush2.bf16.msra.mxu0 0
      %7831 = vmatprep.subr.bf16.mxu0 0
      %7832 = vmatpush2.bf16.msra.mxu0 0
      %7833 = vmatprep.subr.bf16.mxu0 0
      %7834 = vmatpush2.bf16.msra.mxu0 0
      %7835 = vmatprep.subr.bf16.mxu0 0
      %7836 = vmatpush2.bf16.msra.mxu0 0
      %7837 = vmatprep.mubr.bf16.mxu0 0
      %7838 = vmatmul.mubr.bf16.gmra.mxu0 %v7790
      %v7839 = vpop.f32.mrf.mxu0
      %v7840 = vadd.f32 %v7745, %v7839
      %v7841 = vpop.f32.mrf.mxu0
      %v7842 = vpop.f32.mrf.mxu0
      %v7843 = vadd.f32 %v7745, %v7842
      %v7844 = vpop.f32.mrf.mxu0
      %7845 = vmatprep.mubr.bf16.mxu0 0
      %7846 = vmatmul.mubr.bf16.gmra.mxu0 %v7793
      %v7847 = vpop.f32.mrf.mxu0
      %v7848 = vadd.f32 %v7745, %v7847
      %v7849 = vpop.f32.mrf.mxu0
      %v7850 = vpop.f32.mrf.mxu0
      %v7851 = vadd.f32 %v7745, %v7850
      %v7852 = vpop.f32.mrf.mxu0
      %7853 = vmatprep.mubr.bf16.mxu0 0
      %7854 = vmatmul.mubr.bf16.gmra.mxu0 %v7796
      %v7855 = vpop.f32.mrf.mxu0
      %v7856 = vadd.f32 %v7745, %v7855
      %v7857 = vpop.f32.mrf.mxu0
      %v7858 = vpop.f32.mrf.mxu0
      %v7859 = vadd.f32 %v7745, %v7858
      %v7860 = vpop.f32.mrf.mxu0
      %7861 = vmatprep.mubr.bf16.mxu0 0
      %7862 = vmatmul.mubr.bf16.gmra.mxu0 %v7799
      %v7863 = vpop.f32.mrf.mxu0
      %v7864 = vadd.f32 %v7745, %v7863
      %v7865 = vpop.f32.mrf.mxu0
      %v7866 = vpop.f32.mrf.mxu0
      %v7867 = vadd.f32 %v7745, %v7866
      %v7868 = vpop.f32.mrf.mxu0
      %7869 = vdwg.mxu0
      %v7870 = vadd.f32 %v6619, %v7840
      %v7871 = vadd.f32 %v6620, %v7843
      %v7872 = vadd.f32 %v6621, %v7848
      %v7873 = vadd.f32 %v6622, %v7851
      %v7874 = vadd.f32 %v6623, %v7856
      %v7875 = vadd.f32 %v6624, %v7859
      %v7876 = vadd.f32 %v6625, %v7864
      %v7877 = vadd.f32 %v6626, %v7867
      %v7878 = vld [vmem:[%s6] sm:$0x1]
      %v7880 = vlaneseq
      %v7881 = vshrl.u32 %v7880, 7
      %v7882 = vsub.s32 0, %v7881
      %v7883 = vrot.slane %v7878, %v7882
      %v7885 = vmul.f32 %v7870, %v7883
      %v7886 = vmul.f32 %v7871, %v7883
      %v7887 = vmul.f32 %v7872, %v7883
      %v7888 = vmul.f32 %v7873, %v7883
      %v7889 = vmul.f32 %v7874, %v7883
      %v7890 = vmul.f32 %v7875, %v7883
      %v7891 = vmul.f32 %v7876, %v7883
      %v7892 = vmul.f32 %v7877, %v7883
      %v7893 = vld [vmem:[%s7] sm:$0x1]
      %v7895 = vlaneseq
      %v7896 = vshrl.u32 %v7895, 7
      %v7897 = vsub.s32 0, %v7896
      %v7898 = vrot.slane %v7893, %v7897
      %v7900 = vadd.f32 %v7885, %v7898
      %v7901 = vadd.f32 %v7886, %v7898
      %v7902 = vadd.f32 %v7887, %v7898
      %v7903 = vadd.f32 %v7888, %v7898
      %v7904 = vadd.f32 %v7889, %v7898
      %v7905 = vadd.f32 %v7890, %v7898
      %v7906 = vadd.f32 %v7891, %v7898
      %v7907 = vadd.f32 %v7892, %v7898
      %v7908 = vmax.f32 %v7900, 0.0
      %v7909 = vmax.f32 %v7901, 0.0
      %v7910 = vmax.f32 %v7902, 0.0
      %v7911 = vmax.f32 %v7903, 0.0
      %v7912 = vmax.f32 %v7904, 0.0
      %v7913 = vmax.f32 %v7905, 0.0
      %v7914 = vmax.f32 %v7906, 0.0
      %v7915 = vmax.f32 %v7907, 0.0
      %v7916 = vld [vmem:[%s12] sm:$0x1]
      %v7918 = vlaneseq
      %v7919 = vshrl.u32 %v7918, 7
      %v7920 = vsub.s32 0, %v7919
      %v7921 = vrot.slane %v7916, %v7920
      %v7923 = vmul.f32 %v7908, %v7921
      %v7924 = vmul.f32 %v7909, %v7921
      %v7925 = vmul.f32 %v7910, %v7921
      %v7926 = vmul.f32 %v7911, %v7921
      %v7927 = vmul.f32 %v7912, %v7921
      %v7928 = vmul.f32 %v7913, %v7921
      %v7929 = vmul.f32 %v7914, %v7921
      %v7930 = vmul.f32 %v7915, %v7921
      %vm7931 = vcmask 64512
      %v7932 = vsel %vm7931, %v7923, 0.0
      %7933 = vadd.xlane.f32.xlu0 %v7932
      %v7934 = vpop.xlane.xlu0 %7933
      %v7935 = vsel %vm7931, %v7924, 0.0
      %7936 = vadd.xlane.f32.xlu0 %v7935
      %v7937 = vpop.xlane.xlu0 %7936
      %v7938 = vsel %vm7931, %v7925, 0.0
      %7939 = vadd.xlane.f32.xlu0 %v7938
      %v7940 = vpop.xlane.xlu0 %7939
      %v7941 = vsel %vm7931, %v7926, 0.0
      %7942 = vadd.xlane.f32.xlu0 %v7941
      %v7943 = vpop.xlane.xlu0 %7942
      %v7944 = vsel %vm7931, %v7927, 0.0
      %7945 = vadd.xlane.f32.xlu0 %v7944
      %v7946 = vpop.xlane.xlu0 %7945
      %v7947 = vsel %vm7931, %v7928, 0.0
      %7948 = vadd.xlane.f32.xlu0 %v7947
      %v7949 = vpop.xlane.xlu0 %7948
      %v7950 = vsel %vm7931, %v7929, 0.0
      %7951 = vadd.xlane.f32.xlu0 %v7950
      %v7952 = vpop.xlane.xlu0 %7951
      %v7953 = vsel %vm7931, %v7930, 0.0
      %7954 = vadd.xlane.f32.xlu0 %v7953
      %v7955 = vpop.xlane.xlu0 %7954
      %v7956 = vld [vmem:[#allocation6] sm:$0x1]
      %v7958 = vlaneseq
      %v7959 = vshrl.u32 %v7958, 7
      %v7960 = vsub.s32 0, %v7959
      %v7961 = vrot.slane %v7956, %v7960
      %v7963 = vadd.f32 %v7934, %v7961
      %v7964 = vadd.f32 %v7937, %v7961
      %v7965 = vadd.f32 %v7940, %v7961
      %v7966 = vadd.f32 %v7943, %v7961
      %v7967 = vadd.f32 %v7946, %v7961
      %v7968 = vadd.f32 %v7949, %v7961
      %v7969 = vadd.f32 %v7952, %v7961
      %v7970 = vadd.f32 %v7955, %v7961
      %7972 = vset.pattern.permute.xlu0 0
      %7973 = vperm.xlu0 %7972, %v7963
      %v7974 = vpop.permute.xlu0 %7973
      %7977 = vset.pattern.permute.xlu0 0
      %7978 = vperm.xlu0 %7977, %v7964
      %v7979 = vpop.permute.xlu0 %7978
      %7982 = vset.pattern.permute.xlu0 0
      %7983 = vperm.xlu0 %7982, %v7965
      %v7984 = vpop.permute.xlu0 %7983
      %7987 = vset.pattern.permute.xlu0 0
      %7988 = vperm.xlu0 %7987, %v7966
      %v7989 = vpop.permute.xlu0 %7988
      %7992 = vset.pattern.permute.xlu0 0
      %7993 = vperm.xlu0 %7992, %v7967
      %v7994 = vpop.permute.xlu0 %7993
      %7997 = vset.pattern.permute.xlu0 0
      %7998 = vperm.xlu0 %7997, %v7968
      %v7999 = vpop.permute.xlu0 %7998
      %8002 = vset.pattern.permute.xlu0 0
      %8003 = vperm.xlu0 %8002, %v7969
      %v8004 = vpop.permute.xlu0 %8003
      %8007 = vset.pattern.permute.xlu0 0
      %8008 = vperm.xlu0 %8007, %v7970
      %v8009 = vpop.permute.xlu0 %8008
      %v8011 = vmul.f32 %v7974, %v6627
      %v8012 = vmul.f32 %v7979, %v6628
      %v8013 = vmul.f32 %v7984, %v6629
      %v8014 = vmul.f32 %v7989, %v6630
      %v8015 = vmul.f32 %v7994, %v6631
      %v8016 = vmul.f32 %v7999, %v6632
      %v8017 = vmul.f32 %v8004, %v6633
      %v8018 = vmul.f32 %v8009, %v6634
      %vm8019 = vcmask 48128
      %8020 = vst.msk [vmem:[%s489] sm:$0xff] %vm8019, %v8011
      %8021 = vst.msk [vmem:[%s489 + $0x8] sm:$0xff] %vm8019, %v8012
      %8022 = vst.msk [vmem:[%s489 + $0x10] sm:$0xff] %vm8019, %v8013
      %8023 = vst.msk [vmem:[%s489 + $0x18] sm:$0xff] %vm8019, %v8014
      %8024 = vst.msk [vmem:[%s489 + $0x20] sm:$0xff] %vm8019, %v8015
      %8025 = vst.msk [vmem:[%s489 + $0x28] sm:$0xff] %vm8019, %v8016
      %8026 = vst.msk [vmem:[%s489 + $0x30] sm:$0xff] %vm8019, %v8017
      %8027 = vst.msk [vmem:[%s489 + $0x38] sm:$0xff] %vm8019, %v8018
      %p8028 = scmp.lt.s32.totalorder %s27, 1
      %s8029 = scalar_select %p8028, %s27, 1
      %s8030 = smul.addr %s8029, 8
      %s8031 = smul.addr %s8030, 8
      %s8032 = scalar_lea.vmem %s14, %s8031
      // Predicated region
      $region77: #{tpu_custom_call.1} parent=75 // pred_check
        %p8033 = pneg %p349
      $region78: #{tpu_custom_call.1} parent=75 // pred_check_branch
        %8035 = sbr.rel (%p8033) target = $region80
      $region79: #{tpu_custom_call.1} parent=75 // pred_region
        _
      $region80: #{tpu_custom_call.1} parent=75 // pred_fallthru
        _
    $region76: #{tpu_custom_call.1} parent=5 // pred_fallthru
      _
    %p8036 = scmp.le.s32.totalorder 2, %s22
    // Predicated region
    $region81: #{tpu_custom_call.1} parent=5 // pred_check
      %p8037 = pneg %p8036
    $region82: #{tpu_custom_call.1} parent=5 // pred_check_branch
      %8039 = sbr.rel (%p8037) target = $region84
    $region83: #{tpu_custom_call.1} parent=5 // pred_region
      %s8040 = ssub.s32 %s22, 2
      // Predicated region
      $region85: #{tpu_custom_call.1} parent=83 // pred_check
        %p8041 = pneg %p355
      $region86: #{tpu_custom_call.1} parent=83 // pred_check_branch
        %8043 = sbr.rel (%p8041) target = $region88
      $region87: #{tpu_custom_call.1} parent=83 // pred_region
        %p8044 = scmp.lt.s32.totalorder %s28, 1
        %s8045 = scalar_select %p8044, %s28, 1
        %s8046 = smul.addr %s8045, 8
        %s8047 = smul.addr %s8046, 8
        %s8048 = scalar_lea.vmem %s14, %s8047
      $region88: #{tpu_custom_call.1} parent=83 // pred_fallthru
        _
    $region84: #{tpu_custom_call.1} parent=5 // pred_fallthru
      _
  $region6: #{tpu_custom_call.1} parent=0 // loop_footer
    %s26 = sadd.s32 1, %s22
  $region7: #{tpu_custom_call.1} parent=0 // loop_footer_branch
    %21 = sbr.rel target = $region3
  $region8: #{tpu_custom_call.1} parent=0 // loop_exit
    _

</llo_original>
